<compile_context>
chip_gen: v6e
topology: v6e:2x2x1
jax: 0.10.0
libtpu: 0.0.40
codegen_flags: <defaults>
</compile_context>

<pallas_src>
import functools
import math

import jax
import jax.numpy as jnp
from jax.experimental import pallas as pl
from jax.experimental.pallas import tpu as pltpu


# ----------------------------------------------------------------------------------
# Row-tiled Linear (+ optional ReLU) kernel.  Used for the im2col convolutions and
# for the hoisted GRU-input projection.  Output N padded to a multiple of 128 so
# stores are lane-dense (review item on masked vst).
# ----------------------------------------------------------------------------------
def _linear_kernel(x_ref, w_ref, b_ref, o_ref, *, relu):
    y = jnp.dot(x_ref[...], w_ref[...], preferred_element_type=jnp.float32) + b_ref[...]
    if relu:
        y = jnp.maximum(y, 0.0)
    o_ref[...] = y


def pallas_linear(x, w, b, *, relu, row_tile=256):
    m, kdim = x.shape
    n = w.shape[1]
    n_pad = ((n + 127) // 128) * 128
    mp = ((m + row_tile - 1) // row_tile) * row_tile
    xp = jnp.pad(x, ((0, mp - m), (0, 0))) if mp != m else x
    wp = jnp.pad(w, ((0, 0), (0, n_pad - n))) if n_pad != n else w
    bp = b.reshape(1, -1)
    if n_pad != n:
        bp = jnp.pad(bp, ((0, 0), (0, n_pad - n)))
    out = pl.pallas_call(
        functools.partial(_linear_kernel, relu=relu),
        out_shape=jax.ShapeDtypeStruct((mp, n_pad), jnp.float32),
        grid=(mp // row_tile,),
        in_specs=[pl.BlockSpec((row_tile, kdim), lambda i: (i, 0)),
                  pl.BlockSpec((kdim, n_pad), lambda i: (0, 0)),
                  pl.BlockSpec((1, n_pad), lambda i: (0, 0))],
        out_specs=pl.BlockSpec((row_tile, n_pad), lambda i: (i, 0)),
        compiler_params=pltpu.CompilerParams(dimension_semantics=("parallel",)),
    )(xp, wp, bp)
    return out[:m, :n]


# ----------------------------------------------------------------------------------
# Conv2d (NCHW) as im2col + Pallas matmul (ReLU follows each conv in cnn_map)
# ----------------------------------------------------------------------------------
# TODO(synk): the im2col patch is still assembled by XLA in HBM; fusing the 5x5
# window extraction into the kernel via extra grid axes would remove one copy.
def conv2d_pallas(x, w, b, *, stride, pad):
    B, Cin, H, W = x.shape
    Cout, _, KH, KW = w.shape
    Ho = (H + 2 * pad - KH) // stride + 1
    Wo = (W + 2 * pad - KW) // stride + 1
    xp = jnp.pad(x, ((0, 0), (0, 0), (pad, pad), (pad, pad)))
    cols = []
    for kh in range(KH):
        for kw in range(KW):
            cols.append(xp[:, :, kh:kh + stride * Ho:stride, kw:kw + stride * Wo:stride])
    patch = jnp.stack(cols, axis=0).reshape(KH, KW, B, Cin, Ho, Wo)
    # -> (B, Ho, Wo, Cin, KH, KW): flattened column index = c*KH*KW + kh*KW + kw
    patch = patch.transpose(2, 4, 5, 3, 0, 1).reshape(B * Ho * Wo, Cin * KH * KW)
    wt = w.reshape(Cout, Cin * KH * KW).T
    out = pallas_linear(patch, wt, b, relu=True)
    return out.reshape(B, Ho, Wo, Cout).transpose(0, 3, 1, 2)


# ----------------------------------------------------------------------------------
# Fused refinement recurrence kernel.
#   grid = (B, iterations, seq); hidden state carried in VMEM scratch per batch b.
#   Per grid step: social pooling contraction + fc_scf -> GRUCell (hidden-dependent
#   matmuls only; the feat/vel gate half is hoisted) -> fc_score accumulation; the
#   fc_dy epilogue and the score are written once at the final step.
# ----------------------------------------------------------------------------------
def _refine_step_kernel(hx0_ref, slab_ref,
                        wscf_ref, bscf_ref,        # fc_scf (permuted) (48,1728) (1,48)
                        wih2_ref,                  # W_ih rows 48:96   (48,144)
                        whh_ref, bhh_ref,          # GRU W_hh, b_hh    (48,144) (1,144)
                        wsc_ref, bsc_ref,          # fc_score          (1,48) (1,1)
                        wdy_ref, bdy_ref,          # fc_dy             (48,80) (1,80)
                        dy_ref, score_ref,         # outputs (Kn,80) (Kn,1)
                        hx_scr, sc_scr,            # scratch (Kn,48) (Kn,1)
                        *, gi_w, q_stride):
    it = pl.program_id(1)
    t = pl.program_id(2)
    n_iter = pl.num_programs(1)
    seq = pl.num_programs(2)

    # (re-)initialize the carried hidden state at the start of each batch element
    @pl.when(jnp.logical_and(it == 0, t == 0))
    def _():
        hx_scr[...] = hx0_ref[...]

    hxb = hx_scr[...]                              # (Kn, 48), row index = k*n + j
    slab = slab_ref[...]                           # (Kn, slab_w)
    gi_in = slab[:, 0:gi_w]                        # hoisted [feat|yfv]@W_ih[0:48] + b_ih

    # social pooling + fc_scf (algebraic refactor, no one-hot expansions):
    #   rhalf[m,j] = relu( sum_{c,q} pf[m, c*qs+q] * sum_h hid0[q,h]*wscf[c*48+h, j] + bscf[j] )
    # hid0 = k=0 hidden rows (matches the reference indexing hidden[b*n + other]);
    # padding rows (q >= n_agents) are multiplied by zero pooling columns.
    hid0 = hxb[0:q_stride, :]                                                   # (qs, 48)
    hq = jnp.dot(hid0, wscf_ref[...], preferred_element_type=jnp.float32)       # (qs, 1728)
    rpre = None
    for c in range(36):                            # static unrolled; tiny MXU dots
        pf_c = slab[:, gi_w + c * q_stride: gi_w + (c + 1) * q_stride]          # (Kn, qs)
        d = jnp.dot(pf_c, hq[:, c * 48:(c + 1) * 48],
                    preferred_element_type=jnp.float32)                         # (Kn, 48)
        rpre = d if rpre is None else rpre + d
    rhalf = jnp.maximum(rpre + bscf_ref[...], 0.0)

    # GRUCell(96,48): input x = [feat(32) | yfv(16) | rhalf(48)], gate order r|z|n.
    gi = gi_in + jnp.dot(rhalf, wih2_ref[...], preferred_element_type=jnp.float32)
    gh = jnp.dot(hxb, whh_ref[...], preferred_element_type=jnp.float32) + bhh_ref[...]
    r = jax.nn.sigmoid(gi[:, 0:48] + gh[:, 0:48])
    z = jax.nn.sigmoid(gi[:, 48:96] + gh[:, 48:96])
    g = jnp.tanh(gi[:, 96:144] + r * gh[:, 96:144])
    hnew = (1.0 - z) * g + z * hxb
    hx_scr[...] = hnew

    # fc_score(48 -> 1), accumulated in VMEM scratch over the timesteps of each
    # iteration (only the last iteration's sum is ever written out).
    s = jnp.sum(hnew * wsc_ref[...], axis=-1, keepdims=True) + bsc_ref[...]     # (Kn,1)

    @pl.when(t == 0)
    def _():
        sc_scr[...] = s

    @pl.when(t != 0)
    def _():
        sc_scr[...] = sc_scr[...] + s

    # epilogue, written once at the final step of the last iteration
    @pl.when(jnp.logical_and(it == n_iter - 1, t == seq - 1))
    def _():
        dy_ref[...] = jnp.maximum(
            jnp.dot(hnew, wdy_ref[...], preferred_element_type=jnp.float32) + bdy_ref[...],
            0.0)
        score_ref[...] = sc_scr[...]


def refine_recurrent(hx0, slab, p, *, q_stride, n_iter):
    seq, B, Kn, slab_w = slab.shape

    def const(shape):
        return pl.BlockSpec(shape, lambda b, i, t: (0, 0))

    dy, sc = pl.pallas_call(
        functools.partial(_refine_step_kernel, gi_w=144, q_stride=q_stride),
        out_shape=(jax.ShapeDtypeStruct((B, Kn, 80), jnp.float32),
                   jax.ShapeDtypeStruct((B, Kn, 1), jnp.float32)),
        grid=(B, n_iter, seq),
        in_specs=[
            pl.BlockSpec((None, Kn, 48), lambda b, i, t: (b, 0, 0)),                # hx0
            pl.BlockSpec((None, None, Kn, slab_w), lambda b, i, t: (t, b, 0, 0)),   # slab
            const((48, 36 * 48)), const((1, 48)),      # wscf_p, bscf
            const((48, 144)),                          # W_ih rows 48:96
            const((48, 144)), const((1, 144)),         # W_hh, b_hh
            const((1, 48)), const((1, 1)),             # fc_score
            const((48, 80)), const((1, 80)),           # fc_dy
        ],
        out_specs=(pl.BlockSpec((None, Kn, 80), lambda b, i, t: (b, 0, 0)),
                   pl.BlockSpec((None, Kn, 1), lambda b, i, t: (b, 0, 0))),
        scratch_shapes=[pltpu.VMEM((Kn, 48), jnp.float32),
                        pltpu.VMEM((Kn, 1), jnp.float32)],
        # B "parallel" feeds both TensorCores on v7x; on single-TC v5e/v6e it is a
        # serial loop (folding B into the row dim is the alternative there).
        compiler_params=pltpu.CompilerParams(
            dimension_semantics=("parallel", "arbitrary", "arbitrary")),
    )(hx0, slab, p['wscf_p'], p['bscf'], p['wih2'], p['whh'], p['bhh'],
      p['wsc'], p['bsc'], p['wdy'], p['bdy'])
    return dy, sc


# ----------------------------------------------------------------------------------
# Social-pooling bin table (data-dependent distance/angle binning -> normalized
# one-hot).  The scatter has no rectangular Pallas pattern; only the contraction
# against the hidden state runs inside the fused kernel.
# ----------------------------------------------------------------------------------
# TODO(synk): the per-neighbor distance/angle binned scatter is host-side JAX glue.
def pooling_onehot(y_path, K, seq, B, n):
    r_min = jnp.float32(0.5)
    r_max = jnp.float32(4.0)
    radius_step = (r_max - r_min) / jnp.float32(6.0)
    theta_step = jnp.float32(2.0 * math.pi) / jnp.float32(6.0)

    p = y_path.reshape(K, seq, B, n, 2)
    # diff[k,t,b,j,o] = loc_other(o) - loc_agent(j)
    diff = p[:, :, :, None, :, :] - p[:, :, :, :, None, :]
    dist = jnp.sqrt(jnp.sum(diff * diff, axis=-1))
    not_self = ~jnp.eye(n, dtype=bool)
    in_range = (dist <= r_max) & (dist >= r_min) & not_self

    dist_safe = jnp.where(dist < 1e-10, jnp.float32(1e-10), dist)
    ratio = jnp.clip(diff[..., 0] / dist_safe, -1.0, 1.0)
    ct = jnp.arccos(ratio)
    theta = jnp.where(diff[..., 1] < -0.01, jnp.float32(2.0 * math.pi) - ct, ct)

    u_cell = jnp.clip(jnp.trunc((dist - r_min) / radius_step).astype(jnp.int32), 0, 5)
    v_cell = jnp.clip(jnp.trunc(theta / theta_step).astype(jnp.int32), 0, 5)
    cell = u_cell * 6 + v_cell

    P = (in_range[..., None] & (cell[..., None] == jnp.arange(36))).astype(jnp.float32)
    counts = jnp.sum(P, axis=4, keepdims=True)          # per-cell neighbour counts
    return P / jnp.maximum(counts, 1.0)                 # (K, seq, B, j, o, 36)


# ----------------------------------------------------------------------------------
# Full forward
# ----------------------------------------------------------------------------------
def refine_forward(params, hx, current_location, y_path, image_data, *,
                   K, batch_size, hz, iterations):
    bn = hx.shape[0]
    B = batch_size
    n = bn // B
    Kn = K * n
    seq = y_path.shape[1]
    qs = 8 if Kn >= 8 else n         # per-cell neighbour-column stride in the slab

    # CNN feature map (NCHW)
    fm1 = conv2d_pallas(image_data, params['conv1_w'], params['conv1_b'], stride=2, pad=2)
    feature_map = conv2d_pallas(fm1, params['conv2_w'], params['conv2_b'], stride=1, pad=2)
    Hf, Wf = feature_map.shape[2], feature_map.shape[3]

    # compute_vel + fc_vel, hoisted out of the recurrence
    prev = jnp.concatenate(
        [jnp.broadcast_to(current_location[None, None], (K, 1, bn, 2)), y_path[:, :-1]], axis=1)
    vel = (y_path - prev) * hz
    yfv = jnp.maximum(vel[..., 0:1] * params['wfv'][0] + vel[..., 1:2] * params['wfv'][1]
                      + params['bfv'], 0.0)                                   # (K,seq,bn,16)

    # TODO(synk): data-dependent feature-map pixel gather stays a host-side XLA gather.
    fm_hwc = jnp.transpose(feature_map, (0, 2, 3, 1))
    b_idx = jnp.arange(bn) // n
    u = jnp.clip((Hf // 2) - jnp.trunc(y_path[..., 1]).astype(jnp.int32), 0, Hf - 1)
    v = jnp.clip(jnp.trunc(y_path[..., 0]).astype(jnp.int32), 0, Wf - 1)
    feat_agent = fm_hwc[b_idx[None, None, :], u, v]                           # (K,seq,bn,32)

    # hoisted input half of the GRU gates: gi_in = [feat|yfv] @ W_ih[0:48] + b_ih
    lhalf = jnp.concatenate([feat_agent, yfv], axis=-1)                       # (K,seq,bn,48)
    gi_in = pallas_linear(lhalf.reshape(-1, 48), params['wih_in'], params['bih'], relu=False)
    gi_in = gi_in.reshape(K, seq, bn, 144)

    def to_bk(x):
        C = x.shape[-1]
        return x.reshape(K, seq, B, n, C).transpose(1, 2, 0, 3, 4).reshape(seq, B, Kn, C)

    # pooling table, padded to q_stride neighbour columns per cell (zero columns)
    pn = pooling_onehot(y_path, K, seq, B, n)                                 # (K,seq,B,j,o,36)
    if qs > n:
        pn = jnp.pad(pn, ((0, 0),) * 4 + ((0, qs - n), (0, 0)))
    pf_all = pn.transpose(1, 2, 0, 3, 5, 4).reshape(seq, B, Kn, 36 * qs)      # col = c*qs + o

    # one lane-padded per-step input slab: [gi_in(144) | pf(36*qs) | zero pad]
    gi_in_bk = to_bk(gi_in)
    slab_w = ((144 + 36 * qs + 127) // 128) * 128
    pad_w = slab_w - (144 + 36 * qs)
    parts = [gi_in_bk, pf_all]
    if pad_w:
        parts.append(jnp.zeros((seq, B, Kn, pad_w), jnp.float32))
    slab = jnp.concatenate(parts, axis=-1)

    # initial hidden replicated across K; per-batch layout (B, K*n, 48), row = k*n + j
    hx0 = jnp.broadcast_to(hx.reshape(B, n, 48)[:, None], (B, K, n, 48)).reshape(B, Kn, 48)

    dy_out, score_out = refine_recurrent(hx0, slab, params, q_stride=qs, n_iter=iterations)

    # fc_dy(hx).view(K, bn, 2, 40).permute(0, 3, 1, 2)
    deltaY = (dy_out.reshape(B, K, n, 80).transpose(1, 0, 2, 3)
              .reshape(K, bn, 2, 40).transpose(0, 3, 1, 2))
    score = score_out.reshape(B, K, n, 1).transpose(1, 0, 2, 3).reshape(K, bn, 1)
    return deltaY, score


# ----------------------------------------------------------------------------------
# Pure-JAX reference (independent lowering path, PyTorch-like layout) for validation
# ----------------------------------------------------------------------------------
def _conv_ref(x, w, b, stride, pad):
    out = jax.lax.conv_general_dilated(
        x, w, window_strides=(stride, stride), padding=[(pad, pad), (pad, pad)],
        dimension_numbers=('NCHW', 'OIHW', 'NCHW'))
    return jnp.maximum(out + b[None, :, None, None], 0.0)


def refine_forward_ref(p, hx, cur, y_path, img, *, K, batch_size, hz, iterations):
    bn = hx.shape[0]
    B = batch_size
    n = bn // B
    seq = y_path.shape[1]
    fm = _conv_ref(img, p['conv1_w'], p['conv1_b'], 2, 2)
    fm = _conv_ref(fm, p['conv2_w'], p['conv2_b'], 1, 2)
    Hf, Wf = fm.shape[2], fm.shape[3]

    prev = jnp.concatenate([jnp.broadcast_to(cur[None, None], (K, 1, bn, 2)),
                            y_path[:, :-1]], axis=1)
    vel = (y_path - prev) * hz
    yfv = jnp.maximum(jnp.einsum('ktnc,cf->ktnf', vel, p['wfv']) + p['bfv'], 0.0)

    fm_hwc = jnp.transpose(fm, (0, 2, 3, 1))
    b_idx = jnp.arange(bn) // n
    u = jnp.clip((Hf // 2) - jnp.trunc(y_path[..., 1]).astype(jnp.int32), 0, Hf - 1)
    v = jnp.clip(jnp.trunc(y_path[..., 0]).astype(jnp.int32), 0, Wf - 1)
    feat = fm_hwc[b_idx[None, None, :], u, v]

    pn = pooling_onehot(y_path, K, seq, B, n)          # (K,seq,B,j,o,36)

    hx_ = jnp.tile(hx, (K, 1))                         # rows k*bn + b*n + j
    score_acc = jnp.zeros((K * bn, 1), jnp.float32)
    dy = None
    for _it in range(iterations):
        score_acc = jnp.zeros((K * bn, 1), jnp.float32)
        for t in range(seq):
            hid0 = hx_[:bn].reshape(B, n, 48)
            sps = jnp.einsum('kbjoc,boh->kbjch', pn[:, t], hid0).reshape(K, bn, 36 * 48)
            rhalf = jnp.maximum(jnp.einsum('kni,ij->knj', sps, p['wscf']) + p['bscf'], 0.0)
            x = jnp.concatenate([feat[:, t], yfv[:, t], rhalf], axis=-1).reshape(K * bn, 96)
            gi = x @ p['wih'] + p['bih']
            gh = hx_ @ p['whh'] + p['bhh']
            r = jax.nn.sigmoid(gi[:, 0:48] + gh[:, 0:48])
            z = jax.nn.sigmoid(gi[:, 48:96] + gh[:, 48:96])
            g = jnp.tanh(gi[:, 96:144] + r * gh[:, 96:144])
            hx_ = (1.0 - z) * g + z * hx_
            score_acc = score_acc + (hx_ @ p['wsc'].T + p['bsc'])
        dy = jnp.maximum(hx_ @ p['wdy'] + p['bdy'], 0.0)
    deltaY = dy.reshape(K, bn, 2, 40).transpose(0, 3, 1, 2)
    score = score_acc.reshape(K, bn, 1)
    return deltaY, score


# ----------------------------------------------------------------------------------
# Deterministic synthetic parameters, pre-packed into the kernel layouts.
# ----------------------------------------------------------------------------------
def init_params(key):
    def uinit(k, shape, fan_in):
        s = 1.0 / math.sqrt(fan_in)
        return jax.random.uniform(k, shape, jnp.float32, -s, s)

    ks = jax.random.split(key, 16)
    p = {}
    p['conv1_w'] = uinit(ks[0], (16, 4, 5, 5), 4 * 25)
    p['conv1_b'] = uinit(ks[1], (16,), 4 * 25)
    p['conv2_w'] = uinit(ks[2], (32, 16, 5, 5), 16 * 25)
    p['conv2_b'] = uinit(ks[3], (32,), 16 * 25)

    p['wfv'] = uinit(ks[4], (16, 2), 2).T                     # (2, 16)
    p['bfv'] = uinit(ks[5], (16,), 2).reshape(1, 16)

    wih = uinit(ks[6], (144, 96), 48).T                       # (96, 144), gate order r|z|n
    whh = uinit(ks[7], (144, 48), 48).T                       # (48, 144)
    p['wih'] = wih
    p['wih_in'] = wih[0:48]                                   # feat/yfv half (hoisted)
    p['wih2'] = wih[48:96]                                    # rhalf half (in-kernel)
    p['bih'] = uinit(ks[8], (144,), 48).reshape(1, 144)
    p['whh'] = whh
    p['bhh'] = uinit(ks[9], (144,), 48).reshape(1, 144)

    wscf = uinit(ks[10], (48, 1728), 1728).T                  # (1728, 48), row = cell*48 + h
    p['wscf'] = wscf
    # permuted fc_scf weight used by the in-kernel pooling contraction:
    #   wscf_p[h, c*48+j] = wscf[c*48+h, j]
    p['wscf_p'] = wscf.reshape(36, 48, 48).transpose(1, 0, 2).reshape(48, 36 * 48)
    p['bscf'] = uinit(ks[11], (48,), 1728).reshape(1, 48)

    p['wsc'] = uinit(ks[12], (1, 48), 48)
    p['bsc'] = uinit(ks[13], (1,), 48).reshape(1, 1)

    p['wdy'] = uinit(ks[14], (80, 48), 48).T                  # (48, 80)
    p['bdy'] = uinit(ks[15], (80,), 48).reshape(1, 80)
    return p


# ----------------------------------------------------------------------------------
if __name__ == "__main__":
    B = 2            # batch_size
    N_AGENTS = 3
    BN = B * N_AGENTS
    K = 4            # sample_number
    SEQ = 8          # small sequence (forward reads it from y_path.shape[1])
    H_IMG = W_IMG = 32

    key = jax.random.PRNGKey(0)
    k_hx, k_loc, k_step, k_img, k_par = jax.random.split(key, 5)

    hx = jax.random.normal(k_hx, (BN, 48), jnp.float32) * 0.1
    current_location = jax.random.uniform(k_loc, (BN, 2), jnp.float32, 2.0, 14.0)
    steps = jax.random.normal(k_step, (K, SEQ, BN, 2), jnp.float32) * 0.3
    y_path = current_location[None, None] + jnp.cumsum(steps, axis=1)
    image_data = jax.random.normal(k_img, (B, 4, H_IMG, W_IMG), jnp.float32)

    params = init_params(k_par)

    fwd = jax.jit(functools.partial(refine_forward, K=K, batch_size=B, hz=10.0, iterations=1))
    deltaY, score = fwd(params, hx, current_location, y_path, image_data)
    jax.block_until_ready((deltaY, score))

    assert deltaY.shape == (K, 40, BN, 2), deltaY.shape   # fc_dy always emits 2*40 outputs
    assert score.shape == (K, BN, 1), score.shape
    assert bool(jnp.all(jnp.isfinite(deltaY))) and bool(jnp.all(jnp.isfinite(score)))

    # numerical check against an independent pure-JAX reference
    ref = jax.jit(functools.partial(refine_forward_ref, K=K, batch_size=B, hz=10.0, iterations=1))
    dy_ref, sc_ref = ref(params, hx, current_location, y_path, image_data)
    jax.block_until_ready((dy_ref, sc_ref))
    err_dy = float(jnp.max(jnp.abs(deltaY - dy_ref)))
    err_sc = float(jnp.max(jnp.abs(score - sc_ref)))
    assert err_dy < 2e-3 and err_sc < 2e-3, (err_dy, err_sc)

    print("KERNEL_OK")
</pallas_src>

<mosaic_0001>
module attributes {stable_mosaic.version = 11 : i64} {
  func.func @_linear_kernel(%arg0: i32, %arg1: memref<256x100xf32, #tpu.memory_space<vmem>>, %arg2: memref<100x128xf32, #tpu.memory_space<vmem>>, %arg3: memref<1x128xf32, #tpu.memory_space<vmem>>, %arg4: memref<256x128xf32, #tpu.memory_space<vmem>>) attributes {dimension_semantics = [#tpu.dimension_semantics<parallel>], iteration_bounds = array<i64: 2>, scalar_prefetch = 0 : i64, scratch_operands = 0 : i64, tpu.core_type = #tpu.core_type<tc>, window_params = [{transform_indices = @transform_0, window_bounds = array<i64: 256, 100>}, {pipeline_mode = #tpu.pipeline_mode<synchronous>, transform_indices = @transform_1, window_bounds = array<i64: 100, 128>}, {pipeline_mode = #tpu.pipeline_mode<synchronous>, transform_indices = @transform_2, window_bounds = array<i64: 1, 128>}, {transform_indices = @transform_3, window_bounds = array<i64: 256, 128>}]} {
    %c0 = arith.constant 0 : index
    %c0_0 = arith.constant 0 : index
    %0 = vector.load %arg1[%c0, %c0_0] : memref<256x100xf32, #tpu.memory_space<vmem>>, vector<256x100xf32>
    %c0_1 = arith.constant 0 : index
    %c0_2 = arith.constant 0 : index
    %1 = vector.load %arg2[%c0_1, %c0_2] : memref<100x128xf32, #tpu.memory_space<vmem>>, vector<100x128xf32>
    %cst = arith.constant dense<0.000000e+00> : vector<256x128xf32>
    %2 = tpu.matmul %0, %1, %cst {dimension_numbers = #tpu.dot_dimension_numbers<[1], [0], [0], [1], [0, 0, 1, 1], [], []>} : vector<256x100xf32>, vector<100x128xf32>, vector<256x128xf32> -> vector<256x128xf32>
    %c0_3 = arith.constant 0 : index
    %c0_4 = arith.constant 0 : index
    %3 = vector.load %arg3[%c0_3, %c0_4] : memref<1x128xf32, #tpu.memory_space<vmem>>, vector<1x128xf32>
    %4 = vector.broadcast %3 : vector<1x128xf32> to vector<256x128xf32>
    %5 = arith.addf %2, %4 : vector<256x128xf32>
    %cst_5 = arith.constant 0.000000e+00 : f32
    %6 = vector.broadcast %cst_5 : f32 to vector<256x128xf32>
    %7 = arith.maximumf %5, %6 : vector<256x128xf32>
    %c0_6 = arith.constant 0 : index
    %c0_7 = arith.constant 0 : index
    %8 = vector.load %arg4[%c0_6, %c0_7] : memref<256x128xf32, #tpu.memory_space<vmem>>, vector<256x128xf32>
    tpu.vector_store %arg4[%c0_6, %c0_7], %7 {strides = array<i32>} : memref<256x128xf32, #tpu.memory_space<vmem>>, vector<256x128xf32>,
    return
  }
  func.func @transform_0(%arg0: i32) -> (i32, i32) {
    %c0_i32 = arith.constant 0 : i32
    %c0_i32_0 = arith.constant 0 : i32
    return %arg0, %c0_i32 : i32, i32
  }
  func.func @transform_1(%arg0: i32) -> (i32, i32) {
    %c0_i32 = arith.constant 0 : i32
    %c0_i32_0 = arith.constant 0 : i32
    %c0_i32_1 = arith.constant 0 : i32
    return %c0_i32, %c0_i32_0 : i32, i32
  }
  func.func @transform_2(%arg0: i32) -> (i32, i32) {
    %c0_i32 = arith.constant 0 : i32
    %c0_i32_0 = arith.constant 0 : i32
    %c0_i32_1 = arith.constant 0 : i32
    return %c0_i32, %c0_i32_0 : i32, i32
  }
  func.func @transform_3(%arg0: i32) -> (i32, i32) {
    %c0_i32 = arith.constant 0 : i32
    %c0_i32_0 = arith.constant 0 : i32
    return %arg0, %c0_i32 : i32, i32
  }
}

module attributes {stable_mosaic.version = 11 : i64} {
  func.func @_linear_kernel(%arg0: i32, %arg1: memref<256x400xf32, #tpu.memory_space<vmem>>, %arg2: memref<400x128xf32, #tpu.memory_space<vmem>>, %arg3: memref<1x128xf32, #tpu.memory_space<vmem>>, %arg4: memref<256x128xf32, #tpu.memory_space<vmem>>) attributes {dimension_semantics = [#tpu.dimension_semantics<parallel>], iteration_bounds = array<i64: 2>, scalar_prefetch = 0 : i64, scratch_operands = 0 : i64, tpu.core_type = #tpu.core_type<tc>, window_params = [{transform_indices = @transform_0, window_bounds = array<i64: 256, 400>}, {pipeline_mode = #tpu.pipeline_mode<synchronous>, transform_indices = @transform_1, window_bounds = array<i64: 400, 128>}, {pipeline_mode = #tpu.pipeline_mode<synchronous>, transform_indices = @transform_2, window_bounds = array<i64: 1, 128>}, {transform_indices = @transform_3, window_bounds = array<i64: 256, 128>}]} {
    %c0 = arith.constant 0 : index
    %c0_0 = arith.constant 0 : index
    %0 = vector.load %arg1[%c0, %c0_0] : memref<256x400xf32, #tpu.memory_space<vmem>>, vector<256x400xf32>
    %c0_1 = arith.constant 0 : index
    %c0_2 = arith.constant 0 : index
    %1 = vector.load %arg2[%c0_1, %c0_2] : memref<400x128xf32, #tpu.memory_space<vmem>>, vector<400x128xf32>
    %cst = arith.constant dense<0.000000e+00> : vector<256x128xf32>
    %2 = tpu.matmul %0, %1, %cst {dimension_numbers = #tpu.dot_dimension_numbers<[1], [0], [0], [1], [0, 0, 1, 1], [], []>} : vector<256x400xf32>, vector<400x128xf32>, vector<256x128xf32> -> vector<256x128xf32>
    %c0_3 = arith.constant 0 : index
    %c0_4 = arith.constant 0 : index
    %3 = vector.load %arg3[%c0_3, %c0_4] : memref<1x128xf32, #tpu.memory_space<vmem>>, vector<1x128xf32>
    %4 = vector.broadcast %3 : vector<1x128xf32> to vector<256x128xf32>
    %5 = arith.addf %2, %4 : vector<256x128xf32>
    %cst_5 = arith.constant 0.000000e+00 : f32
    %6 = vector.broadcast %cst_5 : f32 to vector<256x128xf32>
    %7 = arith.maximumf %5, %6 : vector<256x128xf32>
    %c0_6 = arith.constant 0 : index
    %c0_7 = arith.constant 0 : index
    %8 = vector.load %arg4[%c0_6, %c0_7] : memref<256x128xf32, #tpu.memory_space<vmem>>, vector<256x128xf32>
    tpu.vector_store %arg4[%c0_6, %c0_7], %7 {strides = array<i32>} : memref<256x128xf32, #tpu.memory_space<vmem>>, vector<256x128xf32>,
    return
  }
  func.func @transform_0(%arg0: i32) -> (i32, i32) {
    %c0_i32 = arith.constant 0 : i32
    %c0_i32_0 = arith.constant 0 : i32
    return %arg0, %c0_i32 : i32, i32
  }
  func.func @transform_1(%arg0: i32) -> (i32, i32) {
    %c0_i32 = arith.constant 0 : i32
    %c0_i32_0 = arith.constant 0 : i32
    %c0_i32_1 = arith.constant 0 : i32
    return %c0_i32, %c0_i32_0 : i32, i32
  }
  func.func @transform_2(%arg0: i32) -> (i32, i32) {
    %c0_i32 = arith.constant 0 : i32
    %c0_i32_0 = arith.constant 0 : i32
    %c0_i32_1 = arith.constant 0 : i32
    return %c0_i32, %c0_i32_0 : i32, i32
  }
  func.func @transform_3(%arg0: i32) -> (i32, i32) {
    %c0_i32 = arith.constant 0 : i32
    %c0_i32_0 = arith.constant 0 : i32
    return %arg0, %c0_i32 : i32, i32
  }
}

module attributes {stable_mosaic.version = 11 : i64} {
  func.func @_linear_kernel(%arg0: i32, %arg1: memref<256x48xf32, #tpu.memory_space<vmem>>, %arg2: memref<48x256xf32, #tpu.memory_space<vmem>>, %arg3: memref<1x256xf32, #tpu.memory_space<vmem>>, %arg4: memref<256x256xf32, #tpu.memory_space<vmem>>) attributes {dimension_semantics = [#tpu.dimension_semantics<parallel>], iteration_bounds = array<i64: 1>, scalar_prefetch = 0 : i64, scratch_operands = 0 : i64, tpu.core_type = #tpu.core_type<tc>, window_params = [{transform_indices = @transform_0, window_bounds = array<i64: 256, 48>}, {pipeline_mode = #tpu.pipeline_mode<synchronous>, transform_indices = @transform_1, window_bounds = array<i64: 48, 256>}, {pipeline_mode = #tpu.pipeline_mode<synchronous>, transform_indices = @transform_2, window_bounds = array<i64: 1, 256>}, {transform_indices = @transform_3, window_bounds = array<i64: 256, 256>}]} {
    %c0 = arith.constant 0 : index
    %c0_0 = arith.constant 0 : index
    %0 = vector.load %arg1[%c0, %c0_0] : memref<256x48xf32, #tpu.memory_space<vmem>>, vector<256x48xf32>
    %c0_1 = arith.constant 0 : index
    %c0_2 = arith.constant 0 : index
    %1 = vector.load %arg2[%c0_1, %c0_2] : memref<48x256xf32, #tpu.memory_space<vmem>>, vector<48x256xf32>
    %cst = arith.constant dense<0.000000e+00> : vector<256x256xf32>
    %2 = tpu.matmul %0, %1, %cst {dimension_numbers = #tpu.dot_dimension_numbers<[1], [0], [0], [1], [0, 0, 1, 1], [], []>} : vector<256x48xf32>, vector<48x256xf32>, vector<256x256xf32> -> vector<256x256xf32>
    %c0_3 = arith.constant 0 : index
    %c0_4 = arith.constant 0 : index
    %3 = vector.load %arg3[%c0_3, %c0_4] : memref<1x256xf32, #tpu.memory_space<vmem>>, vector<1x256xf32>
    %4 = vector.broadcast %3 : vector<1x256xf32> to vector<256x256xf32>
    %5 = arith.addf %2, %4 : vector<256x256xf32>
    %c0_5 = arith.constant 0 : index
    %c0_6 = arith.constant 0 : index
    %6 = vector.load %arg4[%c0_5, %c0_6] : memref<256x256xf32, #tpu.memory_space<vmem>>, vector<256x256xf32>
    tpu.vector_store %arg4[%c0_5, %c0_6], %5 {strides = array<i32>} : memref<256x256xf32, #tpu.memory_space<vmem>>, vector<256x256xf32>,
    return
  }
  func.func @transform_0(%arg0: i32) -> (i32, i32) {
    %c0_i32 = arith.constant 0 : i32
    %c0_i32_0 = arith.constant 0 : i32
    return %arg0, %c0_i32 : i32, i32
  }
  func.func @transform_1(%arg0: i32) -> (i32, i32) {
    %c0_i32 = arith.constant 0 : i32
    %c0_i32_0 = arith.constant 0 : i32
    %c0_i32_1 = arith.constant 0 : i32
    return %c0_i32, %c0_i32_0 : i32, i32
  }
  func.func @transform_2(%arg0: i32) -> (i32, i32) {
    %c0_i32 = arith.constant 0 : i32
    %c0_i32_0 = arith.constant 0 : i32
    %c0_i32_1 = arith.constant 0 : i32
    return %c0_i32, %c0_i32_0 : i32, i32
  }
  func.func @transform_3(%arg0: i32) -> (i32, i32) {
    %c0_i32 = arith.constant 0 : i32
    %c0_i32_0 = arith.constant 0 : i32
    return %arg0, %c0_i32 : i32, i32
  }
}

module attributes {stable_mosaic.version = 11 : i64} {
  func.func @_refine_step_kernel(%arg0: i32, %arg1: i32, %arg2: i32, %arg3: memref<1x12x48xf32, #tpu.memory_space<vmem>>, %arg4: memref<1x1x12x512xf32, #tpu.memory_space<vmem>>, %arg5: memref<48x1728xf32, #tpu.memory_space<vmem>>, %arg6: memref<1x48xf32, #tpu.memory_space<vmem>>, %arg7: memref<48x144xf32, #tpu.memory_space<vmem>>, %arg8: memref<48x144xf32, #tpu.memory_space<vmem>>, %arg9: memref<1x144xf32, #tpu.memory_space<vmem>>, %arg10: memref<1x48xf32, #tpu.memory_space<vmem>>, %arg11: memref<1x1xf32, #tpu.memory_space<vmem>>, %arg12: memref<48x80xf32, #tpu.memory_space<vmem>>, %arg13: memref<1x80xf32, #tpu.memory_space<vmem>>, %arg14: memref<1x12x80xf32, #tpu.memory_space<vmem>>, %arg15: memref<1x12x1xf32, #tpu.memory_space<vmem>>, %arg16: memref<12x48xf32, #tpu.memory_space<vmem>>, %arg17: memref<12x1xf32, #tpu.memory_space<vmem>>) attributes {dimension_semantics = [#tpu.dimension_semantics<parallel>, #tpu.dimension_semantics<arbitrary>, #tpu.dimension_semantics<arbitrary>], iteration_bounds = array<i64: 2, 1, 8>, scalar_prefetch = 0 : i64, scratch_operands = 2 : i64, tpu.core_type = #tpu.core_type<tc>, window_params = [{transform_indices = @transform_0, window_bounds = array<i64: 1, 12, 48>}, {transform_indices = @transform_1, window_bounds = array<i64: 1, 1, 12, 512>}, {pipeline_mode = #tpu.pipeline_mode<synchronous>, transform_indices = @transform_2, window_bounds = array<i64: 48, 1728>}, {pipeline_mode = #tpu.pipeline_mode<synchronous>, transform_indices = @transform_3, window_bounds = array<i64: 1, 48>}, {pipeline_mode = #tpu.pipeline_mode<synchronous>, transform_indices = @transform_4, window_bounds = array<i64: 48, 144>}, {pipeline_mode = #tpu.pipeline_mode<synchronous>, transform_indices = @transform_5, window_bounds = array<i64: 48, 144>}, {pipeline_mode = #tpu.pipeline_mode<synchronous>, transform_indices = @transform_6, window_bounds = array<i64: 1, 144>}, {pipeline_mode = #tpu.pipeline_mode<synchronous>, transform_indices = @transform_7, window_bounds = array<i64: 1, 48>}, {pipeline_mode = #tpu.pipeline_mode<synchronous>, transform_indices = @transform_8, window_bounds = array<i64: 1, 1>}, {pipeline_mode = #tpu.pipeline_mode<synchronous>, transform_indices = @transform_9, window_bounds = array<i64: 48, 80>}, {pipeline_mode = #tpu.pipeline_mode<synchronous>, transform_indices = @transform_10, window_bounds = array<i64: 1, 80>}, {transform_indices = @transform_11, window_bounds = array<i64: 1, 12, 80>}, {transform_indices = @transform_12, window_bounds = array<i64: 1, 12, 1>}]} {
    %c0_i32 = arith.constant 0 : i32
    %0 = arith.cmpi eq, %arg1, %c0_i32 : i32
    %c0_i32_0 = arith.constant 0 : i32
    %1 = arith.cmpi eq, %arg2, %c0_i32_0 : i32
    %2 = arith.andi %0, %1 : i1
    %3 = arith.extui %2 : i1 to i32
    %c0_i32_1 = arith.constant 0 : i32
    %4 = arith.cmpi ne, %3, %c0_i32_1 : i32
    scf.if %4 {
      %c0_72 = arith.constant 0 : index
      %c0_73 = arith.constant 0 : index
      %c0_74 = arith.constant 0 : index
      %214 = vector.load %arg3[%c0_72, %c0_73, %c0_74] : memref<1x12x48xf32, #tpu.memory_space<vmem>>, vector<1x12x48xf32>
      %215 = vector.shape_cast %214 : vector<1x12x48xf32> to vector<12x48xf32>
      %c0_75 = arith.constant 0 : index
      %c0_76 = arith.constant 0 : index
      %216 = vector.load %arg16[%c0_75, %c0_76] : memref<12x48xf32, #tpu.memory_space<vmem>>, vector<12x48xf32>
      tpu.vector_store %arg16[%c0_75, %c0_76], %215 {strides = array<i32>} : memref<12x48xf32, #tpu.memory_space<vmem>>, vector<12x48xf32>,
    } else {
    }
    %c0 = arith.constant 0 : index
    %c0_2 = arith.constant 0 : index
    %5 = vector.load %arg16[%c0, %c0_2] : memref<12x48xf32, #tpu.memory_space<vmem>>, vector<12x48xf32>
    %c0_3 = arith.constant 0 : index
    %c0_4 = arith.constant 0 : index
    %c0_5 = arith.constant 0 : index
    %c0_6 = arith.constant 0 : index
    %6 = vector.load %arg4[%c0_3, %c0_4, %c0_5, %c0_6] : memref<1x1x12x512xf32, #tpu.memory_space<vmem>>, vector<1x1x12x512xf32>
    %7 = vector.shape_cast %6 : vector<1x1x12x512xf32> to vector<12x512xf32>
    %8 = vector.extract_strided_slice %7 {offsets = [0, 0], sizes = [12, 144], strides = [1, 1]} : vector<12x512xf32> to vector<12x144xf32>
    %9 = vector.extract_strided_slice %5 {offsets = [0, 0], sizes = [8, 48], strides = [1, 1]} : vector<12x48xf32> to vector<8x48xf32>
    %c0_7 = arith.constant 0 : index
    %c0_8 = arith.constant 0 : index
    %10 = vector.load %arg5[%c0_7, %c0_8] : memref<48x1728xf32, #tpu.memory_space<vmem>>, vector<48x1728xf32>
    %cst = arith.constant dense<0.000000e+00> : vector<8x1728xf32>
    %11 = tpu.matmul %9, %10, %cst {dimension_numbers = #tpu.dot_dimension_numbers<[1], [0], [0], [1], [0, 0, 1, 1], [], []>} : vector<8x48xf32>, vector<48x1728xf32>, vector<8x1728xf32> -> vector<8x1728xf32>
    %12 = vector.extract_strided_slice %7 {offsets = [0, 144], sizes = [12, 8], strides = [1, 1]} : vector<12x512xf32> to vector<12x8xf32>
    %13 = vector.extract_strided_slice %11 {offsets = [0, 0], sizes = [8, 48], strides = [1, 1]} : vector<8x1728xf32> to vector<8x48xf32>
    %cst_9 = arith.constant dense<0.000000e+00> : vector<12x48xf32>
    %14 = tpu.matmul %12, %13, %cst_9 {dimension_numbers = #tpu.dot_dimension_numbers<[1], [0], [0], [1], [0, 0, 1, 1], [], []>} : vector<12x8xf32>, vector<8x48xf32>, vector<12x48xf32> -> vector<12x48xf32>
    %15 = vector.extract_strided_slice %7 {offsets = [0, 152], sizes = [12, 8], strides = [1, 1]} : vector<12x512xf32> to vector<12x8xf32>
    %16 = vector.extract_strided_slice %11 {offsets = [0, 48], sizes = [8, 48], strides = [1, 1]} : vector<8x1728xf32> to vector<8x48xf32>
    %cst_10 = arith.constant dense<0.000000e+00> : vector<12x48xf32>
    %17 = tpu.matmul %15, %16, %cst_10 {dimension_numbers = #tpu.dot_dimension_numbers<[1], [0], [0], [1], [0, 0, 1, 1], [], []>} : vector<12x8xf32>, vector<8x48xf32>, vector<12x48xf32> -> vector<12x48xf32>
    %18 = arith.addf %14, %17 : vector<12x48xf32>
    %19 = vector.extract_strided_slice %7 {offsets = [0, 160], sizes = [12, 8], strides = [1, 1]} : vector<12x512xf32> to vector<12x8xf32>
    %20 = vector.extract_strided_slice %11 {offsets = [0, 96], sizes = [8, 48], strides = [1, 1]} : vector<8x1728xf32> to vector<8x48xf32>
    %cst_11 = arith.constant dense<0.000000e+00> : vector<12x48xf32>
    %21 = tpu.matmul %19, %20, %cst_11 {dimension_numbers = #tpu.dot_dimension_numbers<[1], [0], [0], [1], [0, 0, 1, 1], [], []>} : vector<12x8xf32>, vector<8x48xf32>, vector<12x48xf32> -> vector<12x48xf32>
    %22 = arith.addf %18, %21 : vector<12x48xf32>
    %23 = vector.extract_strided_slice %7 {offsets = [0, 168], sizes = [12, 8], strides = [1, 1]} : vector<12x512xf32> to vector<12x8xf32>
    %24 = vector.extract_strided_slice %11 {offsets = [0, 144], sizes = [8, 48], strides = [1, 1]} : vector<8x1728xf32> to vector<8x48xf32>
    %cst_12 = arith.constant dense<0.000000e+00> : vector<12x48xf32>
    %25 = tpu.matmul %23, %24, %cst_12 {dimension_numbers = #tpu.dot_dimension_numbers<[1], [0], [0], [1], [0, 0, 1, 1], [], []>} : vector<12x8xf32>, vector<8x48xf32>, vector<12x48xf32> -> vector<12x48xf32>
    %26 = arith.addf %22, %25 : vector<12x48xf32>
    %27 = vector.extract_strided_slice %7 {offsets = [0, 176], sizes = [12, 8], strides = [1, 1]} : vector<12x512xf32> to vector<12x8xf32>
    %28 = vector.extract_strided_slice %11 {offsets = [0, 192], sizes = [8, 48], strides = [1, 1]} : vector<8x1728xf32> to vector<8x48xf32>
    %cst_13 = arith.constant dense<0.000000e+00> : vector<12x48xf32>
    %29 = tpu.matmul %27, %28, %cst_13 {dimension_numbers = #tpu.dot_dimension_numbers<[1], [0], [0], [1], [0, 0, 1, 1], [], []>} : vector<12x8xf32>, vector<8x48xf32>, vector<12x48xf32> -> vector<12x48xf32>
    %30 = arith.addf %26, %29 : vector<12x48xf32>
    %31 = vector.extract_strided_slice %7 {offsets = [0, 184], sizes = [12, 8], strides = [1, 1]} : vector<12x512xf32> to vector<12x8xf32>
    %32 = vector.extract_strided_slice %11 {offsets = [0, 240], sizes = [8, 48], strides = [1, 1]} : vector<8x1728xf32> to vector<8x48xf32>
    %cst_14 = arith.constant dense<0.000000e+00> : vector<12x48xf32>
    %33 = tpu.matmul %31, %32, %cst_14 {dimension_numbers = #tpu.dot_dimension_numbers<[1], [0], [0], [1], [0, 0, 1, 1], [], []>} : vector<12x8xf32>, vector<8x48xf32>, vector<12x48xf32> -> vector<12x48xf32>
    %34 = arith.addf %30, %33 : vector<12x48xf32>
    %35 = vector.extract_strided_slice %7 {offsets = [0, 192], sizes = [12, 8], strides = [1, 1]} : vector<12x512xf32> to vector<12x8xf32>
    %36 = vector.extract_strided_slice %11 {offsets = [0, 288], sizes = [8, 48], strides = [1, 1]} : vector<8x1728xf32> to vector<8x48xf32>
    %cst_15 = arith.constant dense<0.000000e+00> : vector<12x48xf32>
    %37 = tpu.matmul %35, %36, %cst_15 {dimension_numbers = #tpu.dot_dimension_numbers<[1], [0], [0], [1], [0, 0, 1, 1], [], []>} : vector<12x8xf32>, vector<8x48xf32>, vector<12x48xf32> -> vector<12x48xf32>
    %38 = arith.addf %34, %37 : vector<12x48xf32>
    %39 = vector.extract_strided_slice %7 {offsets = [0, 200], sizes = [12, 8], strides = [1, 1]} : vector<12x512xf32> to vector<12x8xf32>
    %40 = vector.extract_strided_slice %11 {offsets = [0, 336], sizes = [8, 48], strides = [1, 1]} : vector<8x1728xf32> to vector<8x48xf32>
    %cst_16 = arith.constant dense<0.000000e+00> : vector<12x48xf32>
    %41 = tpu.matmul %39, %40, %cst_16 {dimension_numbers = #tpu.dot_dimension_numbers<[1], [0], [0], [1], [0, 0, 1, 1], [], []>} : vector<12x8xf32>, vector<8x48xf32>, vector<12x48xf32> -> vector<12x48xf32>
    %42 = arith.addf %38, %41 : vector<12x48xf32>
    %43 = vector.extract_strided_slice %7 {offsets = [0, 208], sizes = [12, 8], strides = [1, 1]} : vector<12x512xf32> to vector<12x8xf32>
    %44 = vector.extract_strided_slice %11 {offsets = [0, 384], sizes = [8, 48], strides = [1, 1]} : vector<8x1728xf32> to vector<8x48xf32>
    %cst_17 = arith.constant dense<0.000000e+00> : vector<12x48xf32>
    %45 = tpu.matmul %43, %44, %cst_17 {dimension_numbers = #tpu.dot_dimension_numbers<[1], [0], [0], [1], [0, 0, 1, 1], [], []>} : vector<12x8xf32>, vector<8x48xf32>, vector<12x48xf32> -> vector<12x48xf32>
    %46 = arith.addf %42, %45 : vector<12x48xf32>
    %47 = vector.extract_strided_slice %7 {offsets = [0, 216], sizes = [12, 8], strides = [1, 1]} : vector<12x512xf32> to vector<12x8xf32>
    %48 = vector.extract_strided_slice %11 {offsets = [0, 432], sizes = [8, 48], strides = [1, 1]} : vector<8x1728xf32> to vector<8x48xf32>
    %cst_18 = arith.constant dense<0.000000e+00> : vector<12x48xf32>
    %49 = tpu.matmul %47, %48, %cst_18 {dimension_numbers = #tpu.dot_dimension_numbers<[1], [0], [0], [1], [0, 0, 1, 1], [], []>} : vector<12x8xf32>, vector<8x48xf32>, vector<12x48xf32> -> vector<12x48xf32>
    %50 = arith.addf %46, %49 : vector<12x48xf32>
    %51 = vector.extract_strided_slice %7 {offsets = [0, 224], sizes = [12, 8], strides = [1, 1]} : vector<12x512xf32> to vector<12x8xf32>
    %52 = vector.extract_strided_slice %11 {offsets = [0, 480], sizes = [8, 48], strides = [1, 1]} : vector<8x1728xf32> to vector<8x48xf32>
    %cst_19 = arith.constant dense<0.000000e+00> : vector<12x48xf32>
    %53 = tpu.matmul %51, %52, %cst_19 {dimension_numbers = #tpu.dot_dimension_numbers<[1], [0], [0], [1], [0, 0, 1, 1], [], []>} : vector<12x8xf32>, vector<8x48xf32>, vector<12x48xf32> -> vector<12x48xf32>
    %54 = arith.addf %50, %53 : vector<12x48xf32>
    %55 = vector.extract_strided_slice %7 {offsets = [0, 232], sizes = [12, 8], strides = [1, 1]} : vector<12x512xf32> to vector<12x8xf32>
    %56 = vector.extract_strided_slice %11 {offsets = [0, 528], sizes = [8, 48], strides = [1, 1]} : vector<8x1728xf32> to vector<8x48xf32>
    %cst_20 = arith.constant dense<0.000000e+00> : vector<12x48xf32>
    %57 = tpu.matmul %55, %56, %cst_20 {dimension_numbers = #tpu.dot_dimension_numbers<[1], [0], [0], [1], [0, 0, 1, 1], [], []>} : vector<12x8xf32>, vector<8x48xf32>, vector<12x48xf32> -> vector<12x48xf32>
    %58 = arith.addf %54, %57 : vector<12x48xf32>
    %59 = vector.extract_strided_slice %7 {offsets = [0, 240], sizes = [12, 8], strides = [1, 1]} : vector<12x512xf32> to vector<12x8xf32>
    %60 = vector.extract_strided_slice %11 {offsets = [0, 576], sizes = [8, 48], strides = [1, 1]} : vector<8x1728xf32> to vector<8x48xf32>
    %cst_21 = arith.constant dense<0.000000e+00> : vector<12x48xf32>
    %61 = tpu.matmul %59, %60, %cst_21 {dimension_numbers = #tpu.dot_dimension_numbers<[1], [0], [0], [1], [0, 0, 1, 1], [], []>} : vector<12x8xf32>, vector<8x48xf32>, vector<12x48xf32> -> vector<12x48xf32>
    %62 = arith.addf %58, %61 : vector<12x48xf32>
    %63 = vector.extract_strided_slice %7 {offsets = [0, 248], sizes = [12, 8], strides = [1, 1]} : vector<12x512xf32> to vector<12x8xf32>
    %64 = vector.extract_strided_slice %11 {offsets = [0, 624], sizes = [8, 48], strides = [1, 1]} : vector<8x1728xf32> to vector<8x48xf32>
    %cst_22 = arith.constant dense<0.000000e+00> : vector<12x48xf32>
    %65 = tpu.matmul %63, %64, %cst_22 {dimension_numbers = #tpu.dot_dimension_numbers<[1], [0], [0], [1], [0, 0, 1, 1], [], []>} : vector<12x8xf32>, vector<8x48xf32>, vector<12x48xf32> -> vector<12x48xf32>
    %66 = arith.addf %62, %65 : vector<12x48xf32>
    %67 = vector.extract_strided_slice %7 {offsets = [0, 256], sizes = [12, 8], strides = [1, 1]} : vector<12x512xf32> to vector<12x8xf32>
    %68 = vector.extract_strided_slice %11 {offsets = [0, 672], sizes = [8, 48], strides = [1, 1]} : vector<8x1728xf32> to vector<8x48xf32>
    %cst_23 = arith.constant dense<0.000000e+00> : vector<12x48xf32>
    %69 = tpu.matmul %67, %68, %cst_23 {dimension_numbers = #tpu.dot_dimension_numbers<[1], [0], [0], [1], [0, 0, 1, 1], [], []>} : vector<12x8xf32>, vector<8x48xf32>, vector<12x48xf32> -> vector<12x48xf32>
    %70 = arith.addf %66, %69 : vector<12x48xf32>
    %71 = vector.extract_strided_slice %7 {offsets = [0, 264], sizes = [12, 8], strides = [1, 1]} : vector<12x512xf32> to vector<12x8xf32>
    %72 = vector.extract_strided_slice %11 {offsets = [0, 720], sizes = [8, 48], strides = [1, 1]} : vector<8x1728xf32> to vector<8x48xf32>
    %cst_24 = arith.constant dense<0.000000e+00> : vector<12x48xf32>
    %73 = tpu.matmul %71, %72, %cst_24 {dimension_numbers = #tpu.dot_dimension_numbers<[1], [0], [0], [1], [0, 0, 1, 1], [], []>} : vector<12x8xf32>, vector<8x48xf32>, vector<12x48xf32> -> vector<12x48xf32>
    %74 = arith.addf %70, %73 : vector<12x48xf32>
    %75 = vector.extract_strided_slice %7 {offsets = [0, 272], sizes = [12, 8], strides = [1, 1]} : vector<12x512xf32> to vector<12x8xf32>
    %76 = vector.extract_strided_slice %11 {offsets = [0, 768], sizes = [8, 48], strides = [1, 1]} : vector<8x1728xf32> to vector<8x48xf32>
    %cst_25 = arith.constant dense<0.000000e+00> : vector<12x48xf32>
    %77 = tpu.matmul %75, %76, %cst_25 {dimension_numbers = #tpu.dot_dimension_numbers<[1], [0], [0], [1], [0, 0, 1, 1], [], []>} : vector<12x8xf32>, vector<8x48xf32>, vector<12x48xf32> -> vector<12x48xf32>
    %78 = arith.addf %74, %77 : vector<12x48xf32>
    %79 = vector.extract_strided_slice %7 {offsets = [0, 280], sizes = [12, 8], strides = [1, 1]} : vector<12x512xf32> to vector<12x8xf32>
    %80 = vector.extract_strided_slice %11 {offsets = [0, 816], sizes = [8, 48], strides = [1, 1]} : vector<8x1728xf32> to vector<8x48xf32>
    %cst_26 = arith.constant dense<0.000000e+00> : vector<12x48xf32>
    %81 = tpu.matmul %79, %80, %cst_26 {dimension_numbers = #tpu.dot_dimension_numbers<[1], [0], [0], [1], [0, 0, 1, 1], [], []>} : vector<12x8xf32>, vector<8x48xf32>, vector<12x48xf32> -> vector<12x48xf32>
    %82 = arith.addf %78, %81 : vector<12x48xf32>
    %83 = vector.extract_strided_slice %7 {offsets = [0, 288], sizes = [12, 8], strides = [1, 1]} : vector<12x512xf32> to vector<12x8xf32>
    %84 = vector.extract_strided_slice %11 {offsets = [0, 864], sizes = [8, 48], strides = [1, 1]} : vector<8x1728xf32> to vector<8x48xf32>
    %cst_27 = arith.constant dense<0.000000e+00> : vector<12x48xf32>
    %85 = tpu.matmul %83, %84, %cst_27 {dimension_numbers = #tpu.dot_dimension_numbers<[1], [0], [0], [1], [0, 0, 1, 1], [], []>} : vector<12x8xf32>, vector<8x48xf32>, vector<12x48xf32> -> vector<12x48xf32>
    %86 = arith.addf %82, %85 : vector<12x48xf32>
    %87 = vector.extract_strided_slice %7 {offsets = [0, 296], sizes = [12, 8], strides = [1, 1]} : vector<12x512xf32> to vector<12x8xf32>
    %88 = vector.extract_strided_slice %11 {offsets = [0, 912], sizes = [8, 48], strides = [1, 1]} : vector<8x1728xf32> to vector<8x48xf32>
    %cst_28 = arith.constant dense<0.000000e+00> : vector<12x48xf32>
    %89 = tpu.matmul %87, %88, %cst_28 {dimension_numbers = #tpu.dot_dimension_numbers<[1], [0], [0], [1], [0, 0, 1, 1], [], []>} : vector<12x8xf32>, vector<8x48xf32>, vector<12x48xf32> -> vector<12x48xf32>
    %90 = arith.addf %86, %89 : vector<12x48xf32>
    %91 = vector.extract_strided_slice %7 {offsets = [0, 304], sizes = [12, 8], strides = [1, 1]} : vector<12x512xf32> to vector<12x8xf32>
    %92 = vector.extract_strided_slice %11 {offsets = [0, 960], sizes = [8, 48], strides = [1, 1]} : vector<8x1728xf32> to vector<8x48xf32>
    %cst_29 = arith.constant dense<0.000000e+00> : vector<12x48xf32>
    %93 = tpu.matmul %91, %92, %cst_29 {dimension_numbers = #tpu.dot_dimension_numbers<[1], [0], [0], [1], [0, 0, 1, 1], [], []>} : vector<12x8xf32>, vector<8x48xf32>, vector<12x48xf32> -> vector<12x48xf32>
    %94 = arith.addf %90, %93 : vector<12x48xf32>
    %95 = vector.extract_strided_slice %7 {offsets = [0, 312], sizes = [12, 8], strides = [1, 1]} : vector<12x512xf32> to vector<12x8xf32>
    %96 = vector.extract_strided_slice %11 {offsets = [0, 1008], sizes = [8, 48], strides = [1, 1]} : vector<8x1728xf32> to vector<8x48xf32>
    %cst_30 = arith.constant dense<0.000000e+00> : vector<12x48xf32>
    %97 = tpu.matmul %95, %96, %cst_30 {dimension_numbers = #tpu.dot_dimension_numbers<[1], [0], [0], [1], [0, 0, 1, 1], [], []>} : vector<12x8xf32>, vector<8x48xf32>, vector<12x48xf32> -> vector<12x48xf32>
    %98 = arith.addf %94, %97 : vector<12x48xf32>
    %99 = vector.extract_strided_slice %7 {offsets = [0, 320], sizes = [12, 8], strides = [1, 1]} : vector<12x512xf32> to vector<12x8xf32>
    %100 = vector.extract_strided_slice %11 {offsets = [0, 1056], sizes = [8, 48], strides = [1, 1]} : vector<8x1728xf32> to vector<8x48xf32>
    %cst_31 = arith.constant dense<0.000000e+00> : vector<12x48xf32>
    %101 = tpu.matmul %99, %100, %cst_31 {dimension_numbers = #tpu.dot_dimension_numbers<[1], [0], [0], [1], [0, 0, 1, 1], [], []>} : vector<12x8xf32>, vector<8x48xf32>, vector<12x48xf32> -> vector<12x48xf32>
    %102 = arith.addf %98, %101 : vector<12x48xf32>
    %103 = vector.extract_strided_slice %7 {offsets = [0, 328], sizes = [12, 8], strides = [1, 1]} : vector<12x512xf32> to vector<12x8xf32>
    %104 = vector.extract_strided_slice %11 {offsets = [0, 1104], sizes = [8, 48], strides = [1, 1]} : vector<8x1728xf32> to vector<8x48xf32>
    %cst_32 = arith.constant dense<0.000000e+00> : vector<12x48xf32>
    %105 = tpu.matmul %103, %104, %cst_32 {dimension_numbers = #tpu.dot_dimension_numbers<[1], [0], [0], [1], [0, 0, 1, 1], [], []>} : vector<12x8xf32>, vector<8x48xf32>, vector<12x48xf32> -> vector<12x48xf32>
    %106 = arith.addf %102, %105 : vector<12x48xf32>
    %107 = vector.extract_strided_slice %7 {offsets = [0, 336], sizes = [12, 8], strides = [1, 1]} : vector<12x512xf32> to vector<12x8xf32>
    %108 = vector.extract_strided_slice %11 {offsets = [0, 1152], sizes = [8, 48], strides = [1, 1]} : vector<8x1728xf32> to vector<8x48xf32>
    %cst_33 = arith.constant dense<0.000000e+00> : vector<12x48xf32>
    %109 = tpu.matmul %107, %108, %cst_33 {dimension_numbers = #tpu.dot_dimension_numbers<[1], [0], [0], [1], [0, 0, 1, 1], [], []>} : vector<12x8xf32>, vector<8x48xf32>, vector<12x48xf32> -> vector<12x48xf32>
    %110 = arith.addf %106, %109 : vector<12x48xf32>
    %111 = vector.extract_strided_slice %7 {offsets = [0, 344], sizes = [12, 8], strides = [1, 1]} : vector<12x512xf32> to vector<12x8xf32>
    %112 = vector.extract_strided_slice %11 {offsets = [0, 1200], sizes = [8, 48], strides = [1, 1]} : vector<8x1728xf32> to vector<8x48xf32>
    %cst_34 = arith.constant dense<0.000000e+00> : vector<12x48xf32>
    %113 = tpu.matmul %111, %112, %cst_34 {dimension_numbers = #tpu.dot_dimension_numbers<[1], [0], [0], [1], [0, 0, 1, 1], [], []>} : vector<12x8xf32>, vector<8x48xf32>, vector<12x48xf32> -> vector<12x48xf32>
    %114 = arith.addf %110, %113 : vector<12x48xf32>
    %115 = vector.extract_strided_slice %7 {offsets = [0, 352], sizes = [12, 8], strides = [1, 1]} : vector<12x512xf32> to vector<12x8xf32>
    %116 = vector.extract_strided_slice %11 {offsets = [0, 1248], sizes = [8, 48], strides = [1, 1]} : vector<8x1728xf32> to vector<8x48xf32>
    %cst_35 = arith.constant dense<0.000000e+00> : vector<12x48xf32>
    %117 = tpu.matmul %115, %116, %cst_35 {dimension_numbers = #tpu.dot_dimension_numbers<[1], [0], [0], [1], [0, 0, 1, 1], [], []>} : vector<12x8xf32>, vector<8x48xf32>, vector<12x48xf32> -> vector<12x48xf32>
    %118 = arith.addf %114, %117 : vector<12x48xf32>
    %119 = vector.extract_strided_slice %7 {offsets = [0, 360], sizes = [12, 8], strides = [1, 1]} : vector<12x512xf32> to vector<12x8xf32>
    %120 = vector.extract_strided_slice %11 {offsets = [0, 1296], sizes = [8, 48], strides = [1, 1]} : vector<8x1728xf32> to vector<8x48xf32>
    %cst_36 = arith.constant dense<0.000000e+00> : vector<12x48xf32>
    %121 = tpu.matmul %119, %120, %cst_36 {dimension_numbers = #tpu.dot_dimension_numbers<[1], [0], [0], [1], [0, 0, 1, 1], [], []>} : vector<12x8xf32>, vector<8x48xf32>, vector<12x48xf32> -> vector<12x48xf32>
    %122 = arith.addf %118, %121 : vector<12x48xf32>
    %123 = vector.extract_strided_slice %7 {offsets = [0, 368], sizes = [12, 8], strides = [1, 1]} : vector<12x512xf32> to vector<12x8xf32>
    %124 = vector.extract_strided_slice %11 {offsets = [0, 1344], sizes = [8, 48], strides = [1, 1]} : vector<8x1728xf32> to vector<8x48xf32>
    %cst_37 = arith.constant dense<0.000000e+00> : vector<12x48xf32>
    %125 = tpu.matmul %123, %124, %cst_37 {dimension_numbers = #tpu.dot_dimension_numbers<[1], [0], [0], [1], [0, 0, 1, 1], [], []>} : vector<12x8xf32>, vector<8x48xf32>, vector<12x48xf32> -> vector<12x48xf32>
    %126 = arith.addf %122, %125 : vector<12x48xf32>
    %127 = vector.extract_strided_slice %7 {offsets = [0, 376], sizes = [12, 8], strides = [1, 1]} : vector<12x512xf32> to vector<12x8xf32>
    %128 = vector.extract_strided_slice %11 {offsets = [0, 1392], sizes = [8, 48], strides = [1, 1]} : vector<8x1728xf32> to vector<8x48xf32>
    %cst_38 = arith.constant dense<0.000000e+00> : vector<12x48xf32>
    %129 = tpu.matmul %127, %128, %cst_38 {dimension_numbers = #tpu.dot_dimension_numbers<[1], [0], [0], [1], [0, 0, 1, 1], [], []>} : vector<12x8xf32>, vector<8x48xf32>, vector<12x48xf32> -> vector<12x48xf32>
    %130 = arith.addf %126, %129 : vector<12x48xf32>
    %131 = vector.extract_strided_slice %7 {offsets = [0, 384], sizes = [12, 8], strides = [1, 1]} : vector<12x512xf32> to vector<12x8xf32>
    %132 = vector.extract_strided_slice %11 {offsets = [0, 1440], sizes = [8, 48], strides = [1, 1]} : vector<8x1728xf32> to vector<8x48xf32>
    %cst_39 = arith.constant dense<0.000000e+00> : vector<12x48xf32>
    %133 = tpu.matmul %131, %132, %cst_39 {dimension_numbers = #tpu.dot_dimension_numbers<[1], [0], [0], [1], [0, 0, 1, 1], [], []>} : vector<12x8xf32>, vector<8x48xf32>, vector<12x48xf32> -> vector<12x48xf32>
    %134 = arith.addf %130, %133 : vector<12x48xf32>
    %135 = vector.extract_strided_slice %7 {offsets = [0, 392], sizes = [12, 8], strides = [1, 1]} : vector<12x512xf32> to vector<12x8xf32>
    %136 = vector.extract_strided_slice %11 {offsets = [0, 1488], sizes = [8, 48], strides = [1, 1]} : vector<8x1728xf32> to vector<8x48xf32>
    %cst_40 = arith.constant dense<0.000000e+00> : vector<12x48xf32>
    %137 = tpu.matmul %135, %136, %cst_40 {dimension_numbers = #tpu.dot_dimension_numbers<[1], [0], [0], [1], [0, 0, 1, 1], [], []>} : vector<12x8xf32>, vector<8x48xf32>, vector<12x48xf32> -> vector<12x48xf32>
    %138 = arith.addf %134, %137 : vector<12x48xf32>
    %139 = vector.extract_strided_slice %7 {offsets = [0, 400], sizes = [12, 8], strides = [1, 1]} : vector<12x512xf32> to vector<12x8xf32>
    %140 = vector.extract_strided_slice %11 {offsets = [0, 1536], sizes = [8, 48], strides = [1, 1]} : vector<8x1728xf32> to vector<8x48xf32>
    %cst_41 = arith.constant dense<0.000000e+00> : vector<12x48xf32>
    %141 = tpu.matmul %139, %140, %cst_41 {dimension_numbers = #tpu.dot_dimension_numbers<[1], [0], [0], [1], [0, 0, 1, 1], [], []>} : vector<12x8xf32>, vector<8x48xf32>, vector<12x48xf32> -> vector<12x48xf32>
    %142 = arith.addf %138, %141 : vector<12x48xf32>
    %143 = vector.extract_strided_slice %7 {offsets = [0, 408], sizes = [12, 8], strides = [1, 1]} : vector<12x512xf32> to vector<12x8xf32>
    %144 = vector.extract_strided_slice %11 {offsets = [0, 1584], sizes = [8, 48], strides = [1, 1]} : vector<8x1728xf32> to vector<8x48xf32>
    %cst_42 = arith.constant dense<0.000000e+00> : vector<12x48xf32>
    %145 = tpu.matmul %143, %144, %cst_42 {dimension_numbers = #tpu.dot_dimension_numbers<[1], [0], [0], [1], [0, 0, 1, 1], [], []>} : vector<12x8xf32>, vector<8x48xf32>, vector<12x48xf32> -> vector<12x48xf32>
    %146 = arith.addf %142, %145 : vector<12x48xf32>
    %147 = vector.extract_strided_slice %7 {offsets = [0, 416], sizes = [12, 8], strides = [1, 1]} : vector<12x512xf32> to vector<12x8xf32>
    %148 = vector.extract_strided_slice %11 {offsets = [0, 1632], sizes = [8, 48], strides = [1, 1]} : vector<8x1728xf32> to vector<8x48xf32>
    %cst_43 = arith.constant dense<0.000000e+00> : vector<12x48xf32>
    %149 = tpu.matmul %147, %148, %cst_43 {dimension_numbers = #tpu.dot_dimension_numbers<[1], [0], [0], [1], [0, 0, 1, 1], [], []>} : vector<12x8xf32>, vector<8x48xf32>, vector<12x48xf32> -> vector<12x48xf32>
    %150 = arith.addf %146, %149 : vector<12x48xf32>
    %151 = vector.extract_strided_slice %7 {offsets = [0, 424], sizes = [12, 8], strides = [1, 1]} : vector<12x512xf32> to vector<12x8xf32>
    %152 = vector.extract_strided_slice %11 {offsets = [0, 1680], sizes = [8, 48], strides = [1, 1]} : vector<8x1728xf32> to vector<8x48xf32>
    %cst_44 = arith.constant dense<0.000000e+00> : vector<12x48xf32>
    %153 = tpu.matmul %151, %152, %cst_44 {dimension_numbers = #tpu.dot_dimension_numbers<[1], [0], [0], [1], [0, 0, 1, 1], [], []>} : vector<12x8xf32>, vector<8x48xf32>, vector<12x48xf32> -> vector<12x48xf32>
    %154 = arith.addf %150, %153 : vector<12x48xf32>
    %c0_45 = arith.constant 0 : index
    %c0_46 = arith.constant 0 : index
    %155 = vector.load %arg6[%c0_45, %c0_46] : memref<1x48xf32, #tpu.memory_space<vmem>>, vector<1x48xf32>
    %156 = vector.broadcast %155 : vector<1x48xf32> to vector<12x48xf32>
    %157 = arith.addf %154, %156 : vector<12x48xf32>
    %cst_47 = arith.constant 0.000000e+00 : f32
    %158 = vector.broadcast %cst_47 : f32 to vector<12x48xf32>
    %159 = arith.maximumf %157, %158 : vector<12x48xf32>
    %c0_48 = arith.constant 0 : index
    %c0_49 = arith.constant 0 : index
    %160 = vector.load %arg7[%c0_48, %c0_49] : memref<48x144xf32, #tpu.memory_space<vmem>>, vector<48x144xf32>
    %cst_50 = arith.constant dense<0.000000e+00> : vector<12x144xf32>
    %161 = tpu.matmul %159, %160, %cst_50 {dimension_numbers = #tpu.dot_dimension_numbers<[1], [0], [0], [1], [0, 0, 1, 1], [], []>} : vector<12x48xf32>, vector<48x144xf32>, vector<12x144xf32> -> vector<12x144xf32>
    %162 = arith.addf %8, %161 : vector<12x144xf32>
    %c0_51 = arith.constant 0 : index
    %c0_52 = arith.constant 0 : index
    %163 = vector.load %arg8[%c0_51, %c0_52] : memref<48x144xf32, #tpu.memory_space<vmem>>, vector<48x144xf32>
    %cst_53 = arith.constant dense<0.000000e+00> : vector<12x144xf32>
    %164 = tpu.matmul %5, %163, %cst_53 {dimension_numbers = #tpu.dot_dimension_numbers<[1], [0], [0], [1], [0, 0, 1, 1], [], []>} : vector<12x48xf32>, vector<48x144xf32>, vector<12x144xf32> -> vector<12x144xf32>
    %c0_54 = arith.constant 0 : index
    %c0_55 = arith.constant 0 : index
    %165 = vector.load %arg9[%c0_54, %c0_55] : memref<1x144xf32, #tpu.memory_space<vmem>>, vector<1x144xf32>
    %166 = vector.broadcast %165 : vector<1x144xf32> to vector<12x144xf32>
    %167 = arith.addf %164, %166 : vector<12x144xf32>
    %168 = vector.extract_strided_slice %162 {offsets = [0, 0], sizes = [12, 48], strides = [1, 1]} : vector<12x144xf32> to vector<12x48xf32>
    %169 = vector.extract_strided_slice %167 {offsets = [0, 0], sizes = [12, 48], strides = [1, 1]} : vector<12x144xf32> to vector<12x48xf32>
    %170 = arith.addf %168, %169 : vector<12x48xf32>
    %171 = arith.negf %170 : vector<12x48xf32>
    %172 = math.exp %171 : vector<12x48xf32>
    %cst_56 = arith.constant 1.000000e+00 : f32
    %173 = vector.broadcast %cst_56 : f32 to vector<12x48xf32>
    %174 = arith.addf %173, %172 : vector<12x48xf32>
    %175 = arith.divf %173, %174 : vector<12x48xf32>
    %176 = vector.extract_strided_slice %162 {offsets = [0, 48], sizes = [12, 48], strides = [1, 1]} : vector<12x144xf32> to vector<12x48xf32>
    %177 = vector.extract_strided_slice %167 {offsets = [0, 48], sizes = [12, 48], strides = [1, 1]} : vector<12x144xf32> to vector<12x48xf32>
    %178 = arith.addf %176, %177 : vector<12x48xf32>
    %179 = arith.negf %178 : vector<12x48xf32>
    %180 = math.exp %179 : vector<12x48xf32>
    %cst_57 = arith.constant 1.000000e+00 : f32
    %181 = vector.broadcast %cst_57 : f32 to vector<12x48xf32>
    %182 = arith.addf %181, %180 : vector<12x48xf32>
    %183 = arith.divf %181, %182 : vector<12x48xf32>
    %184 = vector.extract_strided_slice %162 {offsets = [0, 96], sizes = [12, 48], strides = [1, 1]} : vector<12x144xf32> to vector<12x48xf32>
    %185 = vector.extract_strided_slice %167 {offsets = [0, 96], sizes = [12, 48], strides = [1, 1]} : vector<12x144xf32> to vector<12x48xf32>
    %186 = arith.mulf %175, %185 : vector<12x48xf32>
    %187 = arith.addf %184, %186 : vector<12x48xf32>
    %188 = math.tanh %187 : vector<12x48xf32>
    %cst_58 = arith.constant 1.000000e+00 : f32
    %189 = vector.broadcast %cst_58 : f32 to vector<12x48xf32>
    %190 = arith.subf %189, %183 : vector<12x48xf32>
    %191 = arith.mulf %190, %188 : vector<12x48xf32>
    %192 = arith.mulf %183, %5 : vector<12x48xf32>
    %193 = arith.addf %191, %192 : vector<12x48xf32>
    %c0_59 = arith.constant 0 : index
    %c0_60 = arith.constant 0 : index
    %194 = vector.load %arg16[%c0_59, %c0_60] : memref<12x48xf32, #tpu.memory_space<vmem>>, vector<12x48xf32>
    tpu.vector_store %arg16[%c0_59, %c0_60], %193 {strides = array<i32>} : memref<12x48xf32, #tpu.memory_space<vmem>>, vector<12x48xf32>,
    %c0_61 = arith.constant 0 : index
    %c0_62 = arith.constant 0 : index
    %195 = vector.load %arg10[%c0_61, %c0_62] : memref<1x48xf32, #tpu.memory_space<vmem>>, vector<1x48xf32>
    %196 = vector.broadcast %195 : vector<1x48xf32> to vector<12x48xf32>
    %197 = arith.mulf %193, %196 : vector<12x48xf32>
    %cst_63 = arith.constant dense<0.000000e+00> : vector<12xf32>
    %198 = vector.multi_reduction <add>, %197, %cst_63 [1] : vector<12x48xf32> to vector<12xf32>
    %199 = vector.shape_cast %198 : vector<12xf32> to vector<12x1xf32>
    %c0_64 = arith.constant 0 : index
    %c0_65 = arith.constant 0 : index
    %200 = vector.load %arg11[%c0_64, %c0_65] : memref<1x1xf32, #tpu.memory_space<vmem>>, vector<1x1xf32>
    %201 = vector.broadcast %200 : vector<1x1xf32> to vector<12x1xf32>
    %202 = arith.addf %199, %201 : vector<12x1xf32>
    %c0_i32_66 = arith.constant 0 : i32
    %203 = arith.cmpi eq, %arg2, %c0_i32_66 : i32
    %204 = arith.extui %203 : i1 to i32
    %c0_i32_67 = arith.constant 0 : i32
    %205 = arith.cmpi ne, %204, %c0_i32_67 : i32
    scf.if %205 {
      %c0_72 = arith.constant 0 : index
      %c0_73 = arith.constant 0 : index
      %214 = vector.load %arg17[%c0_72, %c0_73] : memref<12x1xf32, #tpu.memory_space<vmem>>, vector<12x1xf32>
      tpu.vector_store %arg17[%c0_72, %c0_73], %202 {strides = array<i32>} : memref<12x1xf32, #tpu.memory_space<vmem>>, vector<12x1xf32>,
    } else {
    }
    %c0_i32_68 = arith.constant 0 : i32
    %206 = arith.cmpi ne, %arg2, %c0_i32_68 : i32
    %207 = arith.extui %206 : i1 to i32
    %c0_i32_69 = arith.constant 0 : i32
    %208 = arith.cmpi ne, %207, %c0_i32_69 : i32
    scf.if %208 {
      %c0_72 = arith.constant 0 : index
      %c0_73 = arith.constant 0 : index
      %214 = vector.load %arg17[%c0_72, %c0_73] : memref<12x1xf32, #tpu.memory_space<vmem>>, vector<12x1xf32>
      %215 = arith.addf %214, %202 : vector<12x1xf32>
      %c0_74 = arith.constant 0 : index
      %c0_75 = arith.constant 0 : index
      %216 = vector.load %arg17[%c0_74, %c0_75] : memref<12x1xf32, #tpu.memory_space<vmem>>, vector<12x1xf32>
      tpu.vector_store %arg17[%c0_74, %c0_75], %215 {strides = array<i32>} : memref<12x1xf32, #tpu.memory_space<vmem>>, vector<12x1xf32>,
    } else {
    }
    %c0_i32_70 = arith.constant 0 : i32
    %209 = arith.cmpi eq, %arg1, %c0_i32_70 : i32
    %c7_i32 = arith.constant 7 : i32
    %210 = arith.cmpi eq, %arg2, %c7_i32 : i32
    %211 = arith.andi %209, %210 : i1
    %212 = arith.extui %211 : i1 to i32
    %c0_i32_71 = arith.constant 0 : i32
    %213 = arith.cmpi ne, %212, %c0_i32_71 : i32
    scf.if %213 {
      %c0_72 = arith.constant 0 : index
      %c0_73 = arith.constant 0 : index
      %214 = vector.load %arg12[%c0_72, %c0_73] : memref<48x80xf32, #tpu.memory_space<vmem>>, vector<48x80xf32>
      %cst_74 = arith.constant dense<0.000000e+00> : vector<12x80xf32>
      %215 = tpu.matmul %193, %214, %cst_74 {dimension_numbers = #tpu.dot_dimension_numbers<[1], [0], [0], [1], [0, 0, 1, 1], [], []>} : vector<12x48xf32>, vector<48x80xf32>, vector<12x80xf32> -> vector<12x80xf32>
      %c0_75 = arith.constant 0 : index
      %c0_76 = arith.constant 0 : index
      %216 = vector.load %arg13[%c0_75, %c0_76] : memref<1x80xf32, #tpu.memory_space<vmem>>, vector<1x80xf32>
      %217 = vector.broadcast %216 : vector<1x80xf32> to vector<12x80xf32>
      %218 = arith.addf %215, %217 : vector<12x80xf32>
      %cst_77 = arith.constant 0.000000e+00 : f32
      %219 = vector.broadcast %cst_77 : f32 to vector<12x80xf32>
      %220 = arith.maximumf %218, %219 : vector<12x80xf32>
      %c0_78 = arith.constant 0 : index
      %c0_79 = arith.constant 0 : index
      %c0_80 = arith.constant 0 : index
      %221 = vector.load %arg14[%c0_78, %c0_79, %c0_80] : memref<1x12x80xf32, #tpu.memory_space<vmem>>, vector<1x12x80xf32>
      %222 = vector.shape_cast %221 : vector<1x12x80xf32> to vector<12x80xf32>
      %223 = vector.shape_cast %220 : vector<12x80xf32> to vector<1x12x80xf32>
      tpu.vector_store %arg14[%c0_78, %c0_79, %c0_80], %223 {strides = array<i32>} : memref<1x12x80xf32, #tpu.memory_space<vmem>>, vector<1x12x80xf32>,
      %c0_81 = arith.constant 0 : index
      %c0_82 = arith.constant 0 : index
      %224 = vector.load %arg17[%c0_81, %c0_82] : memref<12x1xf32, #tpu.memory_space<vmem>>, vector<12x1xf32>
      %c0_83 = arith.constant 0 : index
      %c0_84 = arith.constant 0 : index
      %c0_85 = arith.constant 0 : index
      %225 = vector.load %arg15[%c0_83, %c0_84, %c0_85] : memref<1x12x1xf32, #tpu.memory_space<vmem>>, vector<1x12x1xf32>
      %226 = vector.shape_cast %225 : vector<1x12x1xf32> to vector<12x1xf32>
      %227 = vector.shape_cast %224 : vector<12x1xf32> to vector<1x12x1xf32>
      tpu.vector_store %arg15[%c0_83, %c0_84, %c0_85], %227 {strides = array<i32>} : memref<1x12x1xf32, #tpu.memory_space<vmem>>, vector<1x12x1xf32>,
    } else {
    }
    return
  }
  func.func @transform_0(%arg0: i32, %arg1: i32, %arg2: i32) -> (i32, i32, i32) {
    %c0_i32 = arith.constant 0 : i32
    %c0_i32_0 = arith.constant 0 : i32
    %c0_i32_1 = arith.constant 0 : i32
    return %arg0, %c0_i32, %c0_i32_0 : i32, i32, i32
  }
  func.func @transform_1(%arg0: i32, %arg1: i32, %arg2: i32) -> (i32, i32, i32, i32) {
    %c0_i32 = arith.constant 0 : i32
    %c0_i32_0 = arith.constant 0 : i32
    %c0_i32_1 = arith.constant 0 : i32
    return %arg2, %arg0, %c0_i32, %c0_i32_0 : i32, i32, i32, i32
  }
  func.func @transform_2(%arg0: i32, %arg1: i32, %arg2: i32) -> (i32, i32) {
    %c0_i32 = arith.constant 0 : i32
    %c0_i32_0 = arith.constant 0 : i32
    %c0_i32_1 = arith.constant 0 : i32
    return %c0_i32, %c0_i32_0 : i32, i32
  }
  func.func @transform_3(%arg0: i32, %arg1: i32, %arg2: i32) -> (i32, i32) {
    %c0_i32 = arith.constant 0 : i32
    %c0_i32_0 = arith.constant 0 : i32
    %c0_i32_1 = arith.constant 0 : i32
    return %c0_i32, %c0_i32_0 : i32, i32
  }
  func.func @transform_4(%arg0: i32, %arg1: i32, %arg2: i32) -> (i32, i32) {
    %c0_i32 = arith.constant 0 : i32
    %c0_i32_0 = arith.constant 0 : i32
    %c0_i32_1 = arith.constant 0 : i32
    return %c0_i32, %c0_i32_0 : i32, i32
  }
  func.func @transform_5(%arg0: i32, %arg1: i32, %arg2: i32) -> (i32, i32) {
    %c0_i32 = arith.constant 0 : i32
    %c0_i32_0 = arith.constant 0 : i32
    %c0_i32_1 = arith.constant 0 : i32
    return %c0_i32, %c0_i32_0 : i32, i32
  }
  func.func @transform_6(%arg0: i32, %arg1: i32, %arg2: i32) -> (i32, i32) {
    %c0_i32 = arith.constant 0 : i32
    %c0_i32_0 = arith.constant 0 : i32
    %c0_i32_1 = arith.constant 0 : i32
    return %c0_i32, %c0_i32_0 : i32, i32
  }
  func.func @transform_7(%arg0: i32, %arg1: i32, %arg2: i32) -> (i32, i32) {
    %c0_i32 = arith.constant 0 : i32
    %c0_i32_0 = arith.constant 0 : i32
    %c0_i32_1 = arith.constant 0 : i32
    return %c0_i32, %c0_i32_0 : i32, i32
  }
  func.func @transform_8(%arg0: i32, %arg1: i32, %arg2: i32) -> (i32, i32) {
    %c0_i32 = arith.constant 0 : i32
    %c0_i32_0 = arith.constant 0 : i32
    %c0_i32_1 = arith.constant 0 : i32
    return %c0_i32, %c0_i32_0 : i32, i32
  }
  func.func @transform_9(%arg0: i32, %arg1: i32, %arg2: i32) -> (i32, i32) {
    %c0_i32 = arith.constant 0 : i32
    %c0_i32_0 = arith.constant 0 : i32
    %c0_i32_1 = arith.constant 0 : i32
    return %c0_i32, %c0_i32_0 : i32, i32
  }
  func.func @transform_10(%arg0: i32, %arg1: i32, %arg2: i32) -> (i32, i32) {
    %c0_i32 = arith.constant 0 : i32
    %c0_i32_0 = arith.constant 0 : i32
    %c0_i32_1 = arith.constant 0 : i32
    return %c0_i32, %c0_i32_0 : i32, i32
  }
  func.func @transform_11(%arg0: i32, %arg1: i32, %arg2: i32) -> (i32, i32, i32) {
    %c0_i32 = arith.constant 0 : i32
    %c0_i32_0 = arith.constant 0 : i32
    %c0_i32_1 = arith.constant 0 : i32
    return %arg0, %c0_i32, %c0_i32_0 : i32, i32, i32
  }
  func.func @transform_12(%arg0: i32, %arg1: i32, %arg2: i32) -> (i32, i32, i32) {
    %c0_i32 = arith.constant 0 : i32
    %c0_i32_0 = arith.constant 0 : i32
    %c0_i32_1 = arith.constant 0 : i32
    return %arg0, %c0_i32, %c0_i32_0 : i32, i32, i32
  }
}

</mosaic_0001>

<llo_original>
// kernel: refine_forward.4
$region0: #{refine_forward.4}
  #allocation0 [shape = 'u32[]', space=smem, size = 0x4, offset = 0x4, fixed_abs, tag = 'smem constant byte address 0x4 - core index']
  #allocation1 [shape = 'u32[144,128]{1,0:T(1,128)}', space=vmem, size = 0x12000, scoped, tag = 'internal scratch']
  %s0 = inlined_call_operand.vmem [shape: f32[512,100], index: 0, kind: input, shape index: {}]
  %s1 = inlined_call_operand.vmem [shape: f32[100,128], index: 1, kind: input, shape index: {}]
  %s2 = inlined_call_operand.vmem [shape: f32[1,128], index: 2, kind: input, shape index: {}]
  %s3 = inlined_call_operand.vmem [shape: f32[512,128], index: 3, kind: output, shape index: {}]
  %s4 = sld [smem:[#allocation0]]
  $region45: #{refine_forward.4} parent=0
    _
  %s6 = ssub.s32 1, %s4
  %s7 = scalar_select 0, %s6, %s4
  loop: start=0, step=1, limit=4
  $region2: #{refine_forward.4} parent=0 // loop_pre_header
    _
  $region3: #{refine_forward.4} parent=0 // loop_header
    %s9 = sphi 0, %s13
    %p10 = scmp.ge.s32.totalorder %s9, 4
    %s19 = sphi 0, %s21
    %s22 = sphi 0, %s19
    %s23 = sphi 0, %s22
    %s39 = sphi 0, %s23
    %s43 = sphi 0, %s43
    %s45 = sphi 0, %s43
    %s46 = sphi 0, %s45
    %s60 = sphi 0, %s46
    %s64 = sphi 0, %s64
    %s66 = sphi 0, %s64
    %s67 = sphi 0, %s66
    %s81 = sphi 0, %s67
    %s87 = sphi 0, %s89
    %s90 = sphi 0, %s87
    %s91 = sphi 0, %s90
    %s107 = sphi 0, %s91
  $region4: #{refine_forward.4} parent=0 // loop_header_branch
    %12 = sbr.rel (%p10) target = $region8
  $region5: #{refine_forward.4} parent=0 // loop_body
    %s14 = ssub.s32 %s9, 1
    %s15 = ssub.s32 %s9, 2
    %s16 = sadd.s32 %s9, 1
    %s17 = ssub.s32 %s9, %s16
    %p18 = scmp.eq.s32.totalorder %s17, 0
    %s20 = sadd.s32 %s19, 1
    %s21 = scalar_select %p18, %s19, %s20
    %p24 = pneg %p18
    %p25 = scmp.eq.s32.totalorder %s9, 1
    %p26 = por %p24, %p25
    %p27 = scmp.ne.s32.totalorder %s19, %s22
    %p28 = scmp.eq.s32.totalorder %s9, 0
    %p29 = por %p27, %p28
    %p30 = scmp.ne.s32.totalorder %s19, %s22
    %p31 = scmp.eq.s32.totalorder %s14, 1
    %p32 = por %p30, %p31
    %p33 = scmp.ne.s32.totalorder %s22, %s23
    %p34 = scmp.eq.s32.totalorder %s14, 0
    %p35 = por %p33, %p34
    %p36 = scmp.ne.s32.totalorder %s22, %s23
    %p37 = scmp.eq.s32.totalorder %s15, 1
    %p38 = por %p36, %p37
    %p40 = scmp.ne.s32.totalorder %s23, %s39
    %p41 = scmp.eq.s32.totalorder %s15, 0
    %p42 = por %p40, %p41
    %s44 = sadd.s32 %s43, 1
    %p47 = scmp.eq.s32.totalorder %s9, 1
    %p48 = scmp.ne.s32.totalorder %s43, %s45
    %p49 = scmp.eq.s32.totalorder %s9, 0
    %p50 = por %p48, %p49
    %p51 = scmp.ne.s32.totalorder %s43, %s45
    %p52 = scmp.eq.s32.totalorder %s14, 1
    %p53 = por %p51, %p52
    %p54 = scmp.ne.s32.totalorder %s45, %s46
    %p55 = scmp.eq.s32.totalorder %s14, 0
    %p56 = por %p54, %p55
    %p57 = scmp.ne.s32.totalorder %s45, %s46
    %p58 = scmp.eq.s32.totalorder %s15, 1
    %p59 = por %p57, %p58
    %p61 = scmp.ne.s32.totalorder %s46, %s60
    %p62 = scmp.eq.s32.totalorder %s15, 0
    %p63 = por %p61, %p62
    %s65 = sadd.s32 %s64, 1
    %p68 = scmp.eq.s32.totalorder %s9, 1
    %p69 = scmp.ne.s32.totalorder %s64, %s66
    %p70 = scmp.eq.s32.totalorder %s9, 0
    %p71 = por %p69, %p70
    %p72 = scmp.ne.s32.totalorder %s64, %s66
    %p73 = scmp.eq.s32.totalorder %s14, 1
    %p74 = por %p72, %p73
    %p75 = scmp.ne.s32.totalorder %s66, %s67
    %p76 = scmp.eq.s32.totalorder %s14, 0
    %p77 = por %p75, %p76
    %p78 = scmp.ne.s32.totalorder %s66, %s67
    %p79 = scmp.eq.s32.totalorder %s15, 1
    %p80 = por %p78, %p79
    %p82 = scmp.ne.s32.totalorder %s67, %s81
    %p83 = scmp.eq.s32.totalorder %s15, 0
    %p84 = por %p82, %p83
    %s85 = ssub.s32 %s9, %s16
    %p86 = scmp.eq.s32.totalorder %s85, 0
    %s88 = sadd.s32 %s87, 1
    %s89 = scalar_select %p86, %s87, %s88
    %p92 = pneg %p86
    %p93 = scmp.eq.s32.totalorder %s9, 1
    %p94 = por %p92, %p93
    %p95 = scmp.ne.s32.totalorder %s87, %s90
    %p96 = scmp.eq.s32.totalorder %s9, 0
    %p97 = por %p95, %p96
    %p98 = scmp.ne.s32.totalorder %s87, %s90
    %p99 = scmp.eq.s32.totalorder %s14, 1
    %p100 = por %p98, %p99
    %p101 = scmp.ne.s32.totalorder %s90, %s91
    %p102 = scmp.eq.s32.totalorder %s14, 0
    %p103 = por %p101, %p102
    %p104 = scmp.ne.s32.totalorder %s90, %s91
    %p105 = scmp.eq.s32.totalorder %s15, 1
    %p106 = por %p104, %p105
    %p108 = scmp.ne.s32.totalorder %s91, %s107
    %p109 = scmp.eq.s32.totalorder %s15, 0
    %p110 = por %p108, %p109
    %p111 = scmp.le.s32.totalorder 1, %s9
    %p112 = scmp.lt.s32.totalorder %s9, 3
    %p113 = pnand %p111, %p112
    %p114 = pneg %p113
    // Predicated region
    $region9: #{refine_forward.4} parent=5 // pred_check
      _
    $region10: #{refine_forward.4} parent=5 // pred_check_branch
      %116 = sbr.rel (%p113) target = $region12
    $region11: #{refine_forward.4} parent=5 // pred_region
      %s117 = ssub.s32 %s9, 1
      // Predicated region
      $region13: #{refine_forward.4} parent=11 // pred_check
        %p118 = pneg %p56
      $region14: #{refine_forward.4} parent=11 // pred_check_branch
        %120 = sbr.rel (%p118) target = $region16
      $region15: #{refine_forward.4} parent=11 // pred_region
        _
      $region16: #{refine_forward.4} parent=11 // pred_fallthru
        _
      // Predicated region
      $region17: #{refine_forward.4} parent=11 // pred_check
        %p121 = pneg %p77
      $region18: #{refine_forward.4} parent=11 // pred_check_branch
        %123 = sbr.rel (%p121) target = $region20
      $region19: #{refine_forward.4} parent=11 // pred_region
        _
      $region20: #{refine_forward.4} parent=11 // pred_fallthru
        _
    $region12: #{refine_forward.4} parent=5 // pred_fallthru
      _
    %p124 = scmp.lt.s32.totalorder %s9, 2
    // Predicated region
    $region21: #{refine_forward.4} parent=5 // pred_check
      %p125 = pneg %p124
    $region22: #{refine_forward.4} parent=5 // pred_check_branch
      %127 = sbr.rel (%p125) target = $region24
    $region23: #{refine_forward.4} parent=5 // pred_region
      // Predicated region
      $region25: #{refine_forward.4} parent=23 // pred_check
        %p128 = pneg %p29
      $region26: #{refine_forward.4} parent=23 // pred_check_branch
        %130 = sbr.rel (%p128) target = $region28
      $region27: #{refine_forward.4} parent=23 // pred_region
        %s131 = smul.u32 32, %s9
        %p132 = scmp.lt.s32.totalorder %s131, 63
        %s133 = scalar_select %p132, %s131, 63
        %s134 = smul.addr %s133, 8
        %s135 = scalar_lea.vmem %s0, %s134
        %s136 = smul.u32 32, %s9
      $region28: #{refine_forward.4} parent=23 // pred_fallthru
        _
    $region24: #{refine_forward.4} parent=5 // pred_fallthru
      _
    %p137 = scmp.le.s32.totalorder 1, %s9
    %p138 = scmp.lt.s32.totalorder %s9, 3
    %p139 = pnand %p137, %p138
    %p140 = pneg %p139
    // Predicated region
    $region29: #{refine_forward.4} parent=5 // pred_check
      _
    $region30: #{refine_forward.4} parent=5 // pred_check_branch
      %142 = sbr.rel (%p139) target = $region32
    $region31: #{refine_forward.4} parent=5 // pred_region
      %s143 = ssub.s32 %s9, 1
      %s144 = smul.u32 32, %s14
      %p145 = scmp.lt.s32.totalorder %s144, 63
      %s146 = scalar_select %p145, %s144, 63
      %s147 = smul.addr %s146, 8
      %s148 = scalar_lea.vmem %s0, %s147
      %p149 = pneg %p35
      %p150 = pneg %p32
      %p151 = pneg %p56
      %p152 = pneg %p53
      %p153 = pneg %p77
      %p154 = pneg %p74
      %p155 = pneg %p103
      %p156 = pneg %p100
      %s157 = smul.u32 32, %s14
      %p158 = scmp.lt.s32.totalorder %s157, 63
      %s159 = scalar_select %p158, %s157, 63
      %s160 = smul.addr %s159, 8
      %s161 = scalar_lea.vmem %s3, %s160
      %s162 = smul.u32 32, %s14
      %p163 = scmp.lt.s32.totalorder %s162, 63
      %s164 = scalar_select %p163, %s162, 63
      %s165 = smul.addr %s164, 8
      %s166 = scalar_lea.vmem %s0, %s165
      %s167 = smul.u32 32, %s14
      %s168 = smul.u32 32, %s14
      %p169 = scmp.lt.s32.totalorder %s168, 63
      %s170 = scalar_select %p169, %s168, 63
      %s171 = smul.addr %s170, 8
      %s172 = scalar_lea.vmem %s3, %s171
      %s173 = smul.u32 32, %s14
      %v174 = vld [vmem:[%s166] sm:$0xff]
      %v175 = vld [vmem:[%s166 + $0x8] sm:$0xff]
      %v176 = vld [vmem:[%s166 + $0x10] sm:$0xff]
      %v177 = vld [vmem:[%s166 + $0x18] sm:$0xff]
      %v178 = vld [vmem:[%s166 + $0x20] sm:$0xff]
      %v179 = vld [vmem:[%s166 + $0x28] sm:$0xff]
      %v180 = vld [vmem:[%s166 + $0x30] sm:$0xff]
      %v181 = vld [vmem:[%s166 + $0x38] sm:$0xff]
      %v182 = vld [vmem:[%s166 + $0x40] sm:$0xff]
      %v183 = vld [vmem:[%s166 + $0x48] sm:$0xff]
      %v184 = vld [vmem:[%s166 + $0x50] sm:$0xff]
      %v185 = vld [vmem:[%s166 + $0x58] sm:$0xff]
      %v186 = vld [vmem:[%s166 + $0x60] sm:$0xff]
      %v187 = vld [vmem:[%s166 + $0x68] sm:$0xff]
      %v188 = vld [vmem:[%s166 + $0x70] sm:$0xff]
      %v189 = vld [vmem:[%s166 + $0x78] sm:$0xff]
      %v190 = vld [vmem:[%s166 + $0x80] sm:$0xff]
      %v191 = vld [vmem:[%s166 + $0x88] sm:$0xff]
      %v192 = vld [vmem:[%s166 + $0x90] sm:$0xff]
      %v193 = vld [vmem:[%s166 + $0x98] sm:$0xff]
      %v194 = vld [vmem:[%s166 + $0xa0] sm:$0xff]
      %v195 = vld [vmem:[%s166 + $0xa8] sm:$0xff]
      %v196 = vld [vmem:[%s166 + $0xb0] sm:$0xff]
      %v197 = vld [vmem:[%s166 + $0xb8] sm:$0xff]
      %v198 = vld [vmem:[%s166 + $0xc0] sm:$0xff]
      %v199 = vld [vmem:[%s166 + $0xc8] sm:$0xff]
      %v200 = vld [vmem:[%s166 + $0xd0] sm:$0xff]
      %v201 = vld [vmem:[%s166 + $0xd8] sm:$0xff]
      %v202 = vld [vmem:[%s166 + $0xe0] sm:$0xff]
      %v203 = vld [vmem:[%s166 + $0xe8] sm:$0xff]
      %v204 = vld [vmem:[%s166 + $0xf0] sm:$0xff]
      %v205 = vld [vmem:[%s166 + $0xf8] sm:$0xff]
      %v206 = vld [vmem:[%s1] sm:$0xff]
      %v207 = vld [vmem:[%s1 + $0x8] sm:$0xff]
      %v208 = vld [vmem:[%s1 + $0x10] sm:$0xff]
      %v209 = vld [vmem:[%s1 + $0x18] sm:$0xff]
      %v210 = vld [vmem:[%s1 + $0x20] sm:$0xff]
      %v211 = vld [vmem:[%s1 + $0x28] sm:$0xff]
      %v212 = vld [vmem:[%s1 + $0x30] sm:$0xff]
      %v213 = vld [vmem:[%s1 + $0x38] sm:$0xff]
      %v214 = vld [vmem:[%s1 + $0x40] sm:$0xff]
      %v215 = vld [vmem:[%s1 + $0x48] sm:$0xff]
      %v216 = vld [vmem:[%s1 + $0x50] sm:$0xff]
      %v217 = vld [vmem:[%s1 + $0x58] sm:$0xff]
      %v218 = vld [vmem:[%s1 + $0x60] sm:$0xf]
      %v219 = vld [vmem:[%s2] sm:$0x1]
      %v221 = vlaneseq
      %v222 = vshrl.u32 %v221, 7
      %v223 = vsub.s32 0, %v222
      %v224 = vrot.slane %v219, %v223
      %vm226 = vcmask 818176
      %v228 = vsel %vm226, %v174, 0
      %v231 = vsel %vm226, %v175, 0
      %v234 = vsel %vm226, %v176, 0
      %v237 = vsel %vm226, %v177, 0
      %v240 = vsel %vm226, %v178, 0
      %v243 = vsel %vm226, %v179, 0
      %v246 = vsel %vm226, %v180, 0
      %v249 = vsel %vm226, %v181, 0
      %v252 = vsel %vm226, %v182, 0
      %v255 = vsel %vm226, %v183, 0
      %v258 = vsel %vm226, %v184, 0
      %v261 = vsel %vm226, %v185, 0
      %v264 = vsel %vm226, %v186, 0
      %v267 = vsel %vm226, %v187, 0
      %v270 = vsel %vm226, %v188, 0
      %v273 = vsel %vm226, %v189, 0
      %v276 = vsel %vm226, %v190, 0
      %v279 = vsel %vm226, %v191, 0
      %v282 = vsel %vm226, %v192, 0
      %v285 = vsel %vm226, %v193, 0
      %v288 = vsel %vm226, %v194, 0
      %v291 = vsel %vm226, %v195, 0
      %v294 = vsel %vm226, %v196, 0
      %v297 = vsel %vm226, %v197, 0
      %v300 = vsel %vm226, %v198, 0
      %v303 = vsel %vm226, %v199, 0
      %v306 = vsel %vm226, %v200, 0
      %v309 = vsel %vm226, %v201, 0
      %v312 = vsel %vm226, %v202, 0
      %v315 = vsel %vm226, %v203, 0
      %v318 = vsel %vm226, %v204, 0
      %v321 = vsel %vm226, %v205, 0
      %vm323 = vcmask 1043456
      %v325 = vsel %vm323, %v218, 0
      %327 = vmatprep.subr.mxu0 0.0
      %328 = vmatpush1.msra.mxu0 0.0
      %329 = vmatprep.subr.mxu0 0.0
      %330 = vmatpush1.msra.mxu0 0.0
      %331 = vmatprep.subr.mxu0 0.0
      %332 = vmatpush1.msra.mxu0 0.0
      %333 = vmatprep.subr.mxu0 0.0
      %334 = vmatpush1.msra.mxu0 %v325
      %335 = vmatprep.subr.mxu0 0.0
      %336 = vmatpush1.msra.mxu0 %v217
      %337 = vmatprep.subr.mxu0 0.0
      %338 = vmatpush1.msra.mxu0 %v216
      %339 = vmatprep.subr.mxu0 0.0
      %340 = vmatpush1.msra.mxu0 %v215
      %341 = vmatprep.subr.mxu0 0.0
      %342 = vmatpush1.msra.mxu0 %v214
      %343 = vmatprep.subr.mxu0 0.0
      %344 = vmatpush1.msra.mxu0 %v213
      %345 = vmatprep.subr.mxu0 0.0
      %346 = vmatpush1.msra.mxu0 %v212
      %347 = vmatprep.subr.mxu0 0.0
      %348 = vmatpush1.msra.mxu0 %v211
      %349 = vmatprep.subr.mxu0 0.0
      %350 = vmatpush1.msra.mxu0 %v210
      %351 = vmatprep.subr.mxu0 0.0
      %352 = vmatpush1.msra.mxu0 %v209
      %353 = vmatprep.subr.mxu0 0.0
      %354 = vmatpush1.msra.mxu0 %v208
      %355 = vmatprep.subr.mxu0 0.0
      %356 = vmatpush1.msra.mxu0 %v207
      %357 = vmatprep.subr.mxu0 0.0
      %358 = vmatpush1.msra.mxu0 %v206
      %359 = vmatprep.subr.mxu0 0.0
      %360 = vmatpush2.msra.mxu0 0.0
      %361 = vmatprep.subr.mxu0 0.0
      %362 = vmatpush2.msra.mxu0 0.0
      %363 = vmatprep.subr.mxu0 0.0
      %364 = vmatpush2.msra.mxu0 0.0
      %365 = vmatprep.subr.mxu0 0.0
      %366 = vmatpush2.msra.mxu0 0.0
      %367 = vmatprep.subr.mxu0 0.0
      %368 = vmatpush2.msra.mxu0 0.0
      %369 = vmatprep.subr.mxu0 0.0
      %370 = vmatpush2.msra.mxu0 0.0
      %371 = vmatprep.subr.mxu0 0.0
      %372 = vmatpush2.msra.mxu0 0.0
      %373 = vmatprep.subr.mxu0 0.0
      %374 = vmatpush2.msra.mxu0 0.0
      %375 = vmatprep.subr.mxu0 0.0
      %376 = vmatpush2.msra.mxu0 0.0
      %377 = vmatprep.subr.mxu0 0.0
      %378 = vmatpush2.msra.mxu0 0.0
      %379 = vmatprep.subr.mxu0 0.0
      %380 = vmatpush2.msra.mxu0 0.0
      %381 = vmatprep.subr.mxu0 0.0
      %382 = vmatpush2.msra.mxu0 0.0
      %383 = vmatprep.subr.mxu0 0.0
      %384 = vmatpush2.msra.mxu0 0.0
      %385 = vmatprep.subr.mxu0 0.0
      %386 = vmatpush2.msra.mxu0 0.0
      %387 = vmatprep.subr.mxu0 0.0
      %388 = vmatpush2.msra.mxu0 0.0
      %389 = vmatprep.subr.mxu0 0.0
      %390 = vmatpush2.msra.mxu0 0.0
      %391 = vmatprep.mubr.f32.mxu0 0.0
      %392 = vmatmul.mubr.f32.gmra.mxu0 %v228
      %v393 = vpop.f32.mrf.mxu0
      %v394 = vadd.f32 %v224, %v393
      %v395 = vpop.f32.mrf.mxu0
      %396 = vmatprep.mubr.f32.mxu0 0.0
      %397 = vmatmul.mubr.f32.gmra.mxu0 %v231
      %v398 = vpop.f32.mrf.mxu0
      %v399 = vadd.f32 %v224, %v398
      %v400 = vpop.f32.mrf.mxu0
      %401 = vmatprep.mubr.f32.mxu0 0.0
      %402 = vmatmul.mubr.f32.gmra.mxu0 %v234
      %v403 = vpop.f32.mrf.mxu0
      %v404 = vadd.f32 %v224, %v403
      %v405 = vpop.f32.mrf.mxu0
      %406 = vmatprep.mubr.f32.mxu0 0.0
      %407 = vmatmul.mubr.f32.gmra.mxu0 %v237
      %v408 = vpop.f32.mrf.mxu0
      %v409 = vadd.f32 %v224, %v408
      %v410 = vpop.f32.mrf.mxu0
      %411 = vmatprep.mubr.f32.mxu0 0.0
      %412 = vmatmul.mubr.f32.gmra.mxu0 %v240
      %v413 = vpop.f32.mrf.mxu0
      %v414 = vadd.f32 %v224, %v413
      %v415 = vpop.f32.mrf.mxu0
      %416 = vmatprep.mubr.f32.mxu0 0.0
      %417 = vmatmul.mubr.f32.gmra.mxu0 %v243
      %v418 = vpop.f32.mrf.mxu0
      %v419 = vadd.f32 %v224, %v418
      %v420 = vpop.f32.mrf.mxu0
      %421 = vmatprep.mubr.f32.mxu0 0.0
      %422 = vmatmul.mubr.f32.gmra.mxu0 %v246
      %v423 = vpop.f32.mrf.mxu0
      %v424 = vadd.f32 %v224, %v423
      %v425 = vpop.f32.mrf.mxu0
      %426 = vmatprep.mubr.f32.mxu0 0.0
      %427 = vmatmul.mubr.f32.gmra.mxu0 %v249
      %v428 = vpop.f32.mrf.mxu0
      %v429 = vadd.f32 %v224, %v428
      %v430 = vpop.f32.mrf.mxu0
      %431 = vmatprep.mubr.f32.mxu0 0.0
      %432 = vmatmul.mubr.f32.gmra.mxu0 %v252
      %v433 = vpop.f32.mrf.mxu0
      %v434 = vadd.f32 %v224, %v433
      %v435 = vpop.f32.mrf.mxu0
      %436 = vmatprep.mubr.f32.mxu0 0.0
      %437 = vmatmul.mubr.f32.gmra.mxu0 %v255
      %v438 = vpop.f32.mrf.mxu0
      %v439 = vadd.f32 %v224, %v438
      %v440 = vpop.f32.mrf.mxu0
      %441 = vmatprep.mubr.f32.mxu0 0.0
      %442 = vmatmul.mubr.f32.gmra.mxu0 %v258
      %v443 = vpop.f32.mrf.mxu0
      %v444 = vadd.f32 %v224, %v443
      %v445 = vpop.f32.mrf.mxu0
      %446 = vmatprep.mubr.f32.mxu0 0.0
      %447 = vmatmul.mubr.f32.gmra.mxu0 %v261
      %v448 = vpop.f32.mrf.mxu0
      %v449 = vadd.f32 %v224, %v448
      %v450 = vpop.f32.mrf.mxu0
      %451 = vmatprep.mubr.f32.mxu0 0.0
      %452 = vmatmul.mubr.f32.gmra.mxu0 %v264
      %v453 = vpop.f32.mrf.mxu0
      %v454 = vadd.f32 %v224, %v453
      %v455 = vpop.f32.mrf.mxu0
      %456 = vmatprep.mubr.f32.mxu0 0.0
      %457 = vmatmul.mubr.f32.gmra.mxu0 %v267
      %v458 = vpop.f32.mrf.mxu0
      %v459 = vadd.f32 %v224, %v458
      %v460 = vpop.f32.mrf.mxu0
      %461 = vmatprep.mubr.f32.mxu0 0.0
      %462 = vmatmul.mubr.f32.gmra.mxu0 %v270
      %v463 = vpop.f32.mrf.mxu0
      %v464 = vadd.f32 %v224, %v463
      %v465 = vpop.f32.mrf.mxu0
      %466 = vmatprep.mubr.f32.mxu0 0.0
      %467 = vmatmul.mubr.f32.gmra.mxu0 %v273
      %v468 = vpop.f32.mrf.mxu0
      %v469 = vadd.f32 %v224, %v468
      %v470 = vpop.f32.mrf.mxu0
      %471 = vmatprep.mubr.f32.mxu0 0.0
      %472 = vmatmul.mubr.f32.gmra.mxu0 %v276
      %v473 = vpop.f32.mrf.mxu0
      %v474 = vadd.f32 %v224, %v473
      %v475 = vpop.f32.mrf.mxu0
      %476 = vmatprep.mubr.f32.mxu0 0.0
      %477 = vmatmul.mubr.f32.gmra.mxu0 %v279
      %v478 = vpop.f32.mrf.mxu0
      %v479 = vadd.f32 %v224, %v478
      %v480 = vpop.f32.mrf.mxu0
      %481 = vmatprep.mubr.f32.mxu0 0.0
      %482 = vmatmul.mubr.f32.gmra.mxu0 %v282
      %v483 = vpop.f32.mrf.mxu0
      %v484 = vadd.f32 %v224, %v483
      %v485 = vpop.f32.mrf.mxu0
      %486 = vmatprep.mubr.f32.mxu0 0.0
      %487 = vmatmul.mubr.f32.gmra.mxu0 %v285
      %v488 = vpop.f32.mrf.mxu0
      %v489 = vadd.f32 %v224, %v488
      %v490 = vpop.f32.mrf.mxu0
      %491 = vmatprep.mubr.f32.mxu0 0.0
      %492 = vmatmul.mubr.f32.gmra.mxu0 %v288
      %v493 = vpop.f32.mrf.mxu0
      %v494 = vadd.f32 %v224, %v493
      %v495 = vpop.f32.mrf.mxu0
      %496 = vmatprep.mubr.f32.mxu0 0.0
      %497 = vmatmul.mubr.f32.gmra.mxu0 %v291
      %v498 = vpop.f32.mrf.mxu0
      %v499 = vadd.f32 %v224, %v498
      %v500 = vpop.f32.mrf.mxu0
      %501 = vmatprep.mubr.f32.mxu0 0.0
      %502 = vmatmul.mubr.f32.gmra.mxu0 %v294
      %v503 = vpop.f32.mrf.mxu0
      %v504 = vadd.f32 %v224, %v503
      %v505 = vpop.f32.mrf.mxu0
      %506 = vmatprep.mubr.f32.mxu0 0.0
      %507 = vmatmul.mubr.f32.gmra.mxu0 %v297
      %v508 = vpop.f32.mrf.mxu0
      %v509 = vadd.f32 %v224, %v508
      %v510 = vpop.f32.mrf.mxu0
      %511 = vmatprep.mubr.f32.mxu0 0.0
      %512 = vmatmul.mubr.f32.gmra.mxu0 %v300
      %v513 = vpop.f32.mrf.mxu0
      %v514 = vadd.f32 %v224, %v513
      %v515 = vpop.f32.mrf.mxu0
      %516 = vmatprep.mubr.f32.mxu0 0.0
      %517 = vmatmul.mubr.f32.gmra.mxu0 %v303
      %v518 = vpop.f32.mrf.mxu0
      %v519 = vadd.f32 %v224, %v518
      %v520 = vpop.f32.mrf.mxu0
      %521 = vmatprep.mubr.f32.mxu0 0.0
      %522 = vmatmul.mubr.f32.gmra.mxu0 %v306
      %v523 = vpop.f32.mrf.mxu0
      %v524 = vadd.f32 %v224, %v523
      %v525 = vpop.f32.mrf.mxu0
      %526 = vmatprep.mubr.f32.mxu0 0.0
      %527 = vmatmul.mubr.f32.gmra.mxu0 %v309
      %v528 = vpop.f32.mrf.mxu0
      %v529 = vadd.f32 %v224, %v528
      %v530 = vpop.f32.mrf.mxu0
      %531 = vmatprep.mubr.f32.mxu0 0.0
      %532 = vmatmul.mubr.f32.gmra.mxu0 %v312
      %v533 = vpop.f32.mrf.mxu0
      %v534 = vadd.f32 %v224, %v533
      %v535 = vpop.f32.mrf.mxu0
      %536 = vmatprep.mubr.f32.mxu0 0.0
      %537 = vmatmul.mubr.f32.gmra.mxu0 %v315
      %v538 = vpop.f32.mrf.mxu0
      %v539 = vadd.f32 %v224, %v538
      %v540 = vpop.f32.mrf.mxu0
      %541 = vmatprep.mubr.f32.mxu0 0.0
      %542 = vmatmul.mubr.f32.gmra.mxu0 %v318
      %v543 = vpop.f32.mrf.mxu0
      %v544 = vadd.f32 %v224, %v543
      %v545 = vpop.f32.mrf.mxu0
      %546 = vmatprep.mubr.f32.mxu0 0.0
      %547 = vmatmul.mubr.f32.gmra.mxu0 %v321
      %v548 = vpop.f32.mrf.mxu0
      %v549 = vadd.f32 %v224, %v548
      %v550 = vpop.f32.mrf.mxu0
      %551 = vdwg.mxu0
      %v552 = vmax.f32 %v394, 0.0
      %v553 = vmax.f32 %v399, 0.0
      %v554 = vmax.f32 %v404, 0.0
      %v555 = vmax.f32 %v409, 0.0
      %v556 = vmax.f32 %v414, 0.0
      %v557 = vmax.f32 %v419, 0.0
      %v558 = vmax.f32 %v424, 0.0
      %v559 = vmax.f32 %v429, 0.0
      %v560 = vmax.f32 %v434, 0.0
      %v561 = vmax.f32 %v439, 0.0
      %v562 = vmax.f32 %v444, 0.0
      %v563 = vmax.f32 %v449, 0.0
      %v564 = vmax.f32 %v454, 0.0
      %v565 = vmax.f32 %v459, 0.0
      %v566 = vmax.f32 %v464, 0.0
      %v567 = vmax.f32 %v469, 0.0
      %v568 = vmax.f32 %v474, 0.0
      %v569 = vmax.f32 %v479, 0.0
      %v570 = vmax.f32 %v484, 0.0
      %v571 = vmax.f32 %v489, 0.0
      %v572 = vmax.f32 %v494, 0.0
      %v573 = vmax.f32 %v499, 0.0
      %v574 = vmax.f32 %v504, 0.0
      %v575 = vmax.f32 %v509, 0.0
      %v576 = vmax.f32 %v514, 0.0
      %v577 = vmax.f32 %v519, 0.0
      %v578 = vmax.f32 %v524, 0.0
      %v579 = vmax.f32 %v529, 0.0
      %v580 = vmax.f32 %v534, 0.0
      %v581 = vmax.f32 %v539, 0.0
      %v582 = vmax.f32 %v544, 0.0
      %v583 = vmax.f32 %v549, 0.0
      %584 = vst [vmem:[%s172] sm:$0xff] %v552
      %585 = vst [vmem:[%s172 + $0x8] sm:$0xff] %v553
      %586 = vst [vmem:[%s172 + $0x10] sm:$0xff] %v554
      %587 = vst [vmem:[%s172 + $0x18] sm:$0xff] %v555
      %588 = vst [vmem:[%s172 + $0x20] sm:$0xff] %v556
      %589 = vst [vmem:[%s172 + $0x28] sm:$0xff] %v557
      %590 = vst [vmem:[%s172 + $0x30] sm:$0xff] %v558
      %591 = vst [vmem:[%s172 + $0x38] sm:$0xff] %v559
      %592 = vst [vmem:[%s172 + $0x40] sm:$0xff] %v560
      %593 = vst [vmem:[%s172 + $0x48] sm:$0xff] %v561
      %594 = vst [vmem:[%s172 + $0x50] sm:$0xff] %v562
      %595 = vst [vmem:[%s172 + $0x58] sm:$0xff] %v563
      %596 = vst [vmem:[%s172 + $0x60] sm:$0xff] %v564
      %597 = vst [vmem:[%s172 + $0x68] sm:$0xff] %v565
      %598 = vst [vmem:[%s172 + $0x70] sm:$0xff] %v566
      %599 = vst [vmem:[%s172 + $0x78] sm:$0xff] %v567
      %600 = vst [vmem:[%s172 + $0x80] sm:$0xff] %v568
      %601 = vst [vmem:[%s172 + $0x88] sm:$0xff] %v569
      %602 = vst [vmem:[%s172 + $0x90] sm:$0xff] %v570
      %603 = vst [vmem:[%s172 + $0x98] sm:$0xff] %v571
      %604 = vst [vmem:[%s172 + $0xa0] sm:$0xff] %v572
      %605 = vst [vmem:[%s172 + $0xa8] sm:$0xff] %v573
      %606 = vst [vmem:[%s172 + $0xb0] sm:$0xff] %v574
      %607 = vst [vmem:[%s172 + $0xb8] sm:$0xff] %v575
      %608 = vst [vmem:[%s172 + $0xc0] sm:$0xff] %v576
      %609 = vst [vmem:[%s172 + $0xc8] sm:$0xff] %v577
      %610 = vst [vmem:[%s172 + $0xd0] sm:$0xff] %v578
      %611 = vst [vmem:[%s172 + $0xd8] sm:$0xff] %v579
      %612 = vst [vmem:[%s172 + $0xe0] sm:$0xff] %v580
      %613 = vst [vmem:[%s172 + $0xe8] sm:$0xff] %v581
      %614 = vst [vmem:[%s172 + $0xf0] sm:$0xff] %v582
      %615 = vst [vmem:[%s172 + $0xf8] sm:$0xff] %v583
      %s616 = smul.u32 32, %s14
      %p617 = scmp.lt.s32.totalorder %s616, 63
      %s618 = scalar_select %p617, %s616, 63
      %s619 = smul.addr %s618, 8
      %s620 = scalar_lea.vmem %s3, %s619
      // Predicated region
      $region33: #{refine_forward.4} parent=31 // pred_check
        %p621 = pneg %p100
      $region34: #{refine_forward.4} parent=31 // pred_check_branch
        %623 = sbr.rel (%p621) target = $region36
      $region35: #{refine_forward.4} parent=31 // pred_region
        %s624 = smul.u32 32, %s14
      $region36: #{refine_forward.4} parent=31 // pred_fallthru
        _
    $region32: #{refine_forward.4} parent=5 // pred_fallthru
      _
    %p625 = scmp.le.s32.totalorder 2, %s9
    // Predicated region
    $region37: #{refine_forward.4} parent=5 // pred_check
      %p626 = pneg %p625
    $region38: #{refine_forward.4} parent=5 // pred_check_branch
      %628 = sbr.rel (%p626) target = $region40
    $region39: #{refine_forward.4} parent=5 // pred_region
      %s629 = ssub.s32 %s9, 2
      // Predicated region
      $region41: #{refine_forward.4} parent=39 // pred_check
        %p630 = pneg %p106
      $region42: #{refine_forward.4} parent=39 // pred_check_branch
        %632 = sbr.rel (%p630) target = $region44
      $region43: #{refine_forward.4} parent=39 // pred_region
        %s633 = smul.u32 32, %s15
        %p634 = scmp.lt.s32.totalorder %s633, 63
        %s635 = scalar_select %p634, %s633, 63
        %s636 = smul.addr %s635, 8
        %s637 = scalar_lea.vmem %s3, %s636
      $region44: #{refine_forward.4} parent=39 // pred_fallthru
        _
    $region40: #{refine_forward.4} parent=5 // pred_fallthru
      _
  $region6: #{refine_forward.4} parent=0 // loop_footer
    %s13 = sadd.s32 1, %s9
  $region7: #{refine_forward.4} parent=0 // loop_footer_branch
    %8 = sbr.rel target = $region3
  $region8: #{refine_forward.4} parent=0 // loop_exit
    _

// kernel: refine_forward.5
$region0: #{refine_forward.5}
  #allocation0 [shape = 'u32[]', space=smem, size = 0x4, offset = 0x4, fixed_abs, tag = 'smem constant byte address 0x4 - core index']
  #allocation1 [shape = 'u32[144,128]{1,0:T(1,128)}', space=vmem, size = 0x12000, scoped, tag = 'internal scratch']
  %s0 = inlined_call_operand.vmem [shape: f32[512,400], index: 0, kind: input, shape index: {}]
  %s1 = inlined_call_operand.vmem [shape: f32[400,128], index: 1, kind: input, shape index: {}]
  %s2 = inlined_call_operand.vmem [shape: f32[1,128], index: 2, kind: input, shape index: {}]
  %s3 = inlined_call_operand.vmem [shape: f32[512,128], index: 3, kind: output, shape index: {}]
  %s4 = sld [smem:[#allocation0]]
  $region45: #{refine_forward.5} parent=0
    _
  %s6 = ssub.s32 1, %s4
  %s7 = scalar_select 0, %s6, %s4
  loop: start=0, step=1, limit=4
  $region2: #{refine_forward.5} parent=0 // loop_pre_header
    _
  $region3: #{refine_forward.5} parent=0 // loop_header
    %s9 = sphi 0, %s13
    %p10 = scmp.ge.s32.totalorder %s9, 4
    %s19 = sphi 0, %s21
    %s22 = sphi 0, %s19
    %s23 = sphi 0, %s22
    %s39 = sphi 0, %s23
    %s43 = sphi 0, %s43
    %s45 = sphi 0, %s43
    %s46 = sphi 0, %s45
    %s60 = sphi 0, %s46
    %s64 = sphi 0, %s64
    %s66 = sphi 0, %s64
    %s67 = sphi 0, %s66
    %s81 = sphi 0, %s67
    %s87 = sphi 0, %s89
    %s90 = sphi 0, %s87
    %s91 = sphi 0, %s90
    %s107 = sphi 0, %s91
  $region4: #{refine_forward.5} parent=0 // loop_header_branch
    %12 = sbr.rel (%p10) target = $region8
  $region5: #{refine_forward.5} parent=0 // loop_body
    %s14 = ssub.s32 %s9, 1
    %s15 = ssub.s32 %s9, 2
    %s16 = sadd.s32 %s9, 1
    %s17 = ssub.s32 %s9, %s16
    %p18 = scmp.eq.s32.totalorder %s17, 0
    %s20 = sadd.s32 %s19, 1
    %s21 = scalar_select %p18, %s19, %s20
    %p24 = pneg %p18
    %p25 = scmp.eq.s32.totalorder %s9, 1
    %p26 = por %p24, %p25
    %p27 = scmp.ne.s32.totalorder %s19, %s22
    %p28 = scmp.eq.s32.totalorder %s9, 0
    %p29 = por %p27, %p28
    %p30 = scmp.ne.s32.totalorder %s19, %s22
    %p31 = scmp.eq.s32.totalorder %s14, 1
    %p32 = por %p30, %p31
    %p33 = scmp.ne.s32.totalorder %s22, %s23
    %p34 = scmp.eq.s32.totalorder %s14, 0
    %p35 = por %p33, %p34
    %p36 = scmp.ne.s32.totalorder %s22, %s23
    %p37 = scmp.eq.s32.totalorder %s15, 1
    %p38 = por %p36, %p37
    %p40 = scmp.ne.s32.totalorder %s23, %s39
    %p41 = scmp.eq.s32.totalorder %s15, 0
    %p42 = por %p40, %p41
    %s44 = sadd.s32 %s43, 1
    %p47 = scmp.eq.s32.totalorder %s9, 1
    %p48 = scmp.ne.s32.totalorder %s43, %s45
    %p49 = scmp.eq.s32.totalorder %s9, 0
    %p50 = por %p48, %p49
    %p51 = scmp.ne.s32.totalorder %s43, %s45
    %p52 = scmp.eq.s32.totalorder %s14, 1
    %p53 = por %p51, %p52
    %p54 = scmp.ne.s32.totalorder %s45, %s46
    %p55 = scmp.eq.s32.totalorder %s14, 0
    %p56 = por %p54, %p55
    %p57 = scmp.ne.s32.totalorder %s45, %s46
    %p58 = scmp.eq.s32.totalorder %s15, 1
    %p59 = por %p57, %p58
    %p61 = scmp.ne.s32.totalorder %s46, %s60
    %p62 = scmp.eq.s32.totalorder %s15, 0
    %p63 = por %p61, %p62
    %s65 = sadd.s32 %s64, 1
    %p68 = scmp.eq.s32.totalorder %s9, 1
    %p69 = scmp.ne.s32.totalorder %s64, %s66
    %p70 = scmp.eq.s32.totalorder %s9, 0
    %p71 = por %p69, %p70
    %p72 = scmp.ne.s32.totalorder %s64, %s66
    %p73 = scmp.eq.s32.totalorder %s14, 1
    %p74 = por %p72, %p73
    %p75 = scmp.ne.s32.totalorder %s66, %s67
    %p76 = scmp.eq.s32.totalorder %s14, 0
    %p77 = por %p75, %p76
    %p78 = scmp.ne.s32.totalorder %s66, %s67
    %p79 = scmp.eq.s32.totalorder %s15, 1
    %p80 = por %p78, %p79
    %p82 = scmp.ne.s32.totalorder %s67, %s81
    %p83 = scmp.eq.s32.totalorder %s15, 0
    %p84 = por %p82, %p83
    %s85 = ssub.s32 %s9, %s16
    %p86 = scmp.eq.s32.totalorder %s85, 0
    %s88 = sadd.s32 %s87, 1
    %s89 = scalar_select %p86, %s87, %s88
    %p92 = pneg %p86
    %p93 = scmp.eq.s32.totalorder %s9, 1
    %p94 = por %p92, %p93
    %p95 = scmp.ne.s32.totalorder %s87, %s90
    %p96 = scmp.eq.s32.totalorder %s9, 0
    %p97 = por %p95, %p96
    %p98 = scmp.ne.s32.totalorder %s87, %s90
    %p99 = scmp.eq.s32.totalorder %s14, 1
    %p100 = por %p98, %p99
    %p101 = scmp.ne.s32.totalorder %s90, %s91
    %p102 = scmp.eq.s32.totalorder %s14, 0
    %p103 = por %p101, %p102
    %p104 = scmp.ne.s32.totalorder %s90, %s91
    %p105 = scmp.eq.s32.totalorder %s15, 1
    %p106 = por %p104, %p105
    %p108 = scmp.ne.s32.totalorder %s91, %s107
    %p109 = scmp.eq.s32.totalorder %s15, 0
    %p110 = por %p108, %p109
    %p111 = scmp.le.s32.totalorder 1, %s9
    %p112 = scmp.lt.s32.totalorder %s9, 3
    %p113 = pnand %p111, %p112
    %p114 = pneg %p113
    // Predicated region
    $region9: #{refine_forward.5} parent=5 // pred_check
      _
    $region10: #{refine_forward.5} parent=5 // pred_check_branch
      %116 = sbr.rel (%p113) target = $region12
    $region11: #{refine_forward.5} parent=5 // pred_region
      %s117 = ssub.s32 %s9, 1
      // Predicated region
      $region13: #{refine_forward.5} parent=11 // pred_check
        %p118 = pneg %p56
      $region14: #{refine_forward.5} parent=11 // pred_check_branch
        %120 = sbr.rel (%p118) target = $region16
      $region15: #{refine_forward.5} parent=11 // pred_region
        _
      $region16: #{refine_forward.5} parent=11 // pred_fallthru
        _
      // Predicated region
      $region17: #{refine_forward.5} parent=11 // pred_check
        %p121 = pneg %p77
      $region18: #{refine_forward.5} parent=11 // pred_check_branch
        %123 = sbr.rel (%p121) target = $region20
      $region19: #{refine_forward.5} parent=11 // pred_region
        _
      $region20: #{refine_forward.5} parent=11 // pred_fallthru
        _
    $region12: #{refine_forward.5} parent=5 // pred_fallthru
      _
    %p124 = scmp.lt.s32.totalorder %s9, 2
    // Predicated region
    $region21: #{refine_forward.5} parent=5 // pred_check
      %p125 = pneg %p124
    $region22: #{refine_forward.5} parent=5 // pred_check_branch
      %127 = sbr.rel (%p125) target = $region24
    $region23: #{refine_forward.5} parent=5 // pred_region
      // Predicated region
      $region25: #{refine_forward.5} parent=23 // pred_check
        %p128 = pneg %p29
      $region26: #{refine_forward.5} parent=23 // pred_check_branch
        %130 = sbr.rel (%p128) target = $region28
      $region27: #{refine_forward.5} parent=23 // pred_region
        %s131 = smul.u32 32, %s9
        %p132 = scmp.lt.s32.totalorder %s131, 63
        %s133 = scalar_select %p132, %s131, 63
        %s134 = smul.addr %s133, 4
        %s135 = smul.addr %s134, 8
        %s136 = scalar_lea.vmem %s0, %s135
        %s137 = smul.u32 32, %s9
      $region28: #{refine_forward.5} parent=23 // pred_fallthru
        _
    $region24: #{refine_forward.5} parent=5 // pred_fallthru
      _
    %p138 = scmp.le.s32.totalorder 1, %s9
    %p139 = scmp.lt.s32.totalorder %s9, 3
    %p140 = pnand %p138, %p139
    %p141 = pneg %p140
    // Predicated region
    $region29: #{refine_forward.5} parent=5 // pred_check
      _
    $region30: #{refine_forward.5} parent=5 // pred_check_branch
      %143 = sbr.rel (%p140) target = $region32
    $region31: #{refine_forward.5} parent=5 // pred_region
      %s144 = ssub.s32 %s9, 1
      %s145 = smul.u32 32, %s14
      %p146 = scmp.lt.s32.totalorder %s145, 63
      %s147 = scalar_select %p146, %s145, 63
      %s148 = smul.addr %s147, 4
      %s149 = smul.addr %s148, 8
      %s150 = scalar_lea.vmem %s0, %s149
      %p151 = pneg %p35
      %p152 = pneg %p32
      %p153 = pneg %p56
      %p154 = pneg %p53
      %p155 = pneg %p77
      %p156 = pneg %p74
      %p157 = pneg %p103
      %p158 = pneg %p100
      %s159 = smul.u32 32, %s14
      %p160 = scmp.lt.s32.totalorder %s159, 63
      %s161 = scalar_select %p160, %s159, 63
      %s162 = smul.addr %s161, 8
      %s163 = scalar_lea.vmem %s3, %s162
      %s164 = smul.u32 32, %s14
      %p165 = scmp.lt.s32.totalorder %s164, 63
      %s166 = scalar_select %p165, %s164, 63
      %s167 = smul.addr %s166, 4
      %s168 = smul.addr %s167, 8
      %s169 = scalar_lea.vmem %s0, %s168
      %s170 = smul.u32 32, %s14
      %s171 = smul.u32 32, %s14
      %p172 = scmp.lt.s32.totalorder %s171, 63
      %s173 = scalar_select %p172, %s171, 63
      %s174 = smul.addr %s173, 8
      %s175 = scalar_lea.vmem %s3, %s174
      %s176 = smul.u32 32, %s14
      %v177 = vld [vmem:[%s169] sm:$0xff]
      %v178 = vld [vmem:[%s169 + $0x8] sm:$0xff]
      %v179 = vld [vmem:[%s169 + $0x10] sm:$0xff]
      %v180 = vld [vmem:[%s169 + $0x18] sm:$0xff]
      %v181 = vld [vmem:[%s169 + $0x20] sm:$0xff]
      %v182 = vld [vmem:[%s169 + $0x28] sm:$0xff]
      %v183 = vld [vmem:[%s169 + $0x30] sm:$0xff]
      %v184 = vld [vmem:[%s169 + $0x38] sm:$0xff]
      %v185 = vld [vmem:[%s169 + $0x40] sm:$0xff]
      %v186 = vld [vmem:[%s169 + $0x48] sm:$0xff]
      %v187 = vld [vmem:[%s169 + $0x50] sm:$0xff]
      %v188 = vld [vmem:[%s169 + $0x58] sm:$0xff]
      %v189 = vld [vmem:[%s169 + $0x60] sm:$0xff]
      %v190 = vld [vmem:[%s169 + $0x68] sm:$0xff]
      %v191 = vld [vmem:[%s169 + $0x70] sm:$0xff]
      %v192 = vld [vmem:[%s169 + $0x78] sm:$0xff]
      %v193 = vld [vmem:[%s169 + $0x80] sm:$0xff]
      %v194 = vld [vmem:[%s169 + $0x88] sm:$0xff]
      %v195 = vld [vmem:[%s169 + $0x90] sm:$0xff]
      %v196 = vld [vmem:[%s169 + $0x98] sm:$0xff]
      %v197 = vld [vmem:[%s169 + $0xa0] sm:$0xff]
      %v198 = vld [vmem:[%s169 + $0xa8] sm:$0xff]
      %v199 = vld [vmem:[%s169 + $0xb0] sm:$0xff]
      %v200 = vld [vmem:[%s169 + $0xb8] sm:$0xff]
      %v201 = vld [vmem:[%s169 + $0xc0] sm:$0xff]
      %v202 = vld [vmem:[%s169 + $0xc8] sm:$0xff]
      %v203 = vld [vmem:[%s169 + $0xd0] sm:$0xff]
      %v204 = vld [vmem:[%s169 + $0xd8] sm:$0xff]
      %v205 = vld [vmem:[%s169 + $0xe0] sm:$0xff]
      %v206 = vld [vmem:[%s169 + $0xe8] sm:$0xff]
      %v207 = vld [vmem:[%s169 + $0xf0] sm:$0xff]
      %v208 = vld [vmem:[%s169 + $0xf8] sm:$0xff]
      %v209 = vld [vmem:[%s169 + $0x100] sm:$0xff]
      %v210 = vld [vmem:[%s169 + $0x108] sm:$0xff]
      %v211 = vld [vmem:[%s169 + $0x110] sm:$0xff]
      %v212 = vld [vmem:[%s169 + $0x118] sm:$0xff]
      %v213 = vld [vmem:[%s169 + $0x120] sm:$0xff]
      %v214 = vld [vmem:[%s169 + $0x128] sm:$0xff]
      %v215 = vld [vmem:[%s169 + $0x130] sm:$0xff]
      %v216 = vld [vmem:[%s169 + $0x138] sm:$0xff]
      %v217 = vld [vmem:[%s169 + $0x140] sm:$0xff]
      %v218 = vld [vmem:[%s169 + $0x148] sm:$0xff]
      %v219 = vld [vmem:[%s169 + $0x150] sm:$0xff]
      %v220 = vld [vmem:[%s169 + $0x158] sm:$0xff]
      %v221 = vld [vmem:[%s169 + $0x160] sm:$0xff]
      %v222 = vld [vmem:[%s169 + $0x168] sm:$0xff]
      %v223 = vld [vmem:[%s169 + $0x170] sm:$0xff]
      %v224 = vld [vmem:[%s169 + $0x178] sm:$0xff]
      %v225 = vld [vmem:[%s169 + $0x180] sm:$0xff]
      %v226 = vld [vmem:[%s169 + $0x188] sm:$0xff]
      %v227 = vld [vmem:[%s169 + $0x190] sm:$0xff]
      %v228 = vld [vmem:[%s169 + $0x198] sm:$0xff]
      %v229 = vld [vmem:[%s169 + $0x1a0] sm:$0xff]
      %v230 = vld [vmem:[%s169 + $0x1a8] sm:$0xff]
      %v231 = vld [vmem:[%s169 + $0x1b0] sm:$0xff]
      %v232 = vld [vmem:[%s169 + $0x1b8] sm:$0xff]
      %v233 = vld [vmem:[%s169 + $0x1c0] sm:$0xff]
      %v234 = vld [vmem:[%s169 + $0x1c8] sm:$0xff]
      %v235 = vld [vmem:[%s169 + $0x1d0] sm:$0xff]
      %v236 = vld [vmem:[%s169 + $0x1d8] sm:$0xff]
      %v237 = vld [vmem:[%s169 + $0x1e0] sm:$0xff]
      %v238 = vld [vmem:[%s169 + $0x1e8] sm:$0xff]
      %v239 = vld [vmem:[%s169 + $0x1f0] sm:$0xff]
      %v240 = vld [vmem:[%s169 + $0x1f8] sm:$0xff]
      %v241 = vld [vmem:[%s169 + $0x200] sm:$0xff]
      %v242 = vld [vmem:[%s169 + $0x208] sm:$0xff]
      %v243 = vld [vmem:[%s169 + $0x210] sm:$0xff]
      %v244 = vld [vmem:[%s169 + $0x218] sm:$0xff]
      %v245 = vld [vmem:[%s169 + $0x220] sm:$0xff]
      %v246 = vld [vmem:[%s169 + $0x228] sm:$0xff]
      %v247 = vld [vmem:[%s169 + $0x230] sm:$0xff]
      %v248 = vld [vmem:[%s169 + $0x238] sm:$0xff]
      %v249 = vld [vmem:[%s169 + $0x240] sm:$0xff]
      %v250 = vld [vmem:[%s169 + $0x248] sm:$0xff]
      %v251 = vld [vmem:[%s169 + $0x250] sm:$0xff]
      %v252 = vld [vmem:[%s169 + $0x258] sm:$0xff]
      %v253 = vld [vmem:[%s169 + $0x260] sm:$0xff]
      %v254 = vld [vmem:[%s169 + $0x268] sm:$0xff]
      %v255 = vld [vmem:[%s169 + $0x270] sm:$0xff]
      %v256 = vld [vmem:[%s169 + $0x278] sm:$0xff]
      %v257 = vld [vmem:[%s169 + $0x280] sm:$0xff]
      %v258 = vld [vmem:[%s169 + $0x288] sm:$0xff]
      %v259 = vld [vmem:[%s169 + $0x290] sm:$0xff]
      %v260 = vld [vmem:[%s169 + $0x298] sm:$0xff]
      %v261 = vld [vmem:[%s169 + $0x2a0] sm:$0xff]
      %v262 = vld [vmem:[%s169 + $0x2a8] sm:$0xff]
      %v263 = vld [vmem:[%s169 + $0x2b0] sm:$0xff]
      %v264 = vld [vmem:[%s169 + $0x2b8] sm:$0xff]
      %v265 = vld [vmem:[%s169 + $0x2c0] sm:$0xff]
      %v266 = vld [vmem:[%s169 + $0x2c8] sm:$0xff]
      %v267 = vld [vmem:[%s169 + $0x2d0] sm:$0xff]
      %v268 = vld [vmem:[%s169 + $0x2d8] sm:$0xff]
      %v269 = vld [vmem:[%s169 + $0x2e0] sm:$0xff]
      %v270 = vld [vmem:[%s169 + $0x2e8] sm:$0xff]
      %v271 = vld [vmem:[%s169 + $0x2f0] sm:$0xff]
      %v272 = vld [vmem:[%s169 + $0x2f8] sm:$0xff]
      %v273 = vld [vmem:[%s169 + $0x300] sm:$0xff]
      %v274 = vld [vmem:[%s169 + $0x308] sm:$0xff]
      %v275 = vld [vmem:[%s169 + $0x310] sm:$0xff]
      %v276 = vld [vmem:[%s169 + $0x318] sm:$0xff]
      %v277 = vld [vmem:[%s169 + $0x320] sm:$0xff]
      %v278 = vld [vmem:[%s169 + $0x328] sm:$0xff]
      %v279 = vld [vmem:[%s169 + $0x330] sm:$0xff]
      %v280 = vld [vmem:[%s169 + $0x338] sm:$0xff]
      %v281 = vld [vmem:[%s169 + $0x340] sm:$0xff]
      %v282 = vld [vmem:[%s169 + $0x348] sm:$0xff]
      %v283 = vld [vmem:[%s169 + $0x350] sm:$0xff]
      %v284 = vld [vmem:[%s169 + $0x358] sm:$0xff]
      %v285 = vld [vmem:[%s169 + $0x360] sm:$0xff]
      %v286 = vld [vmem:[%s169 + $0x368] sm:$0xff]
      %v287 = vld [vmem:[%s169 + $0x370] sm:$0xff]
      %v288 = vld [vmem:[%s169 + $0x378] sm:$0xff]
      %v289 = vld [vmem:[%s169 + $0x380] sm:$0xff]
      %v290 = vld [vmem:[%s169 + $0x388] sm:$0xff]
      %v291 = vld [vmem:[%s169 + $0x390] sm:$0xff]
      %v292 = vld [vmem:[%s169 + $0x398] sm:$0xff]
      %v293 = vld [vmem:[%s169 + $0x3a0] sm:$0xff]
      %v294 = vld [vmem:[%s169 + $0x3a8] sm:$0xff]
      %v295 = vld [vmem:[%s169 + $0x3b0] sm:$0xff]
      %v296 = vld [vmem:[%s169 + $0x3b8] sm:$0xff]
      %v297 = vld [vmem:[%s169 + $0x3c0] sm:$0xff]
      %v298 = vld [vmem:[%s169 + $0x3c8] sm:$0xff]
      %v299 = vld [vmem:[%s169 + $0x3d0] sm:$0xff]
      %v300 = vld [vmem:[%s169 + $0x3d8] sm:$0xff]
      %v301 = vld [vmem:[%s169 + $0x3e0] sm:$0xff]
      %v302 = vld [vmem:[%s169 + $0x3e8] sm:$0xff]
      %v303 = vld [vmem:[%s169 + $0x3f0] sm:$0xff]
      %v304 = vld [vmem:[%s169 + $0x3f8] sm:$0xff]
      %v305 = vld [vmem:[%s1] sm:$0xff]
      %v306 = vld [vmem:[%s1 + $0x8] sm:$0xff]
      %v307 = vld [vmem:[%s1 + $0x10] sm:$0xff]
      %v308 = vld [vmem:[%s1 + $0x18] sm:$0xff]
      %v309 = vld [vmem:[%s1 + $0x20] sm:$0xff]
      %v310 = vld [vmem:[%s1 + $0x28] sm:$0xff]
      %v311 = vld [vmem:[%s1 + $0x30] sm:$0xff]
      %v312 = vld [vmem:[%s1 + $0x38] sm:$0xff]
      %v313 = vld [vmem:[%s1 + $0x40] sm:$0xff]
      %v314 = vld [vmem:[%s1 + $0x48] sm:$0xff]
      %v315 = vld [vmem:[%s1 + $0x50] sm:$0xff]
      %v316 = vld [vmem:[%s1 + $0x58] sm:$0xff]
      %v317 = vld [vmem:[%s1 + $0x60] sm:$0xff]
      %v318 = vld [vmem:[%s1 + $0x68] sm:$0xff]
      %v319 = vld [vmem:[%s1 + $0x70] sm:$0xff]
      %v320 = vld [vmem:[%s1 + $0x78] sm:$0xff]
      %v321 = vld [vmem:[%s1 + $0x80] sm:$0xff]
      %v322 = vld [vmem:[%s1 + $0x88] sm:$0xff]
      %v323 = vld [vmem:[%s1 + $0x90] sm:$0xff]
      %v324 = vld [vmem:[%s1 + $0x98] sm:$0xff]
      %v325 = vld [vmem:[%s1 + $0xa0] sm:$0xff]
      %v326 = vld [vmem:[%s1 + $0xa8] sm:$0xff]
      %v327 = vld [vmem:[%s1 + $0xb0] sm:$0xff]
      %v328 = vld [vmem:[%s1 + $0xb8] sm:$0xff]
      %v329 = vld [vmem:[%s1 + $0xc0] sm:$0xff]
      %v330 = vld [vmem:[%s1 + $0xc8] sm:$0xff]
      %v331 = vld [vmem:[%s1 + $0xd0] sm:$0xff]
      %v332 = vld [vmem:[%s1 + $0xd8] sm:$0xff]
      %v333 = vld [vmem:[%s1 + $0xe0] sm:$0xff]
      %v334 = vld [vmem:[%s1 + $0xe8] sm:$0xff]
      %v335 = vld [vmem:[%s1 + $0xf0] sm:$0xff]
      %v336 = vld [vmem:[%s1 + $0xf8] sm:$0xff]
      %v337 = vld [vmem:[%s1 + $0x100] sm:$0xff]
      %v338 = vld [vmem:[%s1 + $0x108] sm:$0xff]
      %v339 = vld [vmem:[%s1 + $0x110] sm:$0xff]
      %v340 = vld [vmem:[%s1 + $0x118] sm:$0xff]
      %v341 = vld [vmem:[%s1 + $0x120] sm:$0xff]
      %v342 = vld [vmem:[%s1 + $0x128] sm:$0xff]
      %v343 = vld [vmem:[%s1 + $0x130] sm:$0xff]
      %v344 = vld [vmem:[%s1 + $0x138] sm:$0xff]
      %v345 = vld [vmem:[%s1 + $0x140] sm:$0xff]
      %v346 = vld [vmem:[%s1 + $0x148] sm:$0xff]
      %v347 = vld [vmem:[%s1 + $0x150] sm:$0xff]
      %v348 = vld [vmem:[%s1 + $0x158] sm:$0xff]
      %v349 = vld [vmem:[%s1 + $0x160] sm:$0xff]
      %v350 = vld [vmem:[%s1 + $0x168] sm:$0xff]
      %v351 = vld [vmem:[%s1 + $0x170] sm:$0xff]
      %v352 = vld [vmem:[%s1 + $0x178] sm:$0xff]
      %v353 = vld [vmem:[%s1 + $0x180] sm:$0xff]
      %v354 = vld [vmem:[%s1 + $0x188] sm:$0xff]
      %v355 = vld [vmem:[%s2] sm:$0x1]
      %v357 = vlaneseq
      %v358 = vshrl.u32 %v357, 7
      %v359 = vsub.s32 0, %v358
      %v360 = vrot.slane %v355, %v359
      %vm362 = vcmask 130048
      %v364 = vsel %vm362, %v180, 0
      %v367 = vsel %vm362, %v184, 0
      %v370 = vsel %vm362, %v188, 0
      %v373 = vsel %vm362, %v192, 0
      %v376 = vsel %vm362, %v196, 0
      %v379 = vsel %vm362, %v200, 0
      %v382 = vsel %vm362, %v204, 0
      %v385 = vsel %vm362, %v208, 0
      %v388 = vsel %vm362, %v212, 0
      %v391 = vsel %vm362, %v216, 0
      %v394 = vsel %vm362, %v220, 0
      %v397 = vsel %vm362, %v224, 0
      %v400 = vsel %vm362, %v228, 0
      %v403 = vsel %vm362, %v232, 0
      %v406 = vsel %vm362, %v236, 0
      %v409 = vsel %vm362, %v240, 0
      %v412 = vsel %vm362, %v244, 0
      %v415 = vsel %vm362, %v248, 0
      %v418 = vsel %vm362, %v252, 0
      %v421 = vsel %vm362, %v256, 0
      %v424 = vsel %vm362, %v260, 0
      %v427 = vsel %vm362, %v264, 0
      %v430 = vsel %vm362, %v268, 0
      %v433 = vsel %vm362, %v272, 0
      %v436 = vsel %vm362, %v276, 0
      %v439 = vsel %vm362, %v280, 0
      %v442 = vsel %vm362, %v284, 0
      %v445 = vsel %vm362, %v288, 0
      %v448 = vsel %vm362, %v292, 0
      %v451 = vsel %vm362, %v296, 0
      %v454 = vsel %vm362, %v300, 0
      %v457 = vsel %vm362, %v304, 0
      %459 = vmatprep.subr.mxu0 0.0
      %460 = vmatpush1.msra.mxu0 %v320
      %461 = vmatprep.subr.mxu0 0.0
      %462 = vmatpush1.msra.mxu0 %v319
      %463 = vmatprep.subr.mxu0 0.0
      %464 = vmatpush1.msra.mxu0 %v318
      %465 = vmatprep.subr.mxu0 0.0
      %466 = vmatpush1.msra.mxu0 %v317
      %467 = vmatprep.subr.mxu0 0.0
      %468 = vmatpush1.msra.mxu0 %v316
      %469 = vmatprep.subr.mxu0 0.0
      %470 = vmatpush1.msra.mxu0 %v315
      %471 = vmatprep.subr.mxu0 0.0
      %472 = vmatpush1.msra.mxu0 %v314
      %473 = vmatprep.subr.mxu0 0.0
      %474 = vmatpush1.msra.mxu0 %v313
      %475 = vmatprep.subr.mxu0 0.0
      %476 = vmatpush1.msra.mxu0 %v312
      %477 = vmatprep.subr.mxu0 0.0
      %478 = vmatpush1.msra.mxu0 %v311
      %479 = vmatprep.subr.mxu0 0.0
      %480 = vmatpush1.msra.mxu0 %v310
      %481 = vmatprep.subr.mxu0 0.0
      %482 = vmatpush1.msra.mxu0 %v309
      %483 = vmatprep.subr.mxu0 0.0
      %484 = vmatpush1.msra.mxu0 %v308
      %485 = vmatprep.subr.mxu0 0.0
      %486 = vmatpush1.msra.mxu0 %v307
      %487 = vmatprep.subr.mxu0 0.0
      %488 = vmatpush1.msra.mxu0 %v306
      %489 = vmatprep.subr.mxu0 0.0
      %490 = vmatpush1.msra.mxu0 %v305
      %491 = vmatprep.subr.mxu0 0.0
      %492 = vmatpush2.msra.mxu0 %v336
      %493 = vmatprep.subr.mxu0 0.0
      %494 = vmatpush2.msra.mxu0 %v335
      %495 = vmatprep.subr.mxu0 0.0
      %496 = vmatpush2.msra.mxu0 %v334
      %497 = vmatprep.subr.mxu0 0.0
      %498 = vmatpush2.msra.mxu0 %v333
      %499 = vmatprep.subr.mxu0 0.0
      %500 = vmatpush2.msra.mxu0 %v332
      %501 = vmatprep.subr.mxu0 0.0
      %502 = vmatpush2.msra.mxu0 %v331
      %503 = vmatprep.subr.mxu0 0.0
      %504 = vmatpush2.msra.mxu0 %v330
      %505 = vmatprep.subr.mxu0 0.0
      %506 = vmatpush2.msra.mxu0 %v329
      %507 = vmatprep.subr.mxu0 0.0
      %508 = vmatpush2.msra.mxu0 %v328
      %509 = vmatprep.subr.mxu0 0.0
      %510 = vmatpush2.msra.mxu0 %v327
      %511 = vmatprep.subr.mxu0 0.0
      %512 = vmatpush2.msra.mxu0 %v326
      %513 = vmatprep.subr.mxu0 0.0
      %514 = vmatpush2.msra.mxu0 %v325
      %515 = vmatprep.subr.mxu0 0.0
      %516 = vmatpush2.msra.mxu0 %v324
      %517 = vmatprep.subr.mxu0 0.0
      %518 = vmatpush2.msra.mxu0 %v323
      %519 = vmatprep.subr.mxu0 0.0
      %520 = vmatpush2.msra.mxu0 %v322
      %521 = vmatprep.subr.mxu0 0.0
      %522 = vmatpush2.msra.mxu0 %v321
      %523 = vmatprep.mubr.f32.mxu0 %v178
      %524 = vmatmul.mubr.f32.gmra.mxu0 %v177
      %v525 = vpop.f32.mrf.mxu0
      %v526 = vadd.f32 %v360, %v525
      %v527 = vpop.f32.mrf.mxu0
      %528 = vmatprep.mubr.f32.mxu0 %v182
      %529 = vmatmul.mubr.f32.gmra.mxu0 %v181
      %v530 = vpop.f32.mrf.mxu0
      %v531 = vadd.f32 %v360, %v530
      %v532 = vpop.f32.mrf.mxu0
      %533 = vmatprep.mubr.f32.mxu0 %v186
      %534 = vmatmul.mubr.f32.gmra.mxu0 %v185
      %v535 = vpop.f32.mrf.mxu0
      %v536 = vadd.f32 %v360, %v535
      %v537 = vpop.f32.mrf.mxu0
      %538 = vmatprep.mubr.f32.mxu0 %v190
      %539 = vmatmul.mubr.f32.gmra.mxu0 %v189
      %v540 = vpop.f32.mrf.mxu0
      %v541 = vadd.f32 %v360, %v540
      %v542 = vpop.f32.mrf.mxu0
      %543 = vmatprep.mubr.f32.mxu0 %v194
      %544 = vmatmul.mubr.f32.gmra.mxu0 %v193
      %v545 = vpop.f32.mrf.mxu0
      %v546 = vadd.f32 %v360, %v545
      %v547 = vpop.f32.mrf.mxu0
      %548 = vmatprep.mubr.f32.mxu0 %v198
      %549 = vmatmul.mubr.f32.gmra.mxu0 %v197
      %v550 = vpop.f32.mrf.mxu0
      %v551 = vadd.f32 %v360, %v550
      %v552 = vpop.f32.mrf.mxu0
      %553 = vmatprep.mubr.f32.mxu0 %v202
      %554 = vmatmul.mubr.f32.gmra.mxu0 %v201
      %v555 = vpop.f32.mrf.mxu0
      %v556 = vadd.f32 %v360, %v555
      %v557 = vpop.f32.mrf.mxu0
      %558 = vmatprep.mubr.f32.mxu0 %v206
      %559 = vmatmul.mubr.f32.gmra.mxu0 %v205
      %v560 = vpop.f32.mrf.mxu0
      %v561 = vadd.f32 %v360, %v560
      %v562 = vpop.f32.mrf.mxu0
      %563 = vmatprep.mubr.f32.mxu0 %v210
      %564 = vmatmul.mubr.f32.gmra.mxu0 %v209
      %v565 = vpop.f32.mrf.mxu0
      %v566 = vadd.f32 %v360, %v565
      %v567 = vpop.f32.mrf.mxu0
      %568 = vmatprep.mubr.f32.mxu0 %v214
      %569 = vmatmul.mubr.f32.gmra.mxu0 %v213
      %v570 = vpop.f32.mrf.mxu0
      %v571 = vadd.f32 %v360, %v570
      %v572 = vpop.f32.mrf.mxu0
      %573 = vmatprep.mubr.f32.mxu0 %v218
      %574 = vmatmul.mubr.f32.gmra.mxu0 %v217
      %v575 = vpop.f32.mrf.mxu0
      %v576 = vadd.f32 %v360, %v575
      %v577 = vpop.f32.mrf.mxu0
      %578 = vmatprep.mubr.f32.mxu0 %v222
      %579 = vmatmul.mubr.f32.gmra.mxu0 %v221
      %v580 = vpop.f32.mrf.mxu0
      %v581 = vadd.f32 %v360, %v580
      %v582 = vpop.f32.mrf.mxu0
      %583 = vmatprep.mubr.f32.mxu0 %v226
      %584 = vmatmul.mubr.f32.gmra.mxu0 %v225
      %v585 = vpop.f32.mrf.mxu0
      %v586 = vadd.f32 %v360, %v585
      %v587 = vpop.f32.mrf.mxu0
      %588 = vmatprep.mubr.f32.mxu0 %v230
      %589 = vmatmul.mubr.f32.gmra.mxu0 %v229
      %v590 = vpop.f32.mrf.mxu0
      %v591 = vadd.f32 %v360, %v590
      %v592 = vpop.f32.mrf.mxu0
      %593 = vmatprep.mubr.f32.mxu0 %v234
      %594 = vmatmul.mubr.f32.gmra.mxu0 %v233
      %v595 = vpop.f32.mrf.mxu0
      %v596 = vadd.f32 %v360, %v595
      %v597 = vpop.f32.mrf.mxu0
      %598 = vmatprep.mubr.f32.mxu0 %v238
      %599 = vmatmul.mubr.f32.gmra.mxu0 %v237
      %v600 = vpop.f32.mrf.mxu0
      %v601 = vadd.f32 %v360, %v600
      %v602 = vpop.f32.mrf.mxu0
      %603 = vmatprep.mubr.f32.mxu0 %v242
      %604 = vmatmul.mubr.f32.gmra.mxu0 %v241
      %v605 = vpop.f32.mrf.mxu0
      %v606 = vadd.f32 %v360, %v605
      %v607 = vpop.f32.mrf.mxu0
      %608 = vmatprep.mubr.f32.mxu0 %v246
      %609 = vmatmul.mubr.f32.gmra.mxu0 %v245
      %v610 = vpop.f32.mrf.mxu0
      %v611 = vadd.f32 %v360, %v610
      %v612 = vpop.f32.mrf.mxu0
      %613 = vmatprep.mubr.f32.mxu0 %v250
      %614 = vmatmul.mubr.f32.gmra.mxu0 %v249
      %v615 = vpop.f32.mrf.mxu0
      %v616 = vadd.f32 %v360, %v615
      %v617 = vpop.f32.mrf.mxu0
      %618 = vmatprep.mubr.f32.mxu0 %v254
      %619 = vmatmul.mubr.f32.gmra.mxu0 %v253
      %v620 = vpop.f32.mrf.mxu0
      %v621 = vadd.f32 %v360, %v620
      %v622 = vpop.f32.mrf.mxu0
      %623 = vmatprep.mubr.f32.mxu0 %v258
      %624 = vmatmul.mubr.f32.gmra.mxu0 %v257
      %v625 = vpop.f32.mrf.mxu0
      %v626 = vadd.f32 %v360, %v625
      %v627 = vpop.f32.mrf.mxu0
      %628 = vmatprep.mubr.f32.mxu0 %v262
      %629 = vmatmul.mubr.f32.gmra.mxu0 %v261
      %v630 = vpop.f32.mrf.mxu0
      %v631 = vadd.f32 %v360, %v630
      %v632 = vpop.f32.mrf.mxu0
      %633 = vmatprep.mubr.f32.mxu0 %v266
      %634 = vmatmul.mubr.f32.gmra.mxu0 %v265
      %v635 = vpop.f32.mrf.mxu0
      %v636 = vadd.f32 %v360, %v635
      %v637 = vpop.f32.mrf.mxu0
      %638 = vmatprep.mubr.f32.mxu0 %v270
      %639 = vmatmul.mubr.f32.gmra.mxu0 %v269
      %v640 = vpop.f32.mrf.mxu0
      %v641 = vadd.f32 %v360, %v640
      %v642 = vpop.f32.mrf.mxu0
      %643 = vmatprep.mubr.f32.mxu0 %v274
      %644 = vmatmul.mubr.f32.gmra.mxu0 %v273
      %v645 = vpop.f32.mrf.mxu0
      %v646 = vadd.f32 %v360, %v645
      %v647 = vpop.f32.mrf.mxu0
      %648 = vmatprep.mubr.f32.mxu0 %v278
      %649 = vmatmul.mubr.f32.gmra.mxu0 %v277
      %v650 = vpop.f32.mrf.mxu0
      %v651 = vadd.f32 %v360, %v650
      %v652 = vpop.f32.mrf.mxu0
      %653 = vmatprep.mubr.f32.mxu0 %v282
      %654 = vmatmul.mubr.f32.gmra.mxu0 %v281
      %v655 = vpop.f32.mrf.mxu0
      %v656 = vadd.f32 %v360, %v655
      %v657 = vpop.f32.mrf.mxu0
      %658 = vmatprep.mubr.f32.mxu0 %v286
      %659 = vmatmul.mubr.f32.gmra.mxu0 %v285
      %v660 = vpop.f32.mrf.mxu0
      %v661 = vadd.f32 %v360, %v660
      %v662 = vpop.f32.mrf.mxu0
      %663 = vmatprep.mubr.f32.mxu0 %v290
      %664 = vmatmul.mubr.f32.gmra.mxu0 %v289
      %v665 = vpop.f32.mrf.mxu0
      %v666 = vadd.f32 %v360, %v665
      %v667 = vpop.f32.mrf.mxu0
      %668 = vmatprep.mubr.f32.mxu0 %v294
      %669 = vmatmul.mubr.f32.gmra.mxu0 %v293
      %v670 = vpop.f32.mrf.mxu0
      %v671 = vadd.f32 %v360, %v670
      %v672 = vpop.f32.mrf.mxu0
      %673 = vmatprep.mubr.f32.mxu0 %v298
      %674 = vmatmul.mubr.f32.gmra.mxu0 %v297
      %v675 = vpop.f32.mrf.mxu0
      %v676 = vadd.f32 %v360, %v675
      %v677 = vpop.f32.mrf.mxu0
      %678 = vmatprep.mubr.f32.mxu0 %v302
      %679 = vmatmul.mubr.f32.gmra.mxu0 %v301
      %v680 = vpop.f32.mrf.mxu0
      %v681 = vadd.f32 %v360, %v680
      %v682 = vpop.f32.mrf.mxu0
      %683 = vdwg.mxu0
      %684 = vmatprep.subr.mxu0 0.0
      %685 = vmatpush1.msra.mxu0 %v352
      %686 = vmatprep.subr.mxu0 0.0
      %687 = vmatpush1.msra.mxu0 %v351
      %688 = vmatprep.subr.mxu0 0.0
      %689 = vmatpush1.msra.mxu0 %v350
      %690 = vmatprep.subr.mxu0 0.0
      %691 = vmatpush1.msra.mxu0 %v349
      %692 = vmatprep.subr.mxu0 0.0
      %693 = vmatpush1.msra.mxu0 %v348
      %694 = vmatprep.subr.mxu0 0.0
      %695 = vmatpush1.msra.mxu0 %v347
      %696 = vmatprep.subr.mxu0 0.0
      %697 = vmatpush1.msra.mxu0 %v346
      %698 = vmatprep.subr.mxu0 0.0
      %699 = vmatpush1.msra.mxu0 %v345
      %700 = vmatprep.subr.mxu0 0.0
      %701 = vmatpush1.msra.mxu0 %v344
      %702 = vmatprep.subr.mxu0 0.0
      %703 = vmatpush1.msra.mxu0 %v343
      %704 = vmatprep.subr.mxu0 0.0
      %705 = vmatpush1.msra.mxu0 %v342
      %706 = vmatprep.subr.mxu0 0.0
      %707 = vmatpush1.msra.mxu0 %v341
      %708 = vmatprep.subr.mxu0 0.0
      %709 = vmatpush1.msra.mxu0 %v340
      %710 = vmatprep.subr.mxu0 0.0
      %711 = vmatpush1.msra.mxu0 %v339
      %712 = vmatprep.subr.mxu0 0.0
      %713 = vmatpush1.msra.mxu0 %v338
      %714 = vmatprep.subr.mxu0 0.0
      %715 = vmatpush1.msra.mxu0 %v337
      %716 = vmatprep.subr.mxu0 0.0
      %717 = vmatpush2.msra.mxu0 0.0
      %718 = vmatprep.subr.mxu0 0.0
      %719 = vmatpush2.msra.mxu0 0.0
      %720 = vmatprep.subr.mxu0 0.0
      %721 = vmatpush2.msra.mxu0 0.0
      %722 = vmatprep.subr.mxu0 0.0
      %723 = vmatpush2.msra.mxu0 0.0
      %724 = vmatprep.subr.mxu0 0.0
      %725 = vmatpush2.msra.mxu0 0.0
      %726 = vmatprep.subr.mxu0 0.0
      %727 = vmatpush2.msra.mxu0 0.0
      %728 = vmatprep.subr.mxu0 0.0
      %729 = vmatpush2.msra.mxu0 0.0
      %730 = vmatprep.subr.mxu0 0.0
      %731 = vmatpush2.msra.mxu0 0.0
      %732 = vmatprep.subr.mxu0 0.0
      %733 = vmatpush2.msra.mxu0 0.0
      %734 = vmatprep.subr.mxu0 0.0
      %735 = vmatpush2.msra.mxu0 0.0
      %736 = vmatprep.subr.mxu0 0.0
      %737 = vmatpush2.msra.mxu0 0.0
      %738 = vmatprep.subr.mxu0 0.0
      %739 = vmatpush2.msra.mxu0 0.0
      %740 = vmatprep.subr.mxu0 0.0
      %741 = vmatpush2.msra.mxu0 0.0
      %742 = vmatprep.subr.mxu0 0.0
      %743 = vmatpush2.msra.mxu0 0.0
      %744 = vmatprep.subr.mxu0 0.0
      %745 = vmatpush2.msra.mxu0 %v354
      %746 = vmatprep.subr.mxu0 0.0
      %747 = vmatpush2.msra.mxu0 %v353
      %748 = vmatprep.mubr.f32.mxu0 %v364
      %749 = vmatmul.mubr.f32.gmra.mxu0 %v179
      %v750 = vpop.f32.mrf.mxu0
      %v751 = vadd.f32 %v526, %v750
      %v752 = vpop.f32.mrf.mxu0
      %753 = vmatprep.mubr.f32.mxu0 %v367
      %754 = vmatmul.mubr.f32.gmra.mxu0 %v183
      %v755 = vpop.f32.mrf.mxu0
      %v756 = vadd.f32 %v531, %v755
      %v757 = vpop.f32.mrf.mxu0
      %758 = vmatprep.mubr.f32.mxu0 %v370
      %759 = vmatmul.mubr.f32.gmra.mxu0 %v187
      %v760 = vpop.f32.mrf.mxu0
      %v761 = vadd.f32 %v536, %v760
      %v762 = vpop.f32.mrf.mxu0
      %763 = vmatprep.mubr.f32.mxu0 %v373
      %764 = vmatmul.mubr.f32.gmra.mxu0 %v191
      %v765 = vpop.f32.mrf.mxu0
      %v766 = vadd.f32 %v541, %v765
      %v767 = vpop.f32.mrf.mxu0
      %768 = vmatprep.mubr.f32.mxu0 %v376
      %769 = vmatmul.mubr.f32.gmra.mxu0 %v195
      %v770 = vpop.f32.mrf.mxu0
      %v771 = vadd.f32 %v546, %v770
      %v772 = vpop.f32.mrf.mxu0
      %773 = vmatprep.mubr.f32.mxu0 %v379
      %774 = vmatmul.mubr.f32.gmra.mxu0 %v199
      %v775 = vpop.f32.mrf.mxu0
      %v776 = vadd.f32 %v551, %v775
      %v777 = vpop.f32.mrf.mxu0
      %778 = vmatprep.mubr.f32.mxu0 %v382
      %779 = vmatmul.mubr.f32.gmra.mxu0 %v203
      %v780 = vpop.f32.mrf.mxu0
      %v781 = vadd.f32 %v556, %v780
      %v782 = vpop.f32.mrf.mxu0
      %783 = vmatprep.mubr.f32.mxu0 %v385
      %784 = vmatmul.mubr.f32.gmra.mxu0 %v207
      %v785 = vpop.f32.mrf.mxu0
      %v786 = vadd.f32 %v561, %v785
      %v787 = vpop.f32.mrf.mxu0
      %788 = vmatprep.mubr.f32.mxu0 %v388
      %789 = vmatmul.mubr.f32.gmra.mxu0 %v211
      %v790 = vpop.f32.mrf.mxu0
      %v791 = vadd.f32 %v566, %v790
      %v792 = vpop.f32.mrf.mxu0
      %793 = vmatprep.mubr.f32.mxu0 %v391
      %794 = vmatmul.mubr.f32.gmra.mxu0 %v215
      %v795 = vpop.f32.mrf.mxu0
      %v796 = vadd.f32 %v571, %v795
      %v797 = vpop.f32.mrf.mxu0
      %798 = vmatprep.mubr.f32.mxu0 %v394
      %799 = vmatmul.mubr.f32.gmra.mxu0 %v219
      %v800 = vpop.f32.mrf.mxu0
      %v801 = vadd.f32 %v576, %v800
      %v802 = vpop.f32.mrf.mxu0
      %803 = vmatprep.mubr.f32.mxu0 %v397
      %804 = vmatmul.mubr.f32.gmra.mxu0 %v223
      %v805 = vpop.f32.mrf.mxu0
      %v806 = vadd.f32 %v581, %v805
      %v807 = vpop.f32.mrf.mxu0
      %808 = vmatprep.mubr.f32.mxu0 %v400
      %809 = vmatmul.mubr.f32.gmra.mxu0 %v227
      %v810 = vpop.f32.mrf.mxu0
      %v811 = vadd.f32 %v586, %v810
      %v812 = vpop.f32.mrf.mxu0
      %813 = vmatprep.mubr.f32.mxu0 %v403
      %814 = vmatmul.mubr.f32.gmra.mxu0 %v231
      %v815 = vpop.f32.mrf.mxu0
      %v816 = vadd.f32 %v591, %v815
      %v817 = vpop.f32.mrf.mxu0
      %818 = vmatprep.mubr.f32.mxu0 %v406
      %819 = vmatmul.mubr.f32.gmra.mxu0 %v235
      %v820 = vpop.f32.mrf.mxu0
      %v821 = vadd.f32 %v596, %v820
      %v822 = vpop.f32.mrf.mxu0
      %823 = vmatprep.mubr.f32.mxu0 %v409
      %824 = vmatmul.mubr.f32.gmra.mxu0 %v239
      %v825 = vpop.f32.mrf.mxu0
      %v826 = vadd.f32 %v601, %v825
      %v827 = vpop.f32.mrf.mxu0
      %828 = vmatprep.mubr.f32.mxu0 %v412
      %829 = vmatmul.mubr.f32.gmra.mxu0 %v243
      %v830 = vpop.f32.mrf.mxu0
      %v831 = vadd.f32 %v606, %v830
      %v832 = vpop.f32.mrf.mxu0
      %833 = vmatprep.mubr.f32.mxu0 %v415
      %834 = vmatmul.mubr.f32.gmra.mxu0 %v247
      %v835 = vpop.f32.mrf.mxu0
      %v836 = vadd.f32 %v611, %v835
      %v837 = vpop.f32.mrf.mxu0
      %838 = vmatprep.mubr.f32.mxu0 %v418
      %839 = vmatmul.mubr.f32.gmra.mxu0 %v251
      %v840 = vpop.f32.mrf.mxu0
      %v841 = vadd.f32 %v616, %v840
      %v842 = vpop.f32.mrf.mxu0
      %843 = vmatprep.mubr.f32.mxu0 %v421
      %844 = vmatmul.mubr.f32.gmra.mxu0 %v255
      %v845 = vpop.f32.mrf.mxu0
      %v846 = vadd.f32 %v621, %v845
      %v847 = vpop.f32.mrf.mxu0
      %848 = vmatprep.mubr.f32.mxu0 %v424
      %849 = vmatmul.mubr.f32.gmra.mxu0 %v259
      %v850 = vpop.f32.mrf.mxu0
      %v851 = vadd.f32 %v626, %v850
      %v852 = vpop.f32.mrf.mxu0
      %853 = vmatprep.mubr.f32.mxu0 %v427
      %854 = vmatmul.mubr.f32.gmra.mxu0 %v263
      %v855 = vpop.f32.mrf.mxu0
      %v856 = vadd.f32 %v631, %v855
      %v857 = vpop.f32.mrf.mxu0
      %858 = vmatprep.mubr.f32.mxu0 %v430
      %859 = vmatmul.mubr.f32.gmra.mxu0 %v267
      %v860 = vpop.f32.mrf.mxu0
      %v861 = vadd.f32 %v636, %v860
      %v862 = vpop.f32.mrf.mxu0
      %863 = vmatprep.mubr.f32.mxu0 %v433
      %864 = vmatmul.mubr.f32.gmra.mxu0 %v271
      %v865 = vpop.f32.mrf.mxu0
      %v866 = vadd.f32 %v641, %v865
      %v867 = vpop.f32.mrf.mxu0
      %868 = vmatprep.mubr.f32.mxu0 %v436
      %869 = vmatmul.mubr.f32.gmra.mxu0 %v275
      %v870 = vpop.f32.mrf.mxu0
      %v871 = vadd.f32 %v646, %v870
      %v872 = vpop.f32.mrf.mxu0
      %873 = vmatprep.mubr.f32.mxu0 %v439
      %874 = vmatmul.mubr.f32.gmra.mxu0 %v279
      %v875 = vpop.f32.mrf.mxu0
      %v876 = vadd.f32 %v651, %v875
      %v877 = vpop.f32.mrf.mxu0
      %878 = vmatprep.mubr.f32.mxu0 %v442
      %879 = vmatmul.mubr.f32.gmra.mxu0 %v283
      %v880 = vpop.f32.mrf.mxu0
      %v881 = vadd.f32 %v656, %v880
      %v882 = vpop.f32.mrf.mxu0
      %883 = vmatprep.mubr.f32.mxu0 %v445
      %884 = vmatmul.mubr.f32.gmra.mxu0 %v287
      %v885 = vpop.f32.mrf.mxu0
      %v886 = vadd.f32 %v661, %v885
      %v887 = vpop.f32.mrf.mxu0
      %888 = vmatprep.mubr.f32.mxu0 %v448
      %889 = vmatmul.mubr.f32.gmra.mxu0 %v291
      %v890 = vpop.f32.mrf.mxu0
      %v891 = vadd.f32 %v666, %v890
      %v892 = vpop.f32.mrf.mxu0
      %893 = vmatprep.mubr.f32.mxu0 %v451
      %894 = vmatmul.mubr.f32.gmra.mxu0 %v295
      %v895 = vpop.f32.mrf.mxu0
      %v896 = vadd.f32 %v671, %v895
      %v897 = vpop.f32.mrf.mxu0
      %898 = vmatprep.mubr.f32.mxu0 %v454
      %899 = vmatmul.mubr.f32.gmra.mxu0 %v299
      %v900 = vpop.f32.mrf.mxu0
      %v901 = vadd.f32 %v676, %v900
      %v902 = vpop.f32.mrf.mxu0
      %903 = vmatprep.mubr.f32.mxu0 %v457
      %904 = vmatmul.mubr.f32.gmra.mxu0 %v303
      %v905 = vpop.f32.mrf.mxu0
      %v906 = vadd.f32 %v681, %v905
      %v907 = vpop.f32.mrf.mxu0
      %908 = vdwg.mxu0
      %v909 = vmax.f32 %v751, 0.0
      %v910 = vmax.f32 %v756, 0.0
      %v911 = vmax.f32 %v761, 0.0
      %v912 = vmax.f32 %v766, 0.0
      %v913 = vmax.f32 %v771, 0.0
      %v914 = vmax.f32 %v776, 0.0
      %v915 = vmax.f32 %v781, 0.0
      %v916 = vmax.f32 %v786, 0.0
      %v917 = vmax.f32 %v791, 0.0
      %v918 = vmax.f32 %v796, 0.0
      %v919 = vmax.f32 %v801, 0.0
      %v920 = vmax.f32 %v806, 0.0
      %v921 = vmax.f32 %v811, 0.0
      %v922 = vmax.f32 %v816, 0.0
      %v923 = vmax.f32 %v821, 0.0
      %v924 = vmax.f32 %v826, 0.0
      %v925 = vmax.f32 %v831, 0.0
      %v926 = vmax.f32 %v836, 0.0
      %v927 = vmax.f32 %v841, 0.0
      %v928 = vmax.f32 %v846, 0.0
      %v929 = vmax.f32 %v851, 0.0
      %v930 = vmax.f32 %v856, 0.0
      %v931 = vmax.f32 %v861, 0.0
      %v932 = vmax.f32 %v866, 0.0
      %v933 = vmax.f32 %v871, 0.0
      %v934 = vmax.f32 %v876, 0.0
      %v935 = vmax.f32 %v881, 0.0
      %v936 = vmax.f32 %v886, 0.0
      %v937 = vmax.f32 %v891, 0.0
      %v938 = vmax.f32 %v896, 0.0
      %v939 = vmax.f32 %v901, 0.0
      %v940 = vmax.f32 %v906, 0.0
      %941 = vst [vmem:[%s175] sm:$0xff] %v909
      %942 = vst [vmem:[%s175 + $0x8] sm:$0xff] %v910
      %943 = vst [vmem:[%s175 + $0x10] sm:$0xff] %v911
      %944 = vst [vmem:[%s175 + $0x18] sm:$0xff] %v912
      %945 = vst [vmem:[%s175 + $0x20] sm:$0xff] %v913
      %946 = vst [vmem:[%s175 + $0x28] sm:$0xff] %v914
      %947 = vst [vmem:[%s175 + $0x30] sm:$0xff] %v915
      %948 = vst [vmem:[%s175 + $0x38] sm:$0xff] %v916
      %949 = vst [vmem:[%s175 + $0x40] sm:$0xff] %v917
      %950 = vst [vmem:[%s175 + $0x48] sm:$0xff] %v918
      %951 = vst [vmem:[%s175 + $0x50] sm:$0xff] %v919
      %952 = vst [vmem:[%s175 + $0x58] sm:$0xff] %v920
      %953 = vst [vmem:[%s175 + $0x60] sm:$0xff] %v921
      %954 = vst [vmem:[%s175 + $0x68] sm:$0xff] %v922
      %955 = vst [vmem:[%s175 + $0x70] sm:$0xff] %v923
      %956 = vst [vmem:[%s175 + $0x78] sm:$0xff] %v924
      %957 = vst [vmem:[%s175 + $0x80] sm:$0xff] %v925
      %958 = vst [vmem:[%s175 + $0x88] sm:$0xff] %v926
      %959 = vst [vmem:[%s175 + $0x90] sm:$0xff] %v927
      %960 = vst [vmem:[%s175 + $0x98] sm:$0xff] %v928
      %961 = vst [vmem:[%s175 + $0xa0] sm:$0xff] %v929
      %962 = vst [vmem:[%s175 + $0xa8] sm:$0xff] %v930
      %963 = vst [vmem:[%s175 + $0xb0] sm:$0xff] %v931
      %964 = vst [vmem:[%s175 + $0xb8] sm:$0xff] %v932
      %965 = vst [vmem:[%s175 + $0xc0] sm:$0xff] %v933
      %966 = vst [vmem:[%s175 + $0xc8] sm:$0xff] %v934
      %967 = vst [vmem:[%s175 + $0xd0] sm:$0xff] %v935
      %968 = vst [vmem:[%s175 + $0xd8] sm:$0xff] %v936
      %969 = vst [vmem:[%s175 + $0xe0] sm:$0xff] %v937
      %970 = vst [vmem:[%s175 + $0xe8] sm:$0xff] %v938
      %971 = vst [vmem:[%s175 + $0xf0] sm:$0xff] %v939
      %972 = vst [vmem:[%s175 + $0xf8] sm:$0xff] %v940
      %s973 = smul.u32 32, %s14
      %p974 = scmp.lt.s32.totalorder %s973, 63
      %s975 = scalar_select %p974, %s973, 63
      %s976 = smul.addr %s975, 8
      %s977 = scalar_lea.vmem %s3, %s976
      // Predicated region
      $region33: #{refine_forward.5} parent=31 // pred_check
        %p978 = pneg %p100
      $region34: #{refine_forward.5} parent=31 // pred_check_branch
        %980 = sbr.rel (%p978) target = $region36
      $region35: #{refine_forward.5} parent=31 // pred_region
        %s981 = smul.u32 32, %s14
      $region36: #{refine_forward.5} parent=31 // pred_fallthru
        _
    $region32: #{refine_forward.5} parent=5 // pred_fallthru
      _
    %p982 = scmp.le.s32.totalorder 2, %s9
    // Predicated region
    $region37: #{refine_forward.5} parent=5 // pred_check
      %p983 = pneg %p982
    $region38: #{refine_forward.5} parent=5 // pred_check_branch
      %985 = sbr.rel (%p983) target = $region40
    $region39: #{refine_forward.5} parent=5 // pred_region
      %s986 = ssub.s32 %s9, 2
      // Predicated region
      $region41: #{refine_forward.5} parent=39 // pred_check
        %p987 = pneg %p106
      $region42: #{refine_forward.5} parent=39 // pred_check_branch
        %989 = sbr.rel (%p987) target = $region44
      $region43: #{refine_forward.5} parent=39 // pred_region
        %s990 = smul.u32 32, %s15
        %p991 = scmp.lt.s32.totalorder %s990, 63
        %s992 = scalar_select %p991, %s990, 63
        %s993 = smul.addr %s992, 8
        %s994 = scalar_lea.vmem %s3, %s993
      $region44: #{refine_forward.5} parent=39 // pred_fallthru
        _
    $region40: #{refine_forward.5} parent=5 // pred_fallthru
      _
  $region6: #{refine_forward.5} parent=0 // loop_footer
    %s13 = sadd.s32 1, %s9
  $region7: #{refine_forward.5} parent=0 // loop_footer_branch
    %8 = sbr.rel target = $region3
  $region8: #{refine_forward.5} parent=0 // loop_exit
    _

// kernel: refine_forward.6
$region0: #{refine_forward.6}
  #allocation0 [shape = 'u32[]', space=smem, size = 0x4, offset = 0x4, fixed_abs, tag = 'smem constant byte address 0x4 - core index']
  #allocation1 [shape = 'u32[144,128]{1,0:T(1,128)}', space=vmem, size = 0x12000, scoped, tag = 'internal scratch']
  %s0 = inlined_call_operand.vmem [shape: f32[256,48], index: 0, kind: input, shape index: {}]
  %s1 = inlined_call_operand.vmem [shape: f32[48,256], index: 1, kind: input, shape index: {}]
  %s2 = inlined_call_operand.vmem [shape: f32[1,256], index: 2, kind: input, shape index: {}]
  %s3 = inlined_call_operand.vmem [shape: f32[256,256], index: 3, kind: output, shape index: {}]
  %s4 = sld [smem:[#allocation0]]
  $region22: #{refine_forward.6} parent=0
    _
  %s6 = ssub.s32 1, %s4
  %s7 = scalar_select 0, %s6, %s4
  // Predicated region
  $region2: #{refine_forward.6} parent=0 // pred_check
    _
  $region3: #{refine_forward.6} parent=0 // pred_check_branch
    %9 = sbr.rel (0) target = $region5
  $region4: #{refine_forward.6} parent=0 // pred_region
    _
  $region5: #{refine_forward.6} parent=0 // pred_fallthru
    _
  // Predicated region
  $region6: #{refine_forward.6} parent=0 // pred_check
    _
  $region7: #{refine_forward.6} parent=0 // pred_check_branch
    %11 = sbr.rel (0) target = $region9
  $region8: #{refine_forward.6} parent=0 // pred_region
    _
  $region9: #{refine_forward.6} parent=0 // pred_fallthru
    _
  // Predicated region
  $region10: #{refine_forward.6} parent=0 // pred_check
    _
  $region11: #{refine_forward.6} parent=0 // pred_check_branch
    %13 = sbr.rel (0) target = $region13
  $region12: #{refine_forward.6} parent=0 // pred_region
    _
  $region13: #{refine_forward.6} parent=0 // pred_fallthru
    _
  %v14 = vld [vmem:[%s0] sm:$0xff]
  %v15 = vld [vmem:[%s0 + $0x8] sm:$0xff]
  %v16 = vld [vmem:[%s0 + $0x10] sm:$0xff]
  %v17 = vld [vmem:[%s0 + $0x18] sm:$0xff]
  %v18 = vld [vmem:[%s0 + $0x20] sm:$0xff]
  %v19 = vld [vmem:[%s0 + $0x28] sm:$0xff]
  %v20 = vld [vmem:[%s0 + $0x30] sm:$0xff]
  %v21 = vld [vmem:[%s0 + $0x38] sm:$0xff]
  %v22 = vld [vmem:[%s0 + $0x40] sm:$0xff]
  %v23 = vld [vmem:[%s0 + $0x48] sm:$0xff]
  %v24 = vld [vmem:[%s0 + $0x50] sm:$0xff]
  %v25 = vld [vmem:[%s0 + $0x58] sm:$0xff]
  %v26 = vld [vmem:[%s0 + $0x60] sm:$0xff]
  %v27 = vld [vmem:[%s0 + $0x68] sm:$0xff]
  %v28 = vld [vmem:[%s0 + $0x70] sm:$0xff]
  %v29 = vld [vmem:[%s0 + $0x78] sm:$0xff]
  %v30 = vld [vmem:[%s0 + $0x80] sm:$0xff]
  %v31 = vld [vmem:[%s0 + $0x88] sm:$0xff]
  %v32 = vld [vmem:[%s0 + $0x90] sm:$0xff]
  %v33 = vld [vmem:[%s0 + $0x98] sm:$0xff]
  %v34 = vld [vmem:[%s0 + $0xa0] sm:$0xff]
  %v35 = vld [vmem:[%s0 + $0xa8] sm:$0xff]
  %v36 = vld [vmem:[%s0 + $0xb0] sm:$0xff]
  %v37 = vld [vmem:[%s0 + $0xb8] sm:$0xff]
  %v38 = vld [vmem:[%s0 + $0xc0] sm:$0xff]
  %v39 = vld [vmem:[%s0 + $0xc8] sm:$0xff]
  %v40 = vld [vmem:[%s0 + $0xd0] sm:$0xff]
  %v41 = vld [vmem:[%s0 + $0xd8] sm:$0xff]
  %v42 = vld [vmem:[%s0 + $0xe0] sm:$0xff]
  %v43 = vld [vmem:[%s0 + $0xe8] sm:$0xff]
  %v44 = vld [vmem:[%s0 + $0xf0] sm:$0xff]
  %v45 = vld [vmem:[%s0 + $0xf8] sm:$0xff]
  %v46 = vld [vmem:[%s1] sm:$0xff]
  %v47 = vld [vmem:[%s1 + $0x8] sm:$0xff]
  %v48 = vld [vmem:[%s1 + $0x10] sm:$0xff]
  %v49 = vld [vmem:[%s1 + $0x18] sm:$0xff]
  %v50 = vld [vmem:[%s1 + $0x20] sm:$0xff]
  %v51 = vld [vmem:[%s1 + $0x28] sm:$0xff]
  %v52 = vld [vmem:[%s1 + $0x30] sm:$0xff]
  %v53 = vld [vmem:[%s1 + $0x38] sm:$0xff]
  %v54 = vld [vmem:[%s1 + $0x40] sm:$0xff]
  %v55 = vld [vmem:[%s1 + $0x48] sm:$0xff]
  %v56 = vld [vmem:[%s1 + $0x50] sm:$0xff]
  %v57 = vld [vmem:[%s1 + $0x58] sm:$0xff]
  %v58 = vld [vmem:[%s2] sm:$0x3]
  %v60 = vlaneseq
  %v61 = vshrl.u32 %v60, 7
  %v62 = vsub.s32 0, %v61
  %v63 = vrot.slane %v58, %v62
  %v64 = vlaneseq
  %v65 = vshrl.u32 %v64, 7
  %v66 = vsub.s32 1, %v65
  %v67 = vrot.slane %v58, %v66
  %vm70 = vcmask 392192
  %v72 = vsel %vm70, %v14, 0
  %v75 = vsel %vm70, %v15, 0
  %v78 = vsel %vm70, %v16, 0
  %v81 = vsel %vm70, %v17, 0
  %v84 = vsel %vm70, %v18, 0
  %v87 = vsel %vm70, %v19, 0
  %v90 = vsel %vm70, %v20, 0
  %v93 = vsel %vm70, %v21, 0
  %v96 = vsel %vm70, %v22, 0
  %v99 = vsel %vm70, %v23, 0
  %v102 = vsel %vm70, %v24, 0
  %v105 = vsel %vm70, %v25, 0
  %v108 = vsel %vm70, %v26, 0
  %v111 = vsel %vm70, %v27, 0
  %v114 = vsel %vm70, %v28, 0
  %v117 = vsel %vm70, %v29, 0
  %v120 = vsel %vm70, %v30, 0
  %v123 = vsel %vm70, %v31, 0
  %v126 = vsel %vm70, %v32, 0
  %v129 = vsel %vm70, %v33, 0
  %v132 = vsel %vm70, %v34, 0
  %v135 = vsel %vm70, %v35, 0
  %v138 = vsel %vm70, %v36, 0
  %v141 = vsel %vm70, %v37, 0
  %v144 = vsel %vm70, %v38, 0
  %v147 = vsel %vm70, %v39, 0
  %v150 = vsel %vm70, %v40, 0
  %v153 = vsel %vm70, %v41, 0
  %v156 = vsel %vm70, %v42, 0
  %v159 = vsel %vm70, %v43, 0
  %v162 = vsel %vm70, %v44, 0
  %v165 = vsel %vm70, %v45, 0
  %167 = vmatprep.subr.mxu0 0.0
  %168 = vmatpush1.msra.mxu0 0.0
  %169 = vmatprep.subr.mxu0 0.0
  %170 = vmatpush1.msra.mxu0 0.0
  %171 = vmatprep.subr.mxu0 0.0
  %172 = vmatpush1.msra.mxu0 0.0
  %173 = vmatprep.subr.mxu0 0.0
  %174 = vmatpush1.msra.mxu0 0.0
  %175 = vmatprep.subr.mxu0 0.0
  %176 = vmatpush1.msra.mxu0 0.0
  %177 = vmatprep.subr.mxu0 0.0
  %178 = vmatpush1.msra.mxu0 0.0
  %179 = vmatprep.subr.mxu0 0.0
  %180 = vmatpush1.msra.mxu0 0.0
  %181 = vmatprep.subr.mxu0 0.0
  %182 = vmatpush1.msra.mxu0 0.0
  %183 = vmatprep.subr.mxu0 0.0
  %184 = vmatpush1.msra.mxu0 0.0
  %185 = vmatprep.subr.mxu0 0.0
  %186 = vmatpush1.msra.mxu0 0.0
  %187 = vmatprep.subr.mxu0 %v57
  %188 = vmatpush1.msra.mxu0 %v56
  %189 = vmatprep.subr.mxu0 %v55
  %190 = vmatpush1.msra.mxu0 %v54
  %191 = vmatprep.subr.mxu0 %v53
  %192 = vmatpush1.msra.mxu0 %v52
  %193 = vmatprep.subr.mxu0 %v51
  %194 = vmatpush1.msra.mxu0 %v50
  %195 = vmatprep.subr.mxu0 %v49
  %196 = vmatpush1.msra.mxu0 %v48
  %197 = vmatprep.subr.mxu0 %v47
  %198 = vmatpush1.msra.mxu0 %v46
  %199 = vmatprep.subr.mxu0 0.0
  %200 = vmatpush2.msra.mxu0 0.0
  %201 = vmatprep.subr.mxu0 0.0
  %202 = vmatpush2.msra.mxu0 0.0
  %203 = vmatprep.subr.mxu0 0.0
  %204 = vmatpush2.msra.mxu0 0.0
  %205 = vmatprep.subr.mxu0 0.0
  %206 = vmatpush2.msra.mxu0 0.0
  %207 = vmatprep.subr.mxu0 0.0
  %208 = vmatpush2.msra.mxu0 0.0
  %209 = vmatprep.subr.mxu0 0.0
  %210 = vmatpush2.msra.mxu0 0.0
  %211 = vmatprep.subr.mxu0 0.0
  %212 = vmatpush2.msra.mxu0 0.0
  %213 = vmatprep.subr.mxu0 0.0
  %214 = vmatpush2.msra.mxu0 0.0
  %215 = vmatprep.subr.mxu0 0.0
  %216 = vmatpush2.msra.mxu0 0.0
  %217 = vmatprep.subr.mxu0 0.0
  %218 = vmatpush2.msra.mxu0 0.0
  %219 = vmatprep.subr.mxu0 0.0
  %220 = vmatpush2.msra.mxu0 0.0
  %221 = vmatprep.subr.mxu0 0.0
  %222 = vmatpush2.msra.mxu0 0.0
  %223 = vmatprep.subr.mxu0 0.0
  %224 = vmatpush2.msra.mxu0 0.0
  %225 = vmatprep.subr.mxu0 0.0
  %226 = vmatpush2.msra.mxu0 0.0
  %227 = vmatprep.subr.mxu0 0.0
  %228 = vmatpush2.msra.mxu0 0.0
  %229 = vmatprep.subr.mxu0 0.0
  %230 = vmatpush2.msra.mxu0 0.0
  %231 = vmatprep.mubr.f32.mxu0 0.0
  %232 = vmatmul.mubr.f32.gmra.mxu0 %v72
  %v233 = vpop.f32.mrf.mxu0
  %v234 = vadd.f32 %v63, %v233
  %v235 = vpop.f32.mrf.mxu0
  %v236 = vadd.f32 %v67, %v235
  %237 = vmatprep.mubr.f32.mxu0 0.0
  %238 = vmatmul.mubr.f32.gmra.mxu0 %v75
  %v239 = vpop.f32.mrf.mxu0
  %v240 = vadd.f32 %v63, %v239
  %v241 = vpop.f32.mrf.mxu0
  %v242 = vadd.f32 %v67, %v241
  %243 = vmatprep.mubr.f32.mxu0 0.0
  %244 = vmatmul.mubr.f32.gmra.mxu0 %v78
  %v245 = vpop.f32.mrf.mxu0
  %v246 = vadd.f32 %v63, %v245
  %v247 = vpop.f32.mrf.mxu0
  %v248 = vadd.f32 %v67, %v247
  %249 = vmatprep.mubr.f32.mxu0 0.0
  %250 = vmatmul.mubr.f32.gmra.mxu0 %v81
  %v251 = vpop.f32.mrf.mxu0
  %v252 = vadd.f32 %v63, %v251
  %v253 = vpop.f32.mrf.mxu0
  %v254 = vadd.f32 %v67, %v253
  %255 = vmatprep.mubr.f32.mxu0 0.0
  %256 = vmatmul.mubr.f32.gmra.mxu0 %v84
  %v257 = vpop.f32.mrf.mxu0
  %v258 = vadd.f32 %v63, %v257
  %v259 = vpop.f32.mrf.mxu0
  %v260 = vadd.f32 %v67, %v259
  %261 = vmatprep.mubr.f32.mxu0 0.0
  %262 = vmatmul.mubr.f32.gmra.mxu0 %v87
  %v263 = vpop.f32.mrf.mxu0
  %v264 = vadd.f32 %v63, %v263
  %v265 = vpop.f32.mrf.mxu0
  %v266 = vadd.f32 %v67, %v265
  %267 = vmatprep.mubr.f32.mxu0 0.0
  %268 = vmatmul.mubr.f32.gmra.mxu0 %v90
  %v269 = vpop.f32.mrf.mxu0
  %v270 = vadd.f32 %v63, %v269
  %v271 = vpop.f32.mrf.mxu0
  %v272 = vadd.f32 %v67, %v271
  %273 = vmatprep.mubr.f32.mxu0 0.0
  %274 = vmatmul.mubr.f32.gmra.mxu0 %v93
  %v275 = vpop.f32.mrf.mxu0
  %v276 = vadd.f32 %v63, %v275
  %v277 = vpop.f32.mrf.mxu0
  %v278 = vadd.f32 %v67, %v277
  %279 = vmatprep.mubr.f32.mxu0 0.0
  %280 = vmatmul.mubr.f32.gmra.mxu0 %v96
  %v281 = vpop.f32.mrf.mxu0
  %v282 = vadd.f32 %v63, %v281
  %v283 = vpop.f32.mrf.mxu0
  %v284 = vadd.f32 %v67, %v283
  %285 = vmatprep.mubr.f32.mxu0 0.0
  %286 = vmatmul.mubr.f32.gmra.mxu0 %v99
  %v287 = vpop.f32.mrf.mxu0
  %v288 = vadd.f32 %v63, %v287
  %v289 = vpop.f32.mrf.mxu0
  %v290 = vadd.f32 %v67, %v289
  %291 = vmatprep.mubr.f32.mxu0 0.0
  %292 = vmatmul.mubr.f32.gmra.mxu0 %v102
  %v293 = vpop.f32.mrf.mxu0
  %v294 = vadd.f32 %v63, %v293
  %v295 = vpop.f32.mrf.mxu0
  %v296 = vadd.f32 %v67, %v295
  %297 = vmatprep.mubr.f32.mxu0 0.0
  %298 = vmatmul.mubr.f32.gmra.mxu0 %v105
  %v299 = vpop.f32.mrf.mxu0
  %v300 = vadd.f32 %v63, %v299
  %v301 = vpop.f32.mrf.mxu0
  %v302 = vadd.f32 %v67, %v301
  %303 = vmatprep.mubr.f32.mxu0 0.0
  %304 = vmatmul.mubr.f32.gmra.mxu0 %v108
  %v305 = vpop.f32.mrf.mxu0
  %v306 = vadd.f32 %v63, %v305
  %v307 = vpop.f32.mrf.mxu0
  %v308 = vadd.f32 %v67, %v307
  %309 = vmatprep.mubr.f32.mxu0 0.0
  %310 = vmatmul.mubr.f32.gmra.mxu0 %v111
  %v311 = vpop.f32.mrf.mxu0
  %v312 = vadd.f32 %v63, %v311
  %v313 = vpop.f32.mrf.mxu0
  %v314 = vadd.f32 %v67, %v313
  %315 = vmatprep.mubr.f32.mxu0 0.0
  %316 = vmatmul.mubr.f32.gmra.mxu0 %v114
  %v317 = vpop.f32.mrf.mxu0
  %v318 = vadd.f32 %v63, %v317
  %v319 = vpop.f32.mrf.mxu0
  %v320 = vadd.f32 %v67, %v319
  %321 = vmatprep.mubr.f32.mxu0 0.0
  %322 = vmatmul.mubr.f32.gmra.mxu0 %v117
  %v323 = vpop.f32.mrf.mxu0
  %v324 = vadd.f32 %v63, %v323
  %v325 = vpop.f32.mrf.mxu0
  %v326 = vadd.f32 %v67, %v325
  %327 = vmatprep.mubr.f32.mxu0 0.0
  %328 = vmatmul.mubr.f32.gmra.mxu0 %v120
  %v329 = vpop.f32.mrf.mxu0
  %v330 = vadd.f32 %v63, %v329
  %v331 = vpop.f32.mrf.mxu0
  %v332 = vadd.f32 %v67, %v331
  %333 = vmatprep.mubr.f32.mxu0 0.0
  %334 = vmatmul.mubr.f32.gmra.mxu0 %v123
  %v335 = vpop.f32.mrf.mxu0
  %v336 = vadd.f32 %v63, %v335
  %v337 = vpop.f32.mrf.mxu0
  %v338 = vadd.f32 %v67, %v337
  %339 = vmatprep.mubr.f32.mxu0 0.0
  %340 = vmatmul.mubr.f32.gmra.mxu0 %v126
  %v341 = vpop.f32.mrf.mxu0
  %v342 = vadd.f32 %v63, %v341
  %v343 = vpop.f32.mrf.mxu0
  %v344 = vadd.f32 %v67, %v343
  %345 = vmatprep.mubr.f32.mxu0 0.0
  %346 = vmatmul.mubr.f32.gmra.mxu0 %v129
  %v347 = vpop.f32.mrf.mxu0
  %v348 = vadd.f32 %v63, %v347
  %v349 = vpop.f32.mrf.mxu0
  %v350 = vadd.f32 %v67, %v349
  %351 = vmatprep.mubr.f32.mxu0 0.0
  %352 = vmatmul.mubr.f32.gmra.mxu0 %v132
  %v353 = vpop.f32.mrf.mxu0
  %v354 = vadd.f32 %v63, %v353
  %v355 = vpop.f32.mrf.mxu0
  %v356 = vadd.f32 %v67, %v355
  %357 = vmatprep.mubr.f32.mxu0 0.0
  %358 = vmatmul.mubr.f32.gmra.mxu0 %v135
  %v359 = vpop.f32.mrf.mxu0
  %v360 = vadd.f32 %v63, %v359
  %v361 = vpop.f32.mrf.mxu0
  %v362 = vadd.f32 %v67, %v361
  %363 = vmatprep.mubr.f32.mxu0 0.0
  %364 = vmatmul.mubr.f32.gmra.mxu0 %v138
  %v365 = vpop.f32.mrf.mxu0
  %v366 = vadd.f32 %v63, %v365
  %v367 = vpop.f32.mrf.mxu0
  %v368 = vadd.f32 %v67, %v367
  %369 = vmatprep.mubr.f32.mxu0 0.0
  %370 = vmatmul.mubr.f32.gmra.mxu0 %v141
  %v371 = vpop.f32.mrf.mxu0
  %v372 = vadd.f32 %v63, %v371
  %v373 = vpop.f32.mrf.mxu0
  %v374 = vadd.f32 %v67, %v373
  %375 = vmatprep.mubr.f32.mxu0 0.0
  %376 = vmatmul.mubr.f32.gmra.mxu0 %v144
  %v377 = vpop.f32.mrf.mxu0
  %v378 = vadd.f32 %v63, %v377
  %v379 = vpop.f32.mrf.mxu0
  %v380 = vadd.f32 %v67, %v379
  %381 = vmatprep.mubr.f32.mxu0 0.0
  %382 = vmatmul.mubr.f32.gmra.mxu0 %v147
  %v383 = vpop.f32.mrf.mxu0
  %v384 = vadd.f32 %v63, %v383
  %v385 = vpop.f32.mrf.mxu0
  %v386 = vadd.f32 %v67, %v385
  %387 = vmatprep.mubr.f32.mxu0 0.0
  %388 = vmatmul.mubr.f32.gmra.mxu0 %v150
  %v389 = vpop.f32.mrf.mxu0
  %v390 = vadd.f32 %v63, %v389
  %v391 = vpop.f32.mrf.mxu0
  %v392 = vadd.f32 %v67, %v391
  %393 = vmatprep.mubr.f32.mxu0 0.0
  %394 = vmatmul.mubr.f32.gmra.mxu0 %v153
  %v395 = vpop.f32.mrf.mxu0
  %v396 = vadd.f32 %v63, %v395
  %v397 = vpop.f32.mrf.mxu0
  %v398 = vadd.f32 %v67, %v397
  %399 = vmatprep.mubr.f32.mxu0 0.0
  %400 = vmatmul.mubr.f32.gmra.mxu0 %v156
  %v401 = vpop.f32.mrf.mxu0
  %v402 = vadd.f32 %v63, %v401
  %v403 = vpop.f32.mrf.mxu0
  %v404 = vadd.f32 %v67, %v403
  %405 = vmatprep.mubr.f32.mxu0 0.0
  %406 = vmatmul.mubr.f32.gmra.mxu0 %v159
  %v407 = vpop.f32.mrf.mxu0
  %v408 = vadd.f32 %v63, %v407
  %v409 = vpop.f32.mrf.mxu0
  %v410 = vadd.f32 %v67, %v409
  %411 = vmatprep.mubr.f32.mxu0 0.0
  %412 = vmatmul.mubr.f32.gmra.mxu0 %v162
  %v413 = vpop.f32.mrf.mxu0
  %v414 = vadd.f32 %v63, %v413
  %v415 = vpop.f32.mrf.mxu0
  %v416 = vadd.f32 %v67, %v415
  %417 = vmatprep.mubr.f32.mxu0 0.0
  %418 = vmatmul.mubr.f32.gmra.mxu0 %v165
  %v419 = vpop.f32.mrf.mxu0
  %v420 = vadd.f32 %v63, %v419
  %v421 = vpop.f32.mrf.mxu0
  %v422 = vadd.f32 %v67, %v421
  %423 = vdwg.mxu0
  %424 = vst [vmem:[%s3] sm:$0xff] %v234
  %425 = vst [vmem:[%s3 + $0x8] sm:$0xff] %v236
  %426 = vst [vmem:[%s3 + $0x10] sm:$0xff] %v240
  %427 = vst [vmem:[%s3 + $0x18] sm:$0xff] %v242
  %428 = vst [vmem:[%s3 + $0x20] sm:$0xff] %v246
  %429 = vst [vmem:[%s3 + $0x28] sm:$0xff] %v248
  %430 = vst [vmem:[%s3 + $0x30] sm:$0xff] %v252
  %431 = vst [vmem:[%s3 + $0x38] sm:$0xff] %v254
  %432 = vst [vmem:[%s3 + $0x40] sm:$0xff] %v258
  %433 = vst [vmem:[%s3 + $0x48] sm:$0xff] %v260
  %434 = vst [vmem:[%s3 + $0x50] sm:$0xff] %v264
  %435 = vst [vmem:[%s3 + $0x58] sm:$0xff] %v266
  %436 = vst [vmem:[%s3 + $0x60] sm:$0xff] %v270
  %437 = vst [vmem:[%s3 + $0x68] sm:$0xff] %v272
  %438 = vst [vmem:[%s3 + $0x70] sm:$0xff] %v276
  %439 = vst [vmem:[%s3 + $0x78] sm:$0xff] %v278
  %440 = vst [vmem:[%s3 + $0x80] sm:$0xff] %v282
  %441 = vst [vmem:[%s3 + $0x88] sm:$0xff] %v284
  %442 = vst [vmem:[%s3 + $0x90] sm:$0xff] %v288
  %443 = vst [vmem:[%s3 + $0x98] sm:$0xff] %v290
  %444 = vst [vmem:[%s3 + $0xa0] sm:$0xff] %v294
  %445 = vst [vmem:[%s3 + $0xa8] sm:$0xff] %v296
  %446 = vst [vmem:[%s3 + $0xb0] sm:$0xff] %v300
  %447 = vst [vmem:[%s3 + $0xb8] sm:$0xff] %v302
  %448 = vst [vmem:[%s3 + $0xc0] sm:$0xff] %v306
  %449 = vst [vmem:[%s3 + $0xc8] sm:$0xff] %v308
  %450 = vst [vmem:[%s3 + $0xd0] sm:$0xff] %v312
  %451 = vst [vmem:[%s3 + $0xd8] sm:$0xff] %v314
  %452 = vst [vmem:[%s3 + $0xe0] sm:$0xff] %v318
  %453 = vst [vmem:[%s3 + $0xe8] sm:$0xff] %v320
  %454 = vst [vmem:[%s3 + $0xf0] sm:$0xff] %v324
  %455 = vst [vmem:[%s3 + $0xf8] sm:$0xff] %v326
  %456 = vst [vmem:[%s3 + $0x100] sm:$0xff] %v330
  %457 = vst [vmem:[%s3 + $0x108] sm:$0xff] %v332
  %458 = vst [vmem:[%s3 + $0x110] sm:$0xff] %v336
  %459 = vst [vmem:[%s3 + $0x118] sm:$0xff] %v338
  %460 = vst [vmem:[%s3 + $0x120] sm:$0xff] %v342
  %461 = vst [vmem:[%s3 + $0x128] sm:$0xff] %v344
  %462 = vst [vmem:[%s3 + $0x130] sm:$0xff] %v348
  %463 = vst [vmem:[%s3 + $0x138] sm:$0xff] %v350
  %464 = vst [vmem:[%s3 + $0x140] sm:$0xff] %v354
  %465 = vst [vmem:[%s3 + $0x148] sm:$0xff] %v356
  %466 = vst [vmem:[%s3 + $0x150] sm:$0xff] %v360
  %467 = vst [vmem:[%s3 + $0x158] sm:$0xff] %v362
  %468 = vst [vmem:[%s3 + $0x160] sm:$0xff] %v366
  %469 = vst [vmem:[%s3 + $0x168] sm:$0xff] %v368
  %470 = vst [vmem:[%s3 + $0x170] sm:$0xff] %v372
  %471 = vst [vmem:[%s3 + $0x178] sm:$0xff] %v374
  %472 = vst [vmem:[%s3 + $0x180] sm:$0xff] %v378
  %473 = vst [vmem:[%s3 + $0x188] sm:$0xff] %v380
  %474 = vst [vmem:[%s3 + $0x190] sm:$0xff] %v384
  %475 = vst [vmem:[%s3 + $0x198] sm:$0xff] %v386
  %476 = vst [vmem:[%s3 + $0x1a0] sm:$0xff] %v390
  %477 = vst [vmem:[%s3 + $0x1a8] sm:$0xff] %v392
  %478 = vst [vmem:[%s3 + $0x1b0] sm:$0xff] %v396
  %479 = vst [vmem:[%s3 + $0x1b8] sm:$0xff] %v398
  %480 = vst [vmem:[%s3 + $0x1c0] sm:$0xff] %v402
  %481 = vst [vmem:[%s3 + $0x1c8] sm:$0xff] %v404
  %482 = vst [vmem:[%s3 + $0x1d0] sm:$0xff] %v408
  %483 = vst [vmem:[%s3 + $0x1d8] sm:$0xff] %v410
  %484 = vst [vmem:[%s3 + $0x1e0] sm:$0xff] %v414
  %485 = vst [vmem:[%s3 + $0x1e8] sm:$0xff] %v416
  %486 = vst [vmem:[%s3 + $0x1f0] sm:$0xff] %v420
  %487 = vst [vmem:[%s3 + $0x1f8] sm:$0xff] %v422
  // Predicated region
  $region14: #{refine_forward.6} parent=0 // pred_check
    _
  $region15: #{refine_forward.6} parent=0 // pred_check_branch
    %489 = sbr.rel (0) target = $region17
  $region16: #{refine_forward.6} parent=0 // pred_region
    _
  $region17: #{refine_forward.6} parent=0 // pred_fallthru
    _
  // Predicated region
  $region18: #{refine_forward.6} parent=0 // pred_check
    _
  $region19: #{refine_forward.6} parent=0 // pred_check_branch
    %491 = sbr.rel (0) target = $region21
  $region20: #{refine_forward.6} parent=0 // pred_region
    _
  $region21: #{refine_forward.6} parent=0 // pred_fallthru
    _

// kernel: refine_forward.7
$region0: #{refine_forward.7}
  #allocation0 [shape = 'u32[]', space=smem, size = 0x4, offset = 0x4, fixed_abs, tag = 'smem constant byte address 0x4 - core index']
  #allocation1 [shape = 'u32[144,128]{1,0:T(1,128)}', space=vmem, size = 0x12000, scoped, tag = 'internal scratch']
  #allocation2 [shape = 'f32[12,48]{1,0:T(8,128)}', space=vmem, size = 0x2000, scoped, tag = 'scratch operand']
  #allocation3 [shape = 'f32[12,1]{1,0:T(8,128)}', space=vmem, size = 0x2000, scoped, tag = 'scratch operand']
  #allocation4 [shape = 'f32[1,1]{1,0:T(1,128)S(1)}', space=vmem, size = 0x200, scoped, tag = 'scoped memory for refine_forward.7']
  %s0 = inlined_call_operand.vmem [shape: f32[2,12,48], index: 0, kind: input, shape index: {}]
  %s1 = inlined_call_operand.vmem [shape: f32[8,2,12,512], index: 1, kind: input, shape index: {}]
  %s2 = inlined_call_operand.vmem [shape: f32[48,1728], index: 2, kind: input, shape index: {}]
  %s3 = inlined_call_operand.vmem [shape: f32[1,48], index: 3, kind: input, shape index: {}]
  %s4 = inlined_call_operand.vmem [shape: f32[48,144], index: 4, kind: input, shape index: {}]
  %s5 = inlined_call_operand.vmem [shape: f32[48,144], index: 5, kind: input, shape index: {}]
  %s6 = inlined_call_operand.vmem [shape: f32[1,144], index: 6, kind: input, shape index: {}]
  %s7 = inlined_call_operand.vmem [shape: f32[1,48], index: 7, kind: input, shape index: {}]
  %s8 = inlined_call_operand.<no memory space> [shape: f32[1,1], index: 8, kind: input, shape index: {}]
  %s9 = inlined_call_operand.vmem [shape: f32[48,80], index: 9, kind: input, shape index: {}]
  %s10 = inlined_call_operand.vmem [shape: f32[1,80], index: 10, kind: input, shape index: {}]
  %s11 = inlined_call_operand.vmem [shape: f32[2,12,80], index: 11, kind: output, shape index: {0}]
  %s12 = inlined_call_operand.vmem [shape: f32[2,12,1], index: 12, kind: output, shape index: {1}]
  %13 = xla_tuple %s11, %s12
  %s14 = sld [smem:[#allocation0]]
  $region101: #{refine_forward.7} parent=0
    _
  %s16 = ssub.s32 1, %s14
  %s17 = scalar_select 0, %s16, %s14
  %v18 = vstv %s8
  %19 = vst [vmem:[#allocation4] sm:$0x1] %v18
  loop: start=0, step=1, limit=18
  $region2: #{refine_forward.7} parent=0 // loop_pre_header
    _
  $region3: #{refine_forward.7} parent=0 // loop_header
    %s21 = sphi 0, %s25
    %p22 = scmp.ge.s32.totalorder %s21, 18
    %s28 = sphi 0, %s47
    %s29 = sphi 0, %s43
    %s30 = sphi 0, %s39
    %s31 = sphi 0, %s28
    %s32 = sphi 0, %s29
    %s33 = sphi 0, %s30
    %s34 = sphi 0, %s31
    %s35 = sphi 0, %s32
    %s36 = sphi 0, %s33
    %s50 = sphi 0, %s52
    %s53 = sphi 0, %s50
    %s54 = sphi 0, %s53
    %s70 = sphi 0, %s54
    %s78 = sphi 0, %s80
    %s81 = sphi 0, %s78
    %s82 = sphi 0, %s81
    %s98 = sphi 0, %s82
    %s102 = sphi 0, %s102
    %s104 = sphi 0, %s102
    %s105 = sphi 0, %s104
    %s119 = sphi 0, %s105
    %s123 = sphi 0, %s123
    %s125 = sphi 0, %s123
    %s126 = sphi 0, %s125
    %s140 = sphi 0, %s126
    %s144 = sphi 0, %s144
    %s146 = sphi 0, %s144
    %s147 = sphi 0, %s146
    %s161 = sphi 0, %s147
    %s165 = sphi 0, %s165
    %s167 = sphi 0, %s165
    %s168 = sphi 0, %s167
    %s182 = sphi 0, %s168
    %s186 = sphi 0, %s186
    %s188 = sphi 0, %s186
    %s189 = sphi 0, %s188
    %s203 = sphi 0, %s189
    %s207 = sphi 0, %s207
    %s209 = sphi 0, %s207
    %s210 = sphi 0, %s209
    %s224 = sphi 0, %s210
    %s228 = sphi 0, %s228
    %s230 = sphi 0, %s228
    %s231 = sphi 0, %s230
    %s245 = sphi 0, %s231
    %s249 = sphi 0, %s249
    %s251 = sphi 0, %s249
    %s252 = sphi 0, %s251
    %s266 = sphi 0, %s252
    %s270 = sphi 0, %s270
    %s272 = sphi 0, %s270
    %s273 = sphi 0, %s272
    %s287 = sphi 0, %s273
    %s293 = sphi 0, %s295
    %s296 = sphi 0, %s293
    %s297 = sphi 0, %s296
    %s313 = sphi 0, %s297
    %s319 = sphi 0, %s321
    %s322 = sphi 0, %s319
    %s323 = sphi 0, %s322
    %s339 = sphi 0, %s323
  $region4: #{refine_forward.7} parent=0 // loop_header_branch
    %24 = sbr.rel (%p22) target = $region8
  $region5: #{refine_forward.7} parent=0 // loop_body
    %s26 = ssub.s32 %s21, 1
    %s27 = ssub.s32 %s21, 2
    %s37 = sadd.s32 1, %s30
    %p38 = scmp.ge.s32.totalorder %s37, 8
    %s39 = scalar_select %p38, 0, %s37
    %s40 = sadd.s32 1, %s29
    %s41 = scalar_select %p38, %s40, %s29
    %p42 = scmp.ge.s32.totalorder %s41, 1
    %s43 = scalar_select %p42, 0, %s41
    %s44 = sadd.s32 1, %s28
    %s45 = scalar_select %p42, %s44, %s28
    %p46 = scmp.ge.s32.totalorder %s45, 2
    %s47 = scalar_select %p46, 0, %s45
    %s48 = ssub.s32 %s28, %s47
    %p49 = scmp.eq.s32.totalorder %s48, 0
    %s51 = sadd.s32 %s50, 1
    %s52 = scalar_select %p49, %s50, %s51
    %p55 = pneg %p49
    %p56 = scmp.eq.s32.totalorder %s21, 15
    %p57 = por %p55, %p56
    %p58 = scmp.ne.s32.totalorder %s50, %s53
    %p59 = scmp.eq.s32.totalorder %s21, 0
    %p60 = por %p58, %p59
    %p61 = scmp.ne.s32.totalorder %s50, %s53
    %p62 = scmp.eq.s32.totalorder %s26, 15
    %p63 = por %p61, %p62
    %p64 = scmp.ne.s32.totalorder %s53, %s54
    %p65 = scmp.eq.s32.totalorder %s26, 0
    %p66 = por %p64, %p65
    %p67 = scmp.ne.s32.totalorder %s53, %s54
    %p68 = scmp.eq.s32.totalorder %s27, 15
    %p69 = por %p67, %p68
    %p71 = scmp.ne.s32.totalorder %s54, %s70
    %p72 = scmp.eq.s32.totalorder %s27, 0
    %p73 = por %p71, %p72
    %s74 = ssub.s32 %s30, %s39
    %s75 = ssub.s32 %s28, %s47
    %s76 = sor.u32 %s74, %s75
    %p77 = scmp.eq.s32.totalorder %s76, 0
    %s79 = sadd.s32 %s78, 1
    %s80 = scalar_select %p77, %s78, %s79
    %p83 = pneg %p77
    %p84 = scmp.eq.s32.totalorder %s21, 15
    %p85 = por %p83, %p84
    %p86 = scmp.ne.s32.totalorder %s78, %s81
    %p87 = scmp.eq.s32.totalorder %s21, 0
    %p88 = por %p86, %p87
    %p89 = scmp.ne.s32.totalorder %s78, %s81
    %p90 = scmp.eq.s32.totalorder %s26, 15
    %p91 = por %p89, %p90
    %p92 = scmp.ne.s32.totalorder %s81, %s82
    %p93 = scmp.eq.s32.totalorder %s26, 0
    %p94 = por %p92, %p93
    %p95 = scmp.ne.s32.totalorder %s81, %s82
    %p96 = scmp.eq.s32.totalorder %s27, 15
    %p97 = por %p95, %p96
    %p99 = scmp.ne.s32.totalorder %s82, %s98
    %p100 = scmp.eq.s32.totalorder %s27, 0
    %p101 = por %p99, %p100
    %s103 = sadd.s32 %s102, 1
    %p106 = scmp.eq.s32.totalorder %s21, 15
    %p107 = scmp.ne.s32.totalorder %s102, %s104
    %p108 = scmp.eq.s32.totalorder %s21, 0
    %p109 = por %p107, %p108
    %p110 = scmp.ne.s32.totalorder %s102, %s104
    %p111 = scmp.eq.s32.totalorder %s26, 15
    %p112 = por %p110, %p111
    %p113 = scmp.ne.s32.totalorder %s104, %s105
    %p114 = scmp.eq.s32.totalorder %s26, 0
    %p115 = por %p113, %p114
    %p116 = scmp.ne.s32.totalorder %s104, %s105
    %p117 = scmp.eq.s32.totalorder %s27, 15
    %p118 = por %p116, %p117
    %p120 = scmp.ne.s32.totalorder %s105, %s119
    %p121 = scmp.eq.s32.totalorder %s27, 0
    %p122 = por %p120, %p121
    %s124 = sadd.s32 %s123, 1
    %p127 = scmp.eq.s32.totalorder %s21, 15
    %p128 = scmp.ne.s32.totalorder %s123, %s125
    %p129 = scmp.eq.s32.totalorder %s21, 0
    %p130 = por %p128, %p129
    %p131 = scmp.ne.s32.totalorder %s123, %s125
    %p132 = scmp.eq.s32.totalorder %s26, 15
    %p133 = por %p131, %p132
    %p134 = scmp.ne.s32.totalorder %s125, %s126
    %p135 = scmp.eq.s32.totalorder %s26, 0
    %p136 = por %p134, %p135
    %p137 = scmp.ne.s32.totalorder %s125, %s126
    %p138 = scmp.eq.s32.totalorder %s27, 15
    %p139 = por %p137, %p138
    %p141 = scmp.ne.s32.totalorder %s126, %s140
    %p142 = scmp.eq.s32.totalorder %s27, 0
    %p143 = por %p141, %p142
    %s145 = sadd.s32 %s144, 1
    %p148 = scmp.eq.s32.totalorder %s21, 15
    %p149 = scmp.ne.s32.totalorder %s144, %s146
    %p150 = scmp.eq.s32.totalorder %s21, 0
    %p151 = por %p149, %p150
    %p152 = scmp.ne.s32.totalorder %s144, %s146
    %p153 = scmp.eq.s32.totalorder %s26, 15
    %p154 = por %p152, %p153
    %p155 = scmp.ne.s32.totalorder %s146, %s147
    %p156 = scmp.eq.s32.totalorder %s26, 0
    %p157 = por %p155, %p156
    %p158 = scmp.ne.s32.totalorder %s146, %s147
    %p159 = scmp.eq.s32.totalorder %s27, 15
    %p160 = por %p158, %p159
    %p162 = scmp.ne.s32.totalorder %s147, %s161
    %p163 = scmp.eq.s32.totalorder %s27, 0
    %p164 = por %p162, %p163
    %s166 = sadd.s32 %s165, 1
    %p169 = scmp.eq.s32.totalorder %s21, 15
    %p170 = scmp.ne.s32.totalorder %s165, %s167
    %p171 = scmp.eq.s32.totalorder %s21, 0
    %p172 = por %p170, %p171
    %p173 = scmp.ne.s32.totalorder %s165, %s167
    %p174 = scmp.eq.s32.totalorder %s26, 15
    %p175 = por %p173, %p174
    %p176 = scmp.ne.s32.totalorder %s167, %s168
    %p177 = scmp.eq.s32.totalorder %s26, 0
    %p178 = por %p176, %p177
    %p179 = scmp.ne.s32.totalorder %s167, %s168
    %p180 = scmp.eq.s32.totalorder %s27, 15
    %p181 = por %p179, %p180
    %p183 = scmp.ne.s32.totalorder %s168, %s182
    %p184 = scmp.eq.s32.totalorder %s27, 0
    %p185 = por %p183, %p184
    %s187 = sadd.s32 %s186, 1
    %p190 = scmp.eq.s32.totalorder %s21, 15
    %p191 = scmp.ne.s32.totalorder %s186, %s188
    %p192 = scmp.eq.s32.totalorder %s21, 0
    %p193 = por %p191, %p192
    %p194 = scmp.ne.s32.totalorder %s186, %s188
    %p195 = scmp.eq.s32.totalorder %s26, 15
    %p196 = por %p194, %p195
    %p197 = scmp.ne.s32.totalorder %s188, %s189
    %p198 = scmp.eq.s32.totalorder %s26, 0
    %p199 = por %p197, %p198
    %p200 = scmp.ne.s32.totalorder %s188, %s189
    %p201 = scmp.eq.s32.totalorder %s27, 15
    %p202 = por %p200, %p201
    %p204 = scmp.ne.s32.totalorder %s189, %s203
    %p205 = scmp.eq.s32.totalorder %s27, 0
    %p206 = por %p204, %p205
    %s208 = sadd.s32 %s207, 1
    %p211 = scmp.eq.s32.totalorder %s21, 15
    %p212 = scmp.ne.s32.totalorder %s207, %s209
    %p213 = scmp.eq.s32.totalorder %s21, 0
    %p214 = por %p212, %p213
    %p215 = scmp.ne.s32.totalorder %s207, %s209
    %p216 = scmp.eq.s32.totalorder %s26, 15
    %p217 = por %p215, %p216
    %p218 = scmp.ne.s32.totalorder %s209, %s210
    %p219 = scmp.eq.s32.totalorder %s26, 0
    %p220 = por %p218, %p219
    %p221 = scmp.ne.s32.totalorder %s209, %s210
    %p222 = scmp.eq.s32.totalorder %s27, 15
    %p223 = por %p221, %p222
    %p225 = scmp.ne.s32.totalorder %s210, %s224
    %p226 = scmp.eq.s32.totalorder %s27, 0
    %p227 = por %p225, %p226
    %s229 = sadd.s32 %s228, 1
    %p232 = scmp.eq.s32.totalorder %s21, 15
    %p233 = scmp.ne.s32.totalorder %s228, %s230
    %p234 = scmp.eq.s32.totalorder %s21, 0
    %p235 = por %p233, %p234
    %p236 = scmp.ne.s32.totalorder %s228, %s230
    %p237 = scmp.eq.s32.totalorder %s26, 15
    %p238 = por %p236, %p237
    %p239 = scmp.ne.s32.totalorder %s230, %s231
    %p240 = scmp.eq.s32.totalorder %s26, 0
    %p241 = por %p239, %p240
    %p242 = scmp.ne.s32.totalorder %s230, %s231
    %p243 = scmp.eq.s32.totalorder %s27, 15
    %p244 = por %p242, %p243
    %p246 = scmp.ne.s32.totalorder %s231, %s245
    %p247 = scmp.eq.s32.totalorder %s27, 0
    %p248 = por %p246, %p247
    %s250 = sadd.s32 %s249, 1
    %p253 = scmp.eq.s32.totalorder %s21, 15
    %p254 = scmp.ne.s32.totalorder %s249, %s251
    %p255 = scmp.eq.s32.totalorder %s21, 0
    %p256 = por %p254, %p255
    %p257 = scmp.ne.s32.totalorder %s249, %s251
    %p258 = scmp.eq.s32.totalorder %s26, 15
    %p259 = por %p257, %p258
    %p260 = scmp.ne.s32.totalorder %s251, %s252
    %p261 = scmp.eq.s32.totalorder %s26, 0
    %p262 = por %p260, %p261
    %p263 = scmp.ne.s32.totalorder %s251, %s252
    %p264 = scmp.eq.s32.totalorder %s27, 15
    %p265 = por %p263, %p264
    %p267 = scmp.ne.s32.totalorder %s252, %s266
    %p268 = scmp.eq.s32.totalorder %s27, 0
    %p269 = por %p267, %p268
    %s271 = sadd.s32 %s270, 1
    %p274 = scmp.eq.s32.totalorder %s21, 15
    %p275 = scmp.ne.s32.totalorder %s270, %s272
    %p276 = scmp.eq.s32.totalorder %s21, 0
    %p277 = por %p275, %p276
    %p278 = scmp.ne.s32.totalorder %s270, %s272
    %p279 = scmp.eq.s32.totalorder %s26, 15
    %p280 = por %p278, %p279
    %p281 = scmp.ne.s32.totalorder %s272, %s273
    %p282 = scmp.eq.s32.totalorder %s26, 0
    %p283 = por %p281, %p282
    %p284 = scmp.ne.s32.totalorder %s272, %s273
    %p285 = scmp.eq.s32.totalorder %s27, 15
    %p286 = por %p284, %p285
    %p288 = scmp.ne.s32.totalorder %s273, %s287
    %p289 = scmp.eq.s32.totalorder %s27, 0
    %p290 = por %p288, %p289
    %s291 = ssub.s32 %s28, %s47
    %p292 = scmp.eq.s32.totalorder %s291, 0
    %s294 = sadd.s32 %s293, 1
    %s295 = scalar_select %p292, %s293, %s294
    %p298 = pneg %p292
    %p299 = scmp.eq.s32.totalorder %s21, 15
    %p300 = por %p298, %p299
    %p301 = scmp.ne.s32.totalorder %s293, %s296
    %p302 = scmp.eq.s32.totalorder %s21, 0
    %p303 = por %p301, %p302
    %p304 = scmp.ne.s32.totalorder %s293, %s296
    %p305 = scmp.eq.s32.totalorder %s26, 15
    %p306 = por %p304, %p305
    %p307 = scmp.ne.s32.totalorder %s296, %s297
    %p308 = scmp.eq.s32.totalorder %s26, 0
    %p309 = por %p307, %p308
    %p310 = scmp.ne.s32.totalorder %s296, %s297
    %p311 = scmp.eq.s32.totalorder %s27, 15
    %p312 = por %p310, %p311
    %p314 = scmp.ne.s32.totalorder %s297, %s313
    %p315 = scmp.eq.s32.totalorder %s27, 0
    %p316 = por %p314, %p315
    %s317 = ssub.s32 %s28, %s47
    %p318 = scmp.eq.s32.totalorder %s317, 0
    %s320 = sadd.s32 %s319, 1
    %s321 = scalar_select %p318, %s319, %s320
    %p324 = pneg %p318
    %p325 = scmp.eq.s32.totalorder %s21, 15
    %p326 = por %p324, %p325
    %p327 = scmp.ne.s32.totalorder %s319, %s322
    %p328 = scmp.eq.s32.totalorder %s21, 0
    %p329 = por %p327, %p328
    %p330 = scmp.ne.s32.totalorder %s319, %s322
    %p331 = scmp.eq.s32.totalorder %s26, 15
    %p332 = por %p330, %p331
    %p333 = scmp.ne.s32.totalorder %s322, %s323
    %p334 = scmp.eq.s32.totalorder %s26, 0
    %p335 = por %p333, %p334
    %p336 = scmp.ne.s32.totalorder %s322, %s323
    %p337 = scmp.eq.s32.totalorder %s27, 15
    %p338 = por %p336, %p337
    %p340 = scmp.ne.s32.totalorder %s323, %s339
    %p341 = scmp.eq.s32.totalorder %s27, 0
    %p342 = por %p340, %p341
    %p343 = scmp.le.s32.totalorder 1, %s21
    %p344 = scmp.lt.s32.totalorder %s21, 17
    %p345 = pnand %p343, %p344
    %p346 = pneg %p345
    // Predicated region
    $region9: #{refine_forward.7} parent=5 // pred_check
      _
    $region10: #{refine_forward.7} parent=5 // pred_check_branch
      %348 = sbr.rel (%p345) target = $region12
    $region11: #{refine_forward.7} parent=5 // pred_region
      %s349 = ssub.s32 %s21, 1
      // Predicated region
      $region13: #{refine_forward.7} parent=11 // pred_check
        %p350 = pneg %p115
      $region14: #{refine_forward.7} parent=11 // pred_check_branch
        %352 = sbr.rel (%p350) target = $region16
      $region15: #{refine_forward.7} parent=11 // pred_region
        _
      $region16: #{refine_forward.7} parent=11 // pred_fallthru
        _
      // Predicated region
      $region17: #{refine_forward.7} parent=11 // pred_check
        %p353 = pneg %p136
      $region18: #{refine_forward.7} parent=11 // pred_check_branch
        %355 = sbr.rel (%p353) target = $region20
      $region19: #{refine_forward.7} parent=11 // pred_region
        _
      $region20: #{refine_forward.7} parent=11 // pred_fallthru
        _
      // Predicated region
      $region21: #{refine_forward.7} parent=11 // pred_check
        %p356 = pneg %p157
      $region22: #{refine_forward.7} parent=11 // pred_check_branch
        %358 = sbr.rel (%p356) target = $region24
      $region23: #{refine_forward.7} parent=11 // pred_region
        _
      $region24: #{refine_forward.7} parent=11 // pred_fallthru
        _
      // Predicated region
      $region25: #{refine_forward.7} parent=11 // pred_check
        %p359 = pneg %p178
      $region26: #{refine_forward.7} parent=11 // pred_check_branch
        %361 = sbr.rel (%p359) target = $region28
      $region27: #{refine_forward.7} parent=11 // pred_region
        _
      $region28: #{refine_forward.7} parent=11 // pred_fallthru
        _
      // Predicated region
      $region29: #{refine_forward.7} parent=11 // pred_check
        %p362 = pneg %p199
      $region30: #{refine_forward.7} parent=11 // pred_check_branch
        %364 = sbr.rel (%p362) target = $region32
      $region31: #{refine_forward.7} parent=11 // pred_region
        _
      $region32: #{refine_forward.7} parent=11 // pred_fallthru
        _
      // Predicated region
      $region33: #{refine_forward.7} parent=11 // pred_check
        %p365 = pneg %p220
      $region34: #{refine_forward.7} parent=11 // pred_check_branch
        %367 = sbr.rel (%p365) target = $region36
      $region35: #{refine_forward.7} parent=11 // pred_region
        _
      $region36: #{refine_forward.7} parent=11 // pred_fallthru
        _
      // Predicated region
      $region37: #{refine_forward.7} parent=11 // pred_check
        %p368 = pneg %p241
      $region38: #{refine_forward.7} parent=11 // pred_check_branch
        %370 = sbr.rel (%p368) target = $region40
      $region39: #{refine_forward.7} parent=11 // pred_region
        _
      $region40: #{refine_forward.7} parent=11 // pred_fallthru
        _
      // Predicated region
      $region41: #{refine_forward.7} parent=11 // pred_check
        %p371 = pneg %p262
      $region42: #{refine_forward.7} parent=11 // pred_check_branch
        %373 = sbr.rel (%p371) target = $region44
      $region43: #{refine_forward.7} parent=11 // pred_region
        _
      $region44: #{refine_forward.7} parent=11 // pred_fallthru
        _
      // Predicated region
      $region45: #{refine_forward.7} parent=11 // pred_check
        %p374 = pneg %p283
      $region46: #{refine_forward.7} parent=11 // pred_check_branch
        %376 = sbr.rel (%p374) target = $region48
      $region47: #{refine_forward.7} parent=11 // pred_region
        _
      $region48: #{refine_forward.7} parent=11 // pred_fallthru
        _
    $region12: #{refine_forward.7} parent=5 // pred_fallthru
      _
    %p377 = scmp.lt.s32.totalorder %s21, 16
    // Predicated region
    $region49: #{refine_forward.7} parent=5 // pred_check
      %p378 = pneg %p377
    $region50: #{refine_forward.7} parent=5 // pred_check_branch
      %380 = sbr.rel (%p378) target = $region52
    $region51: #{refine_forward.7} parent=5 // pred_region
      // Predicated region
      $region53: #{refine_forward.7} parent=51 // pred_check
        %p381 = pneg %p60
      $region54: #{refine_forward.7} parent=51 // pred_check_branch
        %383 = sbr.rel (%p381) target = $region56
      $region55: #{refine_forward.7} parent=51 // pred_region
        %p384 = scmp.lt.s32.totalorder %s28, 1
        %s385 = scalar_select %p384, %s28, 1
        %s386 = smul.addr %s385, 2
        %s387 = smul.addr %s386, 8
        %s388 = scalar_lea.vmem %s0, %s387
      $region56: #{refine_forward.7} parent=51 // pred_fallthru
        _
      // Predicated region
      $region57: #{refine_forward.7} parent=51 // pred_check
        %p389 = pneg %p88
      $region58: #{refine_forward.7} parent=51 // pred_check_branch
        %391 = sbr.rel (%p389) target = $region60
      $region59: #{refine_forward.7} parent=51 // pred_region
        %p392 = scmp.lt.s32.totalorder %s30, 7
        %s393 = scalar_select %p392, %s30, 7
        %p394 = scmp.lt.s32.totalorder %s28, 1
        %s395 = scalar_select %p394, %s28, 1
        %s396 = smul.addr %s395, 8
        %s397 = smul.addr %s393, 16
        %s398 = sadd.s32 %s396, %s397
        %s399 = smul.addr %s398, 8
        %s400 = scalar_lea.vmem %s1, %s399
      $region60: #{refine_forward.7} parent=51 // pred_fallthru
        _
    $region52: #{refine_forward.7} parent=5 // pred_fallthru
      _
    %p401 = scmp.le.s32.totalorder 1, %s21
    %p402 = scmp.lt.s32.totalorder %s21, 17
    %p403 = pnand %p401, %p402
    %p404 = pneg %p403
    // Predicated region
    $region61: #{refine_forward.7} parent=5 // pred_check
      _
    $region62: #{refine_forward.7} parent=5 // pred_check_branch
      %406 = sbr.rel (%p403) target = $region64
    $region63: #{refine_forward.7} parent=5 // pred_region
      %s407 = ssub.s32 %s21, 1
      %p408 = scmp.lt.s32.totalorder %s31, 1
      %s409 = scalar_select %p408, %s31, 1
      %s410 = smul.addr %s409, 2
      %s411 = smul.addr %s410, 8
      %s412 = scalar_lea.vmem %s0, %s411
      %p413 = pneg %p66
      %p414 = pneg %p63
      %p415 = scmp.lt.s32.totalorder %s33, 7
      %s416 = scalar_select %p415, %s33, 7
      %p417 = scmp.lt.s32.totalorder %s31, 1
      %s418 = scalar_select %p417, %s31, 1
      %s419 = smul.addr %s418, 8
      %s420 = smul.addr %s416, 16
      %s421 = sadd.s32 %s419, %s420
      %s422 = smul.addr %s421, 8
      %s423 = scalar_lea.vmem %s1, %s422
      %p424 = pneg %p94
      %p425 = pneg %p91
      %p426 = pneg %p115
      %p427 = pneg %p112
      %p428 = pneg %p136
      %p429 = pneg %p133
      %p430 = pneg %p157
      %p431 = pneg %p154
      %p432 = pneg %p178
      %p433 = pneg %p175
      %p434 = pneg %p199
      %p435 = pneg %p196
      %p436 = pneg %p220
      %p437 = pneg %p217
      %p438 = pneg %p241
      %p439 = pneg %p238
      %p440 = pneg %p262
      %p441 = pneg %p259
      %p442 = pneg %p283
      %p443 = pneg %p280
      %p444 = pneg %p309
      %p445 = pneg %p306
      %p446 = scmp.lt.s32.totalorder %s31, 1
      %s447 = scalar_select %p446, %s31, 1
      %s448 = smul.addr %s447, 2
      %s449 = smul.addr %s448, 8
      %s450 = scalar_lea.vmem %s11, %s449
      %p451 = pneg %p335
      %p452 = pneg %p332
      %p453 = scmp.lt.s32.totalorder %s31, 1
      %s454 = scalar_select %p453, %s31, 1
      %s455 = smul.addr %s454, 2
      %s456 = smul.addr %s455, 8
      %s457 = scalar_lea.vmem %s12, %s456
      %p458 = scmp.lt.s32.totalorder %s31, 1
      %s459 = scalar_select %p458, %s31, 1
      %s460 = smul.addr %s459, 2
      %s461 = smul.addr %s460, 8
      %s462 = scalar_lea.vmem %s0, %s461
      %p463 = scmp.lt.s32.totalorder %s33, 7
      %s464 = scalar_select %p463, %s33, 7
      %p465 = scmp.lt.s32.totalorder %s31, 1
      %s466 = scalar_select %p465, %s31, 1
      %s467 = smul.addr %s466, 8
      %s468 = smul.addr %s464, 16
      %s469 = sadd.s32 %s467, %s468
      %s470 = smul.addr %s469, 8
      %s471 = scalar_lea.vmem %s1, %s470
      %p472 = scmp.lt.s32.totalorder %s31, 1
      %s473 = scalar_select %p472, %s31, 1
      %s474 = smul.addr %s473, 2
      %s475 = smul.addr %s474, 8
      %s476 = scalar_lea.vmem %s11, %s475
      %p477 = scmp.lt.s32.totalorder %s31, 1
      %s478 = scalar_select %p477, %s31, 1
      %s479 = smul.addr %s478, 2
      %s480 = smul.addr %s479, 8
      %s481 = scalar_lea.vmem %s12, %s480
      %p482 = scmp.eq.s32.totalorder %s32, 0
      %p483 = scmp.eq.s32.totalorder %s33, 0
      %p484 = pnand %p482, %p483
      %p485 = pneg %p484
      // Predicated region
      $region65: #{refine_forward.7} parent=63 // pred_check
        _
      $region66: #{refine_forward.7} parent=63 // pred_check_branch
        %487 = sbr.rel (%p484) target = $region68
      $region67: #{refine_forward.7} parent=63 // pred_region
        %v488 = vld [vmem:[%s462] sm:$0xff]
        %v489 = vld [vmem:[%s462 + $0x8] sm:$0xf]
        %vm490 = vcmask 392192
        %491 = vst.msk [vmem:[#allocation2] sm:$0xff] %vm490, %v488
        %vm492 = vcmask 388096
        %493 = vst.msk [vmem:[#allocation2 + $0x8] sm:$0xf] %vm492, %v489
      $region68: #{refine_forward.7} parent=63 // pred_fallthru
        _
      %v494 = vld [vmem:[#allocation2] sm:$0xff]
      %v495 = vld [vmem:[#allocation2 + $0x8] sm:$0xf]
      %v496 = vld [vmem:[%s471] sm:$0xff]
      %v497 = vld [vmem:[%s471 + $0x8] sm:$0xff]
      %v498 = vld [vmem:[%s471 + $0x10] sm:$0xff]
      %v499 = vld [vmem:[%s471 + $0x18] sm:$0xff]
      %v500 = vld [vmem:[%s471 + $0x20] sm:$0xf]
      %v501 = vld [vmem:[%s471 + $0x28] sm:$0xf]
      %v502 = vld [vmem:[%s471 + $0x30] sm:$0xf]
      %v503 = vld [vmem:[%s471 + $0x38] sm:$0xf]
      %v504 = vld [vmem:[%s2] sm:$0xff]
      %v505 = vld [vmem:[%s2 + $0x8] sm:$0xff]
      %v506 = vld [vmem:[%s2 + $0x10] sm:$0xff]
      %v507 = vld [vmem:[%s2 + $0x18] sm:$0xff]
      %v508 = vld [vmem:[%s2 + $0x20] sm:$0xff]
      %v509 = vld [vmem:[%s2 + $0x28] sm:$0xff]
      %v510 = vld [vmem:[%s2 + $0x30] sm:$0xff]
      %v511 = vld [vmem:[%s2 + $0x38] sm:$0xff]
      %v512 = vld [vmem:[%s2 + $0x40] sm:$0xff]
      %v513 = vld [vmem:[%s2 + $0x48] sm:$0xff]
      %v514 = vld [vmem:[%s2 + $0x50] sm:$0xff]
      %v515 = vld [vmem:[%s2 + $0x58] sm:$0xff]
      %v516 = vld [vmem:[%s2 + $0x60] sm:$0xff]
      %v517 = vld [vmem:[%s2 + $0x68] sm:$0xff]
      %v518 = vld [vmem:[%s2 + $0x70] sm:$0xff]
      %v519 = vld [vmem:[%s2 + $0x78] sm:$0xff]
      %v520 = vld [vmem:[%s2 + $0x80] sm:$0xff]
      %v521 = vld [vmem:[%s2 + $0x88] sm:$0xff]
      %v522 = vld [vmem:[%s2 + $0x90] sm:$0xff]
      %v523 = vld [vmem:[%s2 + $0x98] sm:$0xff]
      %v524 = vld [vmem:[%s2 + $0xa0] sm:$0xff]
      %v525 = vld [vmem:[%s2 + $0xa8] sm:$0xff]
      %v526 = vld [vmem:[%s2 + $0xb0] sm:$0xff]
      %v527 = vld [vmem:[%s2 + $0xb8] sm:$0xff]
      %v528 = vld [vmem:[%s2 + $0xc0] sm:$0xff]
      %v529 = vld [vmem:[%s2 + $0xc8] sm:$0xff]
      %v530 = vld [vmem:[%s2 + $0xd0] sm:$0xff]
      %v531 = vld [vmem:[%s2 + $0xd8] sm:$0xff]
      %v532 = vld [vmem:[%s2 + $0xe0] sm:$0xff]
      %v533 = vld [vmem:[%s2 + $0xe8] sm:$0xff]
      %v534 = vld [vmem:[%s2 + $0xf0] sm:$0xff]
      %v535 = vld [vmem:[%s2 + $0xf8] sm:$0xff]
      %v536 = vld [vmem:[%s2 + $0x100] sm:$0xff]
      %v537 = vld [vmem:[%s2 + $0x108] sm:$0xff]
      %v538 = vld [vmem:[%s2 + $0x110] sm:$0xff]
      %v539 = vld [vmem:[%s2 + $0x118] sm:$0xff]
      %v540 = vld [vmem:[%s2 + $0x120] sm:$0xff]
      %v541 = vld [vmem:[%s2 + $0x128] sm:$0xff]
      %v542 = vld [vmem:[%s2 + $0x130] sm:$0xff]
      %v543 = vld [vmem:[%s2 + $0x138] sm:$0xff]
      %v544 = vld [vmem:[%s2 + $0x140] sm:$0xff]
      %v545 = vld [vmem:[%s2 + $0x148] sm:$0xff]
      %v546 = vld [vmem:[%s2 + $0x150] sm:$0xff]
      %v547 = vld [vmem:[%s2 + $0x158] sm:$0xff]
      %v548 = vld [vmem:[%s2 + $0x160] sm:$0xff]
      %v549 = vld [vmem:[%s2 + $0x168] sm:$0xff]
      %v550 = vld [vmem:[%s2 + $0x170] sm:$0xff]
      %v551 = vld [vmem:[%s2 + $0x178] sm:$0xff]
      %v552 = vld [vmem:[%s2 + $0x180] sm:$0xff]
      %v553 = vld [vmem:[%s2 + $0x188] sm:$0xff]
      %v554 = vld [vmem:[%s2 + $0x190] sm:$0xff]
      %v555 = vld [vmem:[%s2 + $0x198] sm:$0xff]
      %v556 = vld [vmem:[%s2 + $0x1a0] sm:$0xff]
      %v557 = vld [vmem:[%s2 + $0x1a8] sm:$0xff]
      %v558 = vld [vmem:[%s2 + $0x1b0] sm:$0xff]
      %v559 = vld [vmem:[%s2 + $0x1b8] sm:$0xff]
      %v560 = vld [vmem:[%s2 + $0x1c0] sm:$0xff]
      %v561 = vld [vmem:[%s2 + $0x1c8] sm:$0xff]
      %v562 = vld [vmem:[%s2 + $0x1d0] sm:$0xff]
      %v563 = vld [vmem:[%s2 + $0x1d8] sm:$0xff]
      %v564 = vld [vmem:[%s2 + $0x1e0] sm:$0xff]
      %v565 = vld [vmem:[%s2 + $0x1e8] sm:$0xff]
      %v566 = vld [vmem:[%s2 + $0x1f0] sm:$0xff]
      %v567 = vld [vmem:[%s2 + $0x1f8] sm:$0xff]
      %v568 = vld [vmem:[%s2 + $0x200] sm:$0xff]
      %v569 = vld [vmem:[%s2 + $0x208] sm:$0xff]
      %v570 = vld [vmem:[%s2 + $0x210] sm:$0xff]
      %v571 = vld [vmem:[%s2 + $0x218] sm:$0xff]
      %v572 = vld [vmem:[%s2 + $0x220] sm:$0xff]
      %v573 = vld [vmem:[%s2 + $0x228] sm:$0xff]
      %v574 = vld [vmem:[%s2 + $0x230] sm:$0xff]
      %v575 = vld [vmem:[%s2 + $0x238] sm:$0xff]
      %v576 = vld [vmem:[%s2 + $0x240] sm:$0xff]
      %v577 = vld [vmem:[%s2 + $0x248] sm:$0xff]
      %v578 = vld [vmem:[%s2 + $0x250] sm:$0xff]
      %v579 = vld [vmem:[%s2 + $0x258] sm:$0xff]
      %v580 = vld [vmem:[%s2 + $0x260] sm:$0xff]
      %v581 = vld [vmem:[%s2 + $0x268] sm:$0xff]
      %v582 = vld [vmem:[%s2 + $0x270] sm:$0xff]
      %v583 = vld [vmem:[%s2 + $0x278] sm:$0xff]
      %v584 = vld [vmem:[%s2 + $0x280] sm:$0xff]
      %v585 = vld [vmem:[%s2 + $0x288] sm:$0xff]
      %v586 = vld [vmem:[%s2 + $0x290] sm:$0xff]
      %v587 = vld [vmem:[%s2 + $0x298] sm:$0xff]
      %vm588 = vcmask 392192
      %v590 = vsel %vm588, %v494, 0
      %592 = vmatprep.subr.mxu0 0.0
      %593 = vmatpush1.msra.mxu0 0.0
      %594 = vmatprep.subr.mxu0 0.0
      %595 = vmatpush1.msra.mxu0 0.0
      %596 = vmatprep.subr.mxu0 0.0
      %597 = vmatpush1.msra.mxu0 0.0
      %598 = vmatprep.subr.mxu0 0.0
      %599 = vmatpush1.msra.mxu0 0.0
      %600 = vmatprep.subr.mxu0 0.0
      %601 = vmatpush1.msra.mxu0 0.0
      %602 = vmatprep.subr.mxu0 0.0
      %603 = vmatpush1.msra.mxu0 0.0
      %604 = vmatprep.subr.mxu0 0.0
      %605 = vmatpush1.msra.mxu0 0.0
      %606 = vmatprep.subr.mxu0 0.0
      %607 = vmatpush1.msra.mxu0 0.0
      %608 = vmatprep.subr.mxu0 0.0
      %609 = vmatpush1.msra.mxu0 0.0
      %610 = vmatprep.subr.mxu0 0.0
      %611 = vmatpush1.msra.mxu0 0.0
      %612 = vmatprep.subr.mxu0 %v575
      %613 = vmatpush1.msra.mxu0 %v574
      %614 = vmatprep.subr.mxu0 %v561
      %615 = vmatpush1.msra.mxu0 %v560
      %616 = vmatprep.subr.mxu0 %v547
      %617 = vmatpush1.msra.mxu0 %v546
      %618 = vmatprep.subr.mxu0 %v533
      %619 = vmatpush1.msra.mxu0 %v532
      %620 = vmatprep.subr.mxu0 %v519
      %621 = vmatpush1.msra.mxu0 %v518
      %622 = vmatprep.subr.mxu0 %v505
      %623 = vmatpush1.msra.mxu0 %v504
      %624 = vmatprep.subr.mxu0 0.0
      %625 = vmatpush2.msra.mxu0 0.0
      %626 = vmatprep.subr.mxu0 0.0
      %627 = vmatpush2.msra.mxu0 0.0
      %628 = vmatprep.subr.mxu0 0.0
      %629 = vmatpush2.msra.mxu0 0.0
      %630 = vmatprep.subr.mxu0 0.0
      %631 = vmatpush2.msra.mxu0 0.0
      %632 = vmatprep.subr.mxu0 0.0
      %633 = vmatpush2.msra.mxu0 0.0
      %634 = vmatprep.subr.mxu0 0.0
      %635 = vmatpush2.msra.mxu0 0.0
      %636 = vmatprep.subr.mxu0 0.0
      %637 = vmatpush2.msra.mxu0 0.0
      %638 = vmatprep.subr.mxu0 0.0
      %639 = vmatpush2.msra.mxu0 0.0
      %640 = vmatprep.subr.mxu0 0.0
      %641 = vmatpush2.msra.mxu0 0.0
      %642 = vmatprep.subr.mxu0 0.0
      %643 = vmatpush2.msra.mxu0 0.0
      %644 = vmatprep.subr.mxu0 0.0
      %645 = vmatpush2.msra.mxu0 0.0
      %646 = vmatprep.subr.mxu0 0.0
      %647 = vmatpush2.msra.mxu0 0.0
      %648 = vmatprep.subr.mxu0 0.0
      %649 = vmatpush2.msra.mxu0 0.0
      %650 = vmatprep.subr.mxu0 0.0
      %651 = vmatpush2.msra.mxu0 0.0
      %652 = vmatprep.subr.mxu0 0.0
      %653 = vmatpush2.msra.mxu0 0.0
      %654 = vmatprep.subr.mxu0 0.0
      %655 = vmatpush2.msra.mxu0 0.0
      %656 = vmatprep.mubr.f32.mxu0 0.0
      %657 = vmatmul.mubr.f32.gmra.mxu0 %v590
      %v658 = vpop.f32.mrf.mxu0
      %v659 = vadd.f32 0.0, %v658
      %v660 = vpop.f32.mrf.mxu0
      %v661 = vadd.f32 0.0, %v660
      %662 = vdwg.mxu0
      %663 = vmatprep.subr.mxu0 0.0
      %664 = vmatpush1.msra.mxu0 0.0
      %665 = vmatprep.subr.mxu0 0.0
      %666 = vmatpush1.msra.mxu0 0.0
      %667 = vmatprep.subr.mxu0 0.0
      %668 = vmatpush1.msra.mxu0 0.0
      %669 = vmatprep.subr.mxu0 0.0
      %670 = vmatpush1.msra.mxu0 0.0
      %671 = vmatprep.subr.mxu0 0.0
      %672 = vmatpush1.msra.mxu0 0.0
      %673 = vmatprep.subr.mxu0 0.0
      %674 = vmatpush1.msra.mxu0 0.0
      %675 = vmatprep.subr.mxu0 0.0
      %676 = vmatpush1.msra.mxu0 0.0
      %677 = vmatprep.subr.mxu0 0.0
      %678 = vmatpush1.msra.mxu0 0.0
      %679 = vmatprep.subr.mxu0 0.0
      %680 = vmatpush1.msra.mxu0 0.0
      %681 = vmatprep.subr.mxu0 0.0
      %682 = vmatpush1.msra.mxu0 0.0
      %683 = vmatprep.subr.mxu0 %v577
      %684 = vmatpush1.msra.mxu0 %v576
      %685 = vmatprep.subr.mxu0 %v563
      %686 = vmatpush1.msra.mxu0 %v562
      %687 = vmatprep.subr.mxu0 %v549
      %688 = vmatpush1.msra.mxu0 %v548
      %689 = vmatprep.subr.mxu0 %v535
      %690 = vmatpush1.msra.mxu0 %v534
      %691 = vmatprep.subr.mxu0 %v521
      %692 = vmatpush1.msra.mxu0 %v520
      %693 = vmatprep.subr.mxu0 %v507
      %694 = vmatpush1.msra.mxu0 %v506
      %695 = vmatprep.subr.mxu0 0.0
      %696 = vmatpush2.msra.mxu0 0.0
      %697 = vmatprep.subr.mxu0 0.0
      %698 = vmatpush2.msra.mxu0 0.0
      %699 = vmatprep.subr.mxu0 0.0
      %700 = vmatpush2.msra.mxu0 0.0
      %701 = vmatprep.subr.mxu0 0.0
      %702 = vmatpush2.msra.mxu0 0.0
      %703 = vmatprep.subr.mxu0 0.0
      %704 = vmatpush2.msra.mxu0 0.0
      %705 = vmatprep.subr.mxu0 0.0
      %706 = vmatpush2.msra.mxu0 0.0
      %707 = vmatprep.subr.mxu0 0.0
      %708 = vmatpush2.msra.mxu0 0.0
      %709 = vmatprep.subr.mxu0 0.0
      %710 = vmatpush2.msra.mxu0 0.0
      %711 = vmatprep.subr.mxu0 0.0
      %712 = vmatpush2.msra.mxu0 0.0
      %713 = vmatprep.subr.mxu0 0.0
      %714 = vmatpush2.msra.mxu0 0.0
      %715 = vmatprep.subr.mxu0 0.0
      %716 = vmatpush2.msra.mxu0 0.0
      %717 = vmatprep.subr.mxu0 0.0
      %718 = vmatpush2.msra.mxu0 0.0
      %719 = vmatprep.subr.mxu0 0.0
      %720 = vmatpush2.msra.mxu0 0.0
      %721 = vmatprep.subr.mxu0 0.0
      %722 = vmatpush2.msra.mxu0 0.0
      %723 = vmatprep.subr.mxu0 0.0
      %724 = vmatpush2.msra.mxu0 0.0
      %725 = vmatprep.subr.mxu0 0.0
      %726 = vmatpush2.msra.mxu0 0.0
      %727 = vmatprep.mubr.f32.mxu0 0.0
      %728 = vmatmul.mubr.f32.gmra.mxu0 %v590
      %v729 = vpop.f32.mrf.mxu0
      %v730 = vadd.f32 0.0, %v729
      %v731 = vpop.f32.mrf.mxu0
      %v732 = vadd.f32 0.0, %v731
      %733 = vdwg.mxu0
      %734 = vmatprep.subr.mxu0 0.0
      %735 = vmatpush1.msra.mxu0 0.0
      %736 = vmatprep.subr.mxu0 0.0
      %737 = vmatpush1.msra.mxu0 0.0
      %738 = vmatprep.subr.mxu0 0.0
      %739 = vmatpush1.msra.mxu0 0.0
      %740 = vmatprep.subr.mxu0 0.0
      %741 = vmatpush1.msra.mxu0 0.0
      %742 = vmatprep.subr.mxu0 0.0
      %743 = vmatpush1.msra.mxu0 0.0
      %744 = vmatprep.subr.mxu0 0.0
      %745 = vmatpush1.msra.mxu0 0.0
      %746 = vmatprep.subr.mxu0 0.0
      %747 = vmatpush1.msra.mxu0 0.0
      %748 = vmatprep.subr.mxu0 0.0
      %749 = vmatpush1.msra.mxu0 0.0
      %750 = vmatprep.subr.mxu0 0.0
      %751 = vmatpush1.msra.mxu0 0.0
      %752 = vmatprep.subr.mxu0 0.0
      %753 = vmatpush1.msra.mxu0 0.0
      %754 = vmatprep.subr.mxu0 %v579
      %755 = vmatpush1.msra.mxu0 %v578
      %756 = vmatprep.subr.mxu0 %v565
      %757 = vmatpush1.msra.mxu0 %v564
      %758 = vmatprep.subr.mxu0 %v551
      %759 = vmatpush1.msra.mxu0 %v550
      %760 = vmatprep.subr.mxu0 %v537
      %761 = vmatpush1.msra.mxu0 %v536
      %762 = vmatprep.subr.mxu0 %v523
      %763 = vmatpush1.msra.mxu0 %v522
      %764 = vmatprep.subr.mxu0 %v509
      %765 = vmatpush1.msra.mxu0 %v508
      %766 = vmatprep.subr.mxu0 0.0
      %767 = vmatpush2.msra.mxu0 0.0
      %768 = vmatprep.subr.mxu0 0.0
      %769 = vmatpush2.msra.mxu0 0.0
      %770 = vmatprep.subr.mxu0 0.0
      %771 = vmatpush2.msra.mxu0 0.0
      %772 = vmatprep.subr.mxu0 0.0
      %773 = vmatpush2.msra.mxu0 0.0
      %774 = vmatprep.subr.mxu0 0.0
      %775 = vmatpush2.msra.mxu0 0.0
      %776 = vmatprep.subr.mxu0 0.0
      %777 = vmatpush2.msra.mxu0 0.0
      %778 = vmatprep.subr.mxu0 0.0
      %779 = vmatpush2.msra.mxu0 0.0
      %780 = vmatprep.subr.mxu0 0.0
      %781 = vmatpush2.msra.mxu0 0.0
      %782 = vmatprep.subr.mxu0 0.0
      %783 = vmatpush2.msra.mxu0 0.0
      %784 = vmatprep.subr.mxu0 0.0
      %785 = vmatpush2.msra.mxu0 0.0
      %786 = vmatprep.subr.mxu0 0.0
      %787 = vmatpush2.msra.mxu0 0.0
      %788 = vmatprep.subr.mxu0 0.0
      %789 = vmatpush2.msra.mxu0 0.0
      %790 = vmatprep.subr.mxu0 0.0
      %791 = vmatpush2.msra.mxu0 0.0
      %792 = vmatprep.subr.mxu0 0.0
      %793 = vmatpush2.msra.mxu0 0.0
      %794 = vmatprep.subr.mxu0 0.0
      %795 = vmatpush2.msra.mxu0 0.0
      %796 = vmatprep.subr.mxu0 0.0
      %797 = vmatpush2.msra.mxu0 0.0
      %798 = vmatprep.mubr.f32.mxu0 0.0
      %799 = vmatmul.mubr.f32.gmra.mxu0 %v590
      %v800 = vpop.f32.mrf.mxu0
      %v801 = vadd.f32 0.0, %v800
      %v802 = vpop.f32.mrf.mxu0
      %v803 = vadd.f32 0.0, %v802
      %804 = vdwg.mxu0
      %805 = vmatprep.subr.mxu0 0.0
      %806 = vmatpush1.msra.mxu0 0.0
      %807 = vmatprep.subr.mxu0 0.0
      %808 = vmatpush1.msra.mxu0 0.0
      %809 = vmatprep.subr.mxu0 0.0
      %810 = vmatpush1.msra.mxu0 0.0
      %811 = vmatprep.subr.mxu0 0.0
      %812 = vmatpush1.msra.mxu0 0.0
      %813 = vmatprep.subr.mxu0 0.0
      %814 = vmatpush1.msra.mxu0 0.0
      %815 = vmatprep.subr.mxu0 0.0
      %816 = vmatpush1.msra.mxu0 0.0
      %817 = vmatprep.subr.mxu0 0.0
      %818 = vmatpush1.msra.mxu0 0.0
      %819 = vmatprep.subr.mxu0 0.0
      %820 = vmatpush1.msra.mxu0 0.0
      %821 = vmatprep.subr.mxu0 0.0
      %822 = vmatpush1.msra.mxu0 0.0
      %823 = vmatprep.subr.mxu0 0.0
      %824 = vmatpush1.msra.mxu0 0.0
      %825 = vmatprep.subr.mxu0 %v581
      %826 = vmatpush1.msra.mxu0 %v580
      %827 = vmatprep.subr.mxu0 %v567
      %828 = vmatpush1.msra.mxu0 %v566
      %829 = vmatprep.subr.mxu0 %v553
      %830 = vmatpush1.msra.mxu0 %v552
      %831 = vmatprep.subr.mxu0 %v539
      %832 = vmatpush1.msra.mxu0 %v538
      %833 = vmatprep.subr.mxu0 %v525
      %834 = vmatpush1.msra.mxu0 %v524
      %835 = vmatprep.subr.mxu0 %v511
      %836 = vmatpush1.msra.mxu0 %v510
      %837 = vmatprep.subr.mxu0 0.0
      %838 = vmatpush2.msra.mxu0 0.0
      %839 = vmatprep.subr.mxu0 0.0
      %840 = vmatpush2.msra.mxu0 0.0
      %841 = vmatprep.subr.mxu0 0.0
      %842 = vmatpush2.msra.mxu0 0.0
      %843 = vmatprep.subr.mxu0 0.0
      %844 = vmatpush2.msra.mxu0 0.0
      %845 = vmatprep.subr.mxu0 0.0
      %846 = vmatpush2.msra.mxu0 0.0
      %847 = vmatprep.subr.mxu0 0.0
      %848 = vmatpush2.msra.mxu0 0.0
      %849 = vmatprep.subr.mxu0 0.0
      %850 = vmatpush2.msra.mxu0 0.0
      %851 = vmatprep.subr.mxu0 0.0
      %852 = vmatpush2.msra.mxu0 0.0
      %853 = vmatprep.subr.mxu0 0.0
      %854 = vmatpush2.msra.mxu0 0.0
      %855 = vmatprep.subr.mxu0 0.0
      %856 = vmatpush2.msra.mxu0 0.0
      %857 = vmatprep.subr.mxu0 0.0
      %858 = vmatpush2.msra.mxu0 0.0
      %859 = vmatprep.subr.mxu0 0.0
      %860 = vmatpush2.msra.mxu0 0.0
      %861 = vmatprep.subr.mxu0 0.0
      %862 = vmatpush2.msra.mxu0 0.0
      %863 = vmatprep.subr.mxu0 0.0
      %864 = vmatpush2.msra.mxu0 0.0
      %865 = vmatprep.subr.mxu0 0.0
      %866 = vmatpush2.msra.mxu0 0.0
      %867 = vmatprep.subr.mxu0 0.0
      %868 = vmatpush2.msra.mxu0 0.0
      %869 = vmatprep.mubr.f32.mxu0 0.0
      %870 = vmatmul.mubr.f32.gmra.mxu0 %v590
      %v871 = vpop.f32.mrf.mxu0
      %v872 = vadd.f32 0.0, %v871
      %v873 = vpop.f32.mrf.mxu0
      %v874 = vadd.f32 0.0, %v873
      %875 = vdwg.mxu0
      %876 = vmatprep.subr.mxu0 0.0
      %877 = vmatpush1.msra.mxu0 0.0
      %878 = vmatprep.subr.mxu0 0.0
      %879 = vmatpush1.msra.mxu0 0.0
      %880 = vmatprep.subr.mxu0 0.0
      %881 = vmatpush1.msra.mxu0 0.0
      %882 = vmatprep.subr.mxu0 0.0
      %883 = vmatpush1.msra.mxu0 0.0
      %884 = vmatprep.subr.mxu0 0.0
      %885 = vmatpush1.msra.mxu0 0.0
      %886 = vmatprep.subr.mxu0 0.0
      %887 = vmatpush1.msra.mxu0 0.0
      %888 = vmatprep.subr.mxu0 0.0
      %889 = vmatpush1.msra.mxu0 0.0
      %890 = vmatprep.subr.mxu0 0.0
      %891 = vmatpush1.msra.mxu0 0.0
      %892 = vmatprep.subr.mxu0 0.0
      %893 = vmatpush1.msra.mxu0 0.0
      %894 = vmatprep.subr.mxu0 0.0
      %895 = vmatpush1.msra.mxu0 0.0
      %896 = vmatprep.subr.mxu0 %v583
      %897 = vmatpush1.msra.mxu0 %v582
      %898 = vmatprep.subr.mxu0 %v569
      %899 = vmatpush1.msra.mxu0 %v568
      %900 = vmatprep.subr.mxu0 %v555
      %901 = vmatpush1.msra.mxu0 %v554
      %902 = vmatprep.subr.mxu0 %v541
      %903 = vmatpush1.msra.mxu0 %v540
      %904 = vmatprep.subr.mxu0 %v527
      %905 = vmatpush1.msra.mxu0 %v526
      %906 = vmatprep.subr.mxu0 %v513
      %907 = vmatpush1.msra.mxu0 %v512
      %908 = vmatprep.subr.mxu0 0.0
      %909 = vmatpush2.msra.mxu0 0.0
      %910 = vmatprep.subr.mxu0 0.0
      %911 = vmatpush2.msra.mxu0 0.0
      %912 = vmatprep.subr.mxu0 0.0
      %913 = vmatpush2.msra.mxu0 0.0
      %914 = vmatprep.subr.mxu0 0.0
      %915 = vmatpush2.msra.mxu0 0.0
      %916 = vmatprep.subr.mxu0 0.0
      %917 = vmatpush2.msra.mxu0 0.0
      %918 = vmatprep.subr.mxu0 0.0
      %919 = vmatpush2.msra.mxu0 0.0
      %920 = vmatprep.subr.mxu0 0.0
      %921 = vmatpush2.msra.mxu0 0.0
      %922 = vmatprep.subr.mxu0 0.0
      %923 = vmatpush2.msra.mxu0 0.0
      %924 = vmatprep.subr.mxu0 0.0
      %925 = vmatpush2.msra.mxu0 0.0
      %926 = vmatprep.subr.mxu0 0.0
      %927 = vmatpush2.msra.mxu0 0.0
      %928 = vmatprep.subr.mxu0 0.0
      %929 = vmatpush2.msra.mxu0 0.0
      %930 = vmatprep.subr.mxu0 0.0
      %931 = vmatpush2.msra.mxu0 0.0
      %932 = vmatprep.subr.mxu0 0.0
      %933 = vmatpush2.msra.mxu0 0.0
      %934 = vmatprep.subr.mxu0 0.0
      %935 = vmatpush2.msra.mxu0 0.0
      %936 = vmatprep.subr.mxu0 0.0
      %937 = vmatpush2.msra.mxu0 0.0
      %938 = vmatprep.subr.mxu0 0.0
      %939 = vmatpush2.msra.mxu0 0.0
      %940 = vmatprep.mubr.f32.mxu0 0.0
      %941 = vmatmul.mubr.f32.gmra.mxu0 %v590
      %v942 = vpop.f32.mrf.mxu0
      %v943 = vadd.f32 0.0, %v942
      %v944 = vpop.f32.mrf.mxu0
      %v945 = vadd.f32 0.0, %v944
      %946 = vdwg.mxu0
      %947 = vmatprep.subr.mxu0 0.0
      %948 = vmatpush1.msra.mxu0 0.0
      %949 = vmatprep.subr.mxu0 0.0
      %950 = vmatpush1.msra.mxu0 0.0
      %951 = vmatprep.subr.mxu0 0.0
      %952 = vmatpush1.msra.mxu0 0.0
      %953 = vmatprep.subr.mxu0 0.0
      %954 = vmatpush1.msra.mxu0 0.0
      %955 = vmatprep.subr.mxu0 0.0
      %956 = vmatpush1.msra.mxu0 0.0
      %957 = vmatprep.subr.mxu0 0.0
      %958 = vmatpush1.msra.mxu0 0.0
      %959 = vmatprep.subr.mxu0 0.0
      %960 = vmatpush1.msra.mxu0 0.0
      %961 = vmatprep.subr.mxu0 0.0
      %962 = vmatpush1.msra.mxu0 0.0
      %963 = vmatprep.subr.mxu0 0.0
      %964 = vmatpush1.msra.mxu0 0.0
      %965 = vmatprep.subr.mxu0 0.0
      %966 = vmatpush1.msra.mxu0 0.0
      %967 = vmatprep.subr.mxu0 %v585
      %968 = vmatpush1.msra.mxu0 %v584
      %969 = vmatprep.subr.mxu0 %v571
      %970 = vmatpush1.msra.mxu0 %v570
      %971 = vmatprep.subr.mxu0 %v557
      %972 = vmatpush1.msra.mxu0 %v556
      %973 = vmatprep.subr.mxu0 %v543
      %974 = vmatpush1.msra.mxu0 %v542
      %975 = vmatprep.subr.mxu0 %v529
      %976 = vmatpush1.msra.mxu0 %v528
      %977 = vmatprep.subr.mxu0 %v515
      %978 = vmatpush1.msra.mxu0 %v514
      %979 = vmatprep.subr.mxu0 0.0
      %980 = vmatpush2.msra.mxu0 0.0
      %981 = vmatprep.subr.mxu0 0.0
      %982 = vmatpush2.msra.mxu0 0.0
      %983 = vmatprep.subr.mxu0 0.0
      %984 = vmatpush2.msra.mxu0 0.0
      %985 = vmatprep.subr.mxu0 0.0
      %986 = vmatpush2.msra.mxu0 0.0
      %987 = vmatprep.subr.mxu0 0.0
      %988 = vmatpush2.msra.mxu0 0.0
      %989 = vmatprep.subr.mxu0 0.0
      %990 = vmatpush2.msra.mxu0 0.0
      %991 = vmatprep.subr.mxu0 0.0
      %992 = vmatpush2.msra.mxu0 0.0
      %993 = vmatprep.subr.mxu0 0.0
      %994 = vmatpush2.msra.mxu0 0.0
      %995 = vmatprep.subr.mxu0 0.0
      %996 = vmatpush2.msra.mxu0 0.0
      %997 = vmatprep.subr.mxu0 0.0
      %998 = vmatpush2.msra.mxu0 0.0
      %999 = vmatprep.subr.mxu0 0.0
      %1000 = vmatpush2.msra.mxu0 0.0
      %1001 = vmatprep.subr.mxu0 0.0
      %1002 = vmatpush2.msra.mxu0 0.0
      %1003 = vmatprep.subr.mxu0 0.0
      %1004 = vmatpush2.msra.mxu0 0.0
      %1005 = vmatprep.subr.mxu0 0.0
      %1006 = vmatpush2.msra.mxu0 0.0
      %1007 = vmatprep.subr.mxu0 0.0
      %1008 = vmatpush2.msra.mxu0 0.0
      %1009 = vmatprep.subr.mxu0 0.0
      %1010 = vmatpush2.msra.mxu0 0.0
      %1011 = vmatprep.mubr.f32.mxu0 0.0
      %1012 = vmatmul.mubr.f32.gmra.mxu0 %v590
      %v1013 = vpop.f32.mrf.mxu0
      %v1014 = vadd.f32 0.0, %v1013
      %v1015 = vpop.f32.mrf.mxu0
      %v1016 = vadd.f32 0.0, %v1015
      %1017 = vdwg.mxu0
      %1018 = vmatprep.subr.mxu0 0.0
      %1019 = vmatpush1.msra.mxu0 0.0
      %1020 = vmatprep.subr.mxu0 0.0
      %1021 = vmatpush1.msra.mxu0 0.0
      %1022 = vmatprep.subr.mxu0 0.0
      %1023 = vmatpush1.msra.mxu0 0.0
      %1024 = vmatprep.subr.mxu0 0.0
      %1025 = vmatpush1.msra.mxu0 0.0
      %1026 = vmatprep.subr.mxu0 0.0
      %1027 = vmatpush1.msra.mxu0 0.0
      %1028 = vmatprep.subr.mxu0 0.0
      %1029 = vmatpush1.msra.mxu0 0.0
      %1030 = vmatprep.subr.mxu0 0.0
      %1031 = vmatpush1.msra.mxu0 0.0
      %1032 = vmatprep.subr.mxu0 0.0
      %1033 = vmatpush1.msra.mxu0 0.0
      %1034 = vmatprep.subr.mxu0 0.0
      %1035 = vmatpush1.msra.mxu0 0.0
      %1036 = vmatprep.subr.mxu0 0.0
      %1037 = vmatpush1.msra.mxu0 0.0
      %1038 = vmatprep.subr.mxu0 %v587
      %1039 = vmatpush1.msra.mxu0 %v586
      %1040 = vmatprep.subr.mxu0 %v573
      %1041 = vmatpush1.msra.mxu0 %v572
      %1042 = vmatprep.subr.mxu0 %v559
      %1043 = vmatpush1.msra.mxu0 %v558
      %1044 = vmatprep.subr.mxu0 %v545
      %1045 = vmatpush1.msra.mxu0 %v544
      %1046 = vmatprep.subr.mxu0 %v531
      %1047 = vmatpush1.msra.mxu0 %v530
      %1048 = vmatprep.subr.mxu0 %v517
      %1049 = vmatpush1.msra.mxu0 %v516
      %1050 = vmatprep.subr.mxu0 0.0
      %1051 = vmatpush2.msra.mxu0 0.0
      %1052 = vmatprep.subr.mxu0 0.0
      %1053 = vmatpush2.msra.mxu0 0.0
      %1054 = vmatprep.subr.mxu0 0.0
      %1055 = vmatpush2.msra.mxu0 0.0
      %1056 = vmatprep.subr.mxu0 0.0
      %1057 = vmatpush2.msra.mxu0 0.0
      %1058 = vmatprep.subr.mxu0 0.0
      %1059 = vmatpush2.msra.mxu0 0.0
      %1060 = vmatprep.subr.mxu0 0.0
      %1061 = vmatpush2.msra.mxu0 0.0
      %1062 = vmatprep.subr.mxu0 0.0
      %1063 = vmatpush2.msra.mxu0 0.0
      %1064 = vmatprep.subr.mxu0 0.0
      %1065 = vmatpush2.msra.mxu0 0.0
      %1066 = vmatprep.subr.mxu0 0.0
      %1067 = vmatpush2.msra.mxu0 0.0
      %1068 = vmatprep.subr.mxu0 0.0
      %1069 = vmatpush2.msra.mxu0 0.0
      %1070 = vmatprep.subr.mxu0 0.0
      %1071 = vmatpush2.msra.mxu0 0.0
      %1072 = vmatprep.subr.mxu0 0.0
      %1073 = vmatpush2.msra.mxu0 0.0
      %1074 = vmatprep.subr.mxu0 0.0
      %1075 = vmatpush2.msra.mxu0 0.0
      %1076 = vmatprep.subr.mxu0 0.0
      %1077 = vmatpush2.msra.mxu0 0.0
      %1078 = vmatprep.subr.mxu0 0.0
      %1079 = vmatpush2.msra.mxu0 0.0
      %1080 = vmatprep.subr.mxu0 0.0
      %1081 = vmatpush2.msra.mxu0 0.0
      %1082 = vmatprep.mubr.f32.mxu0 0.0
      %1083 = vmatmul.mubr.f32.gmra.mxu0 %v590
      %v1084 = vpop.f32.mrf.mxu0
      %v1085 = vadd.f32 0.0, %v1084
      %v1086 = vpop.f32.mrf.mxu0
      %v1087 = vadd.f32 0.0, %v1086
      %1088 = vdwg.mxu0
      %1091 = vrot.lane.b32.xlu0 %v497, 104
      %v1092 = vpop.permute.xlu0 %1091
      %1093 = vrot.lane.b32.xlu0 %v501, 104
      %v1094 = vpop.permute.xlu0 %1093
      %1096 = vrot.lane.b32.xlu0 %v659, 80
      %v1097 = vpop.permute.xlu0 %1096
      %vm1099 = vcmask 64512
      %v1100 = vsel %vm1099, %v1092, 0
      %v1102 = vsel %vm1099, %v1094, 0
      %1104 = vmatprep.subr.mxu0 0.0
      %1105 = vmatpush1.msra.mxu0 0.0
      %1106 = vmatprep.subr.mxu0 0.0
      %1107 = vmatpush1.msra.mxu0 0.0
      %1108 = vmatprep.subr.mxu0 0.0
      %1109 = vmatpush1.msra.mxu0 0.0
      %1110 = vmatprep.subr.mxu0 0.0
      %1111 = vmatpush1.msra.mxu0 0.0
      %1112 = vmatprep.subr.mxu0 0.0
      %1113 = vmatpush1.msra.mxu0 0.0
      %1114 = vmatprep.subr.mxu0 0.0
      %1115 = vmatpush1.msra.mxu0 0.0
      %1116 = vmatprep.subr.mxu0 0.0
      %1117 = vmatpush1.msra.mxu0 0.0
      %1118 = vmatprep.subr.mxu0 0.0
      %1119 = vmatpush1.msra.mxu0 0.0
      %1120 = vmatprep.subr.mxu0 0.0
      %1121 = vmatpush1.msra.mxu0 0.0
      %1122 = vmatprep.subr.mxu0 0.0
      %1123 = vmatpush1.msra.mxu0 0.0
      %1124 = vmatprep.subr.mxu0 0.0
      %1125 = vmatpush1.msra.mxu0 0.0
      %1126 = vmatprep.subr.mxu0 0.0
      %1127 = vmatpush1.msra.mxu0 0.0
      %1128 = vmatprep.subr.mxu0 0.0
      %1129 = vmatpush1.msra.mxu0 0.0
      %1130 = vmatprep.subr.mxu0 0.0
      %1131 = vmatpush1.msra.mxu0 0.0
      %1132 = vmatprep.subr.mxu0 0.0
      %1133 = vmatpush1.msra.mxu0 0.0
      %1134 = vmatprep.subr.mxu0 0.0
      %1135 = vmatpush1.msra.mxu0 %v1097
      %1136 = vmatprep.subr.mxu0 0.0
      %1137 = vmatpush2.msra.mxu0 0.0
      %1138 = vmatprep.subr.mxu0 0.0
      %1139 = vmatpush2.msra.mxu0 0.0
      %1140 = vmatprep.subr.mxu0 0.0
      %1141 = vmatpush2.msra.mxu0 0.0
      %1142 = vmatprep.subr.mxu0 0.0
      %1143 = vmatpush2.msra.mxu0 0.0
      %1144 = vmatprep.subr.mxu0 0.0
      %1145 = vmatpush2.msra.mxu0 0.0
      %1146 = vmatprep.subr.mxu0 0.0
      %1147 = vmatpush2.msra.mxu0 0.0
      %1148 = vmatprep.subr.mxu0 0.0
      %1149 = vmatpush2.msra.mxu0 0.0
      %1150 = vmatprep.subr.mxu0 0.0
      %1151 = vmatpush2.msra.mxu0 0.0
      %1152 = vmatprep.subr.mxu0 0.0
      %1153 = vmatpush2.msra.mxu0 0.0
      %1154 = vmatprep.subr.mxu0 0.0
      %1155 = vmatpush2.msra.mxu0 0.0
      %1156 = vmatprep.subr.mxu0 0.0
      %1157 = vmatpush2.msra.mxu0 0.0
      %1158 = vmatprep.subr.mxu0 0.0
      %1159 = vmatpush2.msra.mxu0 0.0
      %1160 = vmatprep.subr.mxu0 0.0
      %1161 = vmatpush2.msra.mxu0 0.0
      %1162 = vmatprep.subr.mxu0 0.0
      %1163 = vmatpush2.msra.mxu0 0.0
      %1164 = vmatprep.subr.mxu0 0.0
      %1165 = vmatpush2.msra.mxu0 0.0
      %1166 = vmatprep.subr.mxu0 0.0
      %1167 = vmatpush2.msra.mxu0 0.0
      %1168 = vmatprep.mubr.f32.mxu0 0.0
      %1169 = vmatmul.mubr.f32.gmra.mxu0 %v1100
      %v1170 = vpop.f32.mrf.mxu0
      %v1171 = vadd.f32 0.0, %v1170
      %v1172 = vpop.f32.mrf.mxu0
      %1173 = vmatprep.mubr.f32.mxu0 0.0
      %1174 = vmatmul.mubr.f32.gmra.mxu0 %v1102
      %v1175 = vpop.f32.mrf.mxu0
      %v1176 = vadd.f32 0.0, %v1175
      %v1177 = vpop.f32.mrf.mxu0
      %1178 = vdwg.mxu0
      %1179 = vrot.lane.b32.xlu0 %v497, 112
      %v1180 = vpop.permute.xlu0 %1179
      %1181 = vrot.lane.b32.xlu0 %v501, 112
      %v1182 = vpop.permute.xlu0 %1181
      %v1183 = vsel %vm1099, %v1180, 0
      %v1185 = vsel %vm1099, %v1182, 0
      %1187 = vmatprep.subr.mxu0 0.0
      %1188 = vmatpush1.msra.mxu0 0.0
      %1189 = vmatprep.subr.mxu0 0.0
      %1190 = vmatpush1.msra.mxu0 0.0
      %1191 = vmatprep.subr.mxu0 0.0
      %1192 = vmatpush1.msra.mxu0 0.0
      %1193 = vmatprep.subr.mxu0 0.0
      %1194 = vmatpush1.msra.mxu0 0.0
      %1195 = vmatprep.subr.mxu0 0.0
      %1196 = vmatpush1.msra.mxu0 0.0
      %1197 = vmatprep.subr.mxu0 0.0
      %1198 = vmatpush1.msra.mxu0 0.0
      %1199 = vmatprep.subr.mxu0 0.0
      %1200 = vmatpush1.msra.mxu0 0.0
      %1201 = vmatprep.subr.mxu0 0.0
      %1202 = vmatpush1.msra.mxu0 0.0
      %1203 = vmatprep.subr.mxu0 0.0
      %1204 = vmatpush1.msra.mxu0 0.0
      %1205 = vmatprep.subr.mxu0 0.0
      %1206 = vmatpush1.msra.mxu0 0.0
      %1207 = vmatprep.subr.mxu0 0.0
      %1208 = vmatpush1.msra.mxu0 0.0
      %1209 = vmatprep.subr.mxu0 0.0
      %1210 = vmatpush1.msra.mxu0 0.0
      %1211 = vmatprep.subr.mxu0 0.0
      %1212 = vmatpush1.msra.mxu0 0.0
      %1213 = vmatprep.subr.mxu0 0.0
      %1214 = vmatpush1.msra.mxu0 0.0
      %1215 = vmatprep.subr.mxu0 0.0
      %1216 = vmatpush1.msra.mxu0 0.0
      %1217 = vmatprep.subr.mxu0 0.0
      %1218 = vmatpush1.msra.mxu0 %v659
      %1219 = vmatprep.subr.mxu0 0.0
      %1220 = vmatpush2.msra.mxu0 0.0
      %1221 = vmatprep.subr.mxu0 0.0
      %1222 = vmatpush2.msra.mxu0 0.0
      %1223 = vmatprep.subr.mxu0 0.0
      %1224 = vmatpush2.msra.mxu0 0.0
      %1225 = vmatprep.subr.mxu0 0.0
      %1226 = vmatpush2.msra.mxu0 0.0
      %1227 = vmatprep.subr.mxu0 0.0
      %1228 = vmatpush2.msra.mxu0 0.0
      %1229 = vmatprep.subr.mxu0 0.0
      %1230 = vmatpush2.msra.mxu0 0.0
      %1231 = vmatprep.subr.mxu0 0.0
      %1232 = vmatpush2.msra.mxu0 0.0
      %1233 = vmatprep.subr.mxu0 0.0
      %1234 = vmatpush2.msra.mxu0 0.0
      %1235 = vmatprep.subr.mxu0 0.0
      %1236 = vmatpush2.msra.mxu0 0.0
      %1237 = vmatprep.subr.mxu0 0.0
      %1238 = vmatpush2.msra.mxu0 0.0
      %1239 = vmatprep.subr.mxu0 0.0
      %1240 = vmatpush2.msra.mxu0 0.0
      %1241 = vmatprep.subr.mxu0 0.0
      %1242 = vmatpush2.msra.mxu0 0.0
      %1243 = vmatprep.subr.mxu0 0.0
      %1244 = vmatpush2.msra.mxu0 0.0
      %1245 = vmatprep.subr.mxu0 0.0
      %1246 = vmatpush2.msra.mxu0 0.0
      %1247 = vmatprep.subr.mxu0 0.0
      %1248 = vmatpush2.msra.mxu0 0.0
      %1249 = vmatprep.subr.mxu0 0.0
      %1250 = vmatpush2.msra.mxu0 0.0
      %1251 = vmatprep.mubr.f32.mxu0 0.0
      %1252 = vmatmul.mubr.f32.gmra.mxu0 %v1183
      %v1253 = vpop.f32.mrf.mxu0
      %v1254 = vadd.f32 %v1171, %v1253
      %v1255 = vpop.f32.mrf.mxu0
      %1256 = vmatprep.mubr.f32.mxu0 0.0
      %1257 = vmatmul.mubr.f32.gmra.mxu0 %v1185
      %v1258 = vpop.f32.mrf.mxu0
      %v1259 = vadd.f32 %v1176, %v1258
      %v1260 = vpop.f32.mrf.mxu0
      %1261 = vdwg.mxu0
      %1262 = vrot.lane.b32.xlu0 %v497, 96
      %v1263 = vpop.permute.xlu0 %1262
      %1264 = vrot.lane.b32.xlu0 %v501, 96
      %v1265 = vpop.permute.xlu0 %1264
      %1267 = vrot.lane.b32.xlu0 %v659, 32
      %v1268 = vpop.permute.xlu0 %1267
      %1269 = vrot.lane.b32.xlu0 %v661, 32
      %v1270 = vpop.permute.xlu0 %1269
      %vm1271 = vcmask 261120
      %v1272 = vsel %vm1271, %v1268, %v1270
      %v1274 = vsel %vm1099, %v1263, 0
      %v1276 = vsel %vm1099, %v1265, 0
      %1278 = vmatprep.subr.mxu0 0.0
      %1279 = vmatpush1.msra.mxu0 0.0
      %1280 = vmatprep.subr.mxu0 0.0
      %1281 = vmatpush1.msra.mxu0 0.0
      %1282 = vmatprep.subr.mxu0 0.0
      %1283 = vmatpush1.msra.mxu0 0.0
      %1284 = vmatprep.subr.mxu0 0.0
      %1285 = vmatpush1.msra.mxu0 0.0
      %1286 = vmatprep.subr.mxu0 0.0
      %1287 = vmatpush1.msra.mxu0 0.0
      %1288 = vmatprep.subr.mxu0 0.0
      %1289 = vmatpush1.msra.mxu0 0.0
      %1290 = vmatprep.subr.mxu0 0.0
      %1291 = vmatpush1.msra.mxu0 0.0
      %1292 = vmatprep.subr.mxu0 0.0
      %1293 = vmatpush1.msra.mxu0 0.0
      %1294 = vmatprep.subr.mxu0 0.0
      %1295 = vmatpush1.msra.mxu0 0.0
      %1296 = vmatprep.subr.mxu0 0.0
      %1297 = vmatpush1.msra.mxu0 0.0
      %1298 = vmatprep.subr.mxu0 0.0
      %1299 = vmatpush1.msra.mxu0 0.0
      %1300 = vmatprep.subr.mxu0 0.0
      %1301 = vmatpush1.msra.mxu0 0.0
      %1302 = vmatprep.subr.mxu0 0.0
      %1303 = vmatpush1.msra.mxu0 0.0
      %1304 = vmatprep.subr.mxu0 0.0
      %1305 = vmatpush1.msra.mxu0 0.0
      %1306 = vmatprep.subr.mxu0 0.0
      %1307 = vmatpush1.msra.mxu0 0.0
      %1308 = vmatprep.subr.mxu0 0.0
      %1309 = vmatpush1.msra.mxu0 %v1272
      %1310 = vmatprep.subr.mxu0 0.0
      %1311 = vmatpush2.msra.mxu0 0.0
      %1312 = vmatprep.subr.mxu0 0.0
      %1313 = vmatpush2.msra.mxu0 0.0
      %1314 = vmatprep.subr.mxu0 0.0
      %1315 = vmatpush2.msra.mxu0 0.0
      %1316 = vmatprep.subr.mxu0 0.0
      %1317 = vmatpush2.msra.mxu0 0.0
      %1318 = vmatprep.subr.mxu0 0.0
      %1319 = vmatpush2.msra.mxu0 0.0
      %1320 = vmatprep.subr.mxu0 0.0
      %1321 = vmatpush2.msra.mxu0 0.0
      %1322 = vmatprep.subr.mxu0 0.0
      %1323 = vmatpush2.msra.mxu0 0.0
      %1324 = vmatprep.subr.mxu0 0.0
      %1325 = vmatpush2.msra.mxu0 0.0
      %1326 = vmatprep.subr.mxu0 0.0
      %1327 = vmatpush2.msra.mxu0 0.0
      %1328 = vmatprep.subr.mxu0 0.0
      %1329 = vmatpush2.msra.mxu0 0.0
      %1330 = vmatprep.subr.mxu0 0.0
      %1331 = vmatpush2.msra.mxu0 0.0
      %1332 = vmatprep.subr.mxu0 0.0
      %1333 = vmatpush2.msra.mxu0 0.0
      %1334 = vmatprep.subr.mxu0 0.0
      %1335 = vmatpush2.msra.mxu0 0.0
      %1336 = vmatprep.subr.mxu0 0.0
      %1337 = vmatpush2.msra.mxu0 0.0
      %1338 = vmatprep.subr.mxu0 0.0
      %1339 = vmatpush2.msra.mxu0 0.0
      %1340 = vmatprep.subr.mxu0 0.0
      %1341 = vmatpush2.msra.mxu0 0.0
      %1342 = vmatprep.mubr.f32.mxu0 0.0
      %1343 = vmatmul.mubr.f32.gmra.mxu0 %v1274
      %v1344 = vpop.f32.mrf.mxu0
      %v1345 = vadd.f32 0.0, %v1344
      %v1346 = vpop.f32.mrf.mxu0
      %1347 = vmatprep.mubr.f32.mxu0 0.0
      %1348 = vmatmul.mubr.f32.gmra.mxu0 %v1276
      %v1349 = vpop.f32.mrf.mxu0
      %v1350 = vadd.f32 0.0, %v1349
      %v1351 = vpop.f32.mrf.mxu0
      %1352 = vdwg.mxu0
      %v1353 = vadd.f32 %v1254, %v1345
      %v1354 = vadd.f32 %v1259, %v1350
      %1355 = vrot.lane.b32.xlu0 %v497, 88
      %v1356 = vpop.permute.xlu0 %1355
      %1357 = vrot.lane.b32.xlu0 %v501, 88
      %v1358 = vpop.permute.xlu0 %1357
      %1359 = vrot.lane.b32.xlu0 %v661, 112
      %v1360 = vpop.permute.xlu0 %1359
      %v1362 = vsel %vm1099, %v1356, 0
      %v1364 = vsel %vm1099, %v1358, 0
      %1366 = vmatprep.subr.mxu0 0.0
      %1367 = vmatpush1.msra.mxu0 0.0
      %1368 = vmatprep.subr.mxu0 0.0
      %1369 = vmatpush1.msra.mxu0 0.0
      %1370 = vmatprep.subr.mxu0 0.0
      %1371 = vmatpush1.msra.mxu0 0.0
      %1372 = vmatprep.subr.mxu0 0.0
      %1373 = vmatpush1.msra.mxu0 0.0
      %1374 = vmatprep.subr.mxu0 0.0
      %1375 = vmatpush1.msra.mxu0 0.0
      %1376 = vmatprep.subr.mxu0 0.0
      %1377 = vmatpush1.msra.mxu0 0.0
      %1378 = vmatprep.subr.mxu0 0.0
      %1379 = vmatpush1.msra.mxu0 0.0
      %1380 = vmatprep.subr.mxu0 0.0
      %1381 = vmatpush1.msra.mxu0 0.0
      %1382 = vmatprep.subr.mxu0 0.0
      %1383 = vmatpush1.msra.mxu0 0.0
      %1384 = vmatprep.subr.mxu0 0.0
      %1385 = vmatpush1.msra.mxu0 0.0
      %1386 = vmatprep.subr.mxu0 0.0
      %1387 = vmatpush1.msra.mxu0 0.0
      %1388 = vmatprep.subr.mxu0 0.0
      %1389 = vmatpush1.msra.mxu0 0.0
      %1390 = vmatprep.subr.mxu0 0.0
      %1391 = vmatpush1.msra.mxu0 0.0
      %1392 = vmatprep.subr.mxu0 0.0
      %1393 = vmatpush1.msra.mxu0 0.0
      %1394 = vmatprep.subr.mxu0 0.0
      %1395 = vmatpush1.msra.mxu0 0.0
      %1396 = vmatprep.subr.mxu0 0.0
      %1397 = vmatpush1.msra.mxu0 %v1360
      %1398 = vmatprep.subr.mxu0 0.0
      %1399 = vmatpush2.msra.mxu0 0.0
      %1400 = vmatprep.subr.mxu0 0.0
      %1401 = vmatpush2.msra.mxu0 0.0
      %1402 = vmatprep.subr.mxu0 0.0
      %1403 = vmatpush2.msra.mxu0 0.0
      %1404 = vmatprep.subr.mxu0 0.0
      %1405 = vmatpush2.msra.mxu0 0.0
      %1406 = vmatprep.subr.mxu0 0.0
      %1407 = vmatpush2.msra.mxu0 0.0
      %1408 = vmatprep.subr.mxu0 0.0
      %1409 = vmatpush2.msra.mxu0 0.0
      %1410 = vmatprep.subr.mxu0 0.0
      %1411 = vmatpush2.msra.mxu0 0.0
      %1412 = vmatprep.subr.mxu0 0.0
      %1413 = vmatpush2.msra.mxu0 0.0
      %1414 = vmatprep.subr.mxu0 0.0
      %1415 = vmatpush2.msra.mxu0 0.0
      %1416 = vmatprep.subr.mxu0 0.0
      %1417 = vmatpush2.msra.mxu0 0.0
      %1418 = vmatprep.subr.mxu0 0.0
      %1419 = vmatpush2.msra.mxu0 0.0
      %1420 = vmatprep.subr.mxu0 0.0
      %1421 = vmatpush2.msra.mxu0 0.0
      %1422 = vmatprep.subr.mxu0 0.0
      %1423 = vmatpush2.msra.mxu0 0.0
      %1424 = vmatprep.subr.mxu0 0.0
      %1425 = vmatpush2.msra.mxu0 0.0
      %1426 = vmatprep.subr.mxu0 0.0
      %1427 = vmatpush2.msra.mxu0 0.0
      %1428 = vmatprep.subr.mxu0 0.0
      %1429 = vmatpush2.msra.mxu0 0.0
      %1430 = vmatprep.mubr.f32.mxu0 0.0
      %1431 = vmatmul.mubr.f32.gmra.mxu0 %v1362
      %v1432 = vpop.f32.mrf.mxu0
      %v1433 = vadd.f32 0.0, %v1432
      %v1434 = vpop.f32.mrf.mxu0
      %1435 = vmatprep.mubr.f32.mxu0 0.0
      %1436 = vmatmul.mubr.f32.gmra.mxu0 %v1364
      %v1437 = vpop.f32.mrf.mxu0
      %v1438 = vadd.f32 0.0, %v1437
      %v1439 = vpop.f32.mrf.mxu0
      %1440 = vdwg.mxu0
      %v1441 = vadd.f32 %v1353, %v1433
      %v1442 = vadd.f32 %v1354, %v1438
      %1443 = vrot.lane.b32.xlu0 %v497, 80
      %v1444 = vpop.permute.xlu0 %1443
      %1445 = vrot.lane.b32.xlu0 %v501, 80
      %v1446 = vpop.permute.xlu0 %1445
      %1447 = vrot.lane.b32.xlu0 %v661, 64
      %v1448 = vpop.permute.xlu0 %1447
      %v1450 = vsel %vm1099, %v1444, 0
      %v1452 = vsel %vm1099, %v1446, 0
      %1454 = vmatprep.subr.mxu0 0.0
      %1455 = vmatpush1.msra.mxu0 0.0
      %1456 = vmatprep.subr.mxu0 0.0
      %1457 = vmatpush1.msra.mxu0 0.0
      %1458 = vmatprep.subr.mxu0 0.0
      %1459 = vmatpush1.msra.mxu0 0.0
      %1460 = vmatprep.subr.mxu0 0.0
      %1461 = vmatpush1.msra.mxu0 0.0
      %1462 = vmatprep.subr.mxu0 0.0
      %1463 = vmatpush1.msra.mxu0 0.0
      %1464 = vmatprep.subr.mxu0 0.0
      %1465 = vmatpush1.msra.mxu0 0.0
      %1466 = vmatprep.subr.mxu0 0.0
      %1467 = vmatpush1.msra.mxu0 0.0
      %1468 = vmatprep.subr.mxu0 0.0
      %1469 = vmatpush1.msra.mxu0 0.0
      %1470 = vmatprep.subr.mxu0 0.0
      %1471 = vmatpush1.msra.mxu0 0.0
      %1472 = vmatprep.subr.mxu0 0.0
      %1473 = vmatpush1.msra.mxu0 0.0
      %1474 = vmatprep.subr.mxu0 0.0
      %1475 = vmatpush1.msra.mxu0 0.0
      %1476 = vmatprep.subr.mxu0 0.0
      %1477 = vmatpush1.msra.mxu0 0.0
      %1478 = vmatprep.subr.mxu0 0.0
      %1479 = vmatpush1.msra.mxu0 0.0
      %1480 = vmatprep.subr.mxu0 0.0
      %1481 = vmatpush1.msra.mxu0 0.0
      %1482 = vmatprep.subr.mxu0 0.0
      %1483 = vmatpush1.msra.mxu0 0.0
      %1484 = vmatprep.subr.mxu0 0.0
      %1485 = vmatpush1.msra.mxu0 %v1448
      %1486 = vmatprep.subr.mxu0 0.0
      %1487 = vmatpush2.msra.mxu0 0.0
      %1488 = vmatprep.subr.mxu0 0.0
      %1489 = vmatpush2.msra.mxu0 0.0
      %1490 = vmatprep.subr.mxu0 0.0
      %1491 = vmatpush2.msra.mxu0 0.0
      %1492 = vmatprep.subr.mxu0 0.0
      %1493 = vmatpush2.msra.mxu0 0.0
      %1494 = vmatprep.subr.mxu0 0.0
      %1495 = vmatpush2.msra.mxu0 0.0
      %1496 = vmatprep.subr.mxu0 0.0
      %1497 = vmatpush2.msra.mxu0 0.0
      %1498 = vmatprep.subr.mxu0 0.0
      %1499 = vmatpush2.msra.mxu0 0.0
      %1500 = vmatprep.subr.mxu0 0.0
      %1501 = vmatpush2.msra.mxu0 0.0
      %1502 = vmatprep.subr.mxu0 0.0
      %1503 = vmatpush2.msra.mxu0 0.0
      %1504 = vmatprep.subr.mxu0 0.0
      %1505 = vmatpush2.msra.mxu0 0.0
      %1506 = vmatprep.subr.mxu0 0.0
      %1507 = vmatpush2.msra.mxu0 0.0
      %1508 = vmatprep.subr.mxu0 0.0
      %1509 = vmatpush2.msra.mxu0 0.0
      %1510 = vmatprep.subr.mxu0 0.0
      %1511 = vmatpush2.msra.mxu0 0.0
      %1512 = vmatprep.subr.mxu0 0.0
      %1513 = vmatpush2.msra.mxu0 0.0
      %1514 = vmatprep.subr.mxu0 0.0
      %1515 = vmatpush2.msra.mxu0 0.0
      %1516 = vmatprep.subr.mxu0 0.0
      %1517 = vmatpush2.msra.mxu0 0.0
      %1518 = vmatprep.mubr.f32.mxu0 0.0
      %1519 = vmatmul.mubr.f32.gmra.mxu0 %v1450
      %v1520 = vpop.f32.mrf.mxu0
      %v1521 = vadd.f32 0.0, %v1520
      %v1522 = vpop.f32.mrf.mxu0
      %1523 = vmatprep.mubr.f32.mxu0 0.0
      %1524 = vmatmul.mubr.f32.gmra.mxu0 %v1452
      %v1525 = vpop.f32.mrf.mxu0
      %v1526 = vadd.f32 0.0, %v1525
      %v1527 = vpop.f32.mrf.mxu0
      %1528 = vdwg.mxu0
      %v1529 = vadd.f32 %v1441, %v1521
      %v1530 = vadd.f32 %v1442, %v1526
      %1531 = vrot.lane.b32.xlu0 %v497, 72
      %v1532 = vpop.permute.xlu0 %1531
      %1533 = vrot.lane.b32.xlu0 %v501, 72
      %v1534 = vpop.permute.xlu0 %1533
      %1536 = vrot.lane.b32.xlu0 %v661, 16
      %v1537 = vpop.permute.xlu0 %1536
      %1538 = vrot.lane.b32.xlu0 %v730, 16
      %v1539 = vpop.permute.xlu0 %1538
      %vm1540 = vcmask 130048
      %v1541 = vsel %vm1540, %v1537, %v1539
      %v1543 = vsel %vm1099, %v1532, 0
      %v1545 = vsel %vm1099, %v1534, 0
      %1547 = vmatprep.subr.mxu0 0.0
      %1548 = vmatpush1.msra.mxu0 0.0
      %1549 = vmatprep.subr.mxu0 0.0
      %1550 = vmatpush1.msra.mxu0 0.0
      %1551 = vmatprep.subr.mxu0 0.0
      %1552 = vmatpush1.msra.mxu0 0.0
      %1553 = vmatprep.subr.mxu0 0.0
      %1554 = vmatpush1.msra.mxu0 0.0
      %1555 = vmatprep.subr.mxu0 0.0
      %1556 = vmatpush1.msra.mxu0 0.0
      %1557 = vmatprep.subr.mxu0 0.0
      %1558 = vmatpush1.msra.mxu0 0.0
      %1559 = vmatprep.subr.mxu0 0.0
      %1560 = vmatpush1.msra.mxu0 0.0
      %1561 = vmatprep.subr.mxu0 0.0
      %1562 = vmatpush1.msra.mxu0 0.0
      %1563 = vmatprep.subr.mxu0 0.0
      %1564 = vmatpush1.msra.mxu0 0.0
      %1565 = vmatprep.subr.mxu0 0.0
      %1566 = vmatpush1.msra.mxu0 0.0
      %1567 = vmatprep.subr.mxu0 0.0
      %1568 = vmatpush1.msra.mxu0 0.0
      %1569 = vmatprep.subr.mxu0 0.0
      %1570 = vmatpush1.msra.mxu0 0.0
      %1571 = vmatprep.subr.mxu0 0.0
      %1572 = vmatpush1.msra.mxu0 0.0
      %1573 = vmatprep.subr.mxu0 0.0
      %1574 = vmatpush1.msra.mxu0 0.0
      %1575 = vmatprep.subr.mxu0 0.0
      %1576 = vmatpush1.msra.mxu0 0.0
      %1577 = vmatprep.subr.mxu0 0.0
      %1578 = vmatpush1.msra.mxu0 %v1541
      %1579 = vmatprep.subr.mxu0 0.0
      %1580 = vmatpush2.msra.mxu0 0.0
      %1581 = vmatprep.subr.mxu0 0.0
      %1582 = vmatpush2.msra.mxu0 0.0
      %1583 = vmatprep.subr.mxu0 0.0
      %1584 = vmatpush2.msra.mxu0 0.0
      %1585 = vmatprep.subr.mxu0 0.0
      %1586 = vmatpush2.msra.mxu0 0.0
      %1587 = vmatprep.subr.mxu0 0.0
      %1588 = vmatpush2.msra.mxu0 0.0
      %1589 = vmatprep.subr.mxu0 0.0
      %1590 = vmatpush2.msra.mxu0 0.0
      %1591 = vmatprep.subr.mxu0 0.0
      %1592 = vmatpush2.msra.mxu0 0.0
      %1593 = vmatprep.subr.mxu0 0.0
      %1594 = vmatpush2.msra.mxu0 0.0
      %1595 = vmatprep.subr.mxu0 0.0
      %1596 = vmatpush2.msra.mxu0 0.0
      %1597 = vmatprep.subr.mxu0 0.0
      %1598 = vmatpush2.msra.mxu0 0.0
      %1599 = vmatprep.subr.mxu0 0.0
      %1600 = vmatpush2.msra.mxu0 0.0
      %1601 = vmatprep.subr.mxu0 0.0
      %1602 = vmatpush2.msra.mxu0 0.0
      %1603 = vmatprep.subr.mxu0 0.0
      %1604 = vmatpush2.msra.mxu0 0.0
      %1605 = vmatprep.subr.mxu0 0.0
      %1606 = vmatpush2.msra.mxu0 0.0
      %1607 = vmatprep.subr.mxu0 0.0
      %1608 = vmatpush2.msra.mxu0 0.0
      %1609 = vmatprep.subr.mxu0 0.0
      %1610 = vmatpush2.msra.mxu0 0.0
      %1611 = vmatprep.mubr.f32.mxu0 0.0
      %1612 = vmatmul.mubr.f32.gmra.mxu0 %v1543
      %v1613 = vpop.f32.mrf.mxu0
      %v1614 = vadd.f32 0.0, %v1613
      %v1615 = vpop.f32.mrf.mxu0
      %1616 = vmatprep.mubr.f32.mxu0 0.0
      %1617 = vmatmul.mubr.f32.gmra.mxu0 %v1545
      %v1618 = vpop.f32.mrf.mxu0
      %v1619 = vadd.f32 0.0, %v1618
      %v1620 = vpop.f32.mrf.mxu0
      %1621 = vdwg.mxu0
      %v1622 = vadd.f32 %v1529, %v1614
      %v1623 = vadd.f32 %v1530, %v1619
      %1624 = vrot.lane.b32.xlu0 %v497, 64
      %v1625 = vpop.permute.xlu0 %1624
      %1626 = vrot.lane.b32.xlu0 %v501, 64
      %v1627 = vpop.permute.xlu0 %1626
      %1628 = vrot.lane.b32.xlu0 %v730, 96
      %v1629 = vpop.permute.xlu0 %1628
      %v1631 = vsel %vm1099, %v1625, 0
      %v1633 = vsel %vm1099, %v1627, 0
      %1635 = vmatprep.subr.mxu0 0.0
      %1636 = vmatpush1.msra.mxu0 0.0
      %1637 = vmatprep.subr.mxu0 0.0
      %1638 = vmatpush1.msra.mxu0 0.0
      %1639 = vmatprep.subr.mxu0 0.0
      %1640 = vmatpush1.msra.mxu0 0.0
      %1641 = vmatprep.subr.mxu0 0.0
      %1642 = vmatpush1.msra.mxu0 0.0
      %1643 = vmatprep.subr.mxu0 0.0
      %1644 = vmatpush1.msra.mxu0 0.0
      %1645 = vmatprep.subr.mxu0 0.0
      %1646 = vmatpush1.msra.mxu0 0.0
      %1647 = vmatprep.subr.mxu0 0.0
      %1648 = vmatpush1.msra.mxu0 0.0
      %1649 = vmatprep.subr.mxu0 0.0
      %1650 = vmatpush1.msra.mxu0 0.0
      %1651 = vmatprep.subr.mxu0 0.0
      %1652 = vmatpush1.msra.mxu0 0.0
      %1653 = vmatprep.subr.mxu0 0.0
      %1654 = vmatpush1.msra.mxu0 0.0
      %1655 = vmatprep.subr.mxu0 0.0
      %1656 = vmatpush1.msra.mxu0 0.0
      %1657 = vmatprep.subr.mxu0 0.0
      %1658 = vmatpush1.msra.mxu0 0.0
      %1659 = vmatprep.subr.mxu0 0.0
      %1660 = vmatpush1.msra.mxu0 0.0
      %1661 = vmatprep.subr.mxu0 0.0
      %1662 = vmatpush1.msra.mxu0 0.0
      %1663 = vmatprep.subr.mxu0 0.0
      %1664 = vmatpush1.msra.mxu0 0.0
      %1665 = vmatprep.subr.mxu0 0.0
      %1666 = vmatpush1.msra.mxu0 %v1629
      %1667 = vmatprep.subr.mxu0 0.0
      %1668 = vmatpush2.msra.mxu0 0.0
      %1669 = vmatprep.subr.mxu0 0.0
      %1670 = vmatpush2.msra.mxu0 0.0
      %1671 = vmatprep.subr.mxu0 0.0
      %1672 = vmatpush2.msra.mxu0 0.0
      %1673 = vmatprep.subr.mxu0 0.0
      %1674 = vmatpush2.msra.mxu0 0.0
      %1675 = vmatprep.subr.mxu0 0.0
      %1676 = vmatpush2.msra.mxu0 0.0
      %1677 = vmatprep.subr.mxu0 0.0
      %1678 = vmatpush2.msra.mxu0 0.0
      %1679 = vmatprep.subr.mxu0 0.0
      %1680 = vmatpush2.msra.mxu0 0.0
      %1681 = vmatprep.subr.mxu0 0.0
      %1682 = vmatpush2.msra.mxu0 0.0
      %1683 = vmatprep.subr.mxu0 0.0
      %1684 = vmatpush2.msra.mxu0 0.0
      %1685 = vmatprep.subr.mxu0 0.0
      %1686 = vmatpush2.msra.mxu0 0.0
      %1687 = vmatprep.subr.mxu0 0.0
      %1688 = vmatpush2.msra.mxu0 0.0
      %1689 = vmatprep.subr.mxu0 0.0
      %1690 = vmatpush2.msra.mxu0 0.0
      %1691 = vmatprep.subr.mxu0 0.0
      %1692 = vmatpush2.msra.mxu0 0.0
      %1693 = vmatprep.subr.mxu0 0.0
      %1694 = vmatpush2.msra.mxu0 0.0
      %1695 = vmatprep.subr.mxu0 0.0
      %1696 = vmatpush2.msra.mxu0 0.0
      %1697 = vmatprep.subr.mxu0 0.0
      %1698 = vmatpush2.msra.mxu0 0.0
      %1699 = vmatprep.mubr.f32.mxu0 0.0
      %1700 = vmatmul.mubr.f32.gmra.mxu0 %v1631
      %v1701 = vpop.f32.mrf.mxu0
      %v1702 = vadd.f32 0.0, %v1701
      %v1703 = vpop.f32.mrf.mxu0
      %1704 = vmatprep.mubr.f32.mxu0 0.0
      %1705 = vmatmul.mubr.f32.gmra.mxu0 %v1633
      %v1706 = vpop.f32.mrf.mxu0
      %v1707 = vadd.f32 0.0, %v1706
      %v1708 = vpop.f32.mrf.mxu0
      %1709 = vdwg.mxu0
      %v1710 = vadd.f32 %v1622, %v1702
      %v1711 = vadd.f32 %v1623, %v1707
      %1712 = vrot.lane.b32.xlu0 %v497, 56
      %v1713 = vpop.permute.xlu0 %1712
      %1714 = vrot.lane.b32.xlu0 %v501, 56
      %v1715 = vpop.permute.xlu0 %1714
      %1716 = vrot.lane.b32.xlu0 %v730, 48
      %v1717 = vpop.permute.xlu0 %1716
      %v1719 = vsel %vm1099, %v1713, 0
      %v1721 = vsel %vm1099, %v1715, 0
      %1723 = vmatprep.subr.mxu0 0.0
      %1724 = vmatpush1.msra.mxu0 0.0
      %1725 = vmatprep.subr.mxu0 0.0
      %1726 = vmatpush1.msra.mxu0 0.0
      %1727 = vmatprep.subr.mxu0 0.0
      %1728 = vmatpush1.msra.mxu0 0.0
      %1729 = vmatprep.subr.mxu0 0.0
      %1730 = vmatpush1.msra.mxu0 0.0
      %1731 = vmatprep.subr.mxu0 0.0
      %1732 = vmatpush1.msra.mxu0 0.0
      %1733 = vmatprep.subr.mxu0 0.0
      %1734 = vmatpush1.msra.mxu0 0.0
      %1735 = vmatprep.subr.mxu0 0.0
      %1736 = vmatpush1.msra.mxu0 0.0
      %1737 = vmatprep.subr.mxu0 0.0
      %1738 = vmatpush1.msra.mxu0 0.0
      %1739 = vmatprep.subr.mxu0 0.0
      %1740 = vmatpush1.msra.mxu0 0.0
      %1741 = vmatprep.subr.mxu0 0.0
      %1742 = vmatpush1.msra.mxu0 0.0
      %1743 = vmatprep.subr.mxu0 0.0
      %1744 = vmatpush1.msra.mxu0 0.0
      %1745 = vmatprep.subr.mxu0 0.0
      %1746 = vmatpush1.msra.mxu0 0.0
      %1747 = vmatprep.subr.mxu0 0.0
      %1748 = vmatpush1.msra.mxu0 0.0
      %1749 = vmatprep.subr.mxu0 0.0
      %1750 = vmatpush1.msra.mxu0 0.0
      %1751 = vmatprep.subr.mxu0 0.0
      %1752 = vmatpush1.msra.mxu0 0.0
      %1753 = vmatprep.subr.mxu0 0.0
      %1754 = vmatpush1.msra.mxu0 %v1717
      %1755 = vmatprep.subr.mxu0 0.0
      %1756 = vmatpush2.msra.mxu0 0.0
      %1757 = vmatprep.subr.mxu0 0.0
      %1758 = vmatpush2.msra.mxu0 0.0
      %1759 = vmatprep.subr.mxu0 0.0
      %1760 = vmatpush2.msra.mxu0 0.0
      %1761 = vmatprep.subr.mxu0 0.0
      %1762 = vmatpush2.msra.mxu0 0.0
      %1763 = vmatprep.subr.mxu0 0.0
      %1764 = vmatpush2.msra.mxu0 0.0
      %1765 = vmatprep.subr.mxu0 0.0
      %1766 = vmatpush2.msra.mxu0 0.0
      %1767 = vmatprep.subr.mxu0 0.0
      %1768 = vmatpush2.msra.mxu0 0.0
      %1769 = vmatprep.subr.mxu0 0.0
      %1770 = vmatpush2.msra.mxu0 0.0
      %1771 = vmatprep.subr.mxu0 0.0
      %1772 = vmatpush2.msra.mxu0 0.0
      %1773 = vmatprep.subr.mxu0 0.0
      %1774 = vmatpush2.msra.mxu0 0.0
      %1775 = vmatprep.subr.mxu0 0.0
      %1776 = vmatpush2.msra.mxu0 0.0
      %1777 = vmatprep.subr.mxu0 0.0
      %1778 = vmatpush2.msra.mxu0 0.0
      %1779 = vmatprep.subr.mxu0 0.0
      %1780 = vmatpush2.msra.mxu0 0.0
      %1781 = vmatprep.subr.mxu0 0.0
      %1782 = vmatpush2.msra.mxu0 0.0
      %1783 = vmatprep.subr.mxu0 0.0
      %1784 = vmatpush2.msra.mxu0 0.0
      %1785 = vmatprep.subr.mxu0 0.0
      %1786 = vmatpush2.msra.mxu0 0.0
      %1787 = vmatprep.mubr.f32.mxu0 0.0
      %1788 = vmatmul.mubr.f32.gmra.mxu0 %v1719
      %v1789 = vpop.f32.mrf.mxu0
      %v1790 = vadd.f32 0.0, %v1789
      %v1791 = vpop.f32.mrf.mxu0
      %1792 = vmatprep.mubr.f32.mxu0 0.0
      %1793 = vmatmul.mubr.f32.gmra.mxu0 %v1721
      %v1794 = vpop.f32.mrf.mxu0
      %v1795 = vadd.f32 0.0, %v1794
      %v1796 = vpop.f32.mrf.mxu0
      %1797 = vdwg.mxu0
      %v1798 = vadd.f32 %v1710, %v1790
      %v1799 = vadd.f32 %v1711, %v1795
      %1800 = vrot.lane.b32.xlu0 %v497, 48
      %v1801 = vpop.permute.xlu0 %1800
      %1802 = vrot.lane.b32.xlu0 %v501, 48
      %v1803 = vpop.permute.xlu0 %1802
      %v1804 = vsel %vm1099, %v1801, 0
      %v1806 = vsel %vm1099, %v1803, 0
      %1808 = vmatprep.subr.mxu0 0.0
      %1809 = vmatpush1.msra.mxu0 0.0
      %1810 = vmatprep.subr.mxu0 0.0
      %1811 = vmatpush1.msra.mxu0 0.0
      %1812 = vmatprep.subr.mxu0 0.0
      %1813 = vmatpush1.msra.mxu0 0.0
      %1814 = vmatprep.subr.mxu0 0.0
      %1815 = vmatpush1.msra.mxu0 0.0
      %1816 = vmatprep.subr.mxu0 0.0
      %1817 = vmatpush1.msra.mxu0 0.0
      %1818 = vmatprep.subr.mxu0 0.0
      %1819 = vmatpush1.msra.mxu0 0.0
      %1820 = vmatprep.subr.mxu0 0.0
      %1821 = vmatpush1.msra.mxu0 0.0
      %1822 = vmatprep.subr.mxu0 0.0
      %1823 = vmatpush1.msra.mxu0 0.0
      %1824 = vmatprep.subr.mxu0 0.0
      %1825 = vmatpush1.msra.mxu0 0.0
      %1826 = vmatprep.subr.mxu0 0.0
      %1827 = vmatpush1.msra.mxu0 0.0
      %1828 = vmatprep.subr.mxu0 0.0
      %1829 = vmatpush1.msra.mxu0 0.0
      %1830 = vmatprep.subr.mxu0 0.0
      %1831 = vmatpush1.msra.mxu0 0.0
      %1832 = vmatprep.subr.mxu0 0.0
      %1833 = vmatpush1.msra.mxu0 0.0
      %1834 = vmatprep.subr.mxu0 0.0
      %1835 = vmatpush1.msra.mxu0 0.0
      %1836 = vmatprep.subr.mxu0 0.0
      %1837 = vmatpush1.msra.mxu0 0.0
      %1838 = vmatprep.subr.mxu0 0.0
      %1839 = vmatpush1.msra.mxu0 %v732
      %1840 = vmatprep.subr.mxu0 0.0
      %1841 = vmatpush2.msra.mxu0 0.0
      %1842 = vmatprep.subr.mxu0 0.0
      %1843 = vmatpush2.msra.mxu0 0.0
      %1844 = vmatprep.subr.mxu0 0.0
      %1845 = vmatpush2.msra.mxu0 0.0
      %1846 = vmatprep.subr.mxu0 0.0
      %1847 = vmatpush2.msra.mxu0 0.0
      %1848 = vmatprep.subr.mxu0 0.0
      %1849 = vmatpush2.msra.mxu0 0.0
      %1850 = vmatprep.subr.mxu0 0.0
      %1851 = vmatpush2.msra.mxu0 0.0
      %1852 = vmatprep.subr.mxu0 0.0
      %1853 = vmatpush2.msra.mxu0 0.0
      %1854 = vmatprep.subr.mxu0 0.0
      %1855 = vmatpush2.msra.mxu0 0.0
      %1856 = vmatprep.subr.mxu0 0.0
      %1857 = vmatpush2.msra.mxu0 0.0
      %1858 = vmatprep.subr.mxu0 0.0
      %1859 = vmatpush2.msra.mxu0 0.0
      %1860 = vmatprep.subr.mxu0 0.0
      %1861 = vmatpush2.msra.mxu0 0.0
      %1862 = vmatprep.subr.mxu0 0.0
      %1863 = vmatpush2.msra.mxu0 0.0
      %1864 = vmatprep.subr.mxu0 0.0
      %1865 = vmatpush2.msra.mxu0 0.0
      %1866 = vmatprep.subr.mxu0 0.0
      %1867 = vmatpush2.msra.mxu0 0.0
      %1868 = vmatprep.subr.mxu0 0.0
      %1869 = vmatpush2.msra.mxu0 0.0
      %1870 = vmatprep.subr.mxu0 0.0
      %1871 = vmatpush2.msra.mxu0 0.0
      %1872 = vmatprep.mubr.f32.mxu0 0.0
      %1873 = vmatmul.mubr.f32.gmra.mxu0 %v1804
      %v1874 = vpop.f32.mrf.mxu0
      %v1875 = vadd.f32 0.0, %v1874
      %v1876 = vpop.f32.mrf.mxu0
      %1877 = vmatprep.mubr.f32.mxu0 0.0
      %1878 = vmatmul.mubr.f32.gmra.mxu0 %v1806
      %v1879 = vpop.f32.mrf.mxu0
      %v1880 = vadd.f32 0.0, %v1879
      %v1881 = vpop.f32.mrf.mxu0
      %1882 = vdwg.mxu0
      %v1883 = vadd.f32 %v1798, %v1875
      %v1884 = vadd.f32 %v1799, %v1880
      %1885 = vrot.lane.b32.xlu0 %v497, 40
      %v1886 = vpop.permute.xlu0 %1885
      %1887 = vrot.lane.b32.xlu0 %v501, 40
      %v1888 = vpop.permute.xlu0 %1887
      %1890 = vrot.lane.b32.xlu0 %v732, 80
      %v1891 = vpop.permute.xlu0 %1890
      %v1893 = vsel %vm1099, %v1886, 0
      %v1895 = vsel %vm1099, %v1888, 0
      %1897 = vmatprep.subr.mxu0 0.0
      %1898 = vmatpush1.msra.mxu0 0.0
      %1899 = vmatprep.subr.mxu0 0.0
      %1900 = vmatpush1.msra.mxu0 0.0
      %1901 = vmatprep.subr.mxu0 0.0
      %1902 = vmatpush1.msra.mxu0 0.0
      %1903 = vmatprep.subr.mxu0 0.0
      %1904 = vmatpush1.msra.mxu0 0.0
      %1905 = vmatprep.subr.mxu0 0.0
      %1906 = vmatpush1.msra.mxu0 0.0
      %1907 = vmatprep.subr.mxu0 0.0
      %1908 = vmatpush1.msra.mxu0 0.0
      %1909 = vmatprep.subr.mxu0 0.0
      %1910 = vmatpush1.msra.mxu0 0.0
      %1911 = vmatprep.subr.mxu0 0.0
      %1912 = vmatpush1.msra.mxu0 0.0
      %1913 = vmatprep.subr.mxu0 0.0
      %1914 = vmatpush1.msra.mxu0 0.0
      %1915 = vmatprep.subr.mxu0 0.0
      %1916 = vmatpush1.msra.mxu0 0.0
      %1917 = vmatprep.subr.mxu0 0.0
      %1918 = vmatpush1.msra.mxu0 0.0
      %1919 = vmatprep.subr.mxu0 0.0
      %1920 = vmatpush1.msra.mxu0 0.0
      %1921 = vmatprep.subr.mxu0 0.0
      %1922 = vmatpush1.msra.mxu0 0.0
      %1923 = vmatprep.subr.mxu0 0.0
      %1924 = vmatpush1.msra.mxu0 0.0
      %1925 = vmatprep.subr.mxu0 0.0
      %1926 = vmatpush1.msra.mxu0 0.0
      %1927 = vmatprep.subr.mxu0 0.0
      %1928 = vmatpush1.msra.mxu0 %v1891
      %1929 = vmatprep.subr.mxu0 0.0
      %1930 = vmatpush2.msra.mxu0 0.0
      %1931 = vmatprep.subr.mxu0 0.0
      %1932 = vmatpush2.msra.mxu0 0.0
      %1933 = vmatprep.subr.mxu0 0.0
      %1934 = vmatpush2.msra.mxu0 0.0
      %1935 = vmatprep.subr.mxu0 0.0
      %1936 = vmatpush2.msra.mxu0 0.0
      %1937 = vmatprep.subr.mxu0 0.0
      %1938 = vmatpush2.msra.mxu0 0.0
      %1939 = vmatprep.subr.mxu0 0.0
      %1940 = vmatpush2.msra.mxu0 0.0
      %1941 = vmatprep.subr.mxu0 0.0
      %1942 = vmatpush2.msra.mxu0 0.0
      %1943 = vmatprep.subr.mxu0 0.0
      %1944 = vmatpush2.msra.mxu0 0.0
      %1945 = vmatprep.subr.mxu0 0.0
      %1946 = vmatpush2.msra.mxu0 0.0
      %1947 = vmatprep.subr.mxu0 0.0
      %1948 = vmatpush2.msra.mxu0 0.0
      %1949 = vmatprep.subr.mxu0 0.0
      %1950 = vmatpush2.msra.mxu0 0.0
      %1951 = vmatprep.subr.mxu0 0.0
      %1952 = vmatpush2.msra.mxu0 0.0
      %1953 = vmatprep.subr.mxu0 0.0
      %1954 = vmatpush2.msra.mxu0 0.0
      %1955 = vmatprep.subr.mxu0 0.0
      %1956 = vmatpush2.msra.mxu0 0.0
      %1957 = vmatprep.subr.mxu0 0.0
      %1958 = vmatpush2.msra.mxu0 0.0
      %1959 = vmatprep.subr.mxu0 0.0
      %1960 = vmatpush2.msra.mxu0 0.0
      %1961 = vmatprep.mubr.f32.mxu0 0.0
      %1962 = vmatmul.mubr.f32.gmra.mxu0 %v1893
      %v1963 = vpop.f32.mrf.mxu0
      %v1964 = vadd.f32 0.0, %v1963
      %v1965 = vpop.f32.mrf.mxu0
      %1966 = vmatprep.mubr.f32.mxu0 0.0
      %1967 = vmatmul.mubr.f32.gmra.mxu0 %v1895
      %v1968 = vpop.f32.mrf.mxu0
      %v1969 = vadd.f32 0.0, %v1968
      %v1970 = vpop.f32.mrf.mxu0
      %1971 = vdwg.mxu0
      %v1972 = vadd.f32 %v1883, %v1964
      %v1973 = vadd.f32 %v1884, %v1969
      %1974 = vrot.lane.b32.xlu0 %v497, 32
      %v1975 = vpop.permute.xlu0 %1974
      %1976 = vrot.lane.b32.xlu0 %v501, 32
      %v1977 = vpop.permute.xlu0 %1976
      %1979 = vrot.lane.b32.xlu0 %v732, 32
      %v1980 = vpop.permute.xlu0 %1979
      %1981 = vrot.lane.b32.xlu0 %v801, 32
      %v1982 = vpop.permute.xlu0 %1981
      %v1983 = vsel %vm1271, %v1980, %v1982
      %v1985 = vsel %vm1099, %v1975, 0
      %v1987 = vsel %vm1099, %v1977, 0
      %1989 = vmatprep.subr.mxu0 0.0
      %1990 = vmatpush1.msra.mxu0 0.0
      %1991 = vmatprep.subr.mxu0 0.0
      %1992 = vmatpush1.msra.mxu0 0.0
      %1993 = vmatprep.subr.mxu0 0.0
      %1994 = vmatpush1.msra.mxu0 0.0
      %1995 = vmatprep.subr.mxu0 0.0
      %1996 = vmatpush1.msra.mxu0 0.0
      %1997 = vmatprep.subr.mxu0 0.0
      %1998 = vmatpush1.msra.mxu0 0.0
      %1999 = vmatprep.subr.mxu0 0.0
      %2000 = vmatpush1.msra.mxu0 0.0
      %2001 = vmatprep.subr.mxu0 0.0
      %2002 = vmatpush1.msra.mxu0 0.0
      %2003 = vmatprep.subr.mxu0 0.0
      %2004 = vmatpush1.msra.mxu0 0.0
      %2005 = vmatprep.subr.mxu0 0.0
      %2006 = vmatpush1.msra.mxu0 0.0
      %2007 = vmatprep.subr.mxu0 0.0
      %2008 = vmatpush1.msra.mxu0 0.0
      %2009 = vmatprep.subr.mxu0 0.0
      %2010 = vmatpush1.msra.mxu0 0.0
      %2011 = vmatprep.subr.mxu0 0.0
      %2012 = vmatpush1.msra.mxu0 0.0
      %2013 = vmatprep.subr.mxu0 0.0
      %2014 = vmatpush1.msra.mxu0 0.0
      %2015 = vmatprep.subr.mxu0 0.0
      %2016 = vmatpush1.msra.mxu0 0.0
      %2017 = vmatprep.subr.mxu0 0.0
      %2018 = vmatpush1.msra.mxu0 0.0
      %2019 = vmatprep.subr.mxu0 0.0
      %2020 = vmatpush1.msra.mxu0 %v1983
      %2021 = vmatprep.subr.mxu0 0.0
      %2022 = vmatpush2.msra.mxu0 0.0
      %2023 = vmatprep.subr.mxu0 0.0
      %2024 = vmatpush2.msra.mxu0 0.0
      %2025 = vmatprep.subr.mxu0 0.0
      %2026 = vmatpush2.msra.mxu0 0.0
      %2027 = vmatprep.subr.mxu0 0.0
      %2028 = vmatpush2.msra.mxu0 0.0
      %2029 = vmatprep.subr.mxu0 0.0
      %2030 = vmatpush2.msra.mxu0 0.0
      %2031 = vmatprep.subr.mxu0 0.0
      %2032 = vmatpush2.msra.mxu0 0.0
      %2033 = vmatprep.subr.mxu0 0.0
      %2034 = vmatpush2.msra.mxu0 0.0
      %2035 = vmatprep.subr.mxu0 0.0
      %2036 = vmatpush2.msra.mxu0 0.0
      %2037 = vmatprep.subr.mxu0 0.0
      %2038 = vmatpush2.msra.mxu0 0.0
      %2039 = vmatprep.subr.mxu0 0.0
      %2040 = vmatpush2.msra.mxu0 0.0
      %2041 = vmatprep.subr.mxu0 0.0
      %2042 = vmatpush2.msra.mxu0 0.0
      %2043 = vmatprep.subr.mxu0 0.0
      %2044 = vmatpush2.msra.mxu0 0.0
      %2045 = vmatprep.subr.mxu0 0.0
      %2046 = vmatpush2.msra.mxu0 0.0
      %2047 = vmatprep.subr.mxu0 0.0
      %2048 = vmatpush2.msra.mxu0 0.0
      %2049 = vmatprep.subr.mxu0 0.0
      %2050 = vmatpush2.msra.mxu0 0.0
      %2051 = vmatprep.subr.mxu0 0.0
      %2052 = vmatpush2.msra.mxu0 0.0
      %2053 = vmatprep.mubr.f32.mxu0 0.0
      %2054 = vmatmul.mubr.f32.gmra.mxu0 %v1985
      %v2055 = vpop.f32.mrf.mxu0
      %v2056 = vadd.f32 0.0, %v2055
      %v2057 = vpop.f32.mrf.mxu0
      %2058 = vmatprep.mubr.f32.mxu0 0.0
      %2059 = vmatmul.mubr.f32.gmra.mxu0 %v1987
      %v2060 = vpop.f32.mrf.mxu0
      %v2061 = vadd.f32 0.0, %v2060
      %v2062 = vpop.f32.mrf.mxu0
      %2063 = vdwg.mxu0
      %v2064 = vadd.f32 %v1972, %v2056
      %v2065 = vadd.f32 %v1973, %v2061
      %2066 = vrot.lane.b32.xlu0 %v497, 24
      %v2067 = vpop.permute.xlu0 %2066
      %2068 = vrot.lane.b32.xlu0 %v501, 24
      %v2069 = vpop.permute.xlu0 %2068
      %2070 = vrot.lane.b32.xlu0 %v801, 112
      %v2071 = vpop.permute.xlu0 %2070
      %v2073 = vsel %vm1099, %v2067, 0
      %v2075 = vsel %vm1099, %v2069, 0
      %2077 = vmatprep.subr.mxu0 0.0
      %2078 = vmatpush1.msra.mxu0 0.0
      %2079 = vmatprep.subr.mxu0 0.0
      %2080 = vmatpush1.msra.mxu0 0.0
      %2081 = vmatprep.subr.mxu0 0.0
      %2082 = vmatpush1.msra.mxu0 0.0
      %2083 = vmatprep.subr.mxu0 0.0
      %2084 = vmatpush1.msra.mxu0 0.0
      %2085 = vmatprep.subr.mxu0 0.0
      %2086 = vmatpush1.msra.mxu0 0.0
      %2087 = vmatprep.subr.mxu0 0.0
      %2088 = vmatpush1.msra.mxu0 0.0
      %2089 = vmatprep.subr.mxu0 0.0
      %2090 = vmatpush1.msra.mxu0 0.0
      %2091 = vmatprep.subr.mxu0 0.0
      %2092 = vmatpush1.msra.mxu0 0.0
      %2093 = vmatprep.subr.mxu0 0.0
      %2094 = vmatpush1.msra.mxu0 0.0
      %2095 = vmatprep.subr.mxu0 0.0
      %2096 = vmatpush1.msra.mxu0 0.0
      %2097 = vmatprep.subr.mxu0 0.0
      %2098 = vmatpush1.msra.mxu0 0.0
      %2099 = vmatprep.subr.mxu0 0.0
      %2100 = vmatpush1.msra.mxu0 0.0
      %2101 = vmatprep.subr.mxu0 0.0
      %2102 = vmatpush1.msra.mxu0 0.0
      %2103 = vmatprep.subr.mxu0 0.0
      %2104 = vmatpush1.msra.mxu0 0.0
      %2105 = vmatprep.subr.mxu0 0.0
      %2106 = vmatpush1.msra.mxu0 0.0
      %2107 = vmatprep.subr.mxu0 0.0
      %2108 = vmatpush1.msra.mxu0 %v2071
      %2109 = vmatprep.subr.mxu0 0.0
      %2110 = vmatpush2.msra.mxu0 0.0
      %2111 = vmatprep.subr.mxu0 0.0
      %2112 = vmatpush2.msra.mxu0 0.0
      %2113 = vmatprep.subr.mxu0 0.0
      %2114 = vmatpush2.msra.mxu0 0.0
      %2115 = vmatprep.subr.mxu0 0.0
      %2116 = vmatpush2.msra.mxu0 0.0
      %2117 = vmatprep.subr.mxu0 0.0
      %2118 = vmatpush2.msra.mxu0 0.0
      %2119 = vmatprep.subr.mxu0 0.0
      %2120 = vmatpush2.msra.mxu0 0.0
      %2121 = vmatprep.subr.mxu0 0.0
      %2122 = vmatpush2.msra.mxu0 0.0
      %2123 = vmatprep.subr.mxu0 0.0
      %2124 = vmatpush2.msra.mxu0 0.0
      %2125 = vmatprep.subr.mxu0 0.0
      %2126 = vmatpush2.msra.mxu0 0.0
      %2127 = vmatprep.subr.mxu0 0.0
      %2128 = vmatpush2.msra.mxu0 0.0
      %2129 = vmatprep.subr.mxu0 0.0
      %2130 = vmatpush2.msra.mxu0 0.0
      %2131 = vmatprep.subr.mxu0 0.0
      %2132 = vmatpush2.msra.mxu0 0.0
      %2133 = vmatprep.subr.mxu0 0.0
      %2134 = vmatpush2.msra.mxu0 0.0
      %2135 = vmatprep.subr.mxu0 0.0
      %2136 = vmatpush2.msra.mxu0 0.0
      %2137 = vmatprep.subr.mxu0 0.0
      %2138 = vmatpush2.msra.mxu0 0.0
      %2139 = vmatprep.subr.mxu0 0.0
      %2140 = vmatpush2.msra.mxu0 0.0
      %2141 = vmatprep.mubr.f32.mxu0 0.0
      %2142 = vmatmul.mubr.f32.gmra.mxu0 %v2073
      %v2143 = vpop.f32.mrf.mxu0
      %v2144 = vadd.f32 0.0, %v2143
      %v2145 = vpop.f32.mrf.mxu0
      %2146 = vmatprep.mubr.f32.mxu0 0.0
      %2147 = vmatmul.mubr.f32.gmra.mxu0 %v2075
      %v2148 = vpop.f32.mrf.mxu0
      %v2149 = vadd.f32 0.0, %v2148
      %v2150 = vpop.f32.mrf.mxu0
      %2151 = vdwg.mxu0
      %v2152 = vadd.f32 %v2064, %v2144
      %v2153 = vadd.f32 %v2065, %v2149
      %2154 = vrot.lane.b32.xlu0 %v497, 16
      %v2155 = vpop.permute.xlu0 %2154
      %2156 = vrot.lane.b32.xlu0 %v501, 16
      %v2157 = vpop.permute.xlu0 %2156
      %2158 = vrot.lane.b32.xlu0 %v801, 64
      %v2159 = vpop.permute.xlu0 %2158
      %v2161 = vsel %vm1099, %v2155, 0
      %v2163 = vsel %vm1099, %v2157, 0
      %2165 = vmatprep.subr.mxu0 0.0
      %2166 = vmatpush1.msra.mxu0 0.0
      %2167 = vmatprep.subr.mxu0 0.0
      %2168 = vmatpush1.msra.mxu0 0.0
      %2169 = vmatprep.subr.mxu0 0.0
      %2170 = vmatpush1.msra.mxu0 0.0
      %2171 = vmatprep.subr.mxu0 0.0
      %2172 = vmatpush1.msra.mxu0 0.0
      %2173 = vmatprep.subr.mxu0 0.0
      %2174 = vmatpush1.msra.mxu0 0.0
      %2175 = vmatprep.subr.mxu0 0.0
      %2176 = vmatpush1.msra.mxu0 0.0
      %2177 = vmatprep.subr.mxu0 0.0
      %2178 = vmatpush1.msra.mxu0 0.0
      %2179 = vmatprep.subr.mxu0 0.0
      %2180 = vmatpush1.msra.mxu0 0.0
      %2181 = vmatprep.subr.mxu0 0.0
      %2182 = vmatpush1.msra.mxu0 0.0
      %2183 = vmatprep.subr.mxu0 0.0
      %2184 = vmatpush1.msra.mxu0 0.0
      %2185 = vmatprep.subr.mxu0 0.0
      %2186 = vmatpush1.msra.mxu0 0.0
      %2187 = vmatprep.subr.mxu0 0.0
      %2188 = vmatpush1.msra.mxu0 0.0
      %2189 = vmatprep.subr.mxu0 0.0
      %2190 = vmatpush1.msra.mxu0 0.0
      %2191 = vmatprep.subr.mxu0 0.0
      %2192 = vmatpush1.msra.mxu0 0.0
      %2193 = vmatprep.subr.mxu0 0.0
      %2194 = vmatpush1.msra.mxu0 0.0
      %2195 = vmatprep.subr.mxu0 0.0
      %2196 = vmatpush1.msra.mxu0 %v2159
      %2197 = vmatprep.subr.mxu0 0.0
      %2198 = vmatpush2.msra.mxu0 0.0
      %2199 = vmatprep.subr.mxu0 0.0
      %2200 = vmatpush2.msra.mxu0 0.0
      %2201 = vmatprep.subr.mxu0 0.0
      %2202 = vmatpush2.msra.mxu0 0.0
      %2203 = vmatprep.subr.mxu0 0.0
      %2204 = vmatpush2.msra.mxu0 0.0
      %2205 = vmatprep.subr.mxu0 0.0
      %2206 = vmatpush2.msra.mxu0 0.0
      %2207 = vmatprep.subr.mxu0 0.0
      %2208 = vmatpush2.msra.mxu0 0.0
      %2209 = vmatprep.subr.mxu0 0.0
      %2210 = vmatpush2.msra.mxu0 0.0
      %2211 = vmatprep.subr.mxu0 0.0
      %2212 = vmatpush2.msra.mxu0 0.0
      %2213 = vmatprep.subr.mxu0 0.0
      %2214 = vmatpush2.msra.mxu0 0.0
      %2215 = vmatprep.subr.mxu0 0.0
      %2216 = vmatpush2.msra.mxu0 0.0
      %2217 = vmatprep.subr.mxu0 0.0
      %2218 = vmatpush2.msra.mxu0 0.0
      %2219 = vmatprep.subr.mxu0 0.0
      %2220 = vmatpush2.msra.mxu0 0.0
      %2221 = vmatprep.subr.mxu0 0.0
      %2222 = vmatpush2.msra.mxu0 0.0
      %2223 = vmatprep.subr.mxu0 0.0
      %2224 = vmatpush2.msra.mxu0 0.0
      %2225 = vmatprep.subr.mxu0 0.0
      %2226 = vmatpush2.msra.mxu0 0.0
      %2227 = vmatprep.subr.mxu0 0.0
      %2228 = vmatpush2.msra.mxu0 0.0
      %2229 = vmatprep.mubr.f32.mxu0 0.0
      %2230 = vmatmul.mubr.f32.gmra.mxu0 %v2161
      %v2231 = vpop.f32.mrf.mxu0
      %v2232 = vadd.f32 0.0, %v2231
      %v2233 = vpop.f32.mrf.mxu0
      %2234 = vmatprep.mubr.f32.mxu0 0.0
      %2235 = vmatmul.mubr.f32.gmra.mxu0 %v2163
      %v2236 = vpop.f32.mrf.mxu0
      %v2237 = vadd.f32 0.0, %v2236
      %v2238 = vpop.f32.mrf.mxu0
      %2239 = vdwg.mxu0
      %v2240 = vadd.f32 %v2152, %v2232
      %v2241 = vadd.f32 %v2153, %v2237
      %2242 = vrot.lane.b32.xlu0 %v497, 8
      %v2243 = vpop.permute.xlu0 %2242
      %2244 = vrot.lane.b32.xlu0 %v501, 8
      %v2245 = vpop.permute.xlu0 %2244
      %2247 = vrot.lane.b32.xlu0 %v801, 16
      %v2248 = vpop.permute.xlu0 %2247
      %2249 = vrot.lane.b32.xlu0 %v803, 16
      %v2250 = vpop.permute.xlu0 %2249
      %v2251 = vsel %vm1540, %v2248, %v2250
      %v2253 = vsel %vm1099, %v2243, 0
      %v2255 = vsel %vm1099, %v2245, 0
      %2257 = vmatprep.subr.mxu0 0.0
      %2258 = vmatpush1.msra.mxu0 0.0
      %2259 = vmatprep.subr.mxu0 0.0
      %2260 = vmatpush1.msra.mxu0 0.0
      %2261 = vmatprep.subr.mxu0 0.0
      %2262 = vmatpush1.msra.mxu0 0.0
      %2263 = vmatprep.subr.mxu0 0.0
      %2264 = vmatpush1.msra.mxu0 0.0
      %2265 = vmatprep.subr.mxu0 0.0
      %2266 = vmatpush1.msra.mxu0 0.0
      %2267 = vmatprep.subr.mxu0 0.0
      %2268 = vmatpush1.msra.mxu0 0.0
      %2269 = vmatprep.subr.mxu0 0.0
      %2270 = vmatpush1.msra.mxu0 0.0
      %2271 = vmatprep.subr.mxu0 0.0
      %2272 = vmatpush1.msra.mxu0 0.0
      %2273 = vmatprep.subr.mxu0 0.0
      %2274 = vmatpush1.msra.mxu0 0.0
      %2275 = vmatprep.subr.mxu0 0.0
      %2276 = vmatpush1.msra.mxu0 0.0
      %2277 = vmatprep.subr.mxu0 0.0
      %2278 = vmatpush1.msra.mxu0 0.0
      %2279 = vmatprep.subr.mxu0 0.0
      %2280 = vmatpush1.msra.mxu0 0.0
      %2281 = vmatprep.subr.mxu0 0.0
      %2282 = vmatpush1.msra.mxu0 0.0
      %2283 = vmatprep.subr.mxu0 0.0
      %2284 = vmatpush1.msra.mxu0 0.0
      %2285 = vmatprep.subr.mxu0 0.0
      %2286 = vmatpush1.msra.mxu0 0.0
      %2287 = vmatprep.subr.mxu0 0.0
      %2288 = vmatpush1.msra.mxu0 %v2251
      %2289 = vmatprep.subr.mxu0 0.0
      %2290 = vmatpush2.msra.mxu0 0.0
      %2291 = vmatprep.subr.mxu0 0.0
      %2292 = vmatpush2.msra.mxu0 0.0
      %2293 = vmatprep.subr.mxu0 0.0
      %2294 = vmatpush2.msra.mxu0 0.0
      %2295 = vmatprep.subr.mxu0 0.0
      %2296 = vmatpush2.msra.mxu0 0.0
      %2297 = vmatprep.subr.mxu0 0.0
      %2298 = vmatpush2.msra.mxu0 0.0
      %2299 = vmatprep.subr.mxu0 0.0
      %2300 = vmatpush2.msra.mxu0 0.0
      %2301 = vmatprep.subr.mxu0 0.0
      %2302 = vmatpush2.msra.mxu0 0.0
      %2303 = vmatprep.subr.mxu0 0.0
      %2304 = vmatpush2.msra.mxu0 0.0
      %2305 = vmatprep.subr.mxu0 0.0
      %2306 = vmatpush2.msra.mxu0 0.0
      %2307 = vmatprep.subr.mxu0 0.0
      %2308 = vmatpush2.msra.mxu0 0.0
      %2309 = vmatprep.subr.mxu0 0.0
      %2310 = vmatpush2.msra.mxu0 0.0
      %2311 = vmatprep.subr.mxu0 0.0
      %2312 = vmatpush2.msra.mxu0 0.0
      %2313 = vmatprep.subr.mxu0 0.0
      %2314 = vmatpush2.msra.mxu0 0.0
      %2315 = vmatprep.subr.mxu0 0.0
      %2316 = vmatpush2.msra.mxu0 0.0
      %2317 = vmatprep.subr.mxu0 0.0
      %2318 = vmatpush2.msra.mxu0 0.0
      %2319 = vmatprep.subr.mxu0 0.0
      %2320 = vmatpush2.msra.mxu0 0.0
      %2321 = vmatprep.mubr.f32.mxu0 0.0
      %2322 = vmatmul.mubr.f32.gmra.mxu0 %v2253
      %v2323 = vpop.f32.mrf.mxu0
      %v2324 = vadd.f32 0.0, %v2323
      %v2325 = vpop.f32.mrf.mxu0
      %2326 = vmatprep.mubr.f32.mxu0 0.0
      %2327 = vmatmul.mubr.f32.gmra.mxu0 %v2255
      %v2328 = vpop.f32.mrf.mxu0
      %v2329 = vadd.f32 0.0, %v2328
      %v2330 = vpop.f32.mrf.mxu0
      %2331 = vdwg.mxu0
      %v2332 = vadd.f32 %v2240, %v2324
      %v2333 = vadd.f32 %v2241, %v2329
      %2334 = vrot.lane.b32.xlu0 %v803, 96
      %v2335 = vpop.permute.xlu0 %2334
      %v2338 = vsel %vm1099, %v498, 0
      %v2341 = vsel %vm1099, %v502, 0
      %2343 = vmatprep.subr.mxu0 0.0
      %2344 = vmatpush1.msra.mxu0 0.0
      %2345 = vmatprep.subr.mxu0 0.0
      %2346 = vmatpush1.msra.mxu0 0.0
      %2347 = vmatprep.subr.mxu0 0.0
      %2348 = vmatpush1.msra.mxu0 0.0
      %2349 = vmatprep.subr.mxu0 0.0
      %2350 = vmatpush1.msra.mxu0 0.0
      %2351 = vmatprep.subr.mxu0 0.0
      %2352 = vmatpush1.msra.mxu0 0.0
      %2353 = vmatprep.subr.mxu0 0.0
      %2354 = vmatpush1.msra.mxu0 0.0
      %2355 = vmatprep.subr.mxu0 0.0
      %2356 = vmatpush1.msra.mxu0 0.0
      %2357 = vmatprep.subr.mxu0 0.0
      %2358 = vmatpush1.msra.mxu0 0.0
      %2359 = vmatprep.subr.mxu0 0.0
      %2360 = vmatpush1.msra.mxu0 0.0
      %2361 = vmatprep.subr.mxu0 0.0
      %2362 = vmatpush1.msra.mxu0 0.0
      %2363 = vmatprep.subr.mxu0 0.0
      %2364 = vmatpush1.msra.mxu0 0.0
      %2365 = vmatprep.subr.mxu0 0.0
      %2366 = vmatpush1.msra.mxu0 0.0
      %2367 = vmatprep.subr.mxu0 0.0
      %2368 = vmatpush1.msra.mxu0 0.0
      %2369 = vmatprep.subr.mxu0 0.0
      %2370 = vmatpush1.msra.mxu0 0.0
      %2371 = vmatprep.subr.mxu0 0.0
      %2372 = vmatpush1.msra.mxu0 0.0
      %2373 = vmatprep.subr.mxu0 0.0
      %2374 = vmatpush1.msra.mxu0 %v2335
      %2375 = vmatprep.subr.mxu0 0.0
      %2376 = vmatpush2.msra.mxu0 0.0
      %2377 = vmatprep.subr.mxu0 0.0
      %2378 = vmatpush2.msra.mxu0 0.0
      %2379 = vmatprep.subr.mxu0 0.0
      %2380 = vmatpush2.msra.mxu0 0.0
      %2381 = vmatprep.subr.mxu0 0.0
      %2382 = vmatpush2.msra.mxu0 0.0
      %2383 = vmatprep.subr.mxu0 0.0
      %2384 = vmatpush2.msra.mxu0 0.0
      %2385 = vmatprep.subr.mxu0 0.0
      %2386 = vmatpush2.msra.mxu0 0.0
      %2387 = vmatprep.subr.mxu0 0.0
      %2388 = vmatpush2.msra.mxu0 0.0
      %2389 = vmatprep.subr.mxu0 0.0
      %2390 = vmatpush2.msra.mxu0 0.0
      %2391 = vmatprep.subr.mxu0 0.0
      %2392 = vmatpush2.msra.mxu0 0.0
      %2393 = vmatprep.subr.mxu0 0.0
      %2394 = vmatpush2.msra.mxu0 0.0
      %2395 = vmatprep.subr.mxu0 0.0
      %2396 = vmatpush2.msra.mxu0 0.0
      %2397 = vmatprep.subr.mxu0 0.0
      %2398 = vmatpush2.msra.mxu0 0.0
      %2399 = vmatprep.subr.mxu0 0.0
      %2400 = vmatpush2.msra.mxu0 0.0
      %2401 = vmatprep.subr.mxu0 0.0
      %2402 = vmatpush2.msra.mxu0 0.0
      %2403 = vmatprep.subr.mxu0 0.0
      %2404 = vmatpush2.msra.mxu0 0.0
      %2405 = vmatprep.subr.mxu0 0.0
      %2406 = vmatpush2.msra.mxu0 0.0
      %2407 = vmatprep.mubr.f32.mxu0 0.0
      %2408 = vmatmul.mubr.f32.gmra.mxu0 %v2338
      %v2409 = vpop.f32.mrf.mxu0
      %v2410 = vadd.f32 0.0, %v2409
      %v2411 = vpop.f32.mrf.mxu0
      %2412 = vmatprep.mubr.f32.mxu0 0.0
      %2413 = vmatmul.mubr.f32.gmra.mxu0 %v2341
      %v2414 = vpop.f32.mrf.mxu0
      %v2415 = vadd.f32 0.0, %v2414
      %v2416 = vpop.f32.mrf.mxu0
      %2417 = vdwg.mxu0
      %v2418 = vadd.f32 %v2332, %v2410
      %v2419 = vadd.f32 %v2333, %v2415
      %2420 = vrot.lane.b32.xlu0 %v498, 120
      %v2421 = vpop.permute.xlu0 %2420
      %2422 = vrot.lane.b32.xlu0 %v502, 120
      %v2423 = vpop.permute.xlu0 %2422
      %2424 = vrot.lane.b32.xlu0 %v803, 48
      %v2425 = vpop.permute.xlu0 %2424
      %v2427 = vsel %vm1099, %v2421, 0
      %v2429 = vsel %vm1099, %v2423, 0
      %2431 = vmatprep.subr.mxu0 0.0
      %2432 = vmatpush1.msra.mxu0 0.0
      %2433 = vmatprep.subr.mxu0 0.0
      %2434 = vmatpush1.msra.mxu0 0.0
      %2435 = vmatprep.subr.mxu0 0.0
      %2436 = vmatpush1.msra.mxu0 0.0
      %2437 = vmatprep.subr.mxu0 0.0
      %2438 = vmatpush1.msra.mxu0 0.0
      %2439 = vmatprep.subr.mxu0 0.0
      %2440 = vmatpush1.msra.mxu0 0.0
      %2441 = vmatprep.subr.mxu0 0.0
      %2442 = vmatpush1.msra.mxu0 0.0
      %2443 = vmatprep.subr.mxu0 0.0
      %2444 = vmatpush1.msra.mxu0 0.0
      %2445 = vmatprep.subr.mxu0 0.0
      %2446 = vmatpush1.msra.mxu0 0.0
      %2447 = vmatprep.subr.mxu0 0.0
      %2448 = vmatpush1.msra.mxu0 0.0
      %2449 = vmatprep.subr.mxu0 0.0
      %2450 = vmatpush1.msra.mxu0 0.0
      %2451 = vmatprep.subr.mxu0 0.0
      %2452 = vmatpush1.msra.mxu0 0.0
      %2453 = vmatprep.subr.mxu0 0.0
      %2454 = vmatpush1.msra.mxu0 0.0
      %2455 = vmatprep.subr.mxu0 0.0
      %2456 = vmatpush1.msra.mxu0 0.0
      %2457 = vmatprep.subr.mxu0 0.0
      %2458 = vmatpush1.msra.mxu0 0.0
      %2459 = vmatprep.subr.mxu0 0.0
      %2460 = vmatpush1.msra.mxu0 0.0
      %2461 = vmatprep.subr.mxu0 0.0
      %2462 = vmatpush1.msra.mxu0 %v2425
      %2463 = vmatprep.subr.mxu0 0.0
      %2464 = vmatpush2.msra.mxu0 0.0
      %2465 = vmatprep.subr.mxu0 0.0
      %2466 = vmatpush2.msra.mxu0 0.0
      %2467 = vmatprep.subr.mxu0 0.0
      %2468 = vmatpush2.msra.mxu0 0.0
      %2469 = vmatprep.subr.mxu0 0.0
      %2470 = vmatpush2.msra.mxu0 0.0
      %2471 = vmatprep.subr.mxu0 0.0
      %2472 = vmatpush2.msra.mxu0 0.0
      %2473 = vmatprep.subr.mxu0 0.0
      %2474 = vmatpush2.msra.mxu0 0.0
      %2475 = vmatprep.subr.mxu0 0.0
      %2476 = vmatpush2.msra.mxu0 0.0
      %2477 = vmatprep.subr.mxu0 0.0
      %2478 = vmatpush2.msra.mxu0 0.0
      %2479 = vmatprep.subr.mxu0 0.0
      %2480 = vmatpush2.msra.mxu0 0.0
      %2481 = vmatprep.subr.mxu0 0.0
      %2482 = vmatpush2.msra.mxu0 0.0
      %2483 = vmatprep.subr.mxu0 0.0
      %2484 = vmatpush2.msra.mxu0 0.0
      %2485 = vmatprep.subr.mxu0 0.0
      %2486 = vmatpush2.msra.mxu0 0.0
      %2487 = vmatprep.subr.mxu0 0.0
      %2488 = vmatpush2.msra.mxu0 0.0
      %2489 = vmatprep.subr.mxu0 0.0
      %2490 = vmatpush2.msra.mxu0 0.0
      %2491 = vmatprep.subr.mxu0 0.0
      %2492 = vmatpush2.msra.mxu0 0.0
      %2493 = vmatprep.subr.mxu0 0.0
      %2494 = vmatpush2.msra.mxu0 0.0
      %2495 = vmatprep.mubr.f32.mxu0 0.0
      %2496 = vmatmul.mubr.f32.gmra.mxu0 %v2427
      %v2497 = vpop.f32.mrf.mxu0
      %v2498 = vadd.f32 0.0, %v2497
      %v2499 = vpop.f32.mrf.mxu0
      %2500 = vmatprep.mubr.f32.mxu0 0.0
      %2501 = vmatmul.mubr.f32.gmra.mxu0 %v2429
      %v2502 = vpop.f32.mrf.mxu0
      %v2503 = vadd.f32 0.0, %v2502
      %v2504 = vpop.f32.mrf.mxu0
      %2505 = vdwg.mxu0
      %v2506 = vadd.f32 %v2418, %v2498
      %v2507 = vadd.f32 %v2419, %v2503
      %2508 = vrot.lane.b32.xlu0 %v498, 112
      %v2509 = vpop.permute.xlu0 %2508
      %2510 = vrot.lane.b32.xlu0 %v502, 112
      %v2511 = vpop.permute.xlu0 %2510
      %v2512 = vsel %vm1099, %v2509, 0
      %v2514 = vsel %vm1099, %v2511, 0
      %2516 = vmatprep.subr.mxu0 0.0
      %2517 = vmatpush1.msra.mxu0 0.0
      %2518 = vmatprep.subr.mxu0 0.0
      %2519 = vmatpush1.msra.mxu0 0.0
      %2520 = vmatprep.subr.mxu0 0.0
      %2521 = vmatpush1.msra.mxu0 0.0
      %2522 = vmatprep.subr.mxu0 0.0
      %2523 = vmatpush1.msra.mxu0 0.0
      %2524 = vmatprep.subr.mxu0 0.0
      %2525 = vmatpush1.msra.mxu0 0.0
      %2526 = vmatprep.subr.mxu0 0.0
      %2527 = vmatpush1.msra.mxu0 0.0
      %2528 = vmatprep.subr.mxu0 0.0
      %2529 = vmatpush1.msra.mxu0 0.0
      %2530 = vmatprep.subr.mxu0 0.0
      %2531 = vmatpush1.msra.mxu0 0.0
      %2532 = vmatprep.subr.mxu0 0.0
      %2533 = vmatpush1.msra.mxu0 0.0
      %2534 = vmatprep.subr.mxu0 0.0
      %2535 = vmatpush1.msra.mxu0 0.0
      %2536 = vmatprep.subr.mxu0 0.0
      %2537 = vmatpush1.msra.mxu0 0.0
      %2538 = vmatprep.subr.mxu0 0.0
      %2539 = vmatpush1.msra.mxu0 0.0
      %2540 = vmatprep.subr.mxu0 0.0
      %2541 = vmatpush1.msra.mxu0 0.0
      %2542 = vmatprep.subr.mxu0 0.0
      %2543 = vmatpush1.msra.mxu0 0.0
      %2544 = vmatprep.subr.mxu0 0.0
      %2545 = vmatpush1.msra.mxu0 0.0
      %2546 = vmatprep.subr.mxu0 0.0
      %2547 = vmatpush1.msra.mxu0 %v872
      %2548 = vmatprep.subr.mxu0 0.0
      %2549 = vmatpush2.msra.mxu0 0.0
      %2550 = vmatprep.subr.mxu0 0.0
      %2551 = vmatpush2.msra.mxu0 0.0
      %2552 = vmatprep.subr.mxu0 0.0
      %2553 = vmatpush2.msra.mxu0 0.0
      %2554 = vmatprep.subr.mxu0 0.0
      %2555 = vmatpush2.msra.mxu0 0.0
      %2556 = vmatprep.subr.mxu0 0.0
      %2557 = vmatpush2.msra.mxu0 0.0
      %2558 = vmatprep.subr.mxu0 0.0
      %2559 = vmatpush2.msra.mxu0 0.0
      %2560 = vmatprep.subr.mxu0 0.0
      %2561 = vmatpush2.msra.mxu0 0.0
      %2562 = vmatprep.subr.mxu0 0.0
      %2563 = vmatpush2.msra.mxu0 0.0
      %2564 = vmatprep.subr.mxu0 0.0
      %2565 = vmatpush2.msra.mxu0 0.0
      %2566 = vmatprep.subr.mxu0 0.0
      %2567 = vmatpush2.msra.mxu0 0.0
      %2568 = vmatprep.subr.mxu0 0.0
      %2569 = vmatpush2.msra.mxu0 0.0
      %2570 = vmatprep.subr.mxu0 0.0
      %2571 = vmatpush2.msra.mxu0 0.0
      %2572 = vmatprep.subr.mxu0 0.0
      %2573 = vmatpush2.msra.mxu0 0.0
      %2574 = vmatprep.subr.mxu0 0.0
      %2575 = vmatpush2.msra.mxu0 0.0
      %2576 = vmatprep.subr.mxu0 0.0
      %2577 = vmatpush2.msra.mxu0 0.0
      %2578 = vmatprep.subr.mxu0 0.0
      %2579 = vmatpush2.msra.mxu0 0.0
      %2580 = vmatprep.mubr.f32.mxu0 0.0
      %2581 = vmatmul.mubr.f32.gmra.mxu0 %v2512
      %v2582 = vpop.f32.mrf.mxu0
      %v2583 = vadd.f32 0.0, %v2582
      %v2584 = vpop.f32.mrf.mxu0
      %2585 = vmatprep.mubr.f32.mxu0 0.0
      %2586 = vmatmul.mubr.f32.gmra.mxu0 %v2514
      %v2587 = vpop.f32.mrf.mxu0
      %v2588 = vadd.f32 0.0, %v2587
      %v2589 = vpop.f32.mrf.mxu0
      %2590 = vdwg.mxu0
      %v2591 = vadd.f32 %v2506, %v2583
      %v2592 = vadd.f32 %v2507, %v2588
      %2593 = vrot.lane.b32.xlu0 %v498, 104
      %v2594 = vpop.permute.xlu0 %2593
      %2595 = vrot.lane.b32.xlu0 %v502, 104
      %v2596 = vpop.permute.xlu0 %2595
      %2598 = vrot.lane.b32.xlu0 %v872, 80
      %v2599 = vpop.permute.xlu0 %2598
      %v2601 = vsel %vm1099, %v2594, 0
      %v2603 = vsel %vm1099, %v2596, 0
      %2605 = vmatprep.subr.mxu0 0.0
      %2606 = vmatpush1.msra.mxu0 0.0
      %2607 = vmatprep.subr.mxu0 0.0
      %2608 = vmatpush1.msra.mxu0 0.0
      %2609 = vmatprep.subr.mxu0 0.0
      %2610 = vmatpush1.msra.mxu0 0.0
      %2611 = vmatprep.subr.mxu0 0.0
      %2612 = vmatpush1.msra.mxu0 0.0
      %2613 = vmatprep.subr.mxu0 0.0
      %2614 = vmatpush1.msra.mxu0 0.0
      %2615 = vmatprep.subr.mxu0 0.0
      %2616 = vmatpush1.msra.mxu0 0.0
      %2617 = vmatprep.subr.mxu0 0.0
      %2618 = vmatpush1.msra.mxu0 0.0
      %2619 = vmatprep.subr.mxu0 0.0
      %2620 = vmatpush1.msra.mxu0 0.0
      %2621 = vmatprep.subr.mxu0 0.0
      %2622 = vmatpush1.msra.mxu0 0.0
      %2623 = vmatprep.subr.mxu0 0.0
      %2624 = vmatpush1.msra.mxu0 0.0
      %2625 = vmatprep.subr.mxu0 0.0
      %2626 = vmatpush1.msra.mxu0 0.0
      %2627 = vmatprep.subr.mxu0 0.0
      %2628 = vmatpush1.msra.mxu0 0.0
      %2629 = vmatprep.subr.mxu0 0.0
      %2630 = vmatpush1.msra.mxu0 0.0
      %2631 = vmatprep.subr.mxu0 0.0
      %2632 = vmatpush1.msra.mxu0 0.0
      %2633 = vmatprep.subr.mxu0 0.0
      %2634 = vmatpush1.msra.mxu0 0.0
      %2635 = vmatprep.subr.mxu0 0.0
      %2636 = vmatpush1.msra.mxu0 %v2599
      %2637 = vmatprep.subr.mxu0 0.0
      %2638 = vmatpush2.msra.mxu0 0.0
      %2639 = vmatprep.subr.mxu0 0.0
      %2640 = vmatpush2.msra.mxu0 0.0
      %2641 = vmatprep.subr.mxu0 0.0
      %2642 = vmatpush2.msra.mxu0 0.0
      %2643 = vmatprep.subr.mxu0 0.0
      %2644 = vmatpush2.msra.mxu0 0.0
      %2645 = vmatprep.subr.mxu0 0.0
      %2646 = vmatpush2.msra.mxu0 0.0
      %2647 = vmatprep.subr.mxu0 0.0
      %2648 = vmatpush2.msra.mxu0 0.0
      %2649 = vmatprep.subr.mxu0 0.0
      %2650 = vmatpush2.msra.mxu0 0.0
      %2651 = vmatprep.subr.mxu0 0.0
      %2652 = vmatpush2.msra.mxu0 0.0
      %2653 = vmatprep.subr.mxu0 0.0
      %2654 = vmatpush2.msra.mxu0 0.0
      %2655 = vmatprep.subr.mxu0 0.0
      %2656 = vmatpush2.msra.mxu0 0.0
      %2657 = vmatprep.subr.mxu0 0.0
      %2658 = vmatpush2.msra.mxu0 0.0
      %2659 = vmatprep.subr.mxu0 0.0
      %2660 = vmatpush2.msra.mxu0 0.0
      %2661 = vmatprep.subr.mxu0 0.0
      %2662 = vmatpush2.msra.mxu0 0.0
      %2663 = vmatprep.subr.mxu0 0.0
      %2664 = vmatpush2.msra.mxu0 0.0
      %2665 = vmatprep.subr.mxu0 0.0
      %2666 = vmatpush2.msra.mxu0 0.0
      %2667 = vmatprep.subr.mxu0 0.0
      %2668 = vmatpush2.msra.mxu0 0.0
      %2669 = vmatprep.mubr.f32.mxu0 0.0
      %2670 = vmatmul.mubr.f32.gmra.mxu0 %v2601
      %v2671 = vpop.f32.mrf.mxu0
      %v2672 = vadd.f32 0.0, %v2671
      %v2673 = vpop.f32.mrf.mxu0
      %2674 = vmatprep.mubr.f32.mxu0 0.0
      %2675 = vmatmul.mubr.f32.gmra.mxu0 %v2603
      %v2676 = vpop.f32.mrf.mxu0
      %v2677 = vadd.f32 0.0, %v2676
      %v2678 = vpop.f32.mrf.mxu0
      %2679 = vdwg.mxu0
      %v2680 = vadd.f32 %v2591, %v2672
      %v2681 = vadd.f32 %v2592, %v2677
      %2682 = vrot.lane.b32.xlu0 %v498, 96
      %v2683 = vpop.permute.xlu0 %2682
      %2684 = vrot.lane.b32.xlu0 %v502, 96
      %v2685 = vpop.permute.xlu0 %2684
      %2687 = vrot.lane.b32.xlu0 %v872, 32
      %v2688 = vpop.permute.xlu0 %2687
      %2689 = vrot.lane.b32.xlu0 %v874, 32
      %v2690 = vpop.permute.xlu0 %2689
      %v2691 = vsel %vm1271, %v2688, %v2690
      %v2693 = vsel %vm1099, %v2683, 0
      %v2695 = vsel %vm1099, %v2685, 0
      %2697 = vmatprep.subr.mxu0 0.0
      %2698 = vmatpush1.msra.mxu0 0.0
      %2699 = vmatprep.subr.mxu0 0.0
      %2700 = vmatpush1.msra.mxu0 0.0
      %2701 = vmatprep.subr.mxu0 0.0
      %2702 = vmatpush1.msra.mxu0 0.0
      %2703 = vmatprep.subr.mxu0 0.0
      %2704 = vmatpush1.msra.mxu0 0.0
      %2705 = vmatprep.subr.mxu0 0.0
      %2706 = vmatpush1.msra.mxu0 0.0
      %2707 = vmatprep.subr.mxu0 0.0
      %2708 = vmatpush1.msra.mxu0 0.0
      %2709 = vmatprep.subr.mxu0 0.0
      %2710 = vmatpush1.msra.mxu0 0.0
      %2711 = vmatprep.subr.mxu0 0.0
      %2712 = vmatpush1.msra.mxu0 0.0
      %2713 = vmatprep.subr.mxu0 0.0
      %2714 = vmatpush1.msra.mxu0 0.0
      %2715 = vmatprep.subr.mxu0 0.0
      %2716 = vmatpush1.msra.mxu0 0.0
      %2717 = vmatprep.subr.mxu0 0.0
      %2718 = vmatpush1.msra.mxu0 0.0
      %2719 = vmatprep.subr.mxu0 0.0
      %2720 = vmatpush1.msra.mxu0 0.0
      %2721 = vmatprep.subr.mxu0 0.0
      %2722 = vmatpush1.msra.mxu0 0.0
      %2723 = vmatprep.subr.mxu0 0.0
      %2724 = vmatpush1.msra.mxu0 0.0
      %2725 = vmatprep.subr.mxu0 0.0
      %2726 = vmatpush1.msra.mxu0 0.0
      %2727 = vmatprep.subr.mxu0 0.0
      %2728 = vmatpush1.msra.mxu0 %v2691
      %2729 = vmatprep.subr.mxu0 0.0
      %2730 = vmatpush2.msra.mxu0 0.0
      %2731 = vmatprep.subr.mxu0 0.0
      %2732 = vmatpush2.msra.mxu0 0.0
      %2733 = vmatprep.subr.mxu0 0.0
      %2734 = vmatpush2.msra.mxu0 0.0
      %2735 = vmatprep.subr.mxu0 0.0
      %2736 = vmatpush2.msra.mxu0 0.0
      %2737 = vmatprep.subr.mxu0 0.0
      %2738 = vmatpush2.msra.mxu0 0.0
      %2739 = vmatprep.subr.mxu0 0.0
      %2740 = vmatpush2.msra.mxu0 0.0
      %2741 = vmatprep.subr.mxu0 0.0
      %2742 = vmatpush2.msra.mxu0 0.0
      %2743 = vmatprep.subr.mxu0 0.0
      %2744 = vmatpush2.msra.mxu0 0.0
      %2745 = vmatprep.subr.mxu0 0.0
      %2746 = vmatpush2.msra.mxu0 0.0
      %2747 = vmatprep.subr.mxu0 0.0
      %2748 = vmatpush2.msra.mxu0 0.0
      %2749 = vmatprep.subr.mxu0 0.0
      %2750 = vmatpush2.msra.mxu0 0.0
      %2751 = vmatprep.subr.mxu0 0.0
      %2752 = vmatpush2.msra.mxu0 0.0
      %2753 = vmatprep.subr.mxu0 0.0
      %2754 = vmatpush2.msra.mxu0 0.0
      %2755 = vmatprep.subr.mxu0 0.0
      %2756 = vmatpush2.msra.mxu0 0.0
      %2757 = vmatprep.subr.mxu0 0.0
      %2758 = vmatpush2.msra.mxu0 0.0
      %2759 = vmatprep.subr.mxu0 0.0
      %2760 = vmatpush2.msra.mxu0 0.0
      %2761 = vmatprep.mubr.f32.mxu0 0.0
      %2762 = vmatmul.mubr.f32.gmra.mxu0 %v2693
      %v2763 = vpop.f32.mrf.mxu0
      %v2764 = vadd.f32 0.0, %v2763
      %v2765 = vpop.f32.mrf.mxu0
      %2766 = vmatprep.mubr.f32.mxu0 0.0
      %2767 = vmatmul.mubr.f32.gmra.mxu0 %v2695
      %v2768 = vpop.f32.mrf.mxu0
      %v2769 = vadd.f32 0.0, %v2768
      %v2770 = vpop.f32.mrf.mxu0
      %2771 = vdwg.mxu0
      %v2772 = vadd.f32 %v2680, %v2764
      %v2773 = vadd.f32 %v2681, %v2769
      %2774 = vrot.lane.b32.xlu0 %v498, 88
      %v2775 = vpop.permute.xlu0 %2774
      %2776 = vrot.lane.b32.xlu0 %v502, 88
      %v2777 = vpop.permute.xlu0 %2776
      %2778 = vrot.lane.b32.xlu0 %v874, 112
      %v2779 = vpop.permute.xlu0 %2778
      %v2781 = vsel %vm1099, %v2775, 0
      %v2783 = vsel %vm1099, %v2777, 0
      %2785 = vmatprep.subr.mxu0 0.0
      %2786 = vmatpush1.msra.mxu0 0.0
      %2787 = vmatprep.subr.mxu0 0.0
      %2788 = vmatpush1.msra.mxu0 0.0
      %2789 = vmatprep.subr.mxu0 0.0
      %2790 = vmatpush1.msra.mxu0 0.0
      %2791 = vmatprep.subr.mxu0 0.0
      %2792 = vmatpush1.msra.mxu0 0.0
      %2793 = vmatprep.subr.mxu0 0.0
      %2794 = vmatpush1.msra.mxu0 0.0
      %2795 = vmatprep.subr.mxu0 0.0
      %2796 = vmatpush1.msra.mxu0 0.0
      %2797 = vmatprep.subr.mxu0 0.0
      %2798 = vmatpush1.msra.mxu0 0.0
      %2799 = vmatprep.subr.mxu0 0.0
      %2800 = vmatpush1.msra.mxu0 0.0
      %2801 = vmatprep.subr.mxu0 0.0
      %2802 = vmatpush1.msra.mxu0 0.0
      %2803 = vmatprep.subr.mxu0 0.0
      %2804 = vmatpush1.msra.mxu0 0.0
      %2805 = vmatprep.subr.mxu0 0.0
      %2806 = vmatpush1.msra.mxu0 0.0
      %2807 = vmatprep.subr.mxu0 0.0
      %2808 = vmatpush1.msra.mxu0 0.0
      %2809 = vmatprep.subr.mxu0 0.0
      %2810 = vmatpush1.msra.mxu0 0.0
      %2811 = vmatprep.subr.mxu0 0.0
      %2812 = vmatpush1.msra.mxu0 0.0
      %2813 = vmatprep.subr.mxu0 0.0
      %2814 = vmatpush1.msra.mxu0 0.0
      %2815 = vmatprep.subr.mxu0 0.0
      %2816 = vmatpush1.msra.mxu0 %v2779
      %2817 = vmatprep.subr.mxu0 0.0
      %2818 = vmatpush2.msra.mxu0 0.0
      %2819 = vmatprep.subr.mxu0 0.0
      %2820 = vmatpush2.msra.mxu0 0.0
      %2821 = vmatprep.subr.mxu0 0.0
      %2822 = vmatpush2.msra.mxu0 0.0
      %2823 = vmatprep.subr.mxu0 0.0
      %2824 = vmatpush2.msra.mxu0 0.0
      %2825 = vmatprep.subr.mxu0 0.0
      %2826 = vmatpush2.msra.mxu0 0.0
      %2827 = vmatprep.subr.mxu0 0.0
      %2828 = vmatpush2.msra.mxu0 0.0
      %2829 = vmatprep.subr.mxu0 0.0
      %2830 = vmatpush2.msra.mxu0 0.0
      %2831 = vmatprep.subr.mxu0 0.0
      %2832 = vmatpush2.msra.mxu0 0.0
      %2833 = vmatprep.subr.mxu0 0.0
      %2834 = vmatpush2.msra.mxu0 0.0
      %2835 = vmatprep.subr.mxu0 0.0
      %2836 = vmatpush2.msra.mxu0 0.0
      %2837 = vmatprep.subr.mxu0 0.0
      %2838 = vmatpush2.msra.mxu0 0.0
      %2839 = vmatprep.subr.mxu0 0.0
      %2840 = vmatpush2.msra.mxu0 0.0
      %2841 = vmatprep.subr.mxu0 0.0
      %2842 = vmatpush2.msra.mxu0 0.0
      %2843 = vmatprep.subr.mxu0 0.0
      %2844 = vmatpush2.msra.mxu0 0.0
      %2845 = vmatprep.subr.mxu0 0.0
      %2846 = vmatpush2.msra.mxu0 0.0
      %2847 = vmatprep.subr.mxu0 0.0
      %2848 = vmatpush2.msra.mxu0 0.0
      %2849 = vmatprep.mubr.f32.mxu0 0.0
      %2850 = vmatmul.mubr.f32.gmra.mxu0 %v2781
      %v2851 = vpop.f32.mrf.mxu0
      %v2852 = vadd.f32 0.0, %v2851
      %v2853 = vpop.f32.mrf.mxu0
      %2854 = vmatprep.mubr.f32.mxu0 0.0
      %2855 = vmatmul.mubr.f32.gmra.mxu0 %v2783
      %v2856 = vpop.f32.mrf.mxu0
      %v2857 = vadd.f32 0.0, %v2856
      %v2858 = vpop.f32.mrf.mxu0
      %2859 = vdwg.mxu0
      %v2860 = vadd.f32 %v2772, %v2852
      %v2861 = vadd.f32 %v2773, %v2857
      %2862 = vrot.lane.b32.xlu0 %v498, 80
      %v2863 = vpop.permute.xlu0 %2862
      %2864 = vrot.lane.b32.xlu0 %v502, 80
      %v2865 = vpop.permute.xlu0 %2864
      %2866 = vrot.lane.b32.xlu0 %v874, 64
      %v2867 = vpop.permute.xlu0 %2866
      %v2869 = vsel %vm1099, %v2863, 0
      %v2871 = vsel %vm1099, %v2865, 0
      %2873 = vmatprep.subr.mxu0 0.0
      %2874 = vmatpush1.msra.mxu0 0.0
      %2875 = vmatprep.subr.mxu0 0.0
      %2876 = vmatpush1.msra.mxu0 0.0
      %2877 = vmatprep.subr.mxu0 0.0
      %2878 = vmatpush1.msra.mxu0 0.0
      %2879 = vmatprep.subr.mxu0 0.0
      %2880 = vmatpush1.msra.mxu0 0.0
      %2881 = vmatprep.subr.mxu0 0.0
      %2882 = vmatpush1.msra.mxu0 0.0
      %2883 = vmatprep.subr.mxu0 0.0
      %2884 = vmatpush1.msra.mxu0 0.0
      %2885 = vmatprep.subr.mxu0 0.0
      %2886 = vmatpush1.msra.mxu0 0.0
      %2887 = vmatprep.subr.mxu0 0.0
      %2888 = vmatpush1.msra.mxu0 0.0
      %2889 = vmatprep.subr.mxu0 0.0
      %2890 = vmatpush1.msra.mxu0 0.0
      %2891 = vmatprep.subr.mxu0 0.0
      %2892 = vmatpush1.msra.mxu0 0.0
      %2893 = vmatprep.subr.mxu0 0.0
      %2894 = vmatpush1.msra.mxu0 0.0
      %2895 = vmatprep.subr.mxu0 0.0
      %2896 = vmatpush1.msra.mxu0 0.0
      %2897 = vmatprep.subr.mxu0 0.0
      %2898 = vmatpush1.msra.mxu0 0.0
      %2899 = vmatprep.subr.mxu0 0.0
      %2900 = vmatpush1.msra.mxu0 0.0
      %2901 = vmatprep.subr.mxu0 0.0
      %2902 = vmatpush1.msra.mxu0 0.0
      %2903 = vmatprep.subr.mxu0 0.0
      %2904 = vmatpush1.msra.mxu0 %v2867
      %2905 = vmatprep.subr.mxu0 0.0
      %2906 = vmatpush2.msra.mxu0 0.0
      %2907 = vmatprep.subr.mxu0 0.0
      %2908 = vmatpush2.msra.mxu0 0.0
      %2909 = vmatprep.subr.mxu0 0.0
      %2910 = vmatpush2.msra.mxu0 0.0
      %2911 = vmatprep.subr.mxu0 0.0
      %2912 = vmatpush2.msra.mxu0 0.0
      %2913 = vmatprep.subr.mxu0 0.0
      %2914 = vmatpush2.msra.mxu0 0.0
      %2915 = vmatprep.subr.mxu0 0.0
      %2916 = vmatpush2.msra.mxu0 0.0
      %2917 = vmatprep.subr.mxu0 0.0
      %2918 = vmatpush2.msra.mxu0 0.0
      %2919 = vmatprep.subr.mxu0 0.0
      %2920 = vmatpush2.msra.mxu0 0.0
      %2921 = vmatprep.subr.mxu0 0.0
      %2922 = vmatpush2.msra.mxu0 0.0
      %2923 = vmatprep.subr.mxu0 0.0
      %2924 = vmatpush2.msra.mxu0 0.0
      %2925 = vmatprep.subr.mxu0 0.0
      %2926 = vmatpush2.msra.mxu0 0.0
      %2927 = vmatprep.subr.mxu0 0.0
      %2928 = vmatpush2.msra.mxu0 0.0
      %2929 = vmatprep.subr.mxu0 0.0
      %2930 = vmatpush2.msra.mxu0 0.0
      %2931 = vmatprep.subr.mxu0 0.0
      %2932 = vmatpush2.msra.mxu0 0.0
      %2933 = vmatprep.subr.mxu0 0.0
      %2934 = vmatpush2.msra.mxu0 0.0
      %2935 = vmatprep.subr.mxu0 0.0
      %2936 = vmatpush2.msra.mxu0 0.0
      %2937 = vmatprep.mubr.f32.mxu0 0.0
      %2938 = vmatmul.mubr.f32.gmra.mxu0 %v2869
      %v2939 = vpop.f32.mrf.mxu0
      %v2940 = vadd.f32 0.0, %v2939
      %v2941 = vpop.f32.mrf.mxu0
      %2942 = vmatprep.mubr.f32.mxu0 0.0
      %2943 = vmatmul.mubr.f32.gmra.mxu0 %v2871
      %v2944 = vpop.f32.mrf.mxu0
      %v2945 = vadd.f32 0.0, %v2944
      %v2946 = vpop.f32.mrf.mxu0
      %2947 = vdwg.mxu0
      %v2948 = vadd.f32 %v2860, %v2940
      %v2949 = vadd.f32 %v2861, %v2945
      %2950 = vrot.lane.b32.xlu0 %v498, 72
      %v2951 = vpop.permute.xlu0 %2950
      %2952 = vrot.lane.b32.xlu0 %v502, 72
      %v2953 = vpop.permute.xlu0 %2952
      %2955 = vrot.lane.b32.xlu0 %v874, 16
      %v2956 = vpop.permute.xlu0 %2955
      %2957 = vrot.lane.b32.xlu0 %v943, 16
      %v2958 = vpop.permute.xlu0 %2957
      %v2959 = vsel %vm1540, %v2956, %v2958
      %v2961 = vsel %vm1099, %v2951, 0
      %v2963 = vsel %vm1099, %v2953, 0
      %2965 = vmatprep.subr.mxu0 0.0
      %2966 = vmatpush1.msra.mxu0 0.0
      %2967 = vmatprep.subr.mxu0 0.0
      %2968 = vmatpush1.msra.mxu0 0.0
      %2969 = vmatprep.subr.mxu0 0.0
      %2970 = vmatpush1.msra.mxu0 0.0
      %2971 = vmatprep.subr.mxu0 0.0
      %2972 = vmatpush1.msra.mxu0 0.0
      %2973 = vmatprep.subr.mxu0 0.0
      %2974 = vmatpush1.msra.mxu0 0.0
      %2975 = vmatprep.subr.mxu0 0.0
      %2976 = vmatpush1.msra.mxu0 0.0
      %2977 = vmatprep.subr.mxu0 0.0
      %2978 = vmatpush1.msra.mxu0 0.0
      %2979 = vmatprep.subr.mxu0 0.0
      %2980 = vmatpush1.msra.mxu0 0.0
      %2981 = vmatprep.subr.mxu0 0.0
      %2982 = vmatpush1.msra.mxu0 0.0
      %2983 = vmatprep.subr.mxu0 0.0
      %2984 = vmatpush1.msra.mxu0 0.0
      %2985 = vmatprep.subr.mxu0 0.0
      %2986 = vmatpush1.msra.mxu0 0.0
      %2987 = vmatprep.subr.mxu0 0.0
      %2988 = vmatpush1.msra.mxu0 0.0
      %2989 = vmatprep.subr.mxu0 0.0
      %2990 = vmatpush1.msra.mxu0 0.0
      %2991 = vmatprep.subr.mxu0 0.0
      %2992 = vmatpush1.msra.mxu0 0.0
      %2993 = vmatprep.subr.mxu0 0.0
      %2994 = vmatpush1.msra.mxu0 0.0
      %2995 = vmatprep.subr.mxu0 0.0
      %2996 = vmatpush1.msra.mxu0 %v2959
      %2997 = vmatprep.subr.mxu0 0.0
      %2998 = vmatpush2.msra.mxu0 0.0
      %2999 = vmatprep.subr.mxu0 0.0
      %3000 = vmatpush2.msra.mxu0 0.0
      %3001 = vmatprep.subr.mxu0 0.0
      %3002 = vmatpush2.msra.mxu0 0.0
      %3003 = vmatprep.subr.mxu0 0.0
      %3004 = vmatpush2.msra.mxu0 0.0
      %3005 = vmatprep.subr.mxu0 0.0
      %3006 = vmatpush2.msra.mxu0 0.0
      %3007 = vmatprep.subr.mxu0 0.0
      %3008 = vmatpush2.msra.mxu0 0.0
      %3009 = vmatprep.subr.mxu0 0.0
      %3010 = vmatpush2.msra.mxu0 0.0
      %3011 = vmatprep.subr.mxu0 0.0
      %3012 = vmatpush2.msra.mxu0 0.0
      %3013 = vmatprep.subr.mxu0 0.0
      %3014 = vmatpush2.msra.mxu0 0.0
      %3015 = vmatprep.subr.mxu0 0.0
      %3016 = vmatpush2.msra.mxu0 0.0
      %3017 = vmatprep.subr.mxu0 0.0
      %3018 = vmatpush2.msra.mxu0 0.0
      %3019 = vmatprep.subr.mxu0 0.0
      %3020 = vmatpush2.msra.mxu0 0.0
      %3021 = vmatprep.subr.mxu0 0.0
      %3022 = vmatpush2.msra.mxu0 0.0
      %3023 = vmatprep.subr.mxu0 0.0
      %3024 = vmatpush2.msra.mxu0 0.0
      %3025 = vmatprep.subr.mxu0 0.0
      %3026 = vmatpush2.msra.mxu0 0.0
      %3027 = vmatprep.subr.mxu0 0.0
      %3028 = vmatpush2.msra.mxu0 0.0
      %3029 = vmatprep.mubr.f32.mxu0 0.0
      %3030 = vmatmul.mubr.f32.gmra.mxu0 %v2961
      %v3031 = vpop.f32.mrf.mxu0
      %v3032 = vadd.f32 0.0, %v3031
      %v3033 = vpop.f32.mrf.mxu0
      %3034 = vmatprep.mubr.f32.mxu0 0.0
      %3035 = vmatmul.mubr.f32.gmra.mxu0 %v2963
      %v3036 = vpop.f32.mrf.mxu0
      %v3037 = vadd.f32 0.0, %v3036
      %v3038 = vpop.f32.mrf.mxu0
      %3039 = vdwg.mxu0
      %v3040 = vadd.f32 %v2948, %v3032
      %v3041 = vadd.f32 %v2949, %v3037
      %3042 = vrot.lane.b32.xlu0 %v498, 64
      %v3043 = vpop.permute.xlu0 %3042
      %3044 = vrot.lane.b32.xlu0 %v502, 64
      %v3045 = vpop.permute.xlu0 %3044
      %3046 = vrot.lane.b32.xlu0 %v943, 96
      %v3047 = vpop.permute.xlu0 %3046
      %v3049 = vsel %vm1099, %v3043, 0
      %v3051 = vsel %vm1099, %v3045, 0
      %3053 = vmatprep.subr.mxu0 0.0
      %3054 = vmatpush1.msra.mxu0 0.0
      %3055 = vmatprep.subr.mxu0 0.0
      %3056 = vmatpush1.msra.mxu0 0.0
      %3057 = vmatprep.subr.mxu0 0.0
      %3058 = vmatpush1.msra.mxu0 0.0
      %3059 = vmatprep.subr.mxu0 0.0
      %3060 = vmatpush1.msra.mxu0 0.0
      %3061 = vmatprep.subr.mxu0 0.0
      %3062 = vmatpush1.msra.mxu0 0.0
      %3063 = vmatprep.subr.mxu0 0.0
      %3064 = vmatpush1.msra.mxu0 0.0
      %3065 = vmatprep.subr.mxu0 0.0
      %3066 = vmatpush1.msra.mxu0 0.0
      %3067 = vmatprep.subr.mxu0 0.0
      %3068 = vmatpush1.msra.mxu0 0.0
      %3069 = vmatprep.subr.mxu0 0.0
      %3070 = vmatpush1.msra.mxu0 0.0
      %3071 = vmatprep.subr.mxu0 0.0
      %3072 = vmatpush1.msra.mxu0 0.0
      %3073 = vmatprep.subr.mxu0 0.0
      %3074 = vmatpush1.msra.mxu0 0.0
      %3075 = vmatprep.subr.mxu0 0.0
      %3076 = vmatpush1.msra.mxu0 0.0
      %3077 = vmatprep.subr.mxu0 0.0
      %3078 = vmatpush1.msra.mxu0 0.0
      %3079 = vmatprep.subr.mxu0 0.0
      %3080 = vmatpush1.msra.mxu0 0.0
      %3081 = vmatprep.subr.mxu0 0.0
      %3082 = vmatpush1.msra.mxu0 0.0
      %3083 = vmatprep.subr.mxu0 0.0
      %3084 = vmatpush1.msra.mxu0 %v3047
      %3085 = vmatprep.subr.mxu0 0.0
      %3086 = vmatpush2.msra.mxu0 0.0
      %3087 = vmatprep.subr.mxu0 0.0
      %3088 = vmatpush2.msra.mxu0 0.0
      %3089 = vmatprep.subr.mxu0 0.0
      %3090 = vmatpush2.msra.mxu0 0.0
      %3091 = vmatprep.subr.mxu0 0.0
      %3092 = vmatpush2.msra.mxu0 0.0
      %3093 = vmatprep.subr.mxu0 0.0
      %3094 = vmatpush2.msra.mxu0 0.0
      %3095 = vmatprep.subr.mxu0 0.0
      %3096 = vmatpush2.msra.mxu0 0.0
      %3097 = vmatprep.subr.mxu0 0.0
      %3098 = vmatpush2.msra.mxu0 0.0
      %3099 = vmatprep.subr.mxu0 0.0
      %3100 = vmatpush2.msra.mxu0 0.0
      %3101 = vmatprep.subr.mxu0 0.0
      %3102 = vmatpush2.msra.mxu0 0.0
      %3103 = vmatprep.subr.mxu0 0.0
      %3104 = vmatpush2.msra.mxu0 0.0
      %3105 = vmatprep.subr.mxu0 0.0
      %3106 = vmatpush2.msra.mxu0 0.0
      %3107 = vmatprep.subr.mxu0 0.0
      %3108 = vmatpush2.msra.mxu0 0.0
      %3109 = vmatprep.subr.mxu0 0.0
      %3110 = vmatpush2.msra.mxu0 0.0
      %3111 = vmatprep.subr.mxu0 0.0
      %3112 = vmatpush2.msra.mxu0 0.0
      %3113 = vmatprep.subr.mxu0 0.0
      %3114 = vmatpush2.msra.mxu0 0.0
      %3115 = vmatprep.subr.mxu0 0.0
      %3116 = vmatpush2.msra.mxu0 0.0
      %3117 = vmatprep.mubr.f32.mxu0 0.0
      %3118 = vmatmul.mubr.f32.gmra.mxu0 %v3049
      %v3119 = vpop.f32.mrf.mxu0
      %v3120 = vadd.f32 0.0, %v3119
      %v3121 = vpop.f32.mrf.mxu0
      %3122 = vmatprep.mubr.f32.mxu0 0.0
      %3123 = vmatmul.mubr.f32.gmra.mxu0 %v3051
      %v3124 = vpop.f32.mrf.mxu0
      %v3125 = vadd.f32 0.0, %v3124
      %v3126 = vpop.f32.mrf.mxu0
      %3127 = vdwg.mxu0
      %v3128 = vadd.f32 %v3040, %v3120
      %v3129 = vadd.f32 %v3041, %v3125
      %3130 = vrot.lane.b32.xlu0 %v498, 56
      %v3131 = vpop.permute.xlu0 %3130
      %3132 = vrot.lane.b32.xlu0 %v502, 56
      %v3133 = vpop.permute.xlu0 %3132
      %3134 = vrot.lane.b32.xlu0 %v943, 48
      %v3135 = vpop.permute.xlu0 %3134
      %v3137 = vsel %vm1099, %v3131, 0
      %v3139 = vsel %vm1099, %v3133, 0
      %3141 = vmatprep.subr.mxu0 0.0
      %3142 = vmatpush1.msra.mxu0 0.0
      %3143 = vmatprep.subr.mxu0 0.0
      %3144 = vmatpush1.msra.mxu0 0.0
      %3145 = vmatprep.subr.mxu0 0.0
      %3146 = vmatpush1.msra.mxu0 0.0
      %3147 = vmatprep.subr.mxu0 0.0
      %3148 = vmatpush1.msra.mxu0 0.0
      %3149 = vmatprep.subr.mxu0 0.0
      %3150 = vmatpush1.msra.mxu0 0.0
      %3151 = vmatprep.subr.mxu0 0.0
      %3152 = vmatpush1.msra.mxu0 0.0
      %3153 = vmatprep.subr.mxu0 0.0
      %3154 = vmatpush1.msra.mxu0 0.0
      %3155 = vmatprep.subr.mxu0 0.0
      %3156 = vmatpush1.msra.mxu0 0.0
      %3157 = vmatprep.subr.mxu0 0.0
      %3158 = vmatpush1.msra.mxu0 0.0
      %3159 = vmatprep.subr.mxu0 0.0
      %3160 = vmatpush1.msra.mxu0 0.0
      %3161 = vmatprep.subr.mxu0 0.0
      %3162 = vmatpush1.msra.mxu0 0.0
      %3163 = vmatprep.subr.mxu0 0.0
      %3164 = vmatpush1.msra.mxu0 0.0
      %3165 = vmatprep.subr.mxu0 0.0
      %3166 = vmatpush1.msra.mxu0 0.0
      %3167 = vmatprep.subr.mxu0 0.0
      %3168 = vmatpush1.msra.mxu0 0.0
      %3169 = vmatprep.subr.mxu0 0.0
      %3170 = vmatpush1.msra.mxu0 0.0
      %3171 = vmatprep.subr.mxu0 0.0
      %3172 = vmatpush1.msra.mxu0 %v3135
      %3173 = vmatprep.subr.mxu0 0.0
      %3174 = vmatpush2.msra.mxu0 0.0
      %3175 = vmatprep.subr.mxu0 0.0
      %3176 = vmatpush2.msra.mxu0 0.0
      %3177 = vmatprep.subr.mxu0 0.0
      %3178 = vmatpush2.msra.mxu0 0.0
      %3179 = vmatprep.subr.mxu0 0.0
      %3180 = vmatpush2.msra.mxu0 0.0
      %3181 = vmatprep.subr.mxu0 0.0
      %3182 = vmatpush2.msra.mxu0 0.0
      %3183 = vmatprep.subr.mxu0 0.0
      %3184 = vmatpush2.msra.mxu0 0.0
      %3185 = vmatprep.subr.mxu0 0.0
      %3186 = vmatpush2.msra.mxu0 0.0
      %3187 = vmatprep.subr.mxu0 0.0
      %3188 = vmatpush2.msra.mxu0 0.0
      %3189 = vmatprep.subr.mxu0 0.0
      %3190 = vmatpush2.msra.mxu0 0.0
      %3191 = vmatprep.subr.mxu0 0.0
      %3192 = vmatpush2.msra.mxu0 0.0
      %3193 = vmatprep.subr.mxu0 0.0
      %3194 = vmatpush2.msra.mxu0 0.0
      %3195 = vmatprep.subr.mxu0 0.0
      %3196 = vmatpush2.msra.mxu0 0.0
      %3197 = vmatprep.subr.mxu0 0.0
      %3198 = vmatpush2.msra.mxu0 0.0
      %3199 = vmatprep.subr.mxu0 0.0
      %3200 = vmatpush2.msra.mxu0 0.0
      %3201 = vmatprep.subr.mxu0 0.0
      %3202 = vmatpush2.msra.mxu0 0.0
      %3203 = vmatprep.subr.mxu0 0.0
      %3204 = vmatpush2.msra.mxu0 0.0
      %3205 = vmatprep.mubr.f32.mxu0 0.0
      %3206 = vmatmul.mubr.f32.gmra.mxu0 %v3137
      %v3207 = vpop.f32.mrf.mxu0
      %v3208 = vadd.f32 0.0, %v3207
      %v3209 = vpop.f32.mrf.mxu0
      %3210 = vmatprep.mubr.f32.mxu0 0.0
      %3211 = vmatmul.mubr.f32.gmra.mxu0 %v3139
      %v3212 = vpop.f32.mrf.mxu0
      %v3213 = vadd.f32 0.0, %v3212
      %v3214 = vpop.f32.mrf.mxu0
      %3215 = vdwg.mxu0
      %v3216 = vadd.f32 %v3128, %v3208
      %v3217 = vadd.f32 %v3129, %v3213
      %3218 = vrot.lane.b32.xlu0 %v498, 48
      %v3219 = vpop.permute.xlu0 %3218
      %3220 = vrot.lane.b32.xlu0 %v502, 48
      %v3221 = vpop.permute.xlu0 %3220
      %v3222 = vsel %vm1099, %v3219, 0
      %v3224 = vsel %vm1099, %v3221, 0
      %3226 = vmatprep.subr.mxu0 0.0
      %3227 = vmatpush1.msra.mxu0 0.0
      %3228 = vmatprep.subr.mxu0 0.0
      %3229 = vmatpush1.msra.mxu0 0.0
      %3230 = vmatprep.subr.mxu0 0.0
      %3231 = vmatpush1.msra.mxu0 0.0
      %3232 = vmatprep.subr.mxu0 0.0
      %3233 = vmatpush1.msra.mxu0 0.0
      %3234 = vmatprep.subr.mxu0 0.0
      %3235 = vmatpush1.msra.mxu0 0.0
      %3236 = vmatprep.subr.mxu0 0.0
      %3237 = vmatpush1.msra.mxu0 0.0
      %3238 = vmatprep.subr.mxu0 0.0
      %3239 = vmatpush1.msra.mxu0 0.0
      %3240 = vmatprep.subr.mxu0 0.0
      %3241 = vmatpush1.msra.mxu0 0.0
      %3242 = vmatprep.subr.mxu0 0.0
      %3243 = vmatpush1.msra.mxu0 0.0
      %3244 = vmatprep.subr.mxu0 0.0
      %3245 = vmatpush1.msra.mxu0 0.0
      %3246 = vmatprep.subr.mxu0 0.0
      %3247 = vmatpush1.msra.mxu0 0.0
      %3248 = vmatprep.subr.mxu0 0.0
      %3249 = vmatpush1.msra.mxu0 0.0
      %3250 = vmatprep.subr.mxu0 0.0
      %3251 = vmatpush1.msra.mxu0 0.0
      %3252 = vmatprep.subr.mxu0 0.0
      %3253 = vmatpush1.msra.mxu0 0.0
      %3254 = vmatprep.subr.mxu0 0.0
      %3255 = vmatpush1.msra.mxu0 0.0
      %3256 = vmatprep.subr.mxu0 0.0
      %3257 = vmatpush1.msra.mxu0 %v945
      %3258 = vmatprep.subr.mxu0 0.0
      %3259 = vmatpush2.msra.mxu0 0.0
      %3260 = vmatprep.subr.mxu0 0.0
      %3261 = vmatpush2.msra.mxu0 0.0
      %3262 = vmatprep.subr.mxu0 0.0
      %3263 = vmatpush2.msra.mxu0 0.0
      %3264 = vmatprep.subr.mxu0 0.0
      %3265 = vmatpush2.msra.mxu0 0.0
      %3266 = vmatprep.subr.mxu0 0.0
      %3267 = vmatpush2.msra.mxu0 0.0
      %3268 = vmatprep.subr.mxu0 0.0
      %3269 = vmatpush2.msra.mxu0 0.0
      %3270 = vmatprep.subr.mxu0 0.0
      %3271 = vmatpush2.msra.mxu0 0.0
      %3272 = vmatprep.subr.mxu0 0.0
      %3273 = vmatpush2.msra.mxu0 0.0
      %3274 = vmatprep.subr.mxu0 0.0
      %3275 = vmatpush2.msra.mxu0 0.0
      %3276 = vmatprep.subr.mxu0 0.0
      %3277 = vmatpush2.msra.mxu0 0.0
      %3278 = vmatprep.subr.mxu0 0.0
      %3279 = vmatpush2.msra.mxu0 0.0
      %3280 = vmatprep.subr.mxu0 0.0
      %3281 = vmatpush2.msra.mxu0 0.0
      %3282 = vmatprep.subr.mxu0 0.0
      %3283 = vmatpush2.msra.mxu0 0.0
      %3284 = vmatprep.subr.mxu0 0.0
      %3285 = vmatpush2.msra.mxu0 0.0
      %3286 = vmatprep.subr.mxu0 0.0
      %3287 = vmatpush2.msra.mxu0 0.0
      %3288 = vmatprep.subr.mxu0 0.0
      %3289 = vmatpush2.msra.mxu0 0.0
      %3290 = vmatprep.mubr.f32.mxu0 0.0
      %3291 = vmatmul.mubr.f32.gmra.mxu0 %v3222
      %v3292 = vpop.f32.mrf.mxu0
      %v3293 = vadd.f32 0.0, %v3292
      %v3294 = vpop.f32.mrf.mxu0
      %3295 = vmatprep.mubr.f32.mxu0 0.0
      %3296 = vmatmul.mubr.f32.gmra.mxu0 %v3224
      %v3297 = vpop.f32.mrf.mxu0
      %v3298 = vadd.f32 0.0, %v3297
      %v3299 = vpop.f32.mrf.mxu0
      %3300 = vdwg.mxu0
      %v3301 = vadd.f32 %v3216, %v3293
      %v3302 = vadd.f32 %v3217, %v3298
      %3303 = vrot.lane.b32.xlu0 %v498, 40
      %v3304 = vpop.permute.xlu0 %3303
      %3305 = vrot.lane.b32.xlu0 %v502, 40
      %v3306 = vpop.permute.xlu0 %3305
      %3308 = vrot.lane.b32.xlu0 %v945, 80
      %v3309 = vpop.permute.xlu0 %3308
      %v3311 = vsel %vm1099, %v3304, 0
      %v3313 = vsel %vm1099, %v3306, 0
      %3315 = vmatprep.subr.mxu0 0.0
      %3316 = vmatpush1.msra.mxu0 0.0
      %3317 = vmatprep.subr.mxu0 0.0
      %3318 = vmatpush1.msra.mxu0 0.0
      %3319 = vmatprep.subr.mxu0 0.0
      %3320 = vmatpush1.msra.mxu0 0.0
      %3321 = vmatprep.subr.mxu0 0.0
      %3322 = vmatpush1.msra.mxu0 0.0
      %3323 = vmatprep.subr.mxu0 0.0
      %3324 = vmatpush1.msra.mxu0 0.0
      %3325 = vmatprep.subr.mxu0 0.0
      %3326 = vmatpush1.msra.mxu0 0.0
      %3327 = vmatprep.subr.mxu0 0.0
      %3328 = vmatpush1.msra.mxu0 0.0
      %3329 = vmatprep.subr.mxu0 0.0
      %3330 = vmatpush1.msra.mxu0 0.0
      %3331 = vmatprep.subr.mxu0 0.0
      %3332 = vmatpush1.msra.mxu0 0.0
      %3333 = vmatprep.subr.mxu0 0.0
      %3334 = vmatpush1.msra.mxu0 0.0
      %3335 = vmatprep.subr.mxu0 0.0
      %3336 = vmatpush1.msra.mxu0 0.0
      %3337 = vmatprep.subr.mxu0 0.0
      %3338 = vmatpush1.msra.mxu0 0.0
      %3339 = vmatprep.subr.mxu0 0.0
      %3340 = vmatpush1.msra.mxu0 0.0
      %3341 = vmatprep.subr.mxu0 0.0
      %3342 = vmatpush1.msra.mxu0 0.0
      %3343 = vmatprep.subr.mxu0 0.0
      %3344 = vmatpush1.msra.mxu0 0.0
      %3345 = vmatprep.subr.mxu0 0.0
      %3346 = vmatpush1.msra.mxu0 %v3309
      %3347 = vmatprep.subr.mxu0 0.0
      %3348 = vmatpush2.msra.mxu0 0.0
      %3349 = vmatprep.subr.mxu0 0.0
      %3350 = vmatpush2.msra.mxu0 0.0
      %3351 = vmatprep.subr.mxu0 0.0
      %3352 = vmatpush2.msra.mxu0 0.0
      %3353 = vmatprep.subr.mxu0 0.0
      %3354 = vmatpush2.msra.mxu0 0.0
      %3355 = vmatprep.subr.mxu0 0.0
      %3356 = vmatpush2.msra.mxu0 0.0
      %3357 = vmatprep.subr.mxu0 0.0
      %3358 = vmatpush2.msra.mxu0 0.0
      %3359 = vmatprep.subr.mxu0 0.0
      %3360 = vmatpush2.msra.mxu0 0.0
      %3361 = vmatprep.subr.mxu0 0.0
      %3362 = vmatpush2.msra.mxu0 0.0
      %3363 = vmatprep.subr.mxu0 0.0
      %3364 = vmatpush2.msra.mxu0 0.0
      %3365 = vmatprep.subr.mxu0 0.0
      %3366 = vmatpush2.msra.mxu0 0.0
      %3367 = vmatprep.subr.mxu0 0.0
      %3368 = vmatpush2.msra.mxu0 0.0
      %3369 = vmatprep.subr.mxu0 0.0
      %3370 = vmatpush2.msra.mxu0 0.0
      %3371 = vmatprep.subr.mxu0 0.0
      %3372 = vmatpush2.msra.mxu0 0.0
      %3373 = vmatprep.subr.mxu0 0.0
      %3374 = vmatpush2.msra.mxu0 0.0
      %3375 = vmatprep.subr.mxu0 0.0
      %3376 = vmatpush2.msra.mxu0 0.0
      %3377 = vmatprep.subr.mxu0 0.0
      %3378 = vmatpush2.msra.mxu0 0.0
      %3379 = vmatprep.mubr.f32.mxu0 0.0
      %3380 = vmatmul.mubr.f32.gmra.mxu0 %v3311
      %v3381 = vpop.f32.mrf.mxu0
      %v3382 = vadd.f32 0.0, %v3381
      %v3383 = vpop.f32.mrf.mxu0
      %3384 = vmatprep.mubr.f32.mxu0 0.0
      %3385 = vmatmul.mubr.f32.gmra.mxu0 %v3313
      %v3386 = vpop.f32.mrf.mxu0
      %v3387 = vadd.f32 0.0, %v3386
      %v3388 = vpop.f32.mrf.mxu0
      %3389 = vdwg.mxu0
      %v3390 = vadd.f32 %v3301, %v3382
      %v3391 = vadd.f32 %v3302, %v3387
      %3392 = vrot.lane.b32.xlu0 %v498, 32
      %v3393 = vpop.permute.xlu0 %3392
      %3394 = vrot.lane.b32.xlu0 %v502, 32
      %v3395 = vpop.permute.xlu0 %3394
      %3397 = vrot.lane.b32.xlu0 %v945, 32
      %v3398 = vpop.permute.xlu0 %3397
      %3399 = vrot.lane.b32.xlu0 %v1014, 32
      %v3400 = vpop.permute.xlu0 %3399
      %v3401 = vsel %vm1271, %v3398, %v3400
      %v3403 = vsel %vm1099, %v3393, 0
      %v3405 = vsel %vm1099, %v3395, 0
      %3407 = vmatprep.subr.mxu0 0.0
      %3408 = vmatpush1.msra.mxu0 0.0
      %3409 = vmatprep.subr.mxu0 0.0
      %3410 = vmatpush1.msra.mxu0 0.0
      %3411 = vmatprep.subr.mxu0 0.0
      %3412 = vmatpush1.msra.mxu0 0.0
      %3413 = vmatprep.subr.mxu0 0.0
      %3414 = vmatpush1.msra.mxu0 0.0
      %3415 = vmatprep.subr.mxu0 0.0
      %3416 = vmatpush1.msra.mxu0 0.0
      %3417 = vmatprep.subr.mxu0 0.0
      %3418 = vmatpush1.msra.mxu0 0.0
      %3419 = vmatprep.subr.mxu0 0.0
      %3420 = vmatpush1.msra.mxu0 0.0
      %3421 = vmatprep.subr.mxu0 0.0
      %3422 = vmatpush1.msra.mxu0 0.0
      %3423 = vmatprep.subr.mxu0 0.0
      %3424 = vmatpush1.msra.mxu0 0.0
      %3425 = vmatprep.subr.mxu0 0.0
      %3426 = vmatpush1.msra.mxu0 0.0
      %3427 = vmatprep.subr.mxu0 0.0
      %3428 = vmatpush1.msra.mxu0 0.0
      %3429 = vmatprep.subr.mxu0 0.0
      %3430 = vmatpush1.msra.mxu0 0.0
      %3431 = vmatprep.subr.mxu0 0.0
      %3432 = vmatpush1.msra.mxu0 0.0
      %3433 = vmatprep.subr.mxu0 0.0
      %3434 = vmatpush1.msra.mxu0 0.0
      %3435 = vmatprep.subr.mxu0 0.0
      %3436 = vmatpush1.msra.mxu0 0.0
      %3437 = vmatprep.subr.mxu0 0.0
      %3438 = vmatpush1.msra.mxu0 %v3401
      %3439 = vmatprep.subr.mxu0 0.0
      %3440 = vmatpush2.msra.mxu0 0.0
      %3441 = vmatprep.subr.mxu0 0.0
      %3442 = vmatpush2.msra.mxu0 0.0
      %3443 = vmatprep.subr.mxu0 0.0
      %3444 = vmatpush2.msra.mxu0 0.0
      %3445 = vmatprep.subr.mxu0 0.0
      %3446 = vmatpush2.msra.mxu0 0.0
      %3447 = vmatprep.subr.mxu0 0.0
      %3448 = vmatpush2.msra.mxu0 0.0
      %3449 = vmatprep.subr.mxu0 0.0
      %3450 = vmatpush2.msra.mxu0 0.0
      %3451 = vmatprep.subr.mxu0 0.0
      %3452 = vmatpush2.msra.mxu0 0.0
      %3453 = vmatprep.subr.mxu0 0.0
      %3454 = vmatpush2.msra.mxu0 0.0
      %3455 = vmatprep.subr.mxu0 0.0
      %3456 = vmatpush2.msra.mxu0 0.0
      %3457 = vmatprep.subr.mxu0 0.0
      %3458 = vmatpush2.msra.mxu0 0.0
      %3459 = vmatprep.subr.mxu0 0.0
      %3460 = vmatpush2.msra.mxu0 0.0
      %3461 = vmatprep.subr.mxu0 0.0
      %3462 = vmatpush2.msra.mxu0 0.0
      %3463 = vmatprep.subr.mxu0 0.0
      %3464 = vmatpush2.msra.mxu0 0.0
      %3465 = vmatprep.subr.mxu0 0.0
      %3466 = vmatpush2.msra.mxu0 0.0
      %3467 = vmatprep.subr.mxu0 0.0
      %3468 = vmatpush2.msra.mxu0 0.0
      %3469 = vmatprep.subr.mxu0 0.0
      %3470 = vmatpush2.msra.mxu0 0.0
      %3471 = vmatprep.mubr.f32.mxu0 0.0
      %3472 = vmatmul.mubr.f32.gmra.mxu0 %v3403
      %v3473 = vpop.f32.mrf.mxu0
      %v3474 = vadd.f32 0.0, %v3473
      %v3475 = vpop.f32.mrf.mxu0
      %3476 = vmatprep.mubr.f32.mxu0 0.0
      %3477 = vmatmul.mubr.f32.gmra.mxu0 %v3405
      %v3478 = vpop.f32.mrf.mxu0
      %v3479 = vadd.f32 0.0, %v3478
      %v3480 = vpop.f32.mrf.mxu0
      %3481 = vdwg.mxu0
      %v3482 = vadd.f32 %v3390, %v3474
      %v3483 = vadd.f32 %v3391, %v3479
      %3484 = vrot.lane.b32.xlu0 %v498, 24
      %v3485 = vpop.permute.xlu0 %3484
      %3486 = vrot.lane.b32.xlu0 %v502, 24
      %v3487 = vpop.permute.xlu0 %3486
      %3488 = vrot.lane.b32.xlu0 %v1014, 112
      %v3489 = vpop.permute.xlu0 %3488
      %v3491 = vsel %vm1099, %v3485, 0
      %v3493 = vsel %vm1099, %v3487, 0
      %3495 = vmatprep.subr.mxu0 0.0
      %3496 = vmatpush1.msra.mxu0 0.0
      %3497 = vmatprep.subr.mxu0 0.0
      %3498 = vmatpush1.msra.mxu0 0.0
      %3499 = vmatprep.subr.mxu0 0.0
      %3500 = vmatpush1.msra.mxu0 0.0
      %3501 = vmatprep.subr.mxu0 0.0
      %3502 = vmatpush1.msra.mxu0 0.0
      %3503 = vmatprep.subr.mxu0 0.0
      %3504 = vmatpush1.msra.mxu0 0.0
      %3505 = vmatprep.subr.mxu0 0.0
      %3506 = vmatpush1.msra.mxu0 0.0
      %3507 = vmatprep.subr.mxu0 0.0
      %3508 = vmatpush1.msra.mxu0 0.0
      %3509 = vmatprep.subr.mxu0 0.0
      %3510 = vmatpush1.msra.mxu0 0.0
      %3511 = vmatprep.subr.mxu0 0.0
      %3512 = vmatpush1.msra.mxu0 0.0
      %3513 = vmatprep.subr.mxu0 0.0
      %3514 = vmatpush1.msra.mxu0 0.0
      %3515 = vmatprep.subr.mxu0 0.0
      %3516 = vmatpush1.msra.mxu0 0.0
      %3517 = vmatprep.subr.mxu0 0.0
      %3518 = vmatpush1.msra.mxu0 0.0
      %3519 = vmatprep.subr.mxu0 0.0
      %3520 = vmatpush1.msra.mxu0 0.0
      %3521 = vmatprep.subr.mxu0 0.0
      %3522 = vmatpush1.msra.mxu0 0.0
      %3523 = vmatprep.subr.mxu0 0.0
      %3524 = vmatpush1.msra.mxu0 0.0
      %3525 = vmatprep.subr.mxu0 0.0
      %3526 = vmatpush1.msra.mxu0 %v3489
      %3527 = vmatprep.subr.mxu0 0.0
      %3528 = vmatpush2.msra.mxu0 0.0
      %3529 = vmatprep.subr.mxu0 0.0
      %3530 = vmatpush2.msra.mxu0 0.0
      %3531 = vmatprep.subr.mxu0 0.0
      %3532 = vmatpush2.msra.mxu0 0.0
      %3533 = vmatprep.subr.mxu0 0.0
      %3534 = vmatpush2.msra.mxu0 0.0
      %3535 = vmatprep.subr.mxu0 0.0
      %3536 = vmatpush2.msra.mxu0 0.0
      %3537 = vmatprep.subr.mxu0 0.0
      %3538 = vmatpush2.msra.mxu0 0.0
      %3539 = vmatprep.subr.mxu0 0.0
      %3540 = vmatpush2.msra.mxu0 0.0
      %3541 = vmatprep.subr.mxu0 0.0
      %3542 = vmatpush2.msra.mxu0 0.0
      %3543 = vmatprep.subr.mxu0 0.0
      %3544 = vmatpush2.msra.mxu0 0.0
      %3545 = vmatprep.subr.mxu0 0.0
      %3546 = vmatpush2.msra.mxu0 0.0
      %3547 = vmatprep.subr.mxu0 0.0
      %3548 = vmatpush2.msra.mxu0 0.0
      %3549 = vmatprep.subr.mxu0 0.0
      %3550 = vmatpush2.msra.mxu0 0.0
      %3551 = vmatprep.subr.mxu0 0.0
      %3552 = vmatpush2.msra.mxu0 0.0
      %3553 = vmatprep.subr.mxu0 0.0
      %3554 = vmatpush2.msra.mxu0 0.0
      %3555 = vmatprep.subr.mxu0 0.0
      %3556 = vmatpush2.msra.mxu0 0.0
      %3557 = vmatprep.subr.mxu0 0.0
      %3558 = vmatpush2.msra.mxu0 0.0
      %3559 = vmatprep.mubr.f32.mxu0 0.0
      %3560 = vmatmul.mubr.f32.gmra.mxu0 %v3491
      %v3561 = vpop.f32.mrf.mxu0
      %v3562 = vadd.f32 0.0, %v3561
      %v3563 = vpop.f32.mrf.mxu0
      %3564 = vmatprep.mubr.f32.mxu0 0.0
      %3565 = vmatmul.mubr.f32.gmra.mxu0 %v3493
      %v3566 = vpop.f32.mrf.mxu0
      %v3567 = vadd.f32 0.0, %v3566
      %v3568 = vpop.f32.mrf.mxu0
      %3569 = vdwg.mxu0
      %v3570 = vadd.f32 %v3482, %v3562
      %v3571 = vadd.f32 %v3483, %v3567
      %3572 = vrot.lane.b32.xlu0 %v498, 16
      %v3573 = vpop.permute.xlu0 %3572
      %3574 = vrot.lane.b32.xlu0 %v502, 16
      %v3575 = vpop.permute.xlu0 %3574
      %3576 = vrot.lane.b32.xlu0 %v1014, 64
      %v3577 = vpop.permute.xlu0 %3576
      %v3579 = vsel %vm1099, %v3573, 0
      %v3581 = vsel %vm1099, %v3575, 0
      %3583 = vmatprep.subr.mxu0 0.0
      %3584 = vmatpush1.msra.mxu0 0.0
      %3585 = vmatprep.subr.mxu0 0.0
      %3586 = vmatpush1.msra.mxu0 0.0
      %3587 = vmatprep.subr.mxu0 0.0
      %3588 = vmatpush1.msra.mxu0 0.0
      %3589 = vmatprep.subr.mxu0 0.0
      %3590 = vmatpush1.msra.mxu0 0.0
      %3591 = vmatprep.subr.mxu0 0.0
      %3592 = vmatpush1.msra.mxu0 0.0
      %3593 = vmatprep.subr.mxu0 0.0
      %3594 = vmatpush1.msra.mxu0 0.0
      %3595 = vmatprep.subr.mxu0 0.0
      %3596 = vmatpush1.msra.mxu0 0.0
      %3597 = vmatprep.subr.mxu0 0.0
      %3598 = vmatpush1.msra.mxu0 0.0
      %3599 = vmatprep.subr.mxu0 0.0
      %3600 = vmatpush1.msra.mxu0 0.0
      %3601 = vmatprep.subr.mxu0 0.0
      %3602 = vmatpush1.msra.mxu0 0.0
      %3603 = vmatprep.subr.mxu0 0.0
      %3604 = vmatpush1.msra.mxu0 0.0
      %3605 = vmatprep.subr.mxu0 0.0
      %3606 = vmatpush1.msra.mxu0 0.0
      %3607 = vmatprep.subr.mxu0 0.0
      %3608 = vmatpush1.msra.mxu0 0.0
      %3609 = vmatprep.subr.mxu0 0.0
      %3610 = vmatpush1.msra.mxu0 0.0
      %3611 = vmatprep.subr.mxu0 0.0
      %3612 = vmatpush1.msra.mxu0 0.0
      %3613 = vmatprep.subr.mxu0 0.0
      %3614 = vmatpush1.msra.mxu0 %v3577
      %3615 = vmatprep.subr.mxu0 0.0
      %3616 = vmatpush2.msra.mxu0 0.0
      %3617 = vmatprep.subr.mxu0 0.0
      %3618 = vmatpush2.msra.mxu0 0.0
      %3619 = vmatprep.subr.mxu0 0.0
      %3620 = vmatpush2.msra.mxu0 0.0
      %3621 = vmatprep.subr.mxu0 0.0
      %3622 = vmatpush2.msra.mxu0 0.0
      %3623 = vmatprep.subr.mxu0 0.0
      %3624 = vmatpush2.msra.mxu0 0.0
      %3625 = vmatprep.subr.mxu0 0.0
      %3626 = vmatpush2.msra.mxu0 0.0
      %3627 = vmatprep.subr.mxu0 0.0
      %3628 = vmatpush2.msra.mxu0 0.0
      %3629 = vmatprep.subr.mxu0 0.0
      %3630 = vmatpush2.msra.mxu0 0.0
      %3631 = vmatprep.subr.mxu0 0.0
      %3632 = vmatpush2.msra.mxu0 0.0
      %3633 = vmatprep.subr.mxu0 0.0
      %3634 = vmatpush2.msra.mxu0 0.0
      %3635 = vmatprep.subr.mxu0 0.0
      %3636 = vmatpush2.msra.mxu0 0.0
      %3637 = vmatprep.subr.mxu0 0.0
      %3638 = vmatpush2.msra.mxu0 0.0
      %3639 = vmatprep.subr.mxu0 0.0
      %3640 = vmatpush2.msra.mxu0 0.0
      %3641 = vmatprep.subr.mxu0 0.0
      %3642 = vmatpush2.msra.mxu0 0.0
      %3643 = vmatprep.subr.mxu0 0.0
      %3644 = vmatpush2.msra.mxu0 0.0
      %3645 = vmatprep.subr.mxu0 0.0
      %3646 = vmatpush2.msra.mxu0 0.0
      %3647 = vmatprep.mubr.f32.mxu0 0.0
      %3648 = vmatmul.mubr.f32.gmra.mxu0 %v3579
      %v3649 = vpop.f32.mrf.mxu0
      %v3650 = vadd.f32 0.0, %v3649
      %v3651 = vpop.f32.mrf.mxu0
      %3652 = vmatprep.mubr.f32.mxu0 0.0
      %3653 = vmatmul.mubr.f32.gmra.mxu0 %v3581
      %v3654 = vpop.f32.mrf.mxu0
      %v3655 = vadd.f32 0.0, %v3654
      %v3656 = vpop.f32.mrf.mxu0
      %3657 = vdwg.mxu0
      %v3658 = vadd.f32 %v3570, %v3650
      %v3659 = vadd.f32 %v3571, %v3655
      %3660 = vrot.lane.b32.xlu0 %v498, 8
      %v3661 = vpop.permute.xlu0 %3660
      %3662 = vrot.lane.b32.xlu0 %v502, 8
      %v3663 = vpop.permute.xlu0 %3662
      %3665 = vrot.lane.b32.xlu0 %v1014, 16
      %v3666 = vpop.permute.xlu0 %3665
      %3667 = vrot.lane.b32.xlu0 %v1016, 16
      %v3668 = vpop.permute.xlu0 %3667
      %v3669 = vsel %vm1540, %v3666, %v3668
      %v3671 = vsel %vm1099, %v3661, 0
      %v3673 = vsel %vm1099, %v3663, 0
      %3675 = vmatprep.subr.mxu0 0.0
      %3676 = vmatpush1.msra.mxu0 0.0
      %3677 = vmatprep.subr.mxu0 0.0
      %3678 = vmatpush1.msra.mxu0 0.0
      %3679 = vmatprep.subr.mxu0 0.0
      %3680 = vmatpush1.msra.mxu0 0.0
      %3681 = vmatprep.subr.mxu0 0.0
      %3682 = vmatpush1.msra.mxu0 0.0
      %3683 = vmatprep.subr.mxu0 0.0
      %3684 = vmatpush1.msra.mxu0 0.0
      %3685 = vmatprep.subr.mxu0 0.0
      %3686 = vmatpush1.msra.mxu0 0.0
      %3687 = vmatprep.subr.mxu0 0.0
      %3688 = vmatpush1.msra.mxu0 0.0
      %3689 = vmatprep.subr.mxu0 0.0
      %3690 = vmatpush1.msra.mxu0 0.0
      %3691 = vmatprep.subr.mxu0 0.0
      %3692 = vmatpush1.msra.mxu0 0.0
      %3693 = vmatprep.subr.mxu0 0.0
      %3694 = vmatpush1.msra.mxu0 0.0
      %3695 = vmatprep.subr.mxu0 0.0
      %3696 = vmatpush1.msra.mxu0 0.0
      %3697 = vmatprep.subr.mxu0 0.0
      %3698 = vmatpush1.msra.mxu0 0.0
      %3699 = vmatprep.subr.mxu0 0.0
      %3700 = vmatpush1.msra.mxu0 0.0
      %3701 = vmatprep.subr.mxu0 0.0
      %3702 = vmatpush1.msra.mxu0 0.0
      %3703 = vmatprep.subr.mxu0 0.0
      %3704 = vmatpush1.msra.mxu0 0.0
      %3705 = vmatprep.subr.mxu0 0.0
      %3706 = vmatpush1.msra.mxu0 %v3669
      %3707 = vmatprep.subr.mxu0 0.0
      %3708 = vmatpush2.msra.mxu0 0.0
      %3709 = vmatprep.subr.mxu0 0.0
      %3710 = vmatpush2.msra.mxu0 0.0
      %3711 = vmatprep.subr.mxu0 0.0
      %3712 = vmatpush2.msra.mxu0 0.0
      %3713 = vmatprep.subr.mxu0 0.0
      %3714 = vmatpush2.msra.mxu0 0.0
      %3715 = vmatprep.subr.mxu0 0.0
      %3716 = vmatpush2.msra.mxu0 0.0
      %3717 = vmatprep.subr.mxu0 0.0
      %3718 = vmatpush2.msra.mxu0 0.0
      %3719 = vmatprep.subr.mxu0 0.0
      %3720 = vmatpush2.msra.mxu0 0.0
      %3721 = vmatprep.subr.mxu0 0.0
      %3722 = vmatpush2.msra.mxu0 0.0
      %3723 = vmatprep.subr.mxu0 0.0
      %3724 = vmatpush2.msra.mxu0 0.0
      %3725 = vmatprep.subr.mxu0 0.0
      %3726 = vmatpush2.msra.mxu0 0.0
      %3727 = vmatprep.subr.mxu0 0.0
      %3728 = vmatpush2.msra.mxu0 0.0
      %3729 = vmatprep.subr.mxu0 0.0
      %3730 = vmatpush2.msra.mxu0 0.0
      %3731 = vmatprep.subr.mxu0 0.0
      %3732 = vmatpush2.msra.mxu0 0.0
      %3733 = vmatprep.subr.mxu0 0.0
      %3734 = vmatpush2.msra.mxu0 0.0
      %3735 = vmatprep.subr.mxu0 0.0
      %3736 = vmatpush2.msra.mxu0 0.0
      %3737 = vmatprep.subr.mxu0 0.0
      %3738 = vmatpush2.msra.mxu0 0.0
      %3739 = vmatprep.mubr.f32.mxu0 0.0
      %3740 = vmatmul.mubr.f32.gmra.mxu0 %v3671
      %v3741 = vpop.f32.mrf.mxu0
      %v3742 = vadd.f32 0.0, %v3741
      %v3743 = vpop.f32.mrf.mxu0
      %3744 = vmatprep.mubr.f32.mxu0 0.0
      %3745 = vmatmul.mubr.f32.gmra.mxu0 %v3673
      %v3746 = vpop.f32.mrf.mxu0
      %v3747 = vadd.f32 0.0, %v3746
      %v3748 = vpop.f32.mrf.mxu0
      %3749 = vdwg.mxu0
      %v3750 = vadd.f32 %v3658, %v3742
      %v3751 = vadd.f32 %v3659, %v3747
      %3752 = vrot.lane.b32.xlu0 %v1016, 96
      %v3753 = vpop.permute.xlu0 %3752
      %v3756 = vsel %vm1099, %v499, 0
      %v3759 = vsel %vm1099, %v503, 0
      %3761 = vmatprep.subr.mxu0 0.0
      %3762 = vmatpush1.msra.mxu0 0.0
      %3763 = vmatprep.subr.mxu0 0.0
      %3764 = vmatpush1.msra.mxu0 0.0
      %3765 = vmatprep.subr.mxu0 0.0
      %3766 = vmatpush1.msra.mxu0 0.0
      %3767 = vmatprep.subr.mxu0 0.0
      %3768 = vmatpush1.msra.mxu0 0.0
      %3769 = vmatprep.subr.mxu0 0.0
      %3770 = vmatpush1.msra.mxu0 0.0
      %3771 = vmatprep.subr.mxu0 0.0
      %3772 = vmatpush1.msra.mxu0 0.0
      %3773 = vmatprep.subr.mxu0 0.0
      %3774 = vmatpush1.msra.mxu0 0.0
      %3775 = vmatprep.subr.mxu0 0.0
      %3776 = vmatpush1.msra.mxu0 0.0
      %3777 = vmatprep.subr.mxu0 0.0
      %3778 = vmatpush1.msra.mxu0 0.0
      %3779 = vmatprep.subr.mxu0 0.0
      %3780 = vmatpush1.msra.mxu0 0.0
      %3781 = vmatprep.subr.mxu0 0.0
      %3782 = vmatpush1.msra.mxu0 0.0
      %3783 = vmatprep.subr.mxu0 0.0
      %3784 = vmatpush1.msra.mxu0 0.0
      %3785 = vmatprep.subr.mxu0 0.0
      %3786 = vmatpush1.msra.mxu0 0.0
      %3787 = vmatprep.subr.mxu0 0.0
      %3788 = vmatpush1.msra.mxu0 0.0
      %3789 = vmatprep.subr.mxu0 0.0
      %3790 = vmatpush1.msra.mxu0 0.0
      %3791 = vmatprep.subr.mxu0 0.0
      %3792 = vmatpush1.msra.mxu0 %v3753
      %3793 = vmatprep.subr.mxu0 0.0
      %3794 = vmatpush2.msra.mxu0 0.0
      %3795 = vmatprep.subr.mxu0 0.0
      %3796 = vmatpush2.msra.mxu0 0.0
      %3797 = vmatprep.subr.mxu0 0.0
      %3798 = vmatpush2.msra.mxu0 0.0
      %3799 = vmatprep.subr.mxu0 0.0
      %3800 = vmatpush2.msra.mxu0 0.0
      %3801 = vmatprep.subr.mxu0 0.0
      %3802 = vmatpush2.msra.mxu0 0.0
      %3803 = vmatprep.subr.mxu0 0.0
      %3804 = vmatpush2.msra.mxu0 0.0
      %3805 = vmatprep.subr.mxu0 0.0
      %3806 = vmatpush2.msra.mxu0 0.0
      %3807 = vmatprep.subr.mxu0 0.0
      %3808 = vmatpush2.msra.mxu0 0.0
      %3809 = vmatprep.subr.mxu0 0.0
      %3810 = vmatpush2.msra.mxu0 0.0
      %3811 = vmatprep.subr.mxu0 0.0
      %3812 = vmatpush2.msra.mxu0 0.0
      %3813 = vmatprep.subr.mxu0 0.0
      %3814 = vmatpush2.msra.mxu0 0.0
      %3815 = vmatprep.subr.mxu0 0.0
      %3816 = vmatpush2.msra.mxu0 0.0
      %3817 = vmatprep.subr.mxu0 0.0
      %3818 = vmatpush2.msra.mxu0 0.0
      %3819 = vmatprep.subr.mxu0 0.0
      %3820 = vmatpush2.msra.mxu0 0.0
      %3821 = vmatprep.subr.mxu0 0.0
      %3822 = vmatpush2.msra.mxu0 0.0
      %3823 = vmatprep.subr.mxu0 0.0
      %3824 = vmatpush2.msra.mxu0 0.0
      %3825 = vmatprep.mubr.f32.mxu0 0.0
      %3826 = vmatmul.mubr.f32.gmra.mxu0 %v3756
      %v3827 = vpop.f32.mrf.mxu0
      %v3828 = vadd.f32 0.0, %v3827
      %v3829 = vpop.f32.mrf.mxu0
      %3830 = vmatprep.mubr.f32.mxu0 0.0
      %3831 = vmatmul.mubr.f32.gmra.mxu0 %v3759
      %v3832 = vpop.f32.mrf.mxu0
      %v3833 = vadd.f32 0.0, %v3832
      %v3834 = vpop.f32.mrf.mxu0
      %3835 = vdwg.mxu0
      %v3836 = vadd.f32 %v3750, %v3828
      %v3837 = vadd.f32 %v3751, %v3833
      %3838 = vrot.lane.b32.xlu0 %v499, 120
      %v3839 = vpop.permute.xlu0 %3838
      %3840 = vrot.lane.b32.xlu0 %v503, 120
      %v3841 = vpop.permute.xlu0 %3840
      %3842 = vrot.lane.b32.xlu0 %v1016, 48
      %v3843 = vpop.permute.xlu0 %3842
      %v3845 = vsel %vm1099, %v3839, 0
      %v3847 = vsel %vm1099, %v3841, 0
      %3849 = vmatprep.subr.mxu0 0.0
      %3850 = vmatpush1.msra.mxu0 0.0
      %3851 = vmatprep.subr.mxu0 0.0
      %3852 = vmatpush1.msra.mxu0 0.0
      %3853 = vmatprep.subr.mxu0 0.0
      %3854 = vmatpush1.msra.mxu0 0.0
      %3855 = vmatprep.subr.mxu0 0.0
      %3856 = vmatpush1.msra.mxu0 0.0
      %3857 = vmatprep.subr.mxu0 0.0
      %3858 = vmatpush1.msra.mxu0 0.0
      %3859 = vmatprep.subr.mxu0 0.0
      %3860 = vmatpush1.msra.mxu0 0.0
      %3861 = vmatprep.subr.mxu0 0.0
      %3862 = vmatpush1.msra.mxu0 0.0
      %3863 = vmatprep.subr.mxu0 0.0
      %3864 = vmatpush1.msra.mxu0 0.0
      %3865 = vmatprep.subr.mxu0 0.0
      %3866 = vmatpush1.msra.mxu0 0.0
      %3867 = vmatprep.subr.mxu0 0.0
      %3868 = vmatpush1.msra.mxu0 0.0
      %3869 = vmatprep.subr.mxu0 0.0
      %3870 = vmatpush1.msra.mxu0 0.0
      %3871 = vmatprep.subr.mxu0 0.0
      %3872 = vmatpush1.msra.mxu0 0.0
      %3873 = vmatprep.subr.mxu0 0.0
      %3874 = vmatpush1.msra.mxu0 0.0
      %3875 = vmatprep.subr.mxu0 0.0
      %3876 = vmatpush1.msra.mxu0 0.0
      %3877 = vmatprep.subr.mxu0 0.0
      %3878 = vmatpush1.msra.mxu0 0.0
      %3879 = vmatprep.subr.mxu0 0.0
      %3880 = vmatpush1.msra.mxu0 %v3843
      %3881 = vmatprep.subr.mxu0 0.0
      %3882 = vmatpush2.msra.mxu0 0.0
      %3883 = vmatprep.subr.mxu0 0.0
      %3884 = vmatpush2.msra.mxu0 0.0
      %3885 = vmatprep.subr.mxu0 0.0
      %3886 = vmatpush2.msra.mxu0 0.0
      %3887 = vmatprep.subr.mxu0 0.0
      %3888 = vmatpush2.msra.mxu0 0.0
      %3889 = vmatprep.subr.mxu0 0.0
      %3890 = vmatpush2.msra.mxu0 0.0
      %3891 = vmatprep.subr.mxu0 0.0
      %3892 = vmatpush2.msra.mxu0 0.0
      %3893 = vmatprep.subr.mxu0 0.0
      %3894 = vmatpush2.msra.mxu0 0.0
      %3895 = vmatprep.subr.mxu0 0.0
      %3896 = vmatpush2.msra.mxu0 0.0
      %3897 = vmatprep.subr.mxu0 0.0
      %3898 = vmatpush2.msra.mxu0 0.0
      %3899 = vmatprep.subr.mxu0 0.0
      %3900 = vmatpush2.msra.mxu0 0.0
      %3901 = vmatprep.subr.mxu0 0.0
      %3902 = vmatpush2.msra.mxu0 0.0
      %3903 = vmatprep.subr.mxu0 0.0
      %3904 = vmatpush2.msra.mxu0 0.0
      %3905 = vmatprep.subr.mxu0 0.0
      %3906 = vmatpush2.msra.mxu0 0.0
      %3907 = vmatprep.subr.mxu0 0.0
      %3908 = vmatpush2.msra.mxu0 0.0
      %3909 = vmatprep.subr.mxu0 0.0
      %3910 = vmatpush2.msra.mxu0 0.0
      %3911 = vmatprep.subr.mxu0 0.0
      %3912 = vmatpush2.msra.mxu0 0.0
      %3913 = vmatprep.mubr.f32.mxu0 0.0
      %3914 = vmatmul.mubr.f32.gmra.mxu0 %v3845
      %v3915 = vpop.f32.mrf.mxu0
      %v3916 = vadd.f32 0.0, %v3915
      %v3917 = vpop.f32.mrf.mxu0
      %3918 = vmatprep.mubr.f32.mxu0 0.0
      %3919 = vmatmul.mubr.f32.gmra.mxu0 %v3847
      %v3920 = vpop.f32.mrf.mxu0
      %v3921 = vadd.f32 0.0, %v3920
      %v3922 = vpop.f32.mrf.mxu0
      %3923 = vdwg.mxu0
      %v3924 = vadd.f32 %v3836, %v3916
      %v3925 = vadd.f32 %v3837, %v3921
      %3926 = vrot.lane.b32.xlu0 %v499, 112
      %v3927 = vpop.permute.xlu0 %3926
      %3928 = vrot.lane.b32.xlu0 %v503, 112
      %v3929 = vpop.permute.xlu0 %3928
      %v3930 = vsel %vm1099, %v3927, 0
      %v3932 = vsel %vm1099, %v3929, 0
      %3934 = vmatprep.subr.mxu0 0.0
      %3935 = vmatpush1.msra.mxu0 0.0
      %3936 = vmatprep.subr.mxu0 0.0
      %3937 = vmatpush1.msra.mxu0 0.0
      %3938 = vmatprep.subr.mxu0 0.0
      %3939 = vmatpush1.msra.mxu0 0.0
      %3940 = vmatprep.subr.mxu0 0.0
      %3941 = vmatpush1.msra.mxu0 0.0
      %3942 = vmatprep.subr.mxu0 0.0
      %3943 = vmatpush1.msra.mxu0 0.0
      %3944 = vmatprep.subr.mxu0 0.0
      %3945 = vmatpush1.msra.mxu0 0.0
      %3946 = vmatprep.subr.mxu0 0.0
      %3947 = vmatpush1.msra.mxu0 0.0
      %3948 = vmatprep.subr.mxu0 0.0
      %3949 = vmatpush1.msra.mxu0 0.0
      %3950 = vmatprep.subr.mxu0 0.0
      %3951 = vmatpush1.msra.mxu0 0.0
      %3952 = vmatprep.subr.mxu0 0.0
      %3953 = vmatpush1.msra.mxu0 0.0
      %3954 = vmatprep.subr.mxu0 0.0
      %3955 = vmatpush1.msra.mxu0 0.0
      %3956 = vmatprep.subr.mxu0 0.0
      %3957 = vmatpush1.msra.mxu0 0.0
      %3958 = vmatprep.subr.mxu0 0.0
      %3959 = vmatpush1.msra.mxu0 0.0
      %3960 = vmatprep.subr.mxu0 0.0
      %3961 = vmatpush1.msra.mxu0 0.0
      %3962 = vmatprep.subr.mxu0 0.0
      %3963 = vmatpush1.msra.mxu0 0.0
      %3964 = vmatprep.subr.mxu0 0.0
      %3965 = vmatpush1.msra.mxu0 %v1085
      %3966 = vmatprep.subr.mxu0 0.0
      %3967 = vmatpush2.msra.mxu0 0.0
      %3968 = vmatprep.subr.mxu0 0.0
      %3969 = vmatpush2.msra.mxu0 0.0
      %3970 = vmatprep.subr.mxu0 0.0
      %3971 = vmatpush2.msra.mxu0 0.0
      %3972 = vmatprep.subr.mxu0 0.0
      %3973 = vmatpush2.msra.mxu0 0.0
      %3974 = vmatprep.subr.mxu0 0.0
      %3975 = vmatpush2.msra.mxu0 0.0
      %3976 = vmatprep.subr.mxu0 0.0
      %3977 = vmatpush2.msra.mxu0 0.0
      %3978 = vmatprep.subr.mxu0 0.0
      %3979 = vmatpush2.msra.mxu0 0.0
      %3980 = vmatprep.subr.mxu0 0.0
      %3981 = vmatpush2.msra.mxu0 0.0
      %3982 = vmatprep.subr.mxu0 0.0
      %3983 = vmatpush2.msra.mxu0 0.0
      %3984 = vmatprep.subr.mxu0 0.0
      %3985 = vmatpush2.msra.mxu0 0.0
      %3986 = vmatprep.subr.mxu0 0.0
      %3987 = vmatpush2.msra.mxu0 0.0
      %3988 = vmatprep.subr.mxu0 0.0
      %3989 = vmatpush2.msra.mxu0 0.0
      %3990 = vmatprep.subr.mxu0 0.0
      %3991 = vmatpush2.msra.mxu0 0.0
      %3992 = vmatprep.subr.mxu0 0.0
      %3993 = vmatpush2.msra.mxu0 0.0
      %3994 = vmatprep.subr.mxu0 0.0
      %3995 = vmatpush2.msra.mxu0 0.0
      %3996 = vmatprep.subr.mxu0 0.0
      %3997 = vmatpush2.msra.mxu0 0.0
      %3998 = vmatprep.mubr.f32.mxu0 0.0
      %3999 = vmatmul.mubr.f32.gmra.mxu0 %v3930
      %v4000 = vpop.f32.mrf.mxu0
      %v4001 = vadd.f32 0.0, %v4000
      %v4002 = vpop.f32.mrf.mxu0
      %4003 = vmatprep.mubr.f32.mxu0 0.0
      %4004 = vmatmul.mubr.f32.gmra.mxu0 %v3932
      %v4005 = vpop.f32.mrf.mxu0
      %v4006 = vadd.f32 0.0, %v4005
      %v4007 = vpop.f32.mrf.mxu0
      %4008 = vdwg.mxu0
      %v4009 = vadd.f32 %v3924, %v4001
      %v4010 = vadd.f32 %v3925, %v4006
      %4011 = vrot.lane.b32.xlu0 %v499, 104
      %v4012 = vpop.permute.xlu0 %4011
      %4013 = vrot.lane.b32.xlu0 %v503, 104
      %v4014 = vpop.permute.xlu0 %4013
      %4016 = vrot.lane.b32.xlu0 %v1085, 80
      %v4017 = vpop.permute.xlu0 %4016
      %v4019 = vsel %vm1099, %v4012, 0
      %v4021 = vsel %vm1099, %v4014, 0
      %4023 = vmatprep.subr.mxu0 0.0
      %4024 = vmatpush1.msra.mxu0 0.0
      %4025 = vmatprep.subr.mxu0 0.0
      %4026 = vmatpush1.msra.mxu0 0.0
      %4027 = vmatprep.subr.mxu0 0.0
      %4028 = vmatpush1.msra.mxu0 0.0
      %4029 = vmatprep.subr.mxu0 0.0
      %4030 = vmatpush1.msra.mxu0 0.0
      %4031 = vmatprep.subr.mxu0 0.0
      %4032 = vmatpush1.msra.mxu0 0.0
      %4033 = vmatprep.subr.mxu0 0.0
      %4034 = vmatpush1.msra.mxu0 0.0
      %4035 = vmatprep.subr.mxu0 0.0
      %4036 = vmatpush1.msra.mxu0 0.0
      %4037 = vmatprep.subr.mxu0 0.0
      %4038 = vmatpush1.msra.mxu0 0.0
      %4039 = vmatprep.subr.mxu0 0.0
      %4040 = vmatpush1.msra.mxu0 0.0
      %4041 = vmatprep.subr.mxu0 0.0
      %4042 = vmatpush1.msra.mxu0 0.0
      %4043 = vmatprep.subr.mxu0 0.0
      %4044 = vmatpush1.msra.mxu0 0.0
      %4045 = vmatprep.subr.mxu0 0.0
      %4046 = vmatpush1.msra.mxu0 0.0
      %4047 = vmatprep.subr.mxu0 0.0
      %4048 = vmatpush1.msra.mxu0 0.0
      %4049 = vmatprep.subr.mxu0 0.0
      %4050 = vmatpush1.msra.mxu0 0.0
      %4051 = vmatprep.subr.mxu0 0.0
      %4052 = vmatpush1.msra.mxu0 0.0
      %4053 = vmatprep.subr.mxu0 0.0
      %4054 = vmatpush1.msra.mxu0 %v4017
      %4055 = vmatprep.subr.mxu0 0.0
      %4056 = vmatpush2.msra.mxu0 0.0
      %4057 = vmatprep.subr.mxu0 0.0
      %4058 = vmatpush2.msra.mxu0 0.0
      %4059 = vmatprep.subr.mxu0 0.0
      %4060 = vmatpush2.msra.mxu0 0.0
      %4061 = vmatprep.subr.mxu0 0.0
      %4062 = vmatpush2.msra.mxu0 0.0
      %4063 = vmatprep.subr.mxu0 0.0
      %4064 = vmatpush2.msra.mxu0 0.0
      %4065 = vmatprep.subr.mxu0 0.0
      %4066 = vmatpush2.msra.mxu0 0.0
      %4067 = vmatprep.subr.mxu0 0.0
      %4068 = vmatpush2.msra.mxu0 0.0
      %4069 = vmatprep.subr.mxu0 0.0
      %4070 = vmatpush2.msra.mxu0 0.0
      %4071 = vmatprep.subr.mxu0 0.0
      %4072 = vmatpush2.msra.mxu0 0.0
      %4073 = vmatprep.subr.mxu0 0.0
      %4074 = vmatpush2.msra.mxu0 0.0
      %4075 = vmatprep.subr.mxu0 0.0
      %4076 = vmatpush2.msra.mxu0 0.0
      %4077 = vmatprep.subr.mxu0 0.0
      %4078 = vmatpush2.msra.mxu0 0.0
      %4079 = vmatprep.subr.mxu0 0.0
      %4080 = vmatpush2.msra.mxu0 0.0
      %4081 = vmatprep.subr.mxu0 0.0
      %4082 = vmatpush2.msra.mxu0 0.0
      %4083 = vmatprep.subr.mxu0 0.0
      %4084 = vmatpush2.msra.mxu0 0.0
      %4085 = vmatprep.subr.mxu0 0.0
      %4086 = vmatpush2.msra.mxu0 0.0
      %4087 = vmatprep.mubr.f32.mxu0 0.0
      %4088 = vmatmul.mubr.f32.gmra.mxu0 %v4019
      %v4089 = vpop.f32.mrf.mxu0
      %v4090 = vadd.f32 0.0, %v4089
      %v4091 = vpop.f32.mrf.mxu0
      %4092 = vmatprep.mubr.f32.mxu0 0.0
      %4093 = vmatmul.mubr.f32.gmra.mxu0 %v4021
      %v4094 = vpop.f32.mrf.mxu0
      %v4095 = vadd.f32 0.0, %v4094
      %v4096 = vpop.f32.mrf.mxu0
      %4097 = vdwg.mxu0
      %v4098 = vadd.f32 %v4009, %v4090
      %v4099 = vadd.f32 %v4010, %v4095
      %4100 = vrot.lane.b32.xlu0 %v499, 96
      %v4101 = vpop.permute.xlu0 %4100
      %4102 = vrot.lane.b32.xlu0 %v503, 96
      %v4103 = vpop.permute.xlu0 %4102
      %4105 = vrot.lane.b32.xlu0 %v1085, 32
      %v4106 = vpop.permute.xlu0 %4105
      %4107 = vrot.lane.b32.xlu0 %v1087, 32
      %v4108 = vpop.permute.xlu0 %4107
      %v4109 = vsel %vm1271, %v4106, %v4108
      %v4111 = vsel %vm1099, %v4101, 0
      %v4113 = vsel %vm1099, %v4103, 0
      %4115 = vmatprep.subr.mxu0 0.0
      %4116 = vmatpush1.msra.mxu0 0.0
      %4117 = vmatprep.subr.mxu0 0.0
      %4118 = vmatpush1.msra.mxu0 0.0
      %4119 = vmatprep.subr.mxu0 0.0
      %4120 = vmatpush1.msra.mxu0 0.0
      %4121 = vmatprep.subr.mxu0 0.0
      %4122 = vmatpush1.msra.mxu0 0.0
      %4123 = vmatprep.subr.mxu0 0.0
      %4124 = vmatpush1.msra.mxu0 0.0
      %4125 = vmatprep.subr.mxu0 0.0
      %4126 = vmatpush1.msra.mxu0 0.0
      %4127 = vmatprep.subr.mxu0 0.0
      %4128 = vmatpush1.msra.mxu0 0.0
      %4129 = vmatprep.subr.mxu0 0.0
      %4130 = vmatpush1.msra.mxu0 0.0
      %4131 = vmatprep.subr.mxu0 0.0
      %4132 = vmatpush1.msra.mxu0 0.0
      %4133 = vmatprep.subr.mxu0 0.0
      %4134 = vmatpush1.msra.mxu0 0.0
      %4135 = vmatprep.subr.mxu0 0.0
      %4136 = vmatpush1.msra.mxu0 0.0
      %4137 = vmatprep.subr.mxu0 0.0
      %4138 = vmatpush1.msra.mxu0 0.0
      %4139 = vmatprep.subr.mxu0 0.0
      %4140 = vmatpush1.msra.mxu0 0.0
      %4141 = vmatprep.subr.mxu0 0.0
      %4142 = vmatpush1.msra.mxu0 0.0
      %4143 = vmatprep.subr.mxu0 0.0
      %4144 = vmatpush1.msra.mxu0 0.0
      %4145 = vmatprep.subr.mxu0 0.0
      %4146 = vmatpush1.msra.mxu0 %v4109
      %4147 = vmatprep.subr.mxu0 0.0
      %4148 = vmatpush2.msra.mxu0 0.0
      %4149 = vmatprep.subr.mxu0 0.0
      %4150 = vmatpush2.msra.mxu0 0.0
      %4151 = vmatprep.subr.mxu0 0.0
      %4152 = vmatpush2.msra.mxu0 0.0
      %4153 = vmatprep.subr.mxu0 0.0
      %4154 = vmatpush2.msra.mxu0 0.0
      %4155 = vmatprep.subr.mxu0 0.0
      %4156 = vmatpush2.msra.mxu0 0.0
      %4157 = vmatprep.subr.mxu0 0.0
      %4158 = vmatpush2.msra.mxu0 0.0
      %4159 = vmatprep.subr.mxu0 0.0
      %4160 = vmatpush2.msra.mxu0 0.0
      %4161 = vmatprep.subr.mxu0 0.0
      %4162 = vmatpush2.msra.mxu0 0.0
      %4163 = vmatprep.subr.mxu0 0.0
      %4164 = vmatpush2.msra.mxu0 0.0
      %4165 = vmatprep.subr.mxu0 0.0
      %4166 = vmatpush2.msra.mxu0 0.0
      %4167 = vmatprep.subr.mxu0 0.0
      %4168 = vmatpush2.msra.mxu0 0.0
      %4169 = vmatprep.subr.mxu0 0.0
      %4170 = vmatpush2.msra.mxu0 0.0
      %4171 = vmatprep.subr.mxu0 0.0
      %4172 = vmatpush2.msra.mxu0 0.0
      %4173 = vmatprep.subr.mxu0 0.0
      %4174 = vmatpush2.msra.mxu0 0.0
      %4175 = vmatprep.subr.mxu0 0.0
      %4176 = vmatpush2.msra.mxu0 0.0
      %4177 = vmatprep.subr.mxu0 0.0
      %4178 = vmatpush2.msra.mxu0 0.0
      %4179 = vmatprep.mubr.f32.mxu0 0.0
      %4180 = vmatmul.mubr.f32.gmra.mxu0 %v4111
      %v4181 = vpop.f32.mrf.mxu0
      %v4182 = vadd.f32 0.0, %v4181
      %v4183 = vpop.f32.mrf.mxu0
      %4184 = vmatprep.mubr.f32.mxu0 0.0
      %4185 = vmatmul.mubr.f32.gmra.mxu0 %v4113
      %v4186 = vpop.f32.mrf.mxu0
      %v4187 = vadd.f32 0.0, %v4186
      %v4188 = vpop.f32.mrf.mxu0
      %4189 = vdwg.mxu0
      %v4190 = vadd.f32 %v4098, %v4182
      %v4191 = vadd.f32 %v4099, %v4187
      %4192 = vrot.lane.b32.xlu0 %v499, 88
      %v4193 = vpop.permute.xlu0 %4192
      %4194 = vrot.lane.b32.xlu0 %v503, 88
      %v4195 = vpop.permute.xlu0 %4194
      %4196 = vrot.lane.b32.xlu0 %v1087, 112
      %v4197 = vpop.permute.xlu0 %4196
      %v4199 = vsel %vm1099, %v4193, 0
      %v4201 = vsel %vm1099, %v4195, 0
      %4203 = vmatprep.subr.mxu0 0.0
      %4204 = vmatpush1.msra.mxu0 0.0
      %4205 = vmatprep.subr.mxu0 0.0
      %4206 = vmatpush1.msra.mxu0 0.0
      %4207 = vmatprep.subr.mxu0 0.0
      %4208 = vmatpush1.msra.mxu0 0.0
      %4209 = vmatprep.subr.mxu0 0.0
      %4210 = vmatpush1.msra.mxu0 0.0
      %4211 = vmatprep.subr.mxu0 0.0
      %4212 = vmatpush1.msra.mxu0 0.0
      %4213 = vmatprep.subr.mxu0 0.0
      %4214 = vmatpush1.msra.mxu0 0.0
      %4215 = vmatprep.subr.mxu0 0.0
      %4216 = vmatpush1.msra.mxu0 0.0
      %4217 = vmatprep.subr.mxu0 0.0
      %4218 = vmatpush1.msra.mxu0 0.0
      %4219 = vmatprep.subr.mxu0 0.0
      %4220 = vmatpush1.msra.mxu0 0.0
      %4221 = vmatprep.subr.mxu0 0.0
      %4222 = vmatpush1.msra.mxu0 0.0
      %4223 = vmatprep.subr.mxu0 0.0
      %4224 = vmatpush1.msra.mxu0 0.0
      %4225 = vmatprep.subr.mxu0 0.0
      %4226 = vmatpush1.msra.mxu0 0.0
      %4227 = vmatprep.subr.mxu0 0.0
      %4228 = vmatpush1.msra.mxu0 0.0
      %4229 = vmatprep.subr.mxu0 0.0
      %4230 = vmatpush1.msra.mxu0 0.0
      %4231 = vmatprep.subr.mxu0 0.0
      %4232 = vmatpush1.msra.mxu0 0.0
      %4233 = vmatprep.subr.mxu0 0.0
      %4234 = vmatpush1.msra.mxu0 %v4197
      %4235 = vmatprep.subr.mxu0 0.0
      %4236 = vmatpush2.msra.mxu0 0.0
      %4237 = vmatprep.subr.mxu0 0.0
      %4238 = vmatpush2.msra.mxu0 0.0
      %4239 = vmatprep.subr.mxu0 0.0
      %4240 = vmatpush2.msra.mxu0 0.0
      %4241 = vmatprep.subr.mxu0 0.0
      %4242 = vmatpush2.msra.mxu0 0.0
      %4243 = vmatprep.subr.mxu0 0.0
      %4244 = vmatpush2.msra.mxu0 0.0
      %4245 = vmatprep.subr.mxu0 0.0
      %4246 = vmatpush2.msra.mxu0 0.0
      %4247 = vmatprep.subr.mxu0 0.0
      %4248 = vmatpush2.msra.mxu0 0.0
      %4249 = vmatprep.subr.mxu0 0.0
      %4250 = vmatpush2.msra.mxu0 0.0
      %4251 = vmatprep.subr.mxu0 0.0
      %4252 = vmatpush2.msra.mxu0 0.0
      %4253 = vmatprep.subr.mxu0 0.0
      %4254 = vmatpush2.msra.mxu0 0.0
      %4255 = vmatprep.subr.mxu0 0.0
      %4256 = vmatpush2.msra.mxu0 0.0
      %4257 = vmatprep.subr.mxu0 0.0
      %4258 = vmatpush2.msra.mxu0 0.0
      %4259 = vmatprep.subr.mxu0 0.0
      %4260 = vmatpush2.msra.mxu0 0.0
      %4261 = vmatprep.subr.mxu0 0.0
      %4262 = vmatpush2.msra.mxu0 0.0
      %4263 = vmatprep.subr.mxu0 0.0
      %4264 = vmatpush2.msra.mxu0 0.0
      %4265 = vmatprep.subr.mxu0 0.0
      %4266 = vmatpush2.msra.mxu0 0.0
      %4267 = vmatprep.mubr.f32.mxu0 0.0
      %4268 = vmatmul.mubr.f32.gmra.mxu0 %v4199
      %v4269 = vpop.f32.mrf.mxu0
      %v4270 = vadd.f32 0.0, %v4269
      %v4271 = vpop.f32.mrf.mxu0
      %4272 = vmatprep.mubr.f32.mxu0 0.0
      %4273 = vmatmul.mubr.f32.gmra.mxu0 %v4201
      %v4274 = vpop.f32.mrf.mxu0
      %v4275 = vadd.f32 0.0, %v4274
      %v4276 = vpop.f32.mrf.mxu0
      %4277 = vdwg.mxu0
      %v4278 = vadd.f32 %v4190, %v4270
      %v4279 = vadd.f32 %v4191, %v4275
      %v4280 = vld [vmem:[%s3] sm:$0x1]
      %v4282 = vlaneseq
      %v4283 = vshrl.u32 %v4282, 7
      %v4284 = vsub.s32 0, %v4283
      %v4285 = vrot.slane %v4280, %v4284
      %v4287 = vadd.f32 %v4278, %v4285
      %v4288 = vadd.f32 %v4279, %v4285
      %v4289 = vmax.f32 %v4287, 0.0
      %v4290 = vmax.f32 %v4288, 0.0
      %v4291 = vld [vmem:[%s4] sm:$0xff]
      %v4292 = vld [vmem:[%s4 + $0x8] sm:$0xff]
      %v4293 = vld [vmem:[%s4 + $0x10] sm:$0xff]
      %v4294 = vld [vmem:[%s4 + $0x18] sm:$0xff]
      %v4295 = vld [vmem:[%s4 + $0x20] sm:$0xff]
      %v4296 = vld [vmem:[%s4 + $0x28] sm:$0xff]
      %v4297 = vld [vmem:[%s4 + $0x30] sm:$0xff]
      %v4298 = vld [vmem:[%s4 + $0x38] sm:$0xff]
      %v4299 = vld [vmem:[%s4 + $0x40] sm:$0xff]
      %v4300 = vld [vmem:[%s4 + $0x48] sm:$0xff]
      %v4301 = vld [vmem:[%s4 + $0x50] sm:$0xff]
      %v4302 = vld [vmem:[%s4 + $0x58] sm:$0xff]
      %v4304 = vsel %vm588, %v4289, 0
      %v4307 = vsel %vm588, %v4290, 0
      %4309 = vmatprep.subr.mxu0 0.0
      %4310 = vmatpush1.msra.mxu0 0.0
      %4311 = vmatprep.subr.mxu0 0.0
      %4312 = vmatpush1.msra.mxu0 0.0
      %4313 = vmatprep.subr.mxu0 0.0
      %4314 = vmatpush1.msra.mxu0 0.0
      %4315 = vmatprep.subr.mxu0 0.0
      %4316 = vmatpush1.msra.mxu0 0.0
      %4317 = vmatprep.subr.mxu0 0.0
      %4318 = vmatpush1.msra.mxu0 0.0
      %4319 = vmatprep.subr.mxu0 0.0
      %4320 = vmatpush1.msra.mxu0 0.0
      %4321 = vmatprep.subr.mxu0 0.0
      %4322 = vmatpush1.msra.mxu0 0.0
      %4323 = vmatprep.subr.mxu0 0.0
      %4324 = vmatpush1.msra.mxu0 0.0
      %4325 = vmatprep.subr.mxu0 0.0
      %4326 = vmatpush1.msra.mxu0 0.0
      %4327 = vmatprep.subr.mxu0 0.0
      %4328 = vmatpush1.msra.mxu0 0.0
      %4329 = vmatprep.subr.mxu0 %v4302
      %4330 = vmatpush1.msra.mxu0 %v4301
      %4331 = vmatprep.subr.mxu0 %v4300
      %4332 = vmatpush1.msra.mxu0 %v4299
      %4333 = vmatprep.subr.mxu0 %v4298
      %4334 = vmatpush1.msra.mxu0 %v4297
      %4335 = vmatprep.subr.mxu0 %v4296
      %4336 = vmatpush1.msra.mxu0 %v4295
      %4337 = vmatprep.subr.mxu0 %v4294
      %4338 = vmatpush1.msra.mxu0 %v4293
      %4339 = vmatprep.subr.mxu0 %v4292
      %4340 = vmatpush1.msra.mxu0 %v4291
      %4341 = vmatprep.subr.mxu0 0.0
      %4342 = vmatpush2.msra.mxu0 0.0
      %4343 = vmatprep.subr.mxu0 0.0
      %4344 = vmatpush2.msra.mxu0 0.0
      %4345 = vmatprep.subr.mxu0 0.0
      %4346 = vmatpush2.msra.mxu0 0.0
      %4347 = vmatprep.subr.mxu0 0.0
      %4348 = vmatpush2.msra.mxu0 0.0
      %4349 = vmatprep.subr.mxu0 0.0
      %4350 = vmatpush2.msra.mxu0 0.0
      %4351 = vmatprep.subr.mxu0 0.0
      %4352 = vmatpush2.msra.mxu0 0.0
      %4353 = vmatprep.subr.mxu0 0.0
      %4354 = vmatpush2.msra.mxu0 0.0
      %4355 = vmatprep.subr.mxu0 0.0
      %4356 = vmatpush2.msra.mxu0 0.0
      %4357 = vmatprep.subr.mxu0 0.0
      %4358 = vmatpush2.msra.mxu0 0.0
      %4359 = vmatprep.subr.mxu0 0.0
      %4360 = vmatpush2.msra.mxu0 0.0
      %4361 = vmatprep.subr.mxu0 0.0
      %4362 = vmatpush2.msra.mxu0 0.0
      %4363 = vmatprep.subr.mxu0 0.0
      %4364 = vmatpush2.msra.mxu0 0.0
      %4365 = vmatprep.subr.mxu0 0.0
      %4366 = vmatpush2.msra.mxu0 0.0
      %4367 = vmatprep.subr.mxu0 0.0
      %4368 = vmatpush2.msra.mxu0 0.0
      %4369 = vmatprep.subr.mxu0 0.0
      %4370 = vmatpush2.msra.mxu0 0.0
      %4371 = vmatprep.subr.mxu0 0.0
      %4372 = vmatpush2.msra.mxu0 0.0
      %4373 = vmatprep.mubr.f32.mxu0 0.0
      %4374 = vmatmul.mubr.f32.gmra.mxu0 %v4304
      %v4375 = vpop.f32.mrf.mxu0
      %v4376 = vadd.f32 0.0, %v4375
      %v4377 = vpop.f32.mrf.mxu0
      %v4378 = vadd.f32 0.0, %v4377
      %4379 = vmatprep.mubr.f32.mxu0 0.0
      %4380 = vmatmul.mubr.f32.gmra.mxu0 %v4307
      %v4381 = vpop.f32.mrf.mxu0
      %v4382 = vadd.f32 0.0, %v4381
      %v4383 = vpop.f32.mrf.mxu0
      %v4384 = vadd.f32 0.0, %v4383
      %4385 = vdwg.mxu0
      %v4386 = vadd.f32 %v496, %v4376
      %v4387 = vadd.f32 %v497, %v4378
      %v4388 = vadd.f32 %v500, %v4382
      %v4389 = vadd.f32 %v501, %v4384
      %v4390 = vld [vmem:[%s5] sm:$0xff]
      %v4391 = vld [vmem:[%s5 + $0x8] sm:$0xff]
      %v4392 = vld [vmem:[%s5 + $0x10] sm:$0xff]
      %v4393 = vld [vmem:[%s5 + $0x18] sm:$0xff]
      %v4394 = vld [vmem:[%s5 + $0x20] sm:$0xff]
      %v4395 = vld [vmem:[%s5 + $0x28] sm:$0xff]
      %v4396 = vld [vmem:[%s5 + $0x30] sm:$0xff]
      %v4397 = vld [vmem:[%s5 + $0x38] sm:$0xff]
      %v4398 = vld [vmem:[%s5 + $0x40] sm:$0xff]
      %v4399 = vld [vmem:[%s5 + $0x48] sm:$0xff]
      %v4400 = vld [vmem:[%s5 + $0x50] sm:$0xff]
      %v4401 = vld [vmem:[%s5 + $0x58] sm:$0xff]
      %v4402 = vld [vmem:[%s6] sm:$0x3]
      %v4404 = vlaneseq
      %v4405 = vshrl.u32 %v4404, 7
      %v4406 = vsub.s32 0, %v4405
      %v4407 = vrot.slane %v4402, %v4406
      %v4408 = vlaneseq
      %v4409 = vshrl.u32 %v4408, 7
      %v4410 = vsub.s32 1, %v4409
      %v4411 = vrot.slane %v4402, %v4410
      %v4415 = vsel %vm588, %v495, 0
      %4417 = vmatprep.subr.mxu0 0.0
      %4418 = vmatpush1.msra.mxu0 0.0
      %4419 = vmatprep.subr.mxu0 0.0
      %4420 = vmatpush1.msra.mxu0 0.0
      %4421 = vmatprep.subr.mxu0 0.0
      %4422 = vmatpush1.msra.mxu0 0.0
      %4423 = vmatprep.subr.mxu0 0.0
      %4424 = vmatpush1.msra.mxu0 0.0
      %4425 = vmatprep.subr.mxu0 0.0
      %4426 = vmatpush1.msra.mxu0 0.0
      %4427 = vmatprep.subr.mxu0 0.0
      %4428 = vmatpush1.msra.mxu0 0.0
      %4429 = vmatprep.subr.mxu0 0.0
      %4430 = vmatpush1.msra.mxu0 0.0
      %4431 = vmatprep.subr.mxu0 0.0
      %4432 = vmatpush1.msra.mxu0 0.0
      %4433 = vmatprep.subr.mxu0 0.0
      %4434 = vmatpush1.msra.mxu0 0.0
      %4435 = vmatprep.subr.mxu0 0.0
      %4436 = vmatpush1.msra.mxu0 0.0
      %4437 = vmatprep.subr.mxu0 %v4401
      %4438 = vmatpush1.msra.mxu0 %v4400
      %4439 = vmatprep.subr.mxu0 %v4399
      %4440 = vmatpush1.msra.mxu0 %v4398
      %4441 = vmatprep.subr.mxu0 %v4397
      %4442 = vmatpush1.msra.mxu0 %v4396
      %4443 = vmatprep.subr.mxu0 %v4395
      %4444 = vmatpush1.msra.mxu0 %v4394
      %4445 = vmatprep.subr.mxu0 %v4393
      %4446 = vmatpush1.msra.mxu0 %v4392
      %4447 = vmatprep.subr.mxu0 %v4391
      %4448 = vmatpush1.msra.mxu0 %v4390
      %4449 = vmatprep.subr.mxu0 0.0
      %4450 = vmatpush2.msra.mxu0 0.0
      %4451 = vmatprep.subr.mxu0 0.0
      %4452 = vmatpush2.msra.mxu0 0.0
      %4453 = vmatprep.subr.mxu0 0.0
      %4454 = vmatpush2.msra.mxu0 0.0
      %4455 = vmatprep.subr.mxu0 0.0
      %4456 = vmatpush2.msra.mxu0 0.0
      %4457 = vmatprep.subr.mxu0 0.0
      %4458 = vmatpush2.msra.mxu0 0.0
      %4459 = vmatprep.subr.mxu0 0.0
      %4460 = vmatpush2.msra.mxu0 0.0
      %4461 = vmatprep.subr.mxu0 0.0
      %4462 = vmatpush2.msra.mxu0 0.0
      %4463 = vmatprep.subr.mxu0 0.0
      %4464 = vmatpush2.msra.mxu0 0.0
      %4465 = vmatprep.subr.mxu0 0.0
      %4466 = vmatpush2.msra.mxu0 0.0
      %4467 = vmatprep.subr.mxu0 0.0
      %4468 = vmatpush2.msra.mxu0 0.0
      %4469 = vmatprep.subr.mxu0 0.0
      %4470 = vmatpush2.msra.mxu0 0.0
      %4471 = vmatprep.subr.mxu0 0.0
      %4472 = vmatpush2.msra.mxu0 0.0
      %4473 = vmatprep.subr.mxu0 0.0
      %4474 = vmatpush2.msra.mxu0 0.0
      %4475 = vmatprep.subr.mxu0 0.0
      %4476 = vmatpush2.msra.mxu0 0.0
      %4477 = vmatprep.subr.mxu0 0.0
      %4478 = vmatpush2.msra.mxu0 0.0
      %4479 = vmatprep.subr.mxu0 0.0
      %4480 = vmatpush2.msra.mxu0 0.0
      %4481 = vmatprep.mubr.f32.mxu0 0.0
      %4482 = vmatmul.mubr.f32.gmra.mxu0 %v590
      %v4483 = vpop.f32.mrf.mxu0
      %v4484 = vadd.f32 %v4407, %v4483
      %v4485 = vpop.f32.mrf.mxu0
      %v4486 = vadd.f32 %v4411, %v4485
      %4487 = vmatprep.mubr.f32.mxu0 0.0
      %4488 = vmatmul.mubr.f32.gmra.mxu0 %v4415
      %v4489 = vpop.f32.mrf.mxu0
      %v4490 = vadd.f32 %v4407, %v4489
      %v4491 = vpop.f32.mrf.mxu0
      %v4492 = vadd.f32 %v4411, %v4491
      %4493 = vdwg.mxu0
      %v4494 = vadd.f32 %v4386, %v4484
      %v4495 = vadd.f32 %v4388, %v4490
      %v4496 = vxor.u32 %v4494, 2147483648
      %v4497 = vxor.u32 %v4495, 2147483648
      %v4498 = vmul.f32 %v4496, 1.442695
      %v4499 = vpow.pop %v4498
      %v4500 = vmul.f32 %v4497, 1.442695
      %v4501 = vpow.pop %v4500
      %v4502 = vadd.f32 %v4499, 1.0
      %v4503 = vadd.f32 %v4501, 1.0
      %v4504 = vrcp.pop %v4502
      %v4505 = vmul.f32 1.0, %v4504
      %v4506 = vrcp.pop %v4503
      %v4507 = vmul.f32 1.0, %v4506
      %4512 = vrot.lane.b32.xlu0 %v4484, 32
      %v4513 = vpop.permute.xlu0 %4512
      %4514 = vrot.lane.b32.xlu0 %v4486, 32
      %v4515 = vpop.permute.xlu0 %4514
      %4516 = vrot.lane.b32.xlu0 %v4490, 32
      %v4517 = vpop.permute.xlu0 %4516
      %4518 = vrot.lane.b32.xlu0 %v4492, 32
      %v4519 = vpop.permute.xlu0 %4518
      %v4520 = vsel %vm1271, %v4513, %v4515
      %v4521 = vsel %vm1271, %v4517, %v4519
      %v4524 = vmul.f32 %v4505, %v4520
      %v4525 = vmul.f32 %v4507, %v4521
      %4528 = vrot.lane.b32.xlu0 %v4524, 96
      %v4529 = vpop.permute.xlu0 %4528
      %4530 = vrot.lane.b32.xlu0 %v4525, 96
      %v4531 = vpop.permute.xlu0 %4530
      %v4534 = vadd.f32 %v4386, %v4529
      %v4535 = vadd.f32 %v4387, %v4529
      %v4536 = vadd.f32 %v4388, %v4531
      %v4537 = vadd.f32 %v4389, %v4531
      %v4538 = vtanh.pop %v4534
      %v4539 = vtanh.pop %v4535
      %v4540 = vtanh.pop %v4536
      %v4541 = vtanh.pop %v4537
      %v4542 = vsub.f32 1.0, %v4505
      %v4543 = vsub.f32 1.0, %v4507
      %4548 = vrot.lane.b32.xlu0 %v4538, 80
      %v4549 = vpop.permute.xlu0 %4548
      %4550 = vrot.lane.b32.xlu0 %v4539, 80
      %v4551 = vpop.permute.xlu0 %4550
      %4552 = vrot.lane.b32.xlu0 %v4540, 80
      %v4553 = vpop.permute.xlu0 %4552
      %4554 = vrot.lane.b32.xlu0 %v4541, 80
      %v4555 = vpop.permute.xlu0 %4554
      %vm4556 = vcmask 654336
      %v4557 = vsel %vm4556, %v4549, %v4551
      %v4558 = vsel %vm4556, %v4553, %v4555
      %v4561 = vmul.f32 %v4542, %v4557
      %v4562 = vmul.f32 %v4543, %v4558
      %4563 = vrot.lane.b32.xlu0 %v494, 48
      %v4564 = vpop.permute.xlu0 %4563
      %4565 = vrot.lane.b32.xlu0 %v495, 48
      %v4566 = vpop.permute.xlu0 %4565
      %v4569 = vmul.f32 %v4505, %v4564
      %v4570 = vmul.f32 %v4507, %v4566
      %v4571 = vadd.f32 %v4561, %v4569
      %v4572 = vadd.f32 %v4562, %v4570
      %4575 = vrot.lane.b32.xlu0 %v4571, 80
      %v4576 = vpop.permute.xlu0 %4575
      %4577 = vrot.lane.b32.xlu0 %v4572, 80
      %v4578 = vpop.permute.xlu0 %4577
      %4581 = vst.msk [vmem:[#allocation2] sm:$0xff] %vm588, %v4576
      %vm4582 = vcmask 388096
      %4583 = vst.msk [vmem:[#allocation2 + $0x8] sm:$0xf] %vm4582, %v4578
      %v4584 = vld [vmem:[%s7] sm:$0x1]
      %v4586 = vlaneseq
      %v4587 = vshrl.u32 %v4586, 7
      %v4588 = vsub.s32 0, %v4587
      %v4589 = vrot.slane %v4584, %v4588
      %4590 = vrot.lane.b32.xlu0 %v4589, 48
      %v4591 = vpop.permute.xlu0 %4590
      %v4593 = vmul.f32 %v4571, %v4591
      %v4594 = vmul.f32 %v4572, %v4591
      %4597 = vrot.lane.b32.xlu0 %v4593, 80
      %v4598 = vpop.permute.xlu0 %4597
      %4599 = vrot.lane.b32.xlu0 %v4594, 80
      %v4600 = vpop.permute.xlu0 %4599
      %v4603 = vsel %vm588, %v4598, 0.0
      %4604 = vadd.xlane.f32.xlu0 %v4603
      %v4605 = vpop.xlane.xlu0 %4604
      %v4606 = vsel %vm4582, %v4600, 0.0
      %4607 = vadd.xlane.f32.xlu0 %v4606
      %v4608 = vpop.xlane.xlu0 %4607
      %v4609 = vld [vmem:[#allocation4] sm:$0x1]
      %v4611 = vlaneseq
      %v4612 = vshrl.u32 %v4611, 7
      %v4613 = vsub.s32 0, %v4612
      %v4614 = vrot.slane %v4609, %v4613
      %v4616 = vadd.f32 %v4605, %v4614
      %v4617 = vadd.f32 %v4608, %v4614
      // Predicated region
      $region69: #{refine_forward.7} parent=63 // pred_check
        %p4618 = pneg %p483
      $region70: #{refine_forward.7} parent=63 // pred_check_branch
        %4620 = sbr.rel (%p4618) target = $region72
      $region71: #{refine_forward.7} parent=63 // pred_region
        %vm4621 = vcmask 7168
        %4622 = vst.msk [vmem:[#allocation3] sm:$0xff] %vm4621, %v4616
        %vm4623 = vcmask 3072
        %4624 = vst.msk [vmem:[#allocation3 + $0x8] sm:$0xf] %vm4623, %v4617
      $region72: #{refine_forward.7} parent=63 // pred_fallthru
        _
      %p4625 = scmp.ne.s32.totalorder %s33, 0
      // Predicated region
      $region73: #{refine_forward.7} parent=63 // pred_check
        %p4626 = pneg %p4625
      $region74: #{refine_forward.7} parent=63 // pred_check_branch
        %4628 = sbr.rel (%p4626) target = $region76
      $region75: #{refine_forward.7} parent=63 // pred_region
        %v4629 = vld [vmem:[#allocation3] sm:$0xff]
        %v4630 = vld [vmem:[#allocation3 + $0x8] sm:$0xf]
        %v4631 = vadd.f32 %v4629, %v4616
        %v4632 = vadd.f32 %v4630, %v4617
        %vm4633 = vcmask 7168
        %4634 = vst.msk [vmem:[#allocation3] sm:$0xff] %vm4633, %v4631
        %vm4635 = vcmask 3072
        %4636 = vst.msk [vmem:[#allocation3 + $0x8] sm:$0xf] %vm4635, %v4632
      $region76: #{refine_forward.7} parent=63 // pred_fallthru
        _
      %p4637 = scmp.eq.s32.totalorder %s33, 7
      %p4638 = pnand %p482, %p4637
      %p4639 = pneg %p4638
      // Predicated region
      $region77: #{refine_forward.7} parent=63 // pred_check
        _
      $region78: #{refine_forward.7} parent=63 // pred_check_branch
        %4641 = sbr.rel (%p4638) target = $region80
      $region79: #{refine_forward.7} parent=63 // pred_region
        %v4642 = vld [vmem:[%s9] sm:$0xff]
        %v4643 = vld [vmem:[%s9 + $0x8] sm:$0xff]
        %v4644 = vld [vmem:[%s9 + $0x10] sm:$0xff]
        %v4645 = vld [vmem:[%s9 + $0x18] sm:$0xff]
        %v4646 = vld [vmem:[%s9 + $0x20] sm:$0xff]
        %v4647 = vld [vmem:[%s9 + $0x28] sm:$0xff]
        %v4648 = vld [vmem:[%s10] sm:$0x1]
        %v4650 = vlaneseq
        %v4651 = vshrl.u32 %v4650, 7
        %v4652 = vsub.s32 0, %v4651
        %v4653 = vrot.slane %v4648, %v4652
        %v4655 = vsel %vm588, %v4576, 0
        %v4657 = vsel %vm588, %v4578, 0
        %4659 = vmatprep.subr.mxu0 0.0
        %4660 = vmatpush1.msra.mxu0 0.0
        %4661 = vmatprep.subr.mxu0 0.0
        %4662 = vmatpush1.msra.mxu0 0.0
        %4663 = vmatprep.subr.mxu0 0.0
        %4664 = vmatpush1.msra.mxu0 0.0
        %4665 = vmatprep.subr.mxu0 0.0
        %4666 = vmatpush1.msra.mxu0 0.0
        %4667 = vmatprep.subr.mxu0 0.0
        %4668 = vmatpush1.msra.mxu0 0.0
        %4669 = vmatprep.subr.mxu0 0.0
        %4670 = vmatpush1.msra.mxu0 0.0
        %4671 = vmatprep.subr.mxu0 0.0
        %4672 = vmatpush1.msra.mxu0 0.0
        %4673 = vmatprep.subr.mxu0 0.0
        %4674 = vmatpush1.msra.mxu0 0.0
        %4675 = vmatprep.subr.mxu0 0.0
        %4676 = vmatpush1.msra.mxu0 0.0
        %4677 = vmatprep.subr.mxu0 0.0
        %4678 = vmatpush1.msra.mxu0 0.0
        %4679 = vmatprep.subr.mxu0 0.0
        %4680 = vmatpush1.msra.mxu0 %v4647
        %4681 = vmatprep.subr.mxu0 0.0
        %4682 = vmatpush1.msra.mxu0 %v4646
        %4683 = vmatprep.subr.mxu0 0.0
        %4684 = vmatpush1.msra.mxu0 %v4645
        %4685 = vmatprep.subr.mxu0 0.0
        %4686 = vmatpush1.msra.mxu0 %v4644
        %4687 = vmatprep.subr.mxu0 0.0
        %4688 = vmatpush1.msra.mxu0 %v4643
        %4689 = vmatprep.subr.mxu0 0.0
        %4690 = vmatpush1.msra.mxu0 %v4642
        %4691 = vmatprep.subr.mxu0 0.0
        %4692 = vmatpush2.msra.mxu0 0.0
        %4693 = vmatprep.subr.mxu0 0.0
        %4694 = vmatpush2.msra.mxu0 0.0
        %4695 = vmatprep.subr.mxu0 0.0
        %4696 = vmatpush2.msra.mxu0 0.0
        %4697 = vmatprep.subr.mxu0 0.0
        %4698 = vmatpush2.msra.mxu0 0.0
        %4699 = vmatprep.subr.mxu0 0.0
        %4700 = vmatpush2.msra.mxu0 0.0
        %4701 = vmatprep.subr.mxu0 0.0
        %4702 = vmatpush2.msra.mxu0 0.0
        %4703 = vmatprep.subr.mxu0 0.0
        %4704 = vmatpush2.msra.mxu0 0.0
        %4705 = vmatprep.subr.mxu0 0.0
        %4706 = vmatpush2.msra.mxu0 0.0
        %4707 = vmatprep.subr.mxu0 0.0
        %4708 = vmatpush2.msra.mxu0 0.0
        %4709 = vmatprep.subr.mxu0 0.0
        %4710 = vmatpush2.msra.mxu0 0.0
        %4711 = vmatprep.subr.mxu0 0.0
        %4712 = vmatpush2.msra.mxu0 0.0
        %4713 = vmatprep.subr.mxu0 0.0
        %4714 = vmatpush2.msra.mxu0 0.0
        %4715 = vmatprep.subr.mxu0 0.0
        %4716 = vmatpush2.msra.mxu0 0.0
        %4717 = vmatprep.subr.mxu0 0.0
        %4718 = vmatpush2.msra.mxu0 0.0
        %4719 = vmatprep.subr.mxu0 0.0
        %4720 = vmatpush2.msra.mxu0 0.0
        %4721 = vmatprep.subr.mxu0 0.0
        %4722 = vmatpush2.msra.mxu0 0.0
        %4723 = vmatprep.mubr.f32.mxu0 0.0
        %4724 = vmatmul.mubr.f32.gmra.mxu0 %v4655
        %v4725 = vpop.f32.mrf.mxu0
        %v4726 = vadd.f32 %v4653, %v4725
        %v4727 = vpop.f32.mrf.mxu0
        %4728 = vmatprep.mubr.f32.mxu0 0.0
        %4729 = vmatmul.mubr.f32.gmra.mxu0 %v4657
        %v4730 = vpop.f32.mrf.mxu0
        %v4731 = vadd.f32 %v4653, %v4730
        %v4732 = vpop.f32.mrf.mxu0
        %4733 = vdwg.mxu0
        %v4734 = vmax.f32 %v4726, 0.0
        %v4735 = vmax.f32 %v4731, 0.0
        %4736 = vst.msk [vmem:[%s476] sm:$0xff] %vm4556, %v4734
        %vm4737 = vcmask 650240
        %4738 = vst.msk [vmem:[%s476 + $0x8] sm:$0xf] %vm4737, %v4735
        %v4739 = vld [vmem:[#allocation3] sm:$0xff]
        %v4740 = vld [vmem:[#allocation3 + $0x8] sm:$0xf]
        %vm4741 = vcmask 7168
        %4742 = vst.msk [vmem:[%s481] sm:$0xff] %vm4741, %v4739
        %vm4743 = vcmask 3072
        %4744 = vst.msk [vmem:[%s481 + $0x8] sm:$0xf] %vm4743, %v4740
      $region80: #{refine_forward.7} parent=63 // pred_fallthru
        _
      %p4745 = scmp.lt.s32.totalorder %s31, 1
      %s4746 = scalar_select %p4745, %s31, 1
      %s4747 = smul.addr %s4746, 2
      %s4748 = smul.addr %s4747, 8
      %s4749 = scalar_lea.vmem %s11, %s4748
      %p4750 = scmp.lt.s32.totalorder %s31, 1
      %s4751 = scalar_select %p4750, %s31, 1
      %s4752 = smul.addr %s4751, 2
      %s4753 = smul.addr %s4752, 8
      %s4754 = scalar_lea.vmem %s12, %s4753
      // Predicated region
      $region81: #{refine_forward.7} parent=63 // pred_check
        %p4755 = pneg %p306
      $region82: #{refine_forward.7} parent=63 // pred_check_branch
        %4757 = sbr.rel (%p4755) target = $region84
      $region83: #{refine_forward.7} parent=63 // pred_region
        _
      $region84: #{refine_forward.7} parent=63 // pred_fallthru
        _
      // Predicated region
      $region85: #{refine_forward.7} parent=63 // pred_check
        %p4758 = pneg %p332
      $region86: #{refine_forward.7} parent=63 // pred_check_branch
        %4760 = sbr.rel (%p4758) target = $region88
      $region87: #{refine_forward.7} parent=63 // pred_region
        _
      $region88: #{refine_forward.7} parent=63 // pred_fallthru
        _
    $region64: #{refine_forward.7} parent=5 // pred_fallthru
      _
    %p4761 = scmp.le.s32.totalorder 2, %s21
    // Predicated region
    $region89: #{refine_forward.7} parent=5 // pred_check
      %p4762 = pneg %p4761
    $region90: #{refine_forward.7} parent=5 // pred_check_branch
      %4764 = sbr.rel (%p4762) target = $region92
    $region91: #{refine_forward.7} parent=5 // pred_region
      %s4765 = ssub.s32 %s21, 2
      // Predicated region
      $region93: #{refine_forward.7} parent=91 // pred_check
        %p4766 = pneg %p312
      $region94: #{refine_forward.7} parent=91 // pred_check_branch
        %4768 = sbr.rel (%p4766) target = $region96
      $region95: #{refine_forward.7} parent=91 // pred_region
        %p4769 = scmp.lt.s32.totalorder %s34, 1
        %s4770 = scalar_select %p4769, %s34, 1
        %s4771 = smul.addr %s4770, 2
        %s4772 = smul.addr %s4771, 8
        %s4773 = scalar_lea.vmem %s11, %s4772
      $region96: #{refine_forward.7} parent=91 // pred_fallthru
        _
      // Predicated region
      $region97: #{refine_forward.7} parent=91 // pred_check
        %p4774 = pneg %p338
      $region98: #{refine_forward.7} parent=91 // pred_check_branch
        %4776 = sbr.rel (%p4774) target = $region100
      $region99: #{refine_forward.7} parent=91 // pred_region
        %p4777 = scmp.lt.s32.totalorder %s34, 1
        %s4778 = scalar_select %p4777, %s34, 1
        %s4779 = smul.addr %s4778, 2
        %s4780 = smul.addr %s4779, 8
        %s4781 = scalar_lea.vmem %s12, %s4780
      $region100: #{refine_forward.7} parent=91 // pred_fallthru
        _
    $region92: #{refine_forward.7} parent=5 // pred_fallthru
      _
  $region6: #{refine_forward.7} parent=0 // loop_footer
    %s25 = sadd.s32 1, %s21
  $region7: #{refine_forward.7} parent=0 // loop_footer_branch
    %20 = sbr.rel target = $region3
  $region8: #{refine_forward.7} parent=0 // loop_exit
    _

</llo_original>
